<compile_context>
chip_gen: v6e
topology: v6e:2x2x1
jax: 0.10.0
libtpu: 0.0.40
codegen_flags: <defaults>
</compile_context>

<pallas_src>
import functools

import jax
import jax.numpy as jnp
from jax import lax
from jax.experimental import pallas as pl
from jax.experimental.pallas import tpu as pltpu

_VMEM_LIMIT = 64 * 1024 * 1024
_COMPUTE_DTYPE = jnp.bfloat16


def _round_up(x, m):
    return (x + m - 1) // m * m


def _pick_row_tile(ho):
    """Largest pooled-row tile <= 64 that evenly divides ho (whole image if none)."""
    for t in (64, 32, 16, 8):
        if ho % t == 0:
            return t
    return ho


# ---------------------------------------------------------------------------
# Fused encoder weight: PyTorch conv (Cout, Cin, 3, 3) -> (4*c4_pad, 4*Cout_pad)
# Rows index the 2x2 space-to-depth neighbourhood (p, q, a, b, ci); columns
# index (pool position dh*2+dw, padded output channel).
# ---------------------------------------------------------------------------

def _build_enc_weight(w_oihw, c4_pad, cout_pad):
    cout, cin = w_oihw.shape[0], w_oihw.shape[1]
    blk = jnp.zeros((2, 2, c4_pad, 2, 2, cout_pad), jnp.float32)
    for dh in range(2):
        for dw in range(2):
            for p in range(2):
                for q in range(2):
                    for a in range(2):
                        for b in range(2):
                            kh = 2 * p + a - dh
                            kw = 2 * q + b - dw
                            if 0 <= kh < 3 and 0 <= kw < 3:
                                c0 = (a * 2 + b) * cin
                                blk = blk.at[p, q, c0:c0 + cin, dh, dw, :cout].set(
                                    jnp.transpose(w_oihw[:, :, kh, kw]))
    return blk.reshape(4 * c4_pad, 4 * cout_pad)


# ---------------------------------------------------------------------------
# Encoder kernels: fused conv3x3(pad=1) + ReLU + maxpool2x2
# ---------------------------------------------------------------------------

def _enc_gather_kernel(p_ref, w_ref, b_ref, o_ref):
    """Small-Cin stage (pre-gathered taps): one (M, K)x(K, 4*cp) dot.

    p_ref: (1, th, wz, kp) bf16;  w_ref: (kp, 4*cp) bf16;
    b_ref: (1, cp) f32;           o_ref: (1, th, wz, cp) bf16.
    """
    th, wz, cp = o_ref.shape[1], o_ref.shape[2], o_ref.shape[3]
    kp = p_ref.shape[3]

    a = p_ref[0].reshape(th * wz, kp)                 # wz % 8 == 0 -> layout-free
    y = jnp.dot(a, w_ref[...], preferred_element_type=jnp.float32)

    # 2x2 max-pool = max over the four 128-aligned column groups.
    m = jnp.maximum(jnp.maximum(y[:, 0 * cp:1 * cp], y[:, 1 * cp:2 * cp]),
                    jnp.maximum(y[:, 2 * cp:3 * cp], y[:, 3 * cp:4 * cp]))
    # Bias + ReLU hoisted after the max (shared bias, monotone ReLU).
    m = jnp.maximum(m + b_ref[...], 0.0)
    o_ref[0] = m.reshape(th, wz, cp).astype(o_ref.dtype)


def _enc_s2d_kernel(z0_ref, z1_ref, w_ref, b_ref, o_ref):
    """Wide-Cin stage: four K-chunk dots over the 2x2 s2d neighbourhood.

    z0_ref, z1_ref: (1, Ho+1, wz, c4p) bf16 (z1 = z0 shifted by one s2d col);
    w_ref: (4*c4p, 4*cp) bf16;  b_ref: (1, cp) f32;  o_ref: (1, Ho, wz, cp) bf16.
    """
    ho, wz, cp = o_ref.shape[1], o_ref.shape[2], o_ref.shape[3]
    c4p = z0_ref.shape[3]
    m = ho * wz

    z0 = z0_ref[0]                                    # (Ho+1, wz, c4p)
    z1 = z1_ref[0]
    a00 = z0[0:ho].reshape(m, c4p)                    # (p,q) = (0,0)
    a01 = z1[0:ho].reshape(m, c4p)                    # (0,1)
    a10 = z0[1:ho + 1].reshape(m, c4p)                # (1,0)
    a11 = z1[1:ho + 1].reshape(m, c4p)                # (1,1)

    y = jnp.dot(a00, w_ref[0 * c4p:1 * c4p, :], preferred_element_type=jnp.float32)
    y += jnp.dot(a01, w_ref[1 * c4p:2 * c4p, :], preferred_element_type=jnp.float32)
    y += jnp.dot(a10, w_ref[2 * c4p:3 * c4p, :], preferred_element_type=jnp.float32)
    y += jnp.dot(a11, w_ref[3 * c4p:4 * c4p, :], preferred_element_type=jnp.float32)

    mx = jnp.maximum(jnp.maximum(y[:, 0 * cp:1 * cp], y[:, 1 * cp:2 * cp]),
                     jnp.maximum(y[:, 2 * cp:3 * cp], y[:, 3 * cp:4 * cp]))
    mx = jnp.maximum(mx + b_ref[...], 0.0)
    o_ref[0] = mx.reshape(ho, wz, cp).astype(o_ref.dtype)


# ---------------------------------------------------------------------------
# Decoder kernel: ConvTranspose2d(k=2, s=2) == per-pixel matmul (+ fused sigmoid)
# ---------------------------------------------------------------------------

def _dec_kernel(x_ref, w_ref, b_ref, o_ref, *, apply_sigmoid):
    """x_ref: (tm, cin) bf16;  w_ref: (cin, 4*cp) bf16;  b_ref: (1, 4*cp) f32;
    o_ref: (tm, 4*cp) bf16 (f32 for the sigmoid head)."""
    y = jnp.dot(x_ref[...], w_ref[...], preferred_element_type=jnp.float32)
    y = y + b_ref[...]
    if apply_sigmoid:
        # exp + approximate reciprocal both land on the EUP slot.
        y = pl.reciprocal(1.0 + jnp.exp(-y), approx=True)
    o_ref[...] = y.astype(o_ref.dtype)


# ---------------------------------------------------------------------------
# Stage wrappers (HBM glue + pallas_call)
# ---------------------------------------------------------------------------

def _enc_stage_gather(x, st, compute_dtype=_COMPUTE_DTYPE):
    """Encoder stage with small Cin (e.g. 3): all 16 taps pre-gathered, K=128."""
    n, h, wd, cin = x.shape
    cout, cp = st["cout"], st["cp"]
    wf, bias = st["w"], st["b"]
    kp = wf.shape[0]
    ho, wo = h // 2, wd // 2
    hq, wq = ho + 1, wo + 1
    wz = _round_up(wo, 8)

    # Glue: zero border, 2x2 space-to-depth, gather the 2x2 s2d neighbourhood
    # (= the full 4x4 conv+pool receptive field), pad K once to 128.
    xp = jnp.pad(x, ((0, 0), (1, 1), (1, 1), (0, 0)))
    z = xp.reshape(n, hq, 2, wq, 2, cin).transpose(0, 1, 3, 2, 4, 5)
    z = z.reshape(n, hq, wq, 4 * cin)
    patch = jnp.concatenate(
        [z[:, :ho, :wo], z[:, :ho, 1:wo + 1],
         z[:, 1:, :wo], z[:, 1:, 1:wo + 1]], axis=-1)          # (n, ho, wo, 16*cin)
    patch = jnp.pad(patch, ((0, 0), (0, 0), (0, wz - wo), (0, kp - 16 * cin)))
    patch = patch.astype(compute_dtype)

    th = _pick_row_tile(ho)                                    # parallel row tiles
    out = pl.pallas_call(
        _enc_gather_kernel,
        out_shape=jax.ShapeDtypeStruct((n, ho, wz, cp), compute_dtype),
        grid=(n, ho // th),
        in_specs=[
            pl.BlockSpec((1, th, wz, kp), lambda i, t: (i, t, 0, 0)),
            pl.BlockSpec((kp, 4 * cp), lambda i, t: (0, 0)),
            pl.BlockSpec((1, cp), lambda i, t: (0, 0)),
        ],
        out_specs=pl.BlockSpec((1, th, wz, cp), lambda i, t: (i, t, 0, 0)),
        compiler_params=pltpu.CompilerParams(
            dimension_semantics=("parallel", "parallel"),
            vmem_limit_bytes=_VMEM_LIMIT),
    )(patch, wf, bias)
    return out[:, :, :wo, :cout]


def _enc_stage_s2d(x, st, compute_dtype=_COMPUTE_DTYPE):
    """Encoder stage with wide Cin: two s2d slabs, four K-chunk dots per image."""
    n, h, wd, cin = x.shape
    cout, cp = st["cout"], st["cp"]
    wf, bias = st["w"], st["b"]
    c4p = wf.shape[0] // 4
    ho, wo = h // 2, wd // 2
    hq, wq = ho + 1, wo + 1
    wz = _round_up(wq, 8)

    xp = jnp.pad(x, ((0, 0), (1, 1), (1, 1), (0, 0)))
    z = xp.reshape(n, hq, 2, wq, 2, cin).transpose(0, 1, 3, 2, 4, 5)
    z = z.reshape(n, hq, wq, 4 * cin)
    z0 = jnp.pad(z, ((0, 0), (0, 0), (0, wz - wq), (0, c4p - 4 * cin)))
    # TODO(synk): z1 duplicates z0 shifted by one s2d column (2x encoder input
    #             HBM reads); replace with an in-kernel sublane roll/shift once
    #             pltpu.roll of packed-bf16 sublane tiles is validated on-device.
    z1 = jnp.pad(z[:, :, 1:, :],
                 ((0, 0), (0, 0), (0, wz - wq + 1), (0, c4p - 4 * cin)))
    z0 = z0.astype(compute_dtype)
    z1 = z1.astype(compute_dtype)

    out = pl.pallas_call(
        _enc_s2d_kernel,
        out_shape=jax.ShapeDtypeStruct((n, ho, wz, cp), compute_dtype),
        grid=(n,),
        in_specs=[
            pl.BlockSpec((1, hq, wz, c4p), lambda i: (i, 0, 0, 0)),
            pl.BlockSpec((1, hq, wz, c4p), lambda i: (i, 0, 0, 0)),
            pl.BlockSpec((4 * c4p, 4 * cp), lambda i: (0, 0)),
            pl.BlockSpec((1, cp), lambda i: (0, 0)),
        ],
        out_specs=pl.BlockSpec((1, ho, wz, cp), lambda i: (i, 0, 0, 0)),
        compiler_params=pltpu.CompilerParams(
            dimension_semantics=("parallel",),
            vmem_limit_bytes=_VMEM_LIMIT),
    )(z0, z1, wf, bias)
    # TODO(synk): for very large images these stages also need a spatial
    #             row-tile grid axis (blocks overlapping by one s2d row).
    return out[:, :, :wo, :cout]


def _dec_stage(x, st, compute_dtype=_COMPUTE_DTYPE):
    """ConvTranspose2d(k=2, s=2): batch folded into M, M row-tiled on the grid."""
    n, hi, wi, cin = x.shape
    cout, cp = st["cout"], st["cp"]
    wf, bias = st["w"], st["b"]
    assert wf.shape[0] == cin

    m = n * hi * wi
    tm = min(512, _round_up(m, 8))
    m_pad = _round_up(m, tm)
    xf = x.reshape(m, cin)
    if m_pad != m:
        xf = jnp.pad(xf, ((0, m_pad - m), (0, 0)))
    xf = xf.astype(compute_dtype)

    out_dtype = jnp.float32 if st["sigmoid"] else compute_dtype
    out = pl.pallas_call(
        functools.partial(_dec_kernel, apply_sigmoid=st["sigmoid"]),
        out_shape=jax.ShapeDtypeStruct((m_pad, 4 * cp), out_dtype),
        grid=(m_pad // tm,),
        in_specs=[
            pl.BlockSpec((tm, cin), lambda t: (t, 0)),
            pl.BlockSpec((cin, 4 * cp), lambda t: (0, 0)),
            pl.BlockSpec((1, 4 * cp), lambda t: (0, 0)),
        ],
        out_specs=pl.BlockSpec((tm, 4 * cp), lambda t: (t, 0)),
        compiler_params=pltpu.CompilerParams(
            dimension_semantics=("parallel",),
            vmem_limit_bytes=_VMEM_LIMIT),
    )(xf, wf, bias)

    # Depth-to-space glue: (a, b, co) columns -> (2*hi, 2*wi, cp).
    y = out[:m].reshape(n, hi, wi, 2, 2, cp).transpose(0, 1, 3, 2, 4, 5)
    y = y.reshape(n, 2 * hi, 2 * wi, cp)
    if st["sigmoid"]:
        y = y[..., :cout]          # drop head padding; intermediates carry cp
    return y


# ---------------------------------------------------------------------------
# One-time parameter preparation (fused, lane-dense weight layouts)
# ---------------------------------------------------------------------------

def prepare_dwm_params(params, compute_dtype=_COMPUTE_DTYPE):
    enc_params, dec_params = params
    enc_prep = []
    for (w, b) in enc_params:
        cout, cin = int(w.shape[0]), int(w.shape[1])
        cp = _round_up(cout, 128)
        if 16 * cin <= 128:
            # Small-Cin stage: all 16 taps pre-gathered in glue; K padded to 128.
            kp = 128
            wf = _build_enc_weight(w, 4 * cin, cp)              # (16*cin, 4*cp)
            wf = jnp.pad(wf, ((0, kp - 16 * cin), (0, 0)))
            mode = "gather"
        else:
            c4p = _round_up(4 * cin, 128)
            wf = _build_enc_weight(w, c4p, cp)                  # (4*c4p, 4*cp)
            mode = "s2d"
        bias = jnp.pad(b, (0, cp - cout)).reshape(1, cp).astype(jnp.float32)
        enc_prep.append(dict(mode=mode, cout=cout, cp=cp,
                             w=wf.astype(compute_dtype), b=bias))

    dec_prep = []
    in_ch = int(dec_params[0][0].shape[0])      # encoder output channels (exact)
    n_dec = len(dec_params)
    for idx, (w, b) in enumerate(dec_params):
        cin, cout = int(w.shape[0]), int(w.shape[1])
        is_last = idx == n_dec - 1
        # Head padded to 32 out-channels so 4*cp = 128 lanes (unmasked stores);
        # intermediate stages padded to 128 and the padding carried forward.
        cp = _round_up(cout, 32) if is_last else _round_up(cout, 128)
        wt = jnp.transpose(w, (0, 2, 3, 1))                     # (cin, 2, 2, cout)
        wt = jnp.pad(wt, ((0, in_ch - cin), (0, 0), (0, 0), (0, cp - cout)))
        wf = wt.reshape(in_ch, 4 * cp).astype(compute_dtype)
        bias = jnp.tile(jnp.pad(b, (0, cp - cout)), 4).reshape(1, 4 * cp)
        dec_prep.append(dict(cout=cout, cp=cp, sigmoid=is_last,
                             w=wf, b=bias.astype(jnp.float32)))
        in_ch = cp
    return dict(enc=enc_prep, dec=dec_prep)


# ---------------------------------------------------------------------------
# DWM forward (Encoder -> Decoder -> sigmoid), NCHW interface like PyTorch
# ---------------------------------------------------------------------------

def dwm_forward(x_nchw, prepared):
    x = jnp.transpose(x_nchw, (0, 2, 3, 1))                    # NCHW -> NHWC
    for st in prepared["enc"]:
        x = _enc_stage_gather(x, st) if st["mode"] == "gather" else _enc_stage_s2d(x, st)
    for st in prepared["dec"]:
        x = _dec_stage(x, st)
    return jnp.transpose(x, (0, 3, 1, 2))                      # NHWC -> NCHW


def init_params(key):
    enc_specs = [(64, 3), (128, 64), (256, 128)]    # (Cout, Cin) conv3x3
    dec_specs = [(256, 128), (128, 64), (64, 2)]    # (Cin, Cout) convtranspose2x2
    enc, dec = [], []
    for cout, cin in enc_specs:
        key, kw, kb = jax.random.split(key, 3)
        w = jax.random.normal(kw, (cout, cin, 3, 3), jnp.float32) / jnp.sqrt(9.0 * cin)
        bb = 0.01 * jax.random.normal(kb, (cout,), jnp.float32)
        enc.append((w, bb))
    for cin, cout in dec_specs:
        key, kw, kb = jax.random.split(key, 3)
        w = jax.random.normal(kw, (cin, cout, 2, 2), jnp.float32) / jnp.sqrt(float(cin))
        bb = 0.01 * jax.random.normal(kb, (cout,), jnp.float32)
        dec.append((w, bb))
    return enc, dec


def dwm_reference(x_nchw, params):
    """Pure-JAX reference matching the PyTorch DWM semantics."""
    enc_params, dec_params = params
    x = jnp.transpose(x_nchw, (0, 2, 3, 1))
    for (w, b) in enc_params:
        w_hwio = jnp.transpose(w, (2, 3, 1, 0))
        y = lax.conv_general_dilated(
            x, w_hwio, window_strides=(1, 1), padding="SAME",
            dimension_numbers=("NHWC", "HWIO", "NHWC"))
        y = jnp.maximum(y + b, 0.0)
        x = lax.reduce_window(y, -jnp.inf, lax.max,
                              (1, 2, 2, 1), (1, 2, 2, 1), "VALID")
    last = len(dec_params) - 1
    for i, (w, b) in enumerate(dec_params):
        n, hi, wi, _ = x.shape
        cout = w.shape[1]
        y = jnp.einsum('nijc,coab->nijabo', x, w)
        y = y.transpose(0, 1, 3, 2, 4, 5).reshape(n, 2 * hi, 2 * wi, cout) + b
        x = jax.nn.sigmoid(y) if i == last else y
    return jnp.transpose(x, (0, 3, 1, 2))


if __name__ == "__main__":
    key = jax.random.PRNGKey(0)
    key, kx = jax.random.split(key)
    x = jax.random.normal(kx, (2, 3, 16, 16), jnp.float32)     # NCHW, like PyTorch
    params = init_params(key)

    prepared = prepare_dwm_params(params)                      # one-time weight prep
    fwd = jax.jit(lambda xx: dwm_forward(xx, prepared))

    weight_map = jax.block_until_ready(fwd(x))
    assert weight_map.shape == (2, 2, 16, 16), weight_map.shape

    # UNetPCSDG front-end then modulates the image with the two maps (plain
    # element-wise products); the resnet encoder consuming them is out of
    # scope (see TODO at the top).
    image_content = x * weight_map[:, 0:1, :, :]
    image_style = x * weight_map[:, 1:2, :, :]
    jax.block_until_ready((image_content, image_style))

    ref = jax.block_until_ready(dwm_reference(x, params))
    max_err = float(jnp.max(jnp.abs(weight_map - ref)))
    assert jnp.allclose(weight_map, ref, atol=2e-2, rtol=2e-2), max_err

    print("KERNEL_OK")
</pallas_src>

<mosaic_0001>
module attributes {stable_mosaic.version = 11 : i64} {
  func.func @_enc_gather_kernel(%arg0: i32, %arg1: i32, %arg2: memref<1x8x8x128xbf16, #tpu.memory_space<vmem>>, %arg3: memref<128x512xbf16, #tpu.memory_space<vmem>>, %arg4: memref<1x128xf32, #tpu.memory_space<vmem>>, %arg5: memref<1x8x8x128xbf16, #tpu.memory_space<vmem>>) attributes {dimension_semantics = [#tpu.dimension_semantics<parallel>, #tpu.dimension_semantics<parallel>], iteration_bounds = array<i64: 2, 1>, scalar_prefetch = 0 : i64, scratch_operands = 0 : i64, tpu.core_type = #tpu.core_type<tc>, window_params = [{transform_indices = @transform_0, window_bounds = array<i64: 1, 8, 8, 128>}, {pipeline_mode = #tpu.pipeline_mode<synchronous>, transform_indices = @transform_1, window_bounds = array<i64: 128, 512>}, {pipeline_mode = #tpu.pipeline_mode<synchronous>, transform_indices = @transform_2, window_bounds = array<i64: 1, 128>}, {transform_indices = @transform_3, window_bounds = array<i64: 1, 8, 8, 128>}]} {
    %c0 = arith.constant 0 : index
    %c0_0 = arith.constant 0 : index
    %c0_1 = arith.constant 0 : index
    %c0_2 = arith.constant 0 : index
    %0 = vector.load %arg2[%c0, %c0_0, %c0_1, %c0_2] : memref<1x8x8x128xbf16, #tpu.memory_space<vmem>>, vector<1x8x8x128xbf16>
    %1 = vector.shape_cast %0 : vector<1x8x8x128xbf16> to vector<8x8x128xbf16>
    %2 = vector.shape_cast %1 : vector<8x8x128xbf16> to vector<64x128xbf16>
    %c0_3 = arith.constant 0 : index
    %c0_4 = arith.constant 0 : index
    %3 = vector.load %arg3[%c0_3, %c0_4] : memref<128x512xbf16, #tpu.memory_space<vmem>>, vector<128x512xbf16>
    %cst = arith.constant dense<0.000000e+00> : vector<64x512xf32>
    %4 = tpu.matmul %2, %3, %cst {dimension_numbers = #tpu.dot_dimension_numbers<[1], [0], [0], [1], [0, 0, 1, 1], [], []>} : vector<64x128xbf16>, vector<128x512xbf16>, vector<64x512xf32> -> vector<64x512xf32>
    %5 = vector.extract_strided_slice %4 {offsets = [0, 0], sizes = [64, 128], strides = [1, 1]} : vector<64x512xf32> to vector<64x128xf32>
    %6 = vector.extract_strided_slice %4 {offsets = [0, 128], sizes = [64, 128], strides = [1, 1]} : vector<64x512xf32> to vector<64x128xf32>
    %7 = arith.maximumf %5, %6 : vector<64x128xf32>
    %8 = vector.extract_strided_slice %4 {offsets = [0, 256], sizes = [64, 128], strides = [1, 1]} : vector<64x512xf32> to vector<64x128xf32>
    %9 = vector.extract_strided_slice %4 {offsets = [0, 384], sizes = [64, 128], strides = [1, 1]} : vector<64x512xf32> to vector<64x128xf32>
    %10 = arith.maximumf %8, %9 : vector<64x128xf32>
    %11 = arith.maximumf %7, %10 : vector<64x128xf32>
    %c0_5 = arith.constant 0 : index
    %c0_6 = arith.constant 0 : index
    %12 = vector.load %arg4[%c0_5, %c0_6] : memref<1x128xf32, #tpu.memory_space<vmem>>, vector<1x128xf32>
    %13 = vector.broadcast %12 : vector<1x128xf32> to vector<64x128xf32>
    %14 = arith.addf %11, %13 : vector<64x128xf32>
    %cst_7 = arith.constant 0.000000e+00 : f32
    %15 = vector.broadcast %cst_7 : f32 to vector<64x128xf32>
    %16 = arith.maximumf %14, %15 : vector<64x128xf32>
    %17 = vector.shape_cast %16 : vector<64x128xf32> to vector<8x8x128xf32>
    %18 = arith.truncf %17 : vector<8x8x128xf32> to vector<8x8x128xbf16>
    %c0_8 = arith.constant 0 : index
    %c0_9 = arith.constant 0 : index
    %c0_10 = arith.constant 0 : index
    %c0_11 = arith.constant 0 : index
    %19 = vector.load %arg5[%c0_8, %c0_9, %c0_10, %c0_11] : memref<1x8x8x128xbf16, #tpu.memory_space<vmem>>, vector<1x8x8x128xbf16>
    %20 = vector.shape_cast %19 : vector<1x8x8x128xbf16> to vector<8x8x128xbf16>
    %21 = vector.shape_cast %18 : vector<8x8x128xbf16> to vector<1x8x8x128xbf16>
    tpu.vector_store %arg5[%c0_8, %c0_9, %c0_10, %c0_11], %21 {strides = array<i32>} : memref<1x8x8x128xbf16, #tpu.memory_space<vmem>>, vector<1x8x8x128xbf16>,
    return
  }
  func.func @transform_0(%arg0: i32, %arg1: i32) -> (i32, i32, i32, i32) {
    %c0_i32 = arith.constant 0 : i32
    %c0_i32_0 = arith.constant 0 : i32
    %c0_i32_1 = arith.constant 0 : i32
    return %arg0, %arg1, %c0_i32, %c0_i32_0 : i32, i32, i32, i32
  }
  func.func @transform_1(%arg0: i32, %arg1: i32) -> (i32, i32) {
    %c0_i32 = arith.constant 0 : i32
    %c0_i32_0 = arith.constant 0 : i32
    %c0_i32_1 = arith.constant 0 : i32
    return %c0_i32, %c0_i32_0 : i32, i32
  }
  func.func @transform_2(%arg0: i32, %arg1: i32) -> (i32, i32) {
    %c0_i32 = arith.constant 0 : i32
    %c0_i32_0 = arith.constant 0 : i32
    %c0_i32_1 = arith.constant 0 : i32
    return %c0_i32, %c0_i32_0 : i32, i32
  }
  func.func @transform_3(%arg0: i32, %arg1: i32) -> (i32, i32, i32, i32) {
    %c0_i32 = arith.constant 0 : i32
    %c0_i32_0 = arith.constant 0 : i32
    %c0_i32_1 = arith.constant 0 : i32
    return %arg0, %arg1, %c0_i32, %c0_i32_0 : i32, i32, i32, i32
  }
}

module attributes {stable_mosaic.version = 11 : i64} {
  func.func @_enc_s2d_kernel(%arg0: i32, %arg1: memref<1x5x8x256xbf16, #tpu.memory_space<vmem>>, %arg2: memref<1x5x8x256xbf16, #tpu.memory_space<vmem>>, %arg3: memref<1024x512xbf16, #tpu.memory_space<vmem>>, %arg4: memref<1x128xf32, #tpu.memory_space<vmem>>, %arg5: memref<1x4x8x128xbf16, #tpu.memory_space<vmem>>) attributes {dimension_semantics = [#tpu.dimension_semantics<parallel>], iteration_bounds = array<i64: 2>, scalar_prefetch = 0 : i64, scratch_operands = 0 : i64, tpu.core_type = #tpu.core_type<tc>, window_params = [{transform_indices = @transform_0, window_bounds = array<i64: 1, 5, 8, 256>}, {transform_indices = @transform_1, window_bounds = array<i64: 1, 5, 8, 256>}, {pipeline_mode = #tpu.pipeline_mode<synchronous>, transform_indices = @transform_2, window_bounds = array<i64: 1024, 512>}, {pipeline_mode = #tpu.pipeline_mode<synchronous>, transform_indices = @transform_3, window_bounds = array<i64: 1, 128>}, {transform_indices = @transform_4, window_bounds = array<i64: 1, 4, 8, 128>}]} {
    %c0 = arith.constant 0 : index
    %c0_0 = arith.constant 0 : index
    %c0_1 = arith.constant 0 : index
    %c0_2 = arith.constant 0 : index
    %0 = vector.load %arg1[%c0, %c0_0, %c0_1, %c0_2] : memref<1x5x8x256xbf16, #tpu.memory_space<vmem>>, vector<1x5x8x256xbf16>
    %1 = vector.shape_cast %0 : vector<1x5x8x256xbf16> to vector<5x8x256xbf16>
    %c0_3 = arith.constant 0 : index
    %c0_4 = arith.constant 0 : index
    %c0_5 = arith.constant 0 : index
    %c0_6 = arith.constant 0 : index
    %2 = vector.load %arg2[%c0_3, %c0_4, %c0_5, %c0_6] : memref<1x5x8x256xbf16, #tpu.memory_space<vmem>>, vector<1x5x8x256xbf16>
    %3 = vector.shape_cast %2 : vector<1x5x8x256xbf16> to vector<5x8x256xbf16>
    %4 = vector.extract_strided_slice %1 {offsets = [0, 0, 0], sizes = [4, 8, 256], strides = [1, 1, 1]} : vector<5x8x256xbf16> to vector<4x8x256xbf16>
    %5 = vector.shape_cast %4 : vector<4x8x256xbf16> to vector<32x256xbf16>
    %6 = vector.extract_strided_slice %3 {offsets = [0, 0, 0], sizes = [4, 8, 256], strides = [1, 1, 1]} : vector<5x8x256xbf16> to vector<4x8x256xbf16>
    %7 = vector.shape_cast %6 : vector<4x8x256xbf16> to vector<32x256xbf16>
    %8 = vector.extract_strided_slice %1 {offsets = [1, 0, 0], sizes = [4, 8, 256], strides = [1, 1, 1]} : vector<5x8x256xbf16> to vector<4x8x256xbf16>
    %9 = vector.shape_cast %8 : vector<4x8x256xbf16> to vector<32x256xbf16>
    %10 = vector.extract_strided_slice %3 {offsets = [1, 0, 0], sizes = [4, 8, 256], strides = [1, 1, 1]} : vector<5x8x256xbf16> to vector<4x8x256xbf16>
    %11 = vector.shape_cast %10 : vector<4x8x256xbf16> to vector<32x256xbf16>
    %c0_7 = arith.constant 0 : index
    %c0_8 = arith.constant 0 : index
    %12 = vector.load %arg3[%c0_7, %c0_8] : memref<1024x512xbf16, #tpu.memory_space<vmem>>, vector<256x512xbf16>
    %cst = arith.constant dense<0.000000e+00> : vector<32x512xf32>
    %13 = tpu.matmul %5, %12, %cst {dimension_numbers = #tpu.dot_dimension_numbers<[1], [0], [0], [1], [0, 0, 1, 1], [], []>} : vector<32x256xbf16>, vector<256x512xbf16>, vector<32x512xf32> -> vector<32x512xf32>
    %c256 = arith.constant 256 : index
    %c0_9 = arith.constant 0 : index
    %14 = vector.load %arg3[%c256, %c0_9] : memref<1024x512xbf16, #tpu.memory_space<vmem>>, vector<256x512xbf16>
    %cst_10 = arith.constant dense<0.000000e+00> : vector<32x512xf32>
    %15 = tpu.matmul %7, %14, %cst_10 {dimension_numbers = #tpu.dot_dimension_numbers<[1], [0], [0], [1], [0, 0, 1, 1], [], []>} : vector<32x256xbf16>, vector<256x512xbf16>, vector<32x512xf32> -> vector<32x512xf32>
    %16 = arith.addf %13, %15 : vector<32x512xf32>
    %c512 = arith.constant 512 : index
    %c0_11 = arith.constant 0 : index
    %17 = vector.load %arg3[%c512, %c0_11] : memref<1024x512xbf16, #tpu.memory_space<vmem>>, vector<256x512xbf16>
    %cst_12 = arith.constant dense<0.000000e+00> : vector<32x512xf32>
    %18 = tpu.matmul %9, %17, %cst_12 {dimension_numbers = #tpu.dot_dimension_numbers<[1], [0], [0], [1], [0, 0, 1, 1], [], []>} : vector<32x256xbf16>, vector<256x512xbf16>, vector<32x512xf32> -> vector<32x512xf32>
    %19 = arith.addf %16, %18 : vector<32x512xf32>
    %c768 = arith.constant 768 : index
    %c0_13 = arith.constant 0 : index
    %20 = vector.load %arg3[%c768, %c0_13] : memref<1024x512xbf16, #tpu.memory_space<vmem>>, vector<256x512xbf16>
    %cst_14 = arith.constant dense<0.000000e+00> : vector<32x512xf32>
    %21 = tpu.matmul %11, %20, %cst_14 {dimension_numbers = #tpu.dot_dimension_numbers<[1], [0], [0], [1], [0, 0, 1, 1], [], []>} : vector<32x256xbf16>, vector<256x512xbf16>, vector<32x512xf32> -> vector<32x512xf32>
    %22 = arith.addf %19, %21 : vector<32x512xf32>
    %23 = vector.extract_strided_slice %22 {offsets = [0, 0], sizes = [32, 128], strides = [1, 1]} : vector<32x512xf32> to vector<32x128xf32>
    %24 = vector.extract_strided_slice %22 {offsets = [0, 128], sizes = [32, 128], strides = [1, 1]} : vector<32x512xf32> to vector<32x128xf32>
    %25 = arith.maximumf %23, %24 : vector<32x128xf32>
    %26 = vector.extract_strided_slice %22 {offsets = [0, 256], sizes = [32, 128], strides = [1, 1]} : vector<32x512xf32> to vector<32x128xf32>
    %27 = vector.extract_strided_slice %22 {offsets = [0, 384], sizes = [32, 128], strides = [1, 1]} : vector<32x512xf32> to vector<32x128xf32>
    %28 = arith.maximumf %26, %27 : vector<32x128xf32>
    %29 = arith.maximumf %25, %28 : vector<32x128xf32>
    %c0_15 = arith.constant 0 : index
    %c0_16 = arith.constant 0 : index
    %30 = vector.load %arg4[%c0_15, %c0_16] : memref<1x128xf32, #tpu.memory_space<vmem>>, vector<1x128xf32>
    %31 = vector.broadcast %30 : vector<1x128xf32> to vector<32x128xf32>
    %32 = arith.addf %29, %31 : vector<32x128xf32>
    %cst_17 = arith.constant 0.000000e+00 : f32
    %33 = vector.broadcast %cst_17 : f32 to vector<32x128xf32>
    %34 = arith.maximumf %32, %33 : vector<32x128xf32>
    %35 = vector.shape_cast %34 : vector<32x128xf32> to vector<4x8x128xf32>
    %36 = arith.truncf %35 : vector<4x8x128xf32> to vector<4x8x128xbf16>
    %c0_18 = arith.constant 0 : index
    %c0_19 = arith.constant 0 : index
    %c0_20 = arith.constant 0 : index
    %c0_21 = arith.constant 0 : index
    %37 = vector.load %arg5[%c0_18, %c0_19, %c0_20, %c0_21] : memref<1x4x8x128xbf16, #tpu.memory_space<vmem>>, vector<1x4x8x128xbf16>
    %38 = vector.shape_cast %37 : vector<1x4x8x128xbf16> to vector<4x8x128xbf16>
    %39 = vector.shape_cast %36 : vector<4x8x128xbf16> to vector<1x4x8x128xbf16>
    tpu.vector_store %arg5[%c0_18, %c0_19, %c0_20, %c0_21], %39 {strides = array<i32>} : memref<1x4x8x128xbf16, #tpu.memory_space<vmem>>, vector<1x4x8x128xbf16>,
    return
  }
  func.func @transform_0(%arg0: i32) -> (i32, i32, i32, i32) {
    %c0_i32 = arith.constant 0 : i32
    %c0_i32_0 = arith.constant 0 : i32
    %c0_i32_1 = arith.constant 0 : i32
    %c0_i32_2 = arith.constant 0 : i32
    return %arg0, %c0_i32, %c0_i32_0, %c0_i32_1 : i32, i32, i32, i32
  }
  func.func @transform_1(%arg0: i32) -> (i32, i32, i32, i32) {
    %c0_i32 = arith.constant 0 : i32
    %c0_i32_0 = arith.constant 0 : i32
    %c0_i32_1 = arith.constant 0 : i32
    %c0_i32_2 = arith.constant 0 : i32
    return %arg0, %c0_i32, %c0_i32_0, %c0_i32_1 : i32, i32, i32, i32
  }
  func.func @transform_2(%arg0: i32) -> (i32, i32) {
    %c0_i32 = arith.constant 0 : i32
    %c0_i32_0 = arith.constant 0 : i32
    %c0_i32_1 = arith.constant 0 : i32
    return %c0_i32, %c0_i32_0 : i32, i32
  }
  func.func @transform_3(%arg0: i32) -> (i32, i32) {
    %c0_i32 = arith.constant 0 : i32
    %c0_i32_0 = arith.constant 0 : i32
    %c0_i32_1 = arith.constant 0 : i32
    return %c0_i32, %c0_i32_0 : i32, i32
  }
  func.func @transform_4(%arg0: i32) -> (i32, i32, i32, i32) {
    %c0_i32 = arith.constant 0 : i32
    %c0_i32_0 = arith.constant 0 : i32
    %c0_i32_1 = arith.constant 0 : i32
    %c0_i32_2 = arith.constant 0 : i32
    return %arg0, %c0_i32, %c0_i32_0, %c0_i32_1 : i32, i32, i32, i32
  }
}

module attributes {stable_mosaic.version = 11 : i64} {
  func.func @_enc_s2d_kernel(%arg0: i32, %arg1: memref<1x3x8x512xbf16, #tpu.memory_space<vmem>>, %arg2: memref<1x3x8x512xbf16, #tpu.memory_space<vmem>>, %arg3: memref<2048x1024xbf16, #tpu.memory_space<vmem>>, %arg4: memref<1x256xf32, #tpu.memory_space<vmem>>, %arg5: memref<1x2x8x256xbf16, #tpu.memory_space<vmem>>) attributes {dimension_semantics = [#tpu.dimension_semantics<parallel>], iteration_bounds = array<i64: 2>, scalar_prefetch = 0 : i64, scratch_operands = 0 : i64, tpu.core_type = #tpu.core_type<tc>, window_params = [{transform_indices = @transform_0, window_bounds = array<i64: 1, 3, 8, 512>}, {transform_indices = @transform_1, window_bounds = array<i64: 1, 3, 8, 512>}, {pipeline_mode = #tpu.pipeline_mode<synchronous>, transform_indices = @transform_2, window_bounds = array<i64: 2048, 1024>}, {pipeline_mode = #tpu.pipeline_mode<synchronous>, transform_indices = @transform_3, window_bounds = array<i64: 1, 256>}, {transform_indices = @transform_4, window_bounds = array<i64: 1, 2, 8, 256>}]} {
    %c0 = arith.constant 0 : index
    %c0_0 = arith.constant 0 : index
    %c0_1 = arith.constant 0 : index
    %c0_2 = arith.constant 0 : index
    %0 = vector.load %arg1[%c0, %c0_0, %c0_1, %c0_2] : memref<1x3x8x512xbf16, #tpu.memory_space<vmem>>, vector<1x3x8x512xbf16>
    %1 = vector.shape_cast %0 : vector<1x3x8x512xbf16> to vector<3x8x512xbf16>
    %c0_3 = arith.constant 0 : index
    %c0_4 = arith.constant 0 : index
    %c0_5 = arith.constant 0 : index
    %c0_6 = arith.constant 0 : index
    %2 = vector.load %arg2[%c0_3, %c0_4, %c0_5, %c0_6] : memref<1x3x8x512xbf16, #tpu.memory_space<vmem>>, vector<1x3x8x512xbf16>
    %3 = vector.shape_cast %2 : vector<1x3x8x512xbf16> to vector<3x8x512xbf16>
    %4 = vector.extract_strided_slice %1 {offsets = [0, 0, 0], sizes = [2, 8, 512], strides = [1, 1, 1]} : vector<3x8x512xbf16> to vector<2x8x512xbf16>
    %5 = vector.shape_cast %4 : vector<2x8x512xbf16> to vector<16x512xbf16>
    %6 = vector.extract_strided_slice %3 {offsets = [0, 0, 0], sizes = [2, 8, 512], strides = [1, 1, 1]} : vector<3x8x512xbf16> to vector<2x8x512xbf16>
    %7 = vector.shape_cast %6 : vector<2x8x512xbf16> to vector<16x512xbf16>
    %8 = vector.extract_strided_slice %1 {offsets = [1, 0, 0], sizes = [2, 8, 512], strides = [1, 1, 1]} : vector<3x8x512xbf16> to vector<2x8x512xbf16>
    %9 = vector.shape_cast %8 : vector<2x8x512xbf16> to vector<16x512xbf16>
    %10 = vector.extract_strided_slice %3 {offsets = [1, 0, 0], sizes = [2, 8, 512], strides = [1, 1, 1]} : vector<3x8x512xbf16> to vector<2x8x512xbf16>
    %11 = vector.shape_cast %10 : vector<2x8x512xbf16> to vector<16x512xbf16>
    %c0_7 = arith.constant 0 : index
    %c0_8 = arith.constant 0 : index
    %12 = vector.load %arg3[%c0_7, %c0_8] : memref<2048x1024xbf16, #tpu.memory_space<vmem>>, vector<512x1024xbf16>
    %cst = arith.constant dense<0.000000e+00> : vector<16x1024xf32>
    %13 = tpu.matmul %5, %12, %cst {dimension_numbers = #tpu.dot_dimension_numbers<[1], [0], [0], [1], [0, 0, 1, 1], [], []>} : vector<16x512xbf16>, vector<512x1024xbf16>, vector<16x1024xf32> -> vector<16x1024xf32>
    %c512 = arith.constant 512 : index
    %c0_9 = arith.constant 0 : index
    %14 = vector.load %arg3[%c512, %c0_9] : memref<2048x1024xbf16, #tpu.memory_space<vmem>>, vector<512x1024xbf16>
    %cst_10 = arith.constant dense<0.000000e+00> : vector<16x1024xf32>
    %15 = tpu.matmul %7, %14, %cst_10 {dimension_numbers = #tpu.dot_dimension_numbers<[1], [0], [0], [1], [0, 0, 1, 1], [], []>} : vector<16x512xbf16>, vector<512x1024xbf16>, vector<16x1024xf32> -> vector<16x1024xf32>
    %16 = arith.addf %13, %15 : vector<16x1024xf32>
    %c1024 = arith.constant 1024 : index
    %c0_11 = arith.constant 0 : index
    %17 = vector.load %arg3[%c1024, %c0_11] : memref<2048x1024xbf16, #tpu.memory_space<vmem>>, vector<512x1024xbf16>
    %cst_12 = arith.constant dense<0.000000e+00> : vector<16x1024xf32>
    %18 = tpu.matmul %9, %17, %cst_12 {dimension_numbers = #tpu.dot_dimension_numbers<[1], [0], [0], [1], [0, 0, 1, 1], [], []>} : vector<16x512xbf16>, vector<512x1024xbf16>, vector<16x1024xf32> -> vector<16x1024xf32>
    %19 = arith.addf %16, %18 : vector<16x1024xf32>
    %c1536 = arith.constant 1536 : index
    %c0_13 = arith.constant 0 : index
    %20 = vector.load %arg3[%c1536, %c0_13] : memref<2048x1024xbf16, #tpu.memory_space<vmem>>, vector<512x1024xbf16>
    %cst_14 = arith.constant dense<0.000000e+00> : vector<16x1024xf32>
    %21 = tpu.matmul %11, %20, %cst_14 {dimension_numbers = #tpu.dot_dimension_numbers<[1], [0], [0], [1], [0, 0, 1, 1], [], []>} : vector<16x512xbf16>, vector<512x1024xbf16>, vector<16x1024xf32> -> vector<16x1024xf32>
    %22 = arith.addf %19, %21 : vector<16x1024xf32>
    %23 = vector.extract_strided_slice %22 {offsets = [0, 0], sizes = [16, 256], strides = [1, 1]} : vector<16x1024xf32> to vector<16x256xf32>
    %24 = vector.extract_strided_slice %22 {offsets = [0, 256], sizes = [16, 256], strides = [1, 1]} : vector<16x1024xf32> to vector<16x256xf32>
    %25 = arith.maximumf %23, %24 : vector<16x256xf32>
    %26 = vector.extract_strided_slice %22 {offsets = [0, 512], sizes = [16, 256], strides = [1, 1]} : vector<16x1024xf32> to vector<16x256xf32>
    %27 = vector.extract_strided_slice %22 {offsets = [0, 768], sizes = [16, 256], strides = [1, 1]} : vector<16x1024xf32> to vector<16x256xf32>
    %28 = arith.maximumf %26, %27 : vector<16x256xf32>
    %29 = arith.maximumf %25, %28 : vector<16x256xf32>
    %c0_15 = arith.constant 0 : index
    %c0_16 = arith.constant 0 : index
    %30 = vector.load %arg4[%c0_15, %c0_16] : memref<1x256xf32, #tpu.memory_space<vmem>>, vector<1x256xf32>
    %31 = vector.broadcast %30 : vector<1x256xf32> to vector<16x256xf32>
    %32 = arith.addf %29, %31 : vector<16x256xf32>
    %cst_17 = arith.constant 0.000000e+00 : f32
    %33 = vector.broadcast %cst_17 : f32 to vector<16x256xf32>
    %34 = arith.maximumf %32, %33 : vector<16x256xf32>
    %35 = vector.shape_cast %34 : vector<16x256xf32> to vector<2x8x256xf32>
    %36 = arith.truncf %35 : vector<2x8x256xf32> to vector<2x8x256xbf16>
    %c0_18 = arith.constant 0 : index
    %c0_19 = arith.constant 0 : index
    %c0_20 = arith.constant 0 : index
    %c0_21 = arith.constant 0 : index
    %37 = vector.load %arg5[%c0_18, %c0_19, %c0_20, %c0_21] : memref<1x2x8x256xbf16, #tpu.memory_space<vmem>>, vector<1x2x8x256xbf16>
    %38 = vector.shape_cast %37 : vector<1x2x8x256xbf16> to vector<2x8x256xbf16>
    %39 = vector.shape_cast %36 : vector<2x8x256xbf16> to vector<1x2x8x256xbf16>
    tpu.vector_store %arg5[%c0_18, %c0_19, %c0_20, %c0_21], %39 {strides = array<i32>} : memref<1x2x8x256xbf16, #tpu.memory_space<vmem>>, vector<1x2x8x256xbf16>,
    return
  }
  func.func @transform_0(%arg0: i32) -> (i32, i32, i32, i32) {
    %c0_i32 = arith.constant 0 : i32
    %c0_i32_0 = arith.constant 0 : i32
    %c0_i32_1 = arith.constant 0 : i32
    %c0_i32_2 = arith.constant 0 : i32
    return %arg0, %c0_i32, %c0_i32_0, %c0_i32_1 : i32, i32, i32, i32
  }
  func.func @transform_1(%arg0: i32) -> (i32, i32, i32, i32) {
    %c0_i32 = arith.constant 0 : i32
    %c0_i32_0 = arith.constant 0 : i32
    %c0_i32_1 = arith.constant 0 : i32
    %c0_i32_2 = arith.constant 0 : i32
    return %arg0, %c0_i32, %c0_i32_0, %c0_i32_1 : i32, i32, i32, i32
  }
  func.func @transform_2(%arg0: i32) -> (i32, i32) {
    %c0_i32 = arith.constant 0 : i32
    %c0_i32_0 = arith.constant 0 : i32
    %c0_i32_1 = arith.constant 0 : i32
    return %c0_i32, %c0_i32_0 : i32, i32
  }
  func.func @transform_3(%arg0: i32) -> (i32, i32) {
    %c0_i32 = arith.constant 0 : i32
    %c0_i32_0 = arith.constant 0 : i32
    %c0_i32_1 = arith.constant 0 : i32
    return %c0_i32, %c0_i32_0 : i32, i32
  }
  func.func @transform_4(%arg0: i32) -> (i32, i32, i32, i32) {
    %c0_i32 = arith.constant 0 : i32
    %c0_i32_0 = arith.constant 0 : i32
    %c0_i32_1 = arith.constant 0 : i32
    %c0_i32_2 = arith.constant 0 : i32
    return %arg0, %c0_i32, %c0_i32_0, %c0_i32_1 : i32, i32, i32, i32
  }
}

module attributes {stable_mosaic.version = 11 : i64} {
  func.func @_dec_kernel(%arg0: i32, %arg1: memref<8x256xbf16, #tpu.memory_space<vmem>>, %arg2: memref<256x512xbf16, #tpu.memory_space<vmem>>, %arg3: memref<1x512xf32, #tpu.memory_space<vmem>>, %arg4: memref<8x512xbf16, #tpu.memory_space<vmem>>) attributes {dimension_semantics = [#tpu.dimension_semantics<parallel>], iteration_bounds = array<i64: 1>, scalar_prefetch = 0 : i64, scratch_operands = 0 : i64, tpu.core_type = #tpu.core_type<tc>, window_params = [{transform_indices = @transform_0, window_bounds = array<i64: 8, 256>}, {pipeline_mode = #tpu.pipeline_mode<synchronous>, transform_indices = @transform_1, window_bounds = array<i64: 256, 512>}, {pipeline_mode = #tpu.pipeline_mode<synchronous>, transform_indices = @transform_2, window_bounds = array<i64: 1, 512>}, {transform_indices = @transform_3, window_bounds = array<i64: 8, 512>}]} {
    %c0 = arith.constant 0 : index
    %c0_0 = arith.constant 0 : index
    %0 = vector.load %arg1[%c0, %c0_0] : memref<8x256xbf16, #tpu.memory_space<vmem>>, vector<8x256xbf16>
    %c0_1 = arith.constant 0 : index
    %c0_2 = arith.constant 0 : index
    %1 = vector.load %arg2[%c0_1, %c0_2] : memref<256x512xbf16, #tpu.memory_space<vmem>>, vector<256x512xbf16>
    %cst = arith.constant dense<0.000000e+00> : vector<8x512xf32>
    %2 = tpu.matmul %0, %1, %cst {dimension_numbers = #tpu.dot_dimension_numbers<[1], [0], [0], [1], [0, 0, 1, 1], [], []>} : vector<8x256xbf16>, vector<256x512xbf16>, vector<8x512xf32> -> vector<8x512xf32>
    %c0_3 = arith.constant 0 : index
    %c0_4 = arith.constant 0 : index
    %3 = vector.load %arg3[%c0_3, %c0_4] : memref<1x512xf32, #tpu.memory_space<vmem>>, vector<1x512xf32>
    %4 = vector.broadcast %3 : vector<1x512xf32> to vector<8x512xf32>
    %5 = arith.addf %2, %4 : vector<8x512xf32>
    %6 = arith.truncf %5 : vector<8x512xf32> to vector<8x512xbf16>
    %c0_5 = arith.constant 0 : index
    %c0_6 = arith.constant 0 : index
    %7 = vector.load %arg4[%c0_5, %c0_6] : memref<8x512xbf16, #tpu.memory_space<vmem>>, vector<8x512xbf16>
    tpu.vector_store %arg4[%c0_5, %c0_6], %6 {strides = array<i32>} : memref<8x512xbf16, #tpu.memory_space<vmem>>, vector<8x512xbf16>,
    return
  }
  func.func @transform_0(%arg0: i32) -> (i32, i32) {
    %c0_i32 = arith.constant 0 : i32
    %c0_i32_0 = arith.constant 0 : i32
    return %arg0, %c0_i32 : i32, i32
  }
  func.func @transform_1(%arg0: i32) -> (i32, i32) {
    %c0_i32 = arith.constant 0 : i32
    %c0_i32_0 = arith.constant 0 : i32
    %c0_i32_1 = arith.constant 0 : i32
    return %c0_i32, %c0_i32_0 : i32, i32
  }
  func.func @transform_2(%arg0: i32) -> (i32, i32) {
    %c0_i32 = arith.constant 0 : i32
    %c0_i32_0 = arith.constant 0 : i32
    %c0_i32_1 = arith.constant 0 : i32
    return %c0_i32, %c0_i32_0 : i32, i32
  }
  func.func @transform_3(%arg0: i32) -> (i32, i32) {
    %c0_i32 = arith.constant 0 : i32
    %c0_i32_0 = arith.constant 0 : i32
    return %arg0, %c0_i32 : i32, i32
  }
}

module attributes {stable_mosaic.version = 11 : i64} {
  func.func @_dec_kernel(%arg0: i32, %arg1: memref<32x128xbf16, #tpu.memory_space<vmem>>, %arg2: memref<128x512xbf16, #tpu.memory_space<vmem>>, %arg3: memref<1x512xf32, #tpu.memory_space<vmem>>, %arg4: memref<32x512xbf16, #tpu.memory_space<vmem>>) attributes {dimension_semantics = [#tpu.dimension_semantics<parallel>], iteration_bounds = array<i64: 1>, scalar_prefetch = 0 : i64, scratch_operands = 0 : i64, tpu.core_type = #tpu.core_type<tc>, window_params = [{transform_indices = @transform_0, window_bounds = array<i64: 32, 128>}, {pipeline_mode = #tpu.pipeline_mode<synchronous>, transform_indices = @transform_1, window_bounds = array<i64: 128, 512>}, {pipeline_mode = #tpu.pipeline_mode<synchronous>, transform_indices = @transform_2, window_bounds = array<i64: 1, 512>}, {transform_indices = @transform_3, window_bounds = array<i64: 32, 512>}]} {
    %c0 = arith.constant 0 : index
    %c0_0 = arith.constant 0 : index
    %0 = vector.load %arg1[%c0, %c0_0] : memref<32x128xbf16, #tpu.memory_space<vmem>>, vector<32x128xbf16>
    %c0_1 = arith.constant 0 : index
    %c0_2 = arith.constant 0 : index
    %1 = vector.load %arg2[%c0_1, %c0_2] : memref<128x512xbf16, #tpu.memory_space<vmem>>, vector<128x512xbf16>
    %cst = arith.constant dense<0.000000e+00> : vector<32x512xf32>
    %2 = tpu.matmul %0, %1, %cst {dimension_numbers = #tpu.dot_dimension_numbers<[1], [0], [0], [1], [0, 0, 1, 1], [], []>} : vector<32x128xbf16>, vector<128x512xbf16>, vector<32x512xf32> -> vector<32x512xf32>
    %c0_3 = arith.constant 0 : index
    %c0_4 = arith.constant 0 : index
    %3 = vector.load %arg3[%c0_3, %c0_4] : memref<1x512xf32, #tpu.memory_space<vmem>>, vector<1x512xf32>
    %4 = vector.broadcast %3 : vector<1x512xf32> to vector<32x512xf32>
    %5 = arith.addf %2, %4 : vector<32x512xf32>
    %6 = arith.truncf %5 : vector<32x512xf32> to vector<32x512xbf16>
    %c0_5 = arith.constant 0 : index
    %c0_6 = arith.constant 0 : index
    %7 = vector.load %arg4[%c0_5, %c0_6] : memref<32x512xbf16, #tpu.memory_space<vmem>>, vector<32x512xbf16>
    tpu.vector_store %arg4[%c0_5, %c0_6], %6 {strides = array<i32>} : memref<32x512xbf16, #tpu.memory_space<vmem>>, vector<32x512xbf16>,
    return
  }
  func.func @transform_0(%arg0: i32) -> (i32, i32) {
    %c0_i32 = arith.constant 0 : i32
    %c0_i32_0 = arith.constant 0 : i32
    return %arg0, %c0_i32 : i32, i32
  }
  func.func @transform_1(%arg0: i32) -> (i32, i32) {
    %c0_i32 = arith.constant 0 : i32
    %c0_i32_0 = arith.constant 0 : i32
    %c0_i32_1 = arith.constant 0 : i32
    return %c0_i32, %c0_i32_0 : i32, i32
  }
  func.func @transform_2(%arg0: i32) -> (i32, i32) {
    %c0_i32 = arith.constant 0 : i32
    %c0_i32_0 = arith.constant 0 : i32
    %c0_i32_1 = arith.constant 0 : i32
    return %c0_i32, %c0_i32_0 : i32, i32
  }
  func.func @transform_3(%arg0: i32) -> (i32, i32) {
    %c0_i32 = arith.constant 0 : i32
    %c0_i32_0 = arith.constant 0 : i32
    return %arg0, %c0_i32 : i32, i32
  }
}

module attributes {stable_mosaic.version = 11 : i64} {
  func.func @_dec_kernel(%arg0: i32, %arg1: memref<128x128xbf16, #tpu.memory_space<vmem>>, %arg2: memref<128x128xbf16, #tpu.memory_space<vmem>>, %arg3: memref<1x128xf32, #tpu.memory_space<vmem>>, %arg4: memref<128x128xf32, #tpu.memory_space<vmem>>) attributes {dimension_semantics = [#tpu.dimension_semantics<parallel>], iteration_bounds = array<i64: 1>, scalar_prefetch = 0 : i64, scratch_operands = 0 : i64, tpu.core_type = #tpu.core_type<tc>, window_params = [{transform_indices = @transform_0, window_bounds = array<i64: 128, 128>}, {pipeline_mode = #tpu.pipeline_mode<synchronous>, transform_indices = @transform_1, window_bounds = array<i64: 128, 128>}, {pipeline_mode = #tpu.pipeline_mode<synchronous>, transform_indices = @transform_2, window_bounds = array<i64: 1, 128>}, {transform_indices = @transform_3, window_bounds = array<i64: 128, 128>}]} {
    %c0 = arith.constant 0 : index
    %c0_0 = arith.constant 0 : index
    %0 = vector.load %arg1[%c0, %c0_0] : memref<128x128xbf16, #tpu.memory_space<vmem>>, vector<128x128xbf16>
    %c0_1 = arith.constant 0 : index
    %c0_2 = arith.constant 0 : index
    %1 = vector.load %arg2[%c0_1, %c0_2] : memref<128x128xbf16, #tpu.memory_space<vmem>>, vector<128x128xbf16>
    %cst = arith.constant dense<0.000000e+00> : vector<128x128xf32>
    %2 = tpu.matmul %0, %1, %cst {dimension_numbers = #tpu.dot_dimension_numbers<[1], [0], [0], [1], [0, 0, 1, 1], [], []>} : vector<128x128xbf16>, vector<128x128xbf16>, vector<128x128xf32> -> vector<128x128xf32>
    %c0_3 = arith.constant 0 : index
    %c0_4 = arith.constant 0 : index
    %3 = vector.load %arg3[%c0_3, %c0_4] : memref<1x128xf32, #tpu.memory_space<vmem>>, vector<1x128xf32>
    %4 = vector.broadcast %3 : vector<1x128xf32> to vector<128x128xf32>
    %5 = arith.addf %2, %4 : vector<128x128xf32>
    %cst_5 = arith.constant 0.000000e+00 : f32
    %6 = vector.broadcast %cst_5 : f32 to vector<128x128xf32>
    %7 = arith.subf %6, %5 : vector<128x128xf32>
    %8 = math.exp %7 : vector<128x128xf32>
    %cst_6 = arith.constant 1.000000e+00 : f32
    %9 = vector.broadcast %cst_6 : f32 to vector<128x128xf32>
    %10 = arith.addf %9, %8 : vector<128x128xf32>
    %11 = tpu.reciprocal %10 {approx = true} : vector<128x128xf32> -> vector<128x128xf32>
    %c0_7 = arith.constant 0 : index
    %c0_8 = arith.constant 0 : index
    %12 = vector.load %arg4[%c0_7, %c0_8] : memref<128x128xf32, #tpu.memory_space<vmem>>, vector<128x128xf32>
    tpu.vector_store %arg4[%c0_7, %c0_8], %11 {strides = array<i32>} : memref<128x128xf32, #tpu.memory_space<vmem>>, vector<128x128xf32>,
    return
  }
  func.func @transform_0(%arg0: i32) -> (i32, i32) {
    %c0_i32 = arith.constant 0 : i32
    %c0_i32_0 = arith.constant 0 : i32
    return %arg0, %c0_i32 : i32, i32
  }
  func.func @transform_1(%arg0: i32) -> (i32, i32) {
    %c0_i32 = arith.constant 0 : i32
    %c0_i32_0 = arith.constant 0 : i32
    %c0_i32_1 = arith.constant 0 : i32
    return %c0_i32, %c0_i32_0 : i32, i32
  }
  func.func @transform_2(%arg0: i32) -> (i32, i32) {
    %c0_i32 = arith.constant 0 : i32
    %c0_i32_0 = arith.constant 0 : i32
    %c0_i32_1 = arith.constant 0 : i32
    return %c0_i32, %c0_i32_0 : i32, i32
  }
  func.func @transform_3(%arg0: i32) -> (i32, i32) {
    %c0_i32 = arith.constant 0 : i32
    %c0_i32_0 = arith.constant 0 : i32
    return %arg0, %c0_i32 : i32, i32
  }
}

</mosaic_0001>

<llo_original>
// kernel: _lambda_.6
$region0: #{_lambda_.6}
  #allocation0 [shape = 'u32[]', space=smem, size = 0x4, offset = 0x4, fixed_abs, tag = 'smem constant byte address 0x4 - core index']
  #allocation1 [shape = 'u32[144,128]{1,0:T(1,128)}', space=vmem, size = 0x12000, scoped, tag = 'internal scratch']
  %s0 = inlined_call_operand.vmem [shape: bf16[2,8,8,128], index: 0, kind: input, shape index: {}]
  %s1 = inlined_call_operand.hbm [shape: bf16[128,512], index: 1, kind: input, shape index: {}]
  %s2 = inlined_call_operand.hbm [shape: f32[1,128], index: 2, kind: input, shape index: {}]
  %s3 = inlined_call_operand.vmem [shape: bf16[2,8,8,128], index: 3, kind: output, shape index: {}]
  %s4 = sld [smem:[#allocation0]]
  $region53: #{_lambda_.6} parent=0
    _
  %s6 = ssub.s32 1, %s4
  %s7 = scalar_select 0, %s6, %s4
  $region1: #{_lambda_.6} parent=0
    #allocation2 [shape = 'u8[131072]{0}', space=vmem, size = 0x20000, scoped, tag = 'input window, operand 1, single buffered']
    #allocation3 [shape = 's32[2]{0}', space=sflag, size = 0x8, scoped, tag = 'scoped memory for _lambda_.6']
    #allocation4 [shape = 'u8[512]{0}', space=vmem, size = 0x400, scoped, tag = 'input window, operand 2, single buffered']
    #allocation5 [shape = 's32[1]{0}', space=sflag, size = 0x4, scoped, tag = 'scoped memory for _lambda_.6']
    %8 = vsyncpa [#allocation3], 0
    %9 = vsyncpa [#allocation5], 0
    loop: start=0, step=1, limit=4
    $region2: #{_lambda_.6} parent=1 // loop_pre_header
      _
    $region3: #{_lambda_.6} parent=1 // loop_header
      %s11 = sphi 0, %s15
      %p12 = scmp.ge.s32.totalorder %s11, 4
      %s18 = sphi 0, %s30
      %s19 = sphi 0, %s26
      %s20 = sphi 0, %s18
      %s21 = sphi 0, %s19
      %s22 = sphi 0, %s20
      %s23 = sphi 0, %s21
      %s35 = sphi 0, %s37
      %s38 = sphi 0, %s35
      %s39 = sphi 0, %s38
      %s55 = sphi 0, %s39
      %s59 = sphi 0, %s59
      %s61 = sphi 0, %s59
      %s62 = sphi 0, %s61
      %s76 = sphi 0, %s62
      %s80 = sphi 0, %s80
      %s82 = sphi 0, %s80
      %s83 = sphi 0, %s82
      %s97 = sphi 0, %s83
      %s105 = sphi 0, %s107
      %s108 = sphi 0, %s105
      %s109 = sphi 0, %s108
      %s125 = sphi 0, %s109
    $region4: #{_lambda_.6} parent=1 // loop_header_branch
      %14 = sbr.rel (%p12) target = $region8
    $region5: #{_lambda_.6} parent=1 // loop_body
      %s16 = ssub.s32 %s11, 1
      %s17 = ssub.s32 %s11, 2
      %s24 = sadd.s32 1, %s19
      %p25 = scmp.ge.s32.totalorder %s24, 1
      %s26 = scalar_select %p25, 0, %s24
      %s27 = sadd.s32 1, %s18
      %s28 = scalar_select %p25, %s27, %s18
      %p29 = scmp.ge.s32.totalorder %s28, 2
      %s30 = scalar_select %p29, 0, %s28
      %s31 = ssub.s32 %s18, %s30
      %s32 = ssub.s32 %s19, %s26
      %s33 = sor.u32 %s31, %s32
      %p34 = scmp.eq.s32.totalorder %s33, 0
      %s36 = sadd.s32 %s35, 1
      %s37 = scalar_select %p34, %s35, %s36
      %p40 = pneg %p34
      %p41 = scmp.eq.s32.totalorder %s11, 1
      %p42 = por %p40, %p41
      %p43 = scmp.ne.s32.totalorder %s35, %s38
      %p44 = scmp.eq.s32.totalorder %s11, 0
      %p45 = por %p43, %p44
      %p46 = scmp.ne.s32.totalorder %s35, %s38
      %p47 = scmp.eq.s32.totalorder %s16, 1
      %p48 = por %p46, %p47
      %p49 = scmp.ne.s32.totalorder %s38, %s39
      %p50 = scmp.eq.s32.totalorder %s16, 0
      %p51 = por %p49, %p50
      %p52 = scmp.ne.s32.totalorder %s38, %s39
      %p53 = scmp.eq.s32.totalorder %s17, 1
      %p54 = por %p52, %p53
      %p56 = scmp.ne.s32.totalorder %s39, %s55
      %p57 = scmp.eq.s32.totalorder %s17, 0
      %p58 = por %p56, %p57
      %s60 = sadd.s32 %s59, 1
      %p63 = scmp.eq.s32.totalorder %s11, 1
      %p64 = scmp.ne.s32.totalorder %s59, %s61
      %p65 = scmp.eq.s32.totalorder %s11, 0
      %p66 = por %p64, %p65
      %p67 = scmp.ne.s32.totalorder %s59, %s61
      %p68 = scmp.eq.s32.totalorder %s16, 1
      %p69 = por %p67, %p68
      %p70 = scmp.ne.s32.totalorder %s61, %s62
      %p71 = scmp.eq.s32.totalorder %s16, 0
      %p72 = por %p70, %p71
      %p73 = scmp.ne.s32.totalorder %s61, %s62
      %p74 = scmp.eq.s32.totalorder %s17, 1
      %p75 = por %p73, %p74
      %p77 = scmp.ne.s32.totalorder %s62, %s76
      %p78 = scmp.eq.s32.totalorder %s17, 0
      %p79 = por %p77, %p78
      %s81 = sadd.s32 %s80, 1
      %p84 = scmp.eq.s32.totalorder %s11, 1
      %p85 = scmp.ne.s32.totalorder %s80, %s82
      %p86 = scmp.eq.s32.totalorder %s11, 0
      %p87 = por %p85, %p86
      %p88 = scmp.ne.s32.totalorder %s80, %s82
      %p89 = scmp.eq.s32.totalorder %s16, 1
      %p90 = por %p88, %p89
      %p91 = scmp.ne.s32.totalorder %s82, %s83
      %p92 = scmp.eq.s32.totalorder %s16, 0
      %p93 = por %p91, %p92
      %p94 = scmp.ne.s32.totalorder %s82, %s83
      %p95 = scmp.eq.s32.totalorder %s17, 1
      %p96 = por %p94, %p95
      %p98 = scmp.ne.s32.totalorder %s83, %s97
      %p99 = scmp.eq.s32.totalorder %s17, 0
      %p100 = por %p98, %p99
      %s101 = ssub.s32 %s18, %s30
      %s102 = ssub.s32 %s19, %s26
      %s103 = sor.u32 %s101, %s102
      %p104 = scmp.eq.s32.totalorder %s103, 0
      %s106 = sadd.s32 %s105, 1
      %s107 = scalar_select %p104, %s105, %s106
      %p110 = pneg %p104
      %p111 = scmp.eq.s32.totalorder %s11, 1
      %p112 = por %p110, %p111
      %p113 = scmp.ne.s32.totalorder %s105, %s108
      %p114 = scmp.eq.s32.totalorder %s11, 0
      %p115 = por %p113, %p114
      %p116 = scmp.ne.s32.totalorder %s105, %s108
      %p117 = scmp.eq.s32.totalorder %s16, 1
      %p118 = por %p116, %p117
      %p119 = scmp.ne.s32.totalorder %s108, %s109
      %p120 = scmp.eq.s32.totalorder %s16, 0
      %p121 = por %p119, %p120
      %p122 = scmp.ne.s32.totalorder %s108, %s109
      %p123 = scmp.eq.s32.totalorder %s17, 1
      %p124 = por %p122, %p123
      %p126 = scmp.ne.s32.totalorder %s109, %s125
      %p127 = scmp.eq.s32.totalorder %s17, 0
      %p128 = por %p126, %p127
      %p129 = scmp.le.s32.totalorder 1, %s11
      %p130 = scmp.lt.s32.totalorder %s11, 3
      %p131 = pnand %p129, %p130
      %p132 = pneg %p131
      // Predicated region
      $region9: #{_lambda_.6} parent=5 // pred_check
        _
      $region10: #{_lambda_.6} parent=5 // pred_check_branch
        %134 = sbr.rel (%p131) target = $region12
      $region11: #{_lambda_.6} parent=5 // pred_region
        %s135 = ssub.s32 %s11, 1
        // Predicated region
        $region13: #{_lambda_.6} parent=11 // pred_check
          %p136 = pneg %p72
        $region14: #{_lambda_.6} parent=11 // pred_check_branch
          %138 = sbr.rel (%p136) target = $region16
        $region15: #{_lambda_.6} parent=11 // pred_region
          %s140 = ssub.s32 4096, 4096
          %141 = vsyncadd [#allocation3], %s140
          %s142 = sshll.u32 [#allocation2], 4
          %s143 = int_to_ptr.vmem [resolvable:$true] %s142
          %148 = dma.hbm_to_vmem [thread:$0]  %s1, 4096, %s143, [#allocation3], 256, 256, 16
        $region16: #{_lambda_.6} parent=11 // pred_fallthru
          _
        // Predicated region
        $region17: #{_lambda_.6} parent=11 // pred_check
          %p149 = pneg %p93
        $region18: #{_lambda_.6} parent=11 // pred_check_branch
          %151 = sbr.rel (%p149) target = $region20
        $region19: #{_lambda_.6} parent=11 // pred_region
          %s153 = ssub.s32 16, 16
          %154 = vsyncadd [#allocation5], %s153
          %s156 = sshll.u32 [#allocation4], 4
          %s157 = int_to_ptr.vmem [resolvable:$true] %s156
          %159 = dma.hbm_to_vmem [thread:$0]  %s2, 16, %s157, [#allocation5]
        $region20: #{_lambda_.6} parent=11 // pred_fallthru
          _
      $region12: #{_lambda_.6} parent=5 // pred_fallthru
        _
      %p160 = scmp.lt.s32.totalorder %s11, 2
      // Predicated region
      $region21: #{_lambda_.6} parent=5 // pred_check
        %p161 = pneg %p160
      $region22: #{_lambda_.6} parent=5 // pred_check_branch
        %163 = sbr.rel (%p161) target = $region24
      $region23: #{_lambda_.6} parent=5 // pred_region
        // Predicated region
        $region25: #{_lambda_.6} parent=23 // pred_check
          %p164 = pneg %p45
        $region26: #{_lambda_.6} parent=23 // pred_check_branch
          %166 = sbr.rel (%p164) target = $region28
        $region27: #{_lambda_.6} parent=23 // pred_region
          %s167 = smul.u32 8, %s19
          %p168 = scmp.lt.s32.totalorder %s18, 1
          %s169 = scalar_select %p168, %s18, 1
          %p170 = scmp.lt.s32.totalorder %s167, 7
          %s171 = scalar_select %p170, %s167, 7
          %s172 = smul.addr %s169, 8
          %s173 = sadd.s32 %s171, %s172
          %s174 = smul.addr %s173, 4
          %s175 = scalar_lea.vmem %s0, %s174
          %s176 = smul.u32 8, %s19
        $region28: #{_lambda_.6} parent=23 // pred_fallthru
          _
      $region24: #{_lambda_.6} parent=5 // pred_fallthru
        _
      %p177 = scmp.le.s32.totalorder 1, %s11
      %p178 = scmp.lt.s32.totalorder %s11, 3
      %p179 = pnand %p177, %p178
      %p180 = pneg %p179
      // Predicated region
      $region29: #{_lambda_.6} parent=5 // pred_check
        _
      $region30: #{_lambda_.6} parent=5 // pred_check_branch
        %182 = sbr.rel (%p179) target = $region32
      $region31: #{_lambda_.6} parent=5 // pred_region
        %s183 = ssub.s32 %s11, 1
        // Predicated region
        $region33: #{_lambda_.6} parent=31 // pred_check
          %p184 = pneg %p72
        $region34: #{_lambda_.6} parent=31 // pred_check_branch
          %186 = sbr.rel (%p184) target = $region36
        $region35: #{_lambda_.6} parent=31 // pred_region
          %187 = dma.done [#allocation3], 4096
        $region36: #{_lambda_.6} parent=31 // pred_fallthru
          _
        // Predicated region
        $region37: #{_lambda_.6} parent=31 // pred_check
          %p188 = pneg %p93
        $region38: #{_lambda_.6} parent=31 // pred_check_branch
          %190 = sbr.rel (%p188) target = $region40
        $region39: #{_lambda_.6} parent=31 // pred_region
          %191 = dma.done [#allocation5], 16
        $region40: #{_lambda_.6} parent=31 // pred_fallthru
          _
        %s192 = smul.u32 8, %s21
        %p193 = scmp.lt.s32.totalorder %s20, 1
        %s194 = scalar_select %p193, %s20, 1
        %p195 = scmp.lt.s32.totalorder %s192, 7
        %s196 = scalar_select %p195, %s192, 7
        %s197 = smul.addr %s194, 8
        %s198 = sadd.s32 %s196, %s197
        %s199 = smul.addr %s198, 4
        %s200 = scalar_lea.vmem %s0, %s199
        %p201 = pneg %p51
        %p202 = pneg %p48
        %p203 = pneg %p72
        %p204 = pneg %p69
        %p205 = pneg %p93
        %p206 = pneg %p90
        %p207 = pneg %p121
        %p208 = pneg %p118
        %s209 = smul.u32 8, %s21
        %p210 = scmp.lt.s32.totalorder %s20, 1
        %s211 = scalar_select %p210, %s20, 1
        %p212 = scmp.lt.s32.totalorder %s209, 7
        %s213 = scalar_select %p212, %s209, 7
        %s214 = smul.addr %s211, 8
        %s215 = sadd.s32 %s213, %s214
        %s216 = smul.addr %s215, 4
        %s217 = scalar_lea.vmem %s3, %s216
        %s218 = smul.u32 8, %s21
        %p219 = scmp.lt.s32.totalorder %s20, 1
        %s220 = scalar_select %p219, %s20, 1
        %p221 = scmp.lt.s32.totalorder %s218, 7
        %s222 = scalar_select %p221, %s218, 7
        %s223 = smul.addr %s220, 8
        %s224 = sadd.s32 %s222, %s223
        %s225 = smul.addr %s224, 4
        %s226 = scalar_lea.vmem %s0, %s225
        %s227 = smul.u32 8, %s21
        %s228 = smul.u32 8, %s21
        %p229 = scmp.lt.s32.totalorder %s20, 1
        %s230 = scalar_select %p229, %s20, 1
        %p231 = scmp.lt.s32.totalorder %s228, 7
        %s232 = scalar_select %p231, %s228, 7
        %s233 = smul.addr %s230, 8
        %s234 = sadd.s32 %s232, %s233
        %s235 = smul.addr %s234, 4
        %s236 = scalar_lea.vmem %s3, %s235
        %s237 = smul.u32 8, %s21
        %v239 = vld [vmem:[%s226] sm:$0xf]
        %v240 = vld [vmem:[%s226 + $0x4] sm:$0xf]
        %v241 = vld [vmem:[%s226 + $0x8] sm:$0xf]
        %v242 = vld [vmem:[%s226 + $0xc] sm:$0xf]
        %v243 = vld [vmem:[%s226 + $0x10] sm:$0xf]
        %v244 = vld [vmem:[%s226 + $0x14] sm:$0xf]
        %v245 = vld [vmem:[%s226 + $0x18] sm:$0xf]
        %v246 = vld [vmem:[%s226 + $0x1c] sm:$0xf]
        %v247 = vld [vmem:[#allocation2] sm:$0xff]
        %v248 = vld [vmem:[#allocation2 + $0x8] sm:$0xff]
        %v249 = vld [vmem:[#allocation2 + $0x10] sm:$0xff]
        %v250 = vld [vmem:[#allocation2 + $0x18] sm:$0xff]
        %v251 = vld [vmem:[#allocation2 + $0x20] sm:$0xff]
        %v252 = vld [vmem:[#allocation2 + $0x28] sm:$0xff]
        %v253 = vld [vmem:[#allocation2 + $0x30] sm:$0xff]
        %v254 = vld [vmem:[#allocation2 + $0x38] sm:$0xff]
        %v255 = vld [vmem:[#allocation2 + $0x40] sm:$0xff]
        %v256 = vld [vmem:[#allocation2 + $0x48] sm:$0xff]
        %v257 = vld [vmem:[#allocation2 + $0x50] sm:$0xff]
        %v258 = vld [vmem:[#allocation2 + $0x58] sm:$0xff]
        %v259 = vld [vmem:[#allocation2 + $0x60] sm:$0xff]
        %v260 = vld [vmem:[#allocation2 + $0x68] sm:$0xff]
        %v261 = vld [vmem:[#allocation2 + $0x70] sm:$0xff]
        %v262 = vld [vmem:[#allocation2 + $0x78] sm:$0xff]
        %v263 = vld [vmem:[#allocation2 + $0x80] sm:$0xff]
        %v264 = vld [vmem:[#allocation2 + $0x88] sm:$0xff]
        %v265 = vld [vmem:[#allocation2 + $0x90] sm:$0xff]
        %v266 = vld [vmem:[#allocation2 + $0x98] sm:$0xff]
        %v267 = vld [vmem:[#allocation2 + $0xa0] sm:$0xff]
        %v268 = vld [vmem:[#allocation2 + $0xa8] sm:$0xff]
        %v269 = vld [vmem:[#allocation2 + $0xb0] sm:$0xff]
        %v270 = vld [vmem:[#allocation2 + $0xb8] sm:$0xff]
        %v271 = vld [vmem:[#allocation2 + $0xc0] sm:$0xff]
        %v272 = vld [vmem:[#allocation2 + $0xc8] sm:$0xff]
        %v273 = vld [vmem:[#allocation2 + $0xd0] sm:$0xff]
        %v274 = vld [vmem:[#allocation2 + $0xd8] sm:$0xff]
        %v275 = vld [vmem:[#allocation2 + $0xe0] sm:$0xff]
        %v276 = vld [vmem:[#allocation2 + $0xe8] sm:$0xff]
        %v277 = vld [vmem:[#allocation2 + $0xf0] sm:$0xff]
        %v278 = vld [vmem:[#allocation2 + $0xf8] sm:$0xff]
        %v287 = vunpack.c.l.b16 %v239
        %v288 = vunpack.c.l.b16 %v240
        %v289 = vunpack.c.l.b16 %v241
        %v290 = vunpack.c.l.b16 %v242
        %v291 = vunpack.c.l.b16 %v243
        %v292 = vunpack.c.l.b16 %v244
        %v293 = vunpack.c.l.b16 %v245
        %v294 = vunpack.c.l.b16 %v246
        %v295 = vpack.c.b16 %v288, %v287
        %v296 = vpack.c.b16 %v290, %v289
        %v297 = vpack.c.b16 %v292, %v291
        %v298 = vpack.c.b16 %v294, %v293
        %v335 = vunpack.c.l.b16 %v247
        %v336 = vunpack.c.h.b16 %v247
        %v337 = vunpack.c.l.b16 %v248
        %v338 = vunpack.c.h.b16 %v248
        %v339 = vunpack.c.l.b16 %v249
        %v340 = vunpack.c.h.b16 %v249
        %v341 = vunpack.c.l.b16 %v250
        %v342 = vunpack.c.h.b16 %v250
        %v343 = vunpack.c.l.b16 %v251
        %v344 = vunpack.c.h.b16 %v251
        %v345 = vunpack.c.l.b16 %v252
        %v346 = vunpack.c.h.b16 %v252
        %v347 = vunpack.c.l.b16 %v253
        %v348 = vunpack.c.h.b16 %v253
        %v349 = vunpack.c.l.b16 %v254
        %v350 = vunpack.c.h.b16 %v254
        %v351 = vunpack.c.l.b16 %v255
        %v352 = vunpack.c.h.b16 %v255
        %v353 = vunpack.c.l.b16 %v256
        %v354 = vunpack.c.h.b16 %v256
        %v355 = vunpack.c.l.b16 %v257
        %v356 = vunpack.c.h.b16 %v257
        %v357 = vunpack.c.l.b16 %v258
        %v358 = vunpack.c.h.b16 %v258
        %v359 = vunpack.c.l.b16 %v259
        %v360 = vunpack.c.h.b16 %v259
        %v361 = vunpack.c.l.b16 %v260
        %v362 = vunpack.c.h.b16 %v260
        %v363 = vunpack.c.l.b16 %v261
        %v364 = vunpack.c.h.b16 %v261
        %v365 = vunpack.c.l.b16 %v262
        %v366 = vunpack.c.h.b16 %v262
        %v367 = vunpack.c.l.b16 %v263
        %v368 = vunpack.c.h.b16 %v263
        %v369 = vunpack.c.l.b16 %v264
        %v370 = vunpack.c.h.b16 %v264
        %v371 = vunpack.c.l.b16 %v265
        %v372 = vunpack.c.h.b16 %v265
        %v373 = vunpack.c.l.b16 %v266
        %v374 = vunpack.c.h.b16 %v266
        %v375 = vunpack.c.l.b16 %v267
        %v376 = vunpack.c.h.b16 %v267
        %v377 = vunpack.c.l.b16 %v268
        %v378 = vunpack.c.h.b16 %v268
        %v379 = vunpack.c.l.b16 %v269
        %v380 = vunpack.c.h.b16 %v269
        %v381 = vunpack.c.l.b16 %v270
        %v382 = vunpack.c.h.b16 %v270
        %v383 = vunpack.c.l.b16 %v271
        %v384 = vunpack.c.h.b16 %v271
        %v385 = vunpack.c.l.b16 %v272
        %v386 = vunpack.c.h.b16 %v272
        %v387 = vunpack.c.l.b16 %v273
        %v388 = vunpack.c.h.b16 %v273
        %v389 = vunpack.c.l.b16 %v274
        %v390 = vunpack.c.h.b16 %v274
        %v391 = vunpack.c.l.b16 %v275
        %v392 = vunpack.c.h.b16 %v275
        %v393 = vunpack.c.l.b16 %v276
        %v394 = vunpack.c.h.b16 %v276
        %v395 = vunpack.c.l.b16 %v277
        %v396 = vunpack.c.h.b16 %v277
        %v397 = vunpack.c.l.b16 %v278
        %v398 = vunpack.c.h.b16 %v278
        %v399 = vpack.c.b16 %v339, %v335
        %v400 = vpack.c.b16 %v340, %v336
        %v401 = vpack.c.b16 %v341, %v337
        %v402 = vpack.c.b16 %v342, %v338
        %v403 = vpack.c.b16 %v347, %v343
        %v404 = vpack.c.b16 %v348, %v344
        %v405 = vpack.c.b16 %v349, %v345
        %v406 = vpack.c.b16 %v350, %v346
        %v407 = vpack.c.b16 %v355, %v351
        %v408 = vpack.c.b16 %v356, %v352
        %v409 = vpack.c.b16 %v357, %v353
        %v410 = vpack.c.b16 %v358, %v354
        %v411 = vpack.c.b16 %v363, %v359
        %v412 = vpack.c.b16 %v364, %v360
        %v413 = vpack.c.b16 %v365, %v361
        %v414 = vpack.c.b16 %v366, %v362
        %v415 = vpack.c.b16 %v371, %v367
        %v416 = vpack.c.b16 %v372, %v368
        %v417 = vpack.c.b16 %v373, %v369
        %v418 = vpack.c.b16 %v374, %v370
        %v419 = vpack.c.b16 %v379, %v375
        %v420 = vpack.c.b16 %v380, %v376
        %v421 = vpack.c.b16 %v381, %v377
        %v422 = vpack.c.b16 %v382, %v378
        %v423 = vpack.c.b16 %v387, %v383
        %v424 = vpack.c.b16 %v388, %v384
        %v425 = vpack.c.b16 %v389, %v385
        %v426 = vpack.c.b16 %v390, %v386
        %v427 = vpack.c.b16 %v395, %v391
        %v428 = vpack.c.b16 %v396, %v392
        %v429 = vpack.c.b16 %v397, %v393
        %v430 = vpack.c.b16 %v398, %v394
        %463 = vmatprep.subr.bf16.mxu0 %v428
        %464 = vmatpush1.bf16.msra.mxu0 %v427
        %465 = vmatprep.subr.bf16.mxu0 %v424
        %466 = vmatpush1.bf16.msra.mxu0 %v423
        %467 = vmatprep.subr.bf16.mxu0 %v420
        %468 = vmatpush1.bf16.msra.mxu0 %v419
        %469 = vmatprep.subr.bf16.mxu0 %v416
        %470 = vmatpush1.bf16.msra.mxu0 %v415
        %471 = vmatprep.subr.bf16.mxu0 %v412
        %472 = vmatpush1.bf16.msra.mxu0 %v411
        %473 = vmatprep.subr.bf16.mxu0 %v408
        %474 = vmatpush1.bf16.msra.mxu0 %v407
        %475 = vmatprep.subr.bf16.mxu0 %v404
        %476 = vmatpush1.bf16.msra.mxu0 %v403
        %477 = vmatprep.subr.bf16.mxu0 %v400
        %478 = vmatpush1.bf16.msra.mxu0 %v399
        %479 = vmatprep.subr.bf16.mxu0 0
        %480 = vmatpush2.bf16.msra.mxu0 0
        %481 = vmatprep.subr.bf16.mxu0 0
        %482 = vmatpush2.bf16.msra.mxu0 0
        %483 = vmatprep.subr.bf16.mxu0 0
        %484 = vmatpush2.bf16.msra.mxu0 0
        %485 = vmatprep.subr.bf16.mxu0 0
        %486 = vmatpush2.bf16.msra.mxu0 0
        %487 = vmatprep.subr.bf16.mxu0 0
        %488 = vmatpush2.bf16.msra.mxu0 0
        %489 = vmatprep.subr.bf16.mxu0 0
        %490 = vmatpush2.bf16.msra.mxu0 0
        %491 = vmatprep.subr.bf16.mxu0 0
        %492 = vmatpush2.bf16.msra.mxu0 0
        %493 = vmatprep.subr.bf16.mxu0 0
        %494 = vmatpush2.bf16.msra.mxu0 0
        %495 = vmatprep.mubr.bf16.mxu0 0
        %496 = vmatmul.mubr.bf16.gmra.mxu0 %v295
        %v497 = vpop.f32.mrf.mxu0
        %v498 = vadd.f32 0.0, %v497
        %v499 = vpop.f32.mrf.mxu0
        %v500 = vadd.f32 0.0, %v499
        %v501 = vpop.f32.mrf.mxu0
        %v502 = vadd.f32 0.0, %v501
        %v503 = vpop.f32.mrf.mxu0
        %v504 = vadd.f32 0.0, %v503
        %505 = vmatprep.mubr.bf16.mxu0 0
        %506 = vmatmul.mubr.bf16.gmra.mxu0 %v296
        %v507 = vpop.f32.mrf.mxu0
        %v508 = vadd.f32 0.0, %v507
        %v509 = vpop.f32.mrf.mxu0
        %v510 = vadd.f32 0.0, %v509
        %v511 = vpop.f32.mrf.mxu0
        %v512 = vadd.f32 0.0, %v511
        %v513 = vpop.f32.mrf.mxu0
        %v514 = vadd.f32 0.0, %v513
        %515 = vmatprep.mubr.bf16.mxu0 0
        %516 = vmatmul.mubr.bf16.gmra.mxu0 %v297
        %v517 = vpop.f32.mrf.mxu0
        %v518 = vadd.f32 0.0, %v517
        %v519 = vpop.f32.mrf.mxu0
        %v520 = vadd.f32 0.0, %v519
        %v521 = vpop.f32.mrf.mxu0
        %v522 = vadd.f32 0.0, %v521
        %v523 = vpop.f32.mrf.mxu0
        %v524 = vadd.f32 0.0, %v523
        %525 = vmatprep.mubr.bf16.mxu0 0
        %526 = vmatmul.mubr.bf16.gmra.mxu0 %v298
        %v527 = vpop.f32.mrf.mxu0
        %v528 = vadd.f32 0.0, %v527
        %v529 = vpop.f32.mrf.mxu0
        %v530 = vadd.f32 0.0, %v529
        %v531 = vpop.f32.mrf.mxu0
        %v532 = vadd.f32 0.0, %v531
        %v533 = vpop.f32.mrf.mxu0
        %v534 = vadd.f32 0.0, %v533
        %535 = vdwg.mxu0
        %536 = vmatprep.subr.bf16.mxu0 %v430
        %537 = vmatpush1.bf16.msra.mxu0 %v429
        %538 = vmatprep.subr.bf16.mxu0 %v426
        %539 = vmatpush1.bf16.msra.mxu0 %v425
        %540 = vmatprep.subr.bf16.mxu0 %v422
        %541 = vmatpush1.bf16.msra.mxu0 %v421
        %542 = vmatprep.subr.bf16.mxu0 %v418
        %543 = vmatpush1.bf16.msra.mxu0 %v417
        %544 = vmatprep.subr.bf16.mxu0 %v414
        %545 = vmatpush1.bf16.msra.mxu0 %v413
        %546 = vmatprep.subr.bf16.mxu0 %v410
        %547 = vmatpush1.bf16.msra.mxu0 %v409
        %548 = vmatprep.subr.bf16.mxu0 %v406
        %549 = vmatpush1.bf16.msra.mxu0 %v405
        %550 = vmatprep.subr.bf16.mxu0 %v402
        %551 = vmatpush1.bf16.msra.mxu0 %v401
        %552 = vmatprep.subr.bf16.mxu0 0
        %553 = vmatpush2.bf16.msra.mxu0 0
        %554 = vmatprep.subr.bf16.mxu0 0
        %555 = vmatpush2.bf16.msra.mxu0 0
        %556 = vmatprep.subr.bf16.mxu0 0
        %557 = vmatpush2.bf16.msra.mxu0 0
        %558 = vmatprep.subr.bf16.mxu0 0
        %559 = vmatpush2.bf16.msra.mxu0 0
        %560 = vmatprep.subr.bf16.mxu0 0
        %561 = vmatpush2.bf16.msra.mxu0 0
        %562 = vmatprep.subr.bf16.mxu0 0
        %563 = vmatpush2.bf16.msra.mxu0 0
        %564 = vmatprep.subr.bf16.mxu0 0
        %565 = vmatpush2.bf16.msra.mxu0 0
        %566 = vmatprep.subr.bf16.mxu0 0
        %567 = vmatpush2.bf16.msra.mxu0 0
        %568 = vmatprep.mubr.bf16.mxu0 0
        %569 = vmatmul.mubr.bf16.gmra.mxu0 %v295
        %v570 = vpop.f32.mrf.mxu0
        %v571 = vadd.f32 0.0, %v570
        %v572 = vpop.f32.mrf.mxu0
        %v573 = vadd.f32 0.0, %v572
        %v574 = vpop.f32.mrf.mxu0
        %v575 = vadd.f32 0.0, %v574
        %v576 = vpop.f32.mrf.mxu0
        %v577 = vadd.f32 0.0, %v576
        %578 = vmatprep.mubr.bf16.mxu0 0
        %579 = vmatmul.mubr.bf16.gmra.mxu0 %v296
        %v580 = vpop.f32.mrf.mxu0
        %v581 = vadd.f32 0.0, %v580
        %v582 = vpop.f32.mrf.mxu0
        %v583 = vadd.f32 0.0, %v582
        %v584 = vpop.f32.mrf.mxu0
        %v585 = vadd.f32 0.0, %v584
        %v586 = vpop.f32.mrf.mxu0
        %v587 = vadd.f32 0.0, %v586
        %588 = vmatprep.mubr.bf16.mxu0 0
        %589 = vmatmul.mubr.bf16.gmra.mxu0 %v297
        %v590 = vpop.f32.mrf.mxu0
        %v591 = vadd.f32 0.0, %v590
        %v592 = vpop.f32.mrf.mxu0
        %v593 = vadd.f32 0.0, %v592
        %v594 = vpop.f32.mrf.mxu0
        %v595 = vadd.f32 0.0, %v594
        %v596 = vpop.f32.mrf.mxu0
        %v597 = vadd.f32 0.0, %v596
        %598 = vmatprep.mubr.bf16.mxu0 0
        %599 = vmatmul.mubr.bf16.gmra.mxu0 %v298
        %v600 = vpop.f32.mrf.mxu0
        %v601 = vadd.f32 0.0, %v600
        %v602 = vpop.f32.mrf.mxu0
        %v603 = vadd.f32 0.0, %v602
        %v604 = vpop.f32.mrf.mxu0
        %v605 = vadd.f32 0.0, %v604
        %v606 = vpop.f32.mrf.mxu0
        %v607 = vadd.f32 0.0, %v606
        %608 = vdwg.mxu0
        %v609 = vmax.f32 %v498, %v500
        %v610 = vmax.f32 %v502, %v504
        %v611 = vmax.f32 %v508, %v510
        %v612 = vmax.f32 %v512, %v514
        %v613 = vmax.f32 %v518, %v520
        %v614 = vmax.f32 %v522, %v524
        %v615 = vmax.f32 %v528, %v530
        %v616 = vmax.f32 %v532, %v534
        %v617 = vmax.f32 %v571, %v573
        %v618 = vmax.f32 %v575, %v577
        %v619 = vmax.f32 %v581, %v583
        %v620 = vmax.f32 %v585, %v587
        %v621 = vmax.f32 %v591, %v593
        %v622 = vmax.f32 %v595, %v597
        %v623 = vmax.f32 %v601, %v603
        %v624 = vmax.f32 %v605, %v607
        %v625 = vmax.f32 %v609, %v617
        %v626 = vmax.f32 %v610, %v618
        %v627 = vmax.f32 %v611, %v619
        %v628 = vmax.f32 %v612, %v620
        %v629 = vmax.f32 %v613, %v621
        %v630 = vmax.f32 %v614, %v622
        %v631 = vmax.f32 %v615, %v623
        %v632 = vmax.f32 %v616, %v624
        %v633 = vld [vmem:[#allocation4] sm:$0x1]
        %v635 = vlaneseq
        %v636 = vshrl.u32 %v635, 7
        %v637 = vsub.s32 0, %v636
        %v638 = vrot.slane %v633, %v637
        %v640 = vadd.f32 %v625, %v638
        %v641 = vadd.f32 %v626, %v638
        %v642 = vadd.f32 %v627, %v638
        %v643 = vadd.f32 %v628, %v638
        %v644 = vadd.f32 %v629, %v638
        %v645 = vadd.f32 %v630, %v638
        %v646 = vadd.f32 %v631, %v638
        %v647 = vadd.f32 %v632, %v638
        %v648 = vmax.f32 %v640, 0.0
        %v649 = vmax.f32 %v641, 0.0
        %v650 = vmax.f32 %v642, 0.0
        %v651 = vmax.f32 %v643, 0.0
        %v652 = vmax.f32 %v644, 0.0
        %v653 = vmax.f32 %v645, 0.0
        %v654 = vmax.f32 %v646, 0.0
        %v655 = vmax.f32 %v647, 0.0
        %v656 = vpack.c.bf16 %v648, %v648
        %v657 = vpack.c.bf16 %v649, %v649
        %v658 = vpack.c.bf16 %v650, %v650
        %v659 = vpack.c.bf16 %v651, %v651
        %v660 = vpack.c.bf16 %v652, %v652
        %v661 = vpack.c.bf16 %v653, %v653
        %v662 = vpack.c.bf16 %v654, %v654
        %v663 = vpack.c.bf16 %v655, %v655
        %664 = vst [vmem:[%s236] sm:$0xf] %v656
        %665 = vst [vmem:[%s236 + $0x4] sm:$0xf] %v657
        %666 = vst [vmem:[%s236 + $0x8] sm:$0xf] %v658
        %667 = vst [vmem:[%s236 + $0xc] sm:$0xf] %v659
        %668 = vst [vmem:[%s236 + $0x10] sm:$0xf] %v660
        %669 = vst [vmem:[%s236 + $0x14] sm:$0xf] %v661
        %670 = vst [vmem:[%s236 + $0x18] sm:$0xf] %v662
        %671 = vst [vmem:[%s236 + $0x1c] sm:$0xf] %v663
        %s672 = smul.u32 8, %s21
        %p673 = scmp.lt.s32.totalorder %s20, 1
        %s674 = scalar_select %p673, %s20, 1
        %p675 = scmp.lt.s32.totalorder %s672, 7
        %s676 = scalar_select %p675, %s672, 7
        %s677 = smul.addr %s674, 8
        %s678 = sadd.s32 %s676, %s677
        %s679 = smul.addr %s678, 4
        %s680 = scalar_lea.vmem %s3, %s679
        // Predicated region
        $region41: #{_lambda_.6} parent=31 // pred_check
          %p681 = pneg %p118
        $region42: #{_lambda_.6} parent=31 // pred_check_branch
          %683 = sbr.rel (%p681) target = $region44
        $region43: #{_lambda_.6} parent=31 // pred_region
          %s684 = smul.u32 8, %s21
        $region44: #{_lambda_.6} parent=31 // pred_fallthru
          _
      $region32: #{_lambda_.6} parent=5 // pred_fallthru
        _
      %p685 = scmp.le.s32.totalorder 2, %s11
      // Predicated region
      $region45: #{_lambda_.6} parent=5 // pred_check
        %p686 = pneg %p685
      $region46: #{_lambda_.6} parent=5 // pred_check_branch
        %688 = sbr.rel (%p686) target = $region48
      $region47: #{_lambda_.6} parent=5 // pred_region
        %s689 = ssub.s32 %s11, 2
        // Predicated region
        $region49: #{_lambda_.6} parent=47 // pred_check
          %p690 = pneg %p124
        $region50: #{_lambda_.6} parent=47 // pred_check_branch
          %692 = sbr.rel (%p690) target = $region52
        $region51: #{_lambda_.6} parent=47 // pred_region
          %s693 = smul.u32 8, %s23
          %p694 = scmp.lt.s32.totalorder %s22, 1
          %s695 = scalar_select %p694, %s22, 1
          %p696 = scmp.lt.s32.totalorder %s693, 7
          %s697 = scalar_select %p696, %s693, 7
          %s698 = smul.addr %s695, 8
          %s699 = sadd.s32 %s697, %s698
          %s700 = smul.addr %s699, 4
          %s701 = scalar_lea.vmem %s3, %s700
        $region52: #{_lambda_.6} parent=47 // pred_fallthru
          _
      $region48: #{_lambda_.6} parent=5 // pred_fallthru
        _
    $region6: #{_lambda_.6} parent=1 // loop_footer
      %s15 = sadd.s32 1, %s11
    $region7: #{_lambda_.6} parent=1 // loop_footer_branch
      %10 = sbr.rel target = $region3
    $region8: #{_lambda_.6} parent=1 // loop_exit
      _
    %702 = vsyncpa [#allocation3], 1
    %s703 = scalar_lea.sflag [#allocation3], 1
    %704 = vsyncpa %s703, 1
    %705 = vsyncpa [#allocation5], 1

// kernel: _lambda_.9
$region0: #{_lambda_.9}
  #allocation0 [shape = 'u32[]', space=smem, size = 0x4, offset = 0x4, fixed_abs, tag = 'smem constant byte address 0x4 - core index']
  #allocation1 [shape = 'u32[144,128]{1,0:T(1,128)}', space=vmem, size = 0x12000, scoped, tag = 'internal scratch']
  %s0 = inlined_call_operand.vmem [shape: bf16[8,256], index: 0, kind: input, shape index: {}]
  %s1 = inlined_call_operand.vmem [shape: bf16[256,512], index: 1, kind: input, shape index: {}]
  %s2 = inlined_call_operand.vmem [shape: f32[1,512], index: 2, kind: input, shape index: {}]
  %s3 = inlined_call_operand.vmem [shape: bf16[8,512], index: 3, kind: output, shape index: {}]
  %s4 = sld [smem:[#allocation0]]
  $region22: #{_lambda_.9} parent=0
    _
  %s6 = ssub.s32 1, %s4
  %s7 = scalar_select 0, %s6, %s4
  // Predicated region
  $region2: #{_lambda_.9} parent=0 // pred_check
    _
  $region3: #{_lambda_.9} parent=0 // pred_check_branch
    %9 = sbr.rel (0) target = $region5
  $region4: #{_lambda_.9} parent=0 // pred_region
    _
  $region5: #{_lambda_.9} parent=0 // pred_fallthru
    _
  // Predicated region
  $region6: #{_lambda_.9} parent=0 // pred_check
    _
  $region7: #{_lambda_.9} parent=0 // pred_check_branch
    %11 = sbr.rel (0) target = $region9
  $region8: #{_lambda_.9} parent=0 // pred_region
    _
  $region9: #{_lambda_.9} parent=0 // pred_fallthru
    _
  // Predicated region
  $region10: #{_lambda_.9} parent=0 // pred_check
    _
  $region11: #{_lambda_.9} parent=0 // pred_check_branch
    %13 = sbr.rel (0) target = $region13
  $region12: #{_lambda_.9} parent=0 // pred_region
    _
  $region13: #{_lambda_.9} parent=0 // pred_fallthru
    _
  %v14 = vld [vmem:[%s0] sm:$0xff]
  %v15 = vld [vmem:[%s1] sm:$0xff]
  %v16 = vld [vmem:[%s1 + $0x8] sm:$0xff]
  %v17 = vld [vmem:[%s1 + $0x10] sm:$0xff]
  %v18 = vld [vmem:[%s1 + $0x18] sm:$0xff]
  %v19 = vld [vmem:[%s1 + $0x20] sm:$0xff]
  %v20 = vld [vmem:[%s1 + $0x28] sm:$0xff]
  %v21 = vld [vmem:[%s1 + $0x30] sm:$0xff]
  %v22 = vld [vmem:[%s1 + $0x38] sm:$0xff]
  %v23 = vld [vmem:[%s1 + $0x40] sm:$0xff]
  %v24 = vld [vmem:[%s1 + $0x48] sm:$0xff]
  %v25 = vld [vmem:[%s1 + $0x50] sm:$0xff]
  %v26 = vld [vmem:[%s1 + $0x58] sm:$0xff]
  %v27 = vld [vmem:[%s1 + $0x60] sm:$0xff]
  %v28 = vld [vmem:[%s1 + $0x68] sm:$0xff]
  %v29 = vld [vmem:[%s1 + $0x70] sm:$0xff]
  %v30 = vld [vmem:[%s1 + $0x78] sm:$0xff]
  %v31 = vld [vmem:[%s1 + $0x80] sm:$0xff]
  %v32 = vld [vmem:[%s1 + $0x88] sm:$0xff]
  %v33 = vld [vmem:[%s1 + $0x90] sm:$0xff]
  %v34 = vld [vmem:[%s1 + $0x98] sm:$0xff]
  %v35 = vld [vmem:[%s1 + $0xa0] sm:$0xff]
  %v36 = vld [vmem:[%s1 + $0xa8] sm:$0xff]
  %v37 = vld [vmem:[%s1 + $0xb0] sm:$0xff]
  %v38 = vld [vmem:[%s1 + $0xb8] sm:$0xff]
  %v39 = vld [vmem:[%s1 + $0xc0] sm:$0xff]
  %v40 = vld [vmem:[%s1 + $0xc8] sm:$0xff]
  %v41 = vld [vmem:[%s1 + $0xd0] sm:$0xff]
  %v42 = vld [vmem:[%s1 + $0xd8] sm:$0xff]
  %v43 = vld [vmem:[%s1 + $0xe0] sm:$0xff]
  %v44 = vld [vmem:[%s1 + $0xe8] sm:$0xff]
  %v45 = vld [vmem:[%s1 + $0xf0] sm:$0xff]
  %v46 = vld [vmem:[%s1 + $0xf8] sm:$0xff]
  %v47 = vld [vmem:[%s1 + $0x100] sm:$0xff]
  %v48 = vld [vmem:[%s1 + $0x108] sm:$0xff]
  %v49 = vld [vmem:[%s1 + $0x110] sm:$0xff]
  %v50 = vld [vmem:[%s1 + $0x118] sm:$0xff]
  %v51 = vld [vmem:[%s1 + $0x120] sm:$0xff]
  %v52 = vld [vmem:[%s1 + $0x128] sm:$0xff]
  %v53 = vld [vmem:[%s1 + $0x130] sm:$0xff]
  %v54 = vld [vmem:[%s1 + $0x138] sm:$0xff]
  %v55 = vld [vmem:[%s1 + $0x140] sm:$0xff]
  %v56 = vld [vmem:[%s1 + $0x148] sm:$0xff]
  %v57 = vld [vmem:[%s1 + $0x150] sm:$0xff]
  %v58 = vld [vmem:[%s1 + $0x158] sm:$0xff]
  %v59 = vld [vmem:[%s1 + $0x160] sm:$0xff]
  %v60 = vld [vmem:[%s1 + $0x168] sm:$0xff]
  %v61 = vld [vmem:[%s1 + $0x170] sm:$0xff]
  %v62 = vld [vmem:[%s1 + $0x178] sm:$0xff]
  %v63 = vld [vmem:[%s1 + $0x180] sm:$0xff]
  %v64 = vld [vmem:[%s1 + $0x188] sm:$0xff]
  %v65 = vld [vmem:[%s1 + $0x190] sm:$0xff]
  %v66 = vld [vmem:[%s1 + $0x198] sm:$0xff]
  %v67 = vld [vmem:[%s1 + $0x1a0] sm:$0xff]
  %v68 = vld [vmem:[%s1 + $0x1a8] sm:$0xff]
  %v69 = vld [vmem:[%s1 + $0x1b0] sm:$0xff]
  %v70 = vld [vmem:[%s1 + $0x1b8] sm:$0xff]
  %v71 = vld [vmem:[%s1 + $0x1c0] sm:$0xff]
  %v72 = vld [vmem:[%s1 + $0x1c8] sm:$0xff]
  %v73 = vld [vmem:[%s1 + $0x1d0] sm:$0xff]
  %v74 = vld [vmem:[%s1 + $0x1d8] sm:$0xff]
  %v75 = vld [vmem:[%s1 + $0x1e0] sm:$0xff]
  %v76 = vld [vmem:[%s1 + $0x1e8] sm:$0xff]
  %v77 = vld [vmem:[%s1 + $0x1f0] sm:$0xff]
  %v78 = vld [vmem:[%s1 + $0x1f8] sm:$0xff]
  %v79 = vld [vmem:[%s2] sm:$0xf]
  %v81 = vlaneseq
  %v82 = vshrl.u32 %v81, 7
  %v83 = vsub.s32 0, %v82
  %v84 = vrot.slane %v79, %v83
  %v85 = vlaneseq
  %v86 = vshrl.u32 %v85, 7
  %v87 = vsub.s32 1, %v86
  %v88 = vrot.slane %v79, %v87
  %v89 = vlaneseq
  %v90 = vshrl.u32 %v89, 7
  %v91 = vsub.s32 2, %v90
  %v92 = vrot.slane %v79, %v91
  %v93 = vlaneseq
  %v94 = vshrl.u32 %v93, 7
  %v95 = vsub.s32 3, %v94
  %v96 = vrot.slane %v79, %v95
  %v102 = vunpack.c.l.b16 %v14
  %v103 = vunpack.c.h.b16 %v14
  %v104 = vpack.c.b16 %v102, %v102
  %v105 = vpack.c.b16 %v103, %v103
  %v172 = vunpack.c.l.b16 %v15
  %v173 = vunpack.c.h.b16 %v15
  %v174 = vunpack.c.l.b16 %v16
  %v175 = vunpack.c.h.b16 %v16
  %v176 = vunpack.c.l.b16 %v17
  %v177 = vunpack.c.h.b16 %v17
  %v178 = vunpack.c.l.b16 %v18
  %v179 = vunpack.c.h.b16 %v18
  %v180 = vunpack.c.l.b16 %v19
  %v181 = vunpack.c.h.b16 %v19
  %v182 = vunpack.c.l.b16 %v20
  %v183 = vunpack.c.h.b16 %v20
  %v184 = vunpack.c.l.b16 %v21
  %v185 = vunpack.c.h.b16 %v21
  %v186 = vunpack.c.l.b16 %v22
  %v187 = vunpack.c.h.b16 %v22
  %v188 = vunpack.c.l.b16 %v23
  %v189 = vunpack.c.h.b16 %v23
  %v190 = vunpack.c.l.b16 %v24
  %v191 = vunpack.c.h.b16 %v24
  %v192 = vunpack.c.l.b16 %v25
  %v193 = vunpack.c.h.b16 %v25
  %v194 = vunpack.c.l.b16 %v26
  %v195 = vunpack.c.h.b16 %v26
  %v196 = vunpack.c.l.b16 %v27
  %v197 = vunpack.c.h.b16 %v27
  %v198 = vunpack.c.l.b16 %v28
  %v199 = vunpack.c.h.b16 %v28
  %v200 = vunpack.c.l.b16 %v29
  %v201 = vunpack.c.h.b16 %v29
  %v202 = vunpack.c.l.b16 %v30
  %v203 = vunpack.c.h.b16 %v30
  %v204 = vunpack.c.l.b16 %v31
  %v205 = vunpack.c.h.b16 %v31
  %v206 = vunpack.c.l.b16 %v32
  %v207 = vunpack.c.h.b16 %v32
  %v208 = vunpack.c.l.b16 %v33
  %v209 = vunpack.c.h.b16 %v33
  %v210 = vunpack.c.l.b16 %v34
  %v211 = vunpack.c.h.b16 %v34
  %v212 = vunpack.c.l.b16 %v35
  %v213 = vunpack.c.h.b16 %v35
  %v214 = vunpack.c.l.b16 %v36
  %v215 = vunpack.c.h.b16 %v36
  %v216 = vunpack.c.l.b16 %v37
  %v217 = vunpack.c.h.b16 %v37
  %v218 = vunpack.c.l.b16 %v38
  %v219 = vunpack.c.h.b16 %v38
  %v220 = vunpack.c.l.b16 %v39
  %v221 = vunpack.c.h.b16 %v39
  %v222 = vunpack.c.l.b16 %v40
  %v223 = vunpack.c.h.b16 %v40
  %v224 = vunpack.c.l.b16 %v41
  %v225 = vunpack.c.h.b16 %v41
  %v226 = vunpack.c.l.b16 %v42
  %v227 = vunpack.c.h.b16 %v42
  %v228 = vunpack.c.l.b16 %v43
  %v229 = vunpack.c.h.b16 %v43
  %v230 = vunpack.c.l.b16 %v44
  %v231 = vunpack.c.h.b16 %v44
  %v232 = vunpack.c.l.b16 %v45
  %v233 = vunpack.c.h.b16 %v45
  %v234 = vunpack.c.l.b16 %v46
  %v235 = vunpack.c.h.b16 %v46
  %v236 = vunpack.c.l.b16 %v47
  %v237 = vunpack.c.h.b16 %v47
  %v238 = vunpack.c.l.b16 %v48
  %v239 = vunpack.c.h.b16 %v48
  %v240 = vunpack.c.l.b16 %v49
  %v241 = vunpack.c.h.b16 %v49
  %v242 = vunpack.c.l.b16 %v50
  %v243 = vunpack.c.h.b16 %v50
  %v244 = vunpack.c.l.b16 %v51
  %v245 = vunpack.c.h.b16 %v51
  %v246 = vunpack.c.l.b16 %v52
  %v247 = vunpack.c.h.b16 %v52
  %v248 = vunpack.c.l.b16 %v53
  %v249 = vunpack.c.h.b16 %v53
  %v250 = vunpack.c.l.b16 %v54
  %v251 = vunpack.c.h.b16 %v54
  %v252 = vunpack.c.l.b16 %v55
  %v253 = vunpack.c.h.b16 %v55
  %v254 = vunpack.c.l.b16 %v56
  %v255 = vunpack.c.h.b16 %v56
  %v256 = vunpack.c.l.b16 %v57
  %v257 = vunpack.c.h.b16 %v57
  %v258 = vunpack.c.l.b16 %v58
  %v259 = vunpack.c.h.b16 %v58
  %v260 = vunpack.c.l.b16 %v59
  %v261 = vunpack.c.h.b16 %v59
  %v262 = vunpack.c.l.b16 %v60
  %v263 = vunpack.c.h.b16 %v60
  %v264 = vunpack.c.l.b16 %v61
  %v265 = vunpack.c.h.b16 %v61
  %v266 = vunpack.c.l.b16 %v62
  %v267 = vunpack.c.h.b16 %v62
  %v268 = vunpack.c.l.b16 %v63
  %v269 = vunpack.c.h.b16 %v63
  %v270 = vunpack.c.l.b16 %v64
  %v271 = vunpack.c.h.b16 %v64
  %v272 = vunpack.c.l.b16 %v65
  %v273 = vunpack.c.h.b16 %v65
  %v274 = vunpack.c.l.b16 %v66
  %v275 = vunpack.c.h.b16 %v66
  %v276 = vunpack.c.l.b16 %v67
  %v277 = vunpack.c.h.b16 %v67
  %v278 = vunpack.c.l.b16 %v68
  %v279 = vunpack.c.h.b16 %v68
  %v280 = vunpack.c.l.b16 %v69
  %v281 = vunpack.c.h.b16 %v69
  %v282 = vunpack.c.l.b16 %v70
  %v283 = vunpack.c.h.b16 %v70
  %v284 = vunpack.c.l.b16 %v71
  %v285 = vunpack.c.h.b16 %v71
  %v286 = vunpack.c.l.b16 %v72
  %v287 = vunpack.c.h.b16 %v72
  %v288 = vunpack.c.l.b16 %v73
  %v289 = vunpack.c.h.b16 %v73
  %v290 = vunpack.c.l.b16 %v74
  %v291 = vunpack.c.h.b16 %v74
  %v292 = vunpack.c.l.b16 %v75
  %v293 = vunpack.c.h.b16 %v75
  %v294 = vunpack.c.l.b16 %v76
  %v295 = vunpack.c.h.b16 %v76
  %v296 = vunpack.c.l.b16 %v77
  %v297 = vunpack.c.h.b16 %v77
  %v298 = vunpack.c.l.b16 %v78
  %v299 = vunpack.c.h.b16 %v78
  %v300 = vpack.c.b16 %v176, %v172
  %v301 = vpack.c.b16 %v177, %v173
  %v302 = vpack.c.b16 %v178, %v174
  %v303 = vpack.c.b16 %v179, %v175
  %v304 = vpack.c.b16 %v184, %v180
  %v305 = vpack.c.b16 %v185, %v181
  %v306 = vpack.c.b16 %v186, %v182
  %v307 = vpack.c.b16 %v187, %v183
  %v308 = vpack.c.b16 %v192, %v188
  %v309 = vpack.c.b16 %v193, %v189
  %v310 = vpack.c.b16 %v194, %v190
  %v311 = vpack.c.b16 %v195, %v191
  %v312 = vpack.c.b16 %v200, %v196
  %v313 = vpack.c.b16 %v201, %v197
  %v314 = vpack.c.b16 %v202, %v198
  %v315 = vpack.c.b16 %v203, %v199
  %v316 = vpack.c.b16 %v208, %v204
  %v317 = vpack.c.b16 %v209, %v205
  %v318 = vpack.c.b16 %v210, %v206
  %v319 = vpack.c.b16 %v211, %v207
  %v320 = vpack.c.b16 %v216, %v212
  %v321 = vpack.c.b16 %v217, %v213
  %v322 = vpack.c.b16 %v218, %v214
  %v323 = vpack.c.b16 %v219, %v215
  %v324 = vpack.c.b16 %v224, %v220
  %v325 = vpack.c.b16 %v225, %v221
  %v326 = vpack.c.b16 %v226, %v222
  %v327 = vpack.c.b16 %v227, %v223
  %v328 = vpack.c.b16 %v232, %v228
  %v329 = vpack.c.b16 %v233, %v229
  %v330 = vpack.c.b16 %v234, %v230
  %v331 = vpack.c.b16 %v235, %v231
  %v332 = vpack.c.b16 %v240, %v236
  %v333 = vpack.c.b16 %v241, %v237
  %v334 = vpack.c.b16 %v242, %v238
  %v335 = vpack.c.b16 %v243, %v239
  %v336 = vpack.c.b16 %v248, %v244
  %v337 = vpack.c.b16 %v249, %v245
  %v338 = vpack.c.b16 %v250, %v246
  %v339 = vpack.c.b16 %v251, %v247
  %v340 = vpack.c.b16 %v256, %v252
  %v341 = vpack.c.b16 %v257, %v253
  %v342 = vpack.c.b16 %v258, %v254
  %v343 = vpack.c.b16 %v259, %v255
  %v344 = vpack.c.b16 %v264, %v260
  %v345 = vpack.c.b16 %v265, %v261
  %v346 = vpack.c.b16 %v266, %v262
  %v347 = vpack.c.b16 %v267, %v263
  %v348 = vpack.c.b16 %v272, %v268
  %v349 = vpack.c.b16 %v273, %v269
  %v350 = vpack.c.b16 %v274, %v270
  %v351 = vpack.c.b16 %v275, %v271
  %v352 = vpack.c.b16 %v280, %v276
  %v353 = vpack.c.b16 %v281, %v277
  %v354 = vpack.c.b16 %v282, %v278
  %v355 = vpack.c.b16 %v283, %v279
  %v356 = vpack.c.b16 %v288, %v284
  %v357 = vpack.c.b16 %v289, %v285
  %v358 = vpack.c.b16 %v290, %v286
  %v359 = vpack.c.b16 %v291, %v287
  %v360 = vpack.c.b16 %v296, %v292
  %v361 = vpack.c.b16 %v297, %v293
  %v362 = vpack.c.b16 %v298, %v294
  %v363 = vpack.c.b16 %v299, %v295
  %428 = vmatprep.subr.bf16.mxu0 %v329
  %429 = vmatpush1.bf16.msra.mxu0 %v328
  %430 = vmatprep.subr.bf16.mxu0 %v325
  %431 = vmatpush1.bf16.msra.mxu0 %v324
  %432 = vmatprep.subr.bf16.mxu0 %v321
  %433 = vmatpush1.bf16.msra.mxu0 %v320
  %434 = vmatprep.subr.bf16.mxu0 %v317
  %435 = vmatpush1.bf16.msra.mxu0 %v316
  %436 = vmatprep.subr.bf16.mxu0 %v313
  %437 = vmatpush1.bf16.msra.mxu0 %v312
  %438 = vmatprep.subr.bf16.mxu0 %v309
  %439 = vmatpush1.bf16.msra.mxu0 %v308
  %440 = vmatprep.subr.bf16.mxu0 %v305
  %441 = vmatpush1.bf16.msra.mxu0 %v304
  %442 = vmatprep.subr.bf16.mxu0 %v301
  %443 = vmatpush1.bf16.msra.mxu0 %v300
  %444 = vmatprep.subr.bf16.mxu0 %v361
  %445 = vmatpush2.bf16.msra.mxu0 %v360
  %446 = vmatprep.subr.bf16.mxu0 %v357
  %447 = vmatpush2.bf16.msra.mxu0 %v356
  %448 = vmatprep.subr.bf16.mxu0 %v353
  %449 = vmatpush2.bf16.msra.mxu0 %v352
  %450 = vmatprep.subr.bf16.mxu0 %v349
  %451 = vmatpush2.bf16.msra.mxu0 %v348
  %452 = vmatprep.subr.bf16.mxu0 %v345
  %453 = vmatpush2.bf16.msra.mxu0 %v344
  %454 = vmatprep.subr.bf16.mxu0 %v341
  %455 = vmatpush2.bf16.msra.mxu0 %v340
  %456 = vmatprep.subr.bf16.mxu0 %v337
  %457 = vmatpush2.bf16.msra.mxu0 %v336
  %458 = vmatprep.subr.bf16.mxu0 %v333
  %459 = vmatpush2.bf16.msra.mxu0 %v332
  %460 = vmatprep.mubr.bf16.mxu0 %v105
  %461 = vmatmul.mubr.bf16.gmra.mxu0 %v104
  %v462 = vpop.f32.mrf.mxu0
  %v463 = vadd.f32 %v84, %v462
  %v464 = vpop.f32.mrf.mxu0
  %v465 = vadd.f32 %v88, %v464
  %v466 = vpop.f32.mrf.mxu0
  %v467 = vpop.f32.mrf.mxu0
  %468 = vdwg.mxu0
  %469 = vmatprep.subr.bf16.mxu0 %v331
  %470 = vmatpush1.bf16.msra.mxu0 %v330
  %471 = vmatprep.subr.bf16.mxu0 %v327
  %472 = vmatpush1.bf16.msra.mxu0 %v326
  %473 = vmatprep.subr.bf16.mxu0 %v323
  %474 = vmatpush1.bf16.msra.mxu0 %v322
  %475 = vmatprep.subr.bf16.mxu0 %v319
  %476 = vmatpush1.bf16.msra.mxu0 %v318
  %477 = vmatprep.subr.bf16.mxu0 %v315
  %478 = vmatpush1.bf16.msra.mxu0 %v314
  %479 = vmatprep.subr.bf16.mxu0 %v311
  %480 = vmatpush1.bf16.msra.mxu0 %v310
  %481 = vmatprep.subr.bf16.mxu0 %v307
  %482 = vmatpush1.bf16.msra.mxu0 %v306
  %483 = vmatprep.subr.bf16.mxu0 %v303
  %484 = vmatpush1.bf16.msra.mxu0 %v302
  %485 = vmatprep.subr.bf16.mxu0 %v363
  %486 = vmatpush2.bf16.msra.mxu0 %v362
  %487 = vmatprep.subr.bf16.mxu0 %v359
  %488 = vmatpush2.bf16.msra.mxu0 %v358
  %489 = vmatprep.subr.bf16.mxu0 %v355
  %490 = vmatpush2.bf16.msra.mxu0 %v354
  %491 = vmatprep.subr.bf16.mxu0 %v351
  %492 = vmatpush2.bf16.msra.mxu0 %v350
  %493 = vmatprep.subr.bf16.mxu0 %v347
  %494 = vmatpush2.bf16.msra.mxu0 %v346
  %495 = vmatprep.subr.bf16.mxu0 %v343
  %496 = vmatpush2.bf16.msra.mxu0 %v342
  %497 = vmatprep.subr.bf16.mxu0 %v339
  %498 = vmatpush2.bf16.msra.mxu0 %v338
  %499 = vmatprep.subr.bf16.mxu0 %v335
  %500 = vmatpush2.bf16.msra.mxu0 %v334
  %501 = vmatprep.mubr.bf16.mxu0 %v105
  %502 = vmatmul.mubr.bf16.gmra.mxu0 %v104
  %v503 = vpop.f32.mrf.mxu0
  %v504 = vadd.f32 %v92, %v503
  %v505 = vpop.f32.mrf.mxu0
  %v506 = vadd.f32 %v96, %v505
  %v507 = vpop.f32.mrf.mxu0
  %v508 = vpop.f32.mrf.mxu0
  %509 = vdwg.mxu0
  %v510 = vpack.c.bf16 %v463, %v463
  %v511 = vpack.c.bf16 %v465, %v465
  %v512 = vpack.c.bf16 %v504, %v504
  %v513 = vpack.c.bf16 %v506, %v506
  %v518 = vunpack.c.l.b16 %v510
  %v519 = vunpack.c.l.b16 %v511
  %v520 = vunpack.c.l.b16 %v512
  %v521 = vunpack.c.l.b16 %v513
  %v522 = vpack.c.b16 %v519, %v518
  %v523 = vpack.c.b16 %v521, %v520
  %526 = vst [vmem:[%s3] sm:$0xff] %v522
  %527 = vst [vmem:[%s3 + $0x8] sm:$0xff] %v523
  // Predicated region
  $region14: #{_lambda_.9} parent=0 // pred_check
    _
  $region15: #{_lambda_.9} parent=0 // pred_check_branch
    %529 = sbr.rel (0) target = $region17
  $region16: #{_lambda_.9} parent=0 // pred_region
    _
  $region17: #{_lambda_.9} parent=0 // pred_fallthru
    _
  // Predicated region
  $region18: #{_lambda_.9} parent=0 // pred_check
    _
  $region19: #{_lambda_.9} parent=0 // pred_check_branch
    %531 = sbr.rel (0) target = $region21
  $region20: #{_lambda_.9} parent=0 // pred_region
    _
  $region21: #{_lambda_.9} parent=0 // pred_fallthru
    _

// kernel: _lambda_.10
$region0: #{_lambda_.10}
  #allocation0 [shape = 'u32[]', space=smem, size = 0x4, offset = 0x4, fixed_abs, tag = 'smem constant byte address 0x4 - core index']
  #allocation1 [shape = 'u32[144,128]{1,0:T(1,128)}', space=vmem, size = 0x12000, scoped, tag = 'internal scratch']
  %s0 = inlined_call_operand.vmem [shape: bf16[32,128], index: 0, kind: input, shape index: {}]
  %s1 = inlined_call_operand.vmem [shape: bf16[128,512], index: 1, kind: input, shape index: {}]
  %s2 = inlined_call_operand.vmem [shape: f32[1,512], index: 2, kind: input, shape index: {}]
  %s3 = inlined_call_operand.vmem [shape: bf16[32,512], index: 3, kind: output, shape index: {}]
  %s4 = sld [smem:[#allocation0]]
  $region22: #{_lambda_.10} parent=0
    _
  %s6 = ssub.s32 1, %s4
  %s7 = scalar_select 0, %s6, %s4
  // Predicated region
  $region2: #{_lambda_.10} parent=0 // pred_check
    _
  $region3: #{_lambda_.10} parent=0 // pred_check_branch
    %9 = sbr.rel (0) target = $region5
  $region4: #{_lambda_.10} parent=0 // pred_region
    _
  $region5: #{_lambda_.10} parent=0 // pred_fallthru
    _
  // Predicated region
  $region6: #{_lambda_.10} parent=0 // pred_check
    _
  $region7: #{_lambda_.10} parent=0 // pred_check_branch
    %11 = sbr.rel (0) target = $region9
  $region8: #{_lambda_.10} parent=0 // pred_region
    _
  $region9: #{_lambda_.10} parent=0 // pred_fallthru
    _
  // Predicated region
  $region10: #{_lambda_.10} parent=0 // pred_check
    _
  $region11: #{_lambda_.10} parent=0 // pred_check_branch
    %13 = sbr.rel (0) target = $region13
  $region12: #{_lambda_.10} parent=0 // pred_region
    _
  $region13: #{_lambda_.10} parent=0 // pred_fallthru
    _
  %v15 = vld [vmem:[%s0] sm:$0xf]
  %v16 = vld [vmem:[%s0 + $0x4] sm:$0xf]
  %v17 = vld [vmem:[%s0 + $0x8] sm:$0xf]
  %v18 = vld [vmem:[%s0 + $0xc] sm:$0xf]
  %v19 = vld [vmem:[%s1] sm:$0xff]
  %v20 = vld [vmem:[%s1 + $0x8] sm:$0xff]
  %v21 = vld [vmem:[%s1 + $0x10] sm:$0xff]
  %v22 = vld [vmem:[%s1 + $0x18] sm:$0xff]
  %v23 = vld [vmem:[%s1 + $0x20] sm:$0xff]
  %v24 = vld [vmem:[%s1 + $0x28] sm:$0xff]
  %v25 = vld [vmem:[%s1 + $0x30] sm:$0xff]
  %v26 = vld [vmem:[%s1 + $0x38] sm:$0xff]
  %v27 = vld [vmem:[%s1 + $0x40] sm:$0xff]
  %v28 = vld [vmem:[%s1 + $0x48] sm:$0xff]
  %v29 = vld [vmem:[%s1 + $0x50] sm:$0xff]
  %v30 = vld [vmem:[%s1 + $0x58] sm:$0xff]
  %v31 = vld [vmem:[%s1 + $0x60] sm:$0xff]
  %v32 = vld [vmem:[%s1 + $0x68] sm:$0xff]
  %v33 = vld [vmem:[%s1 + $0x70] sm:$0xff]
  %v34 = vld [vmem:[%s1 + $0x78] sm:$0xff]
  %v35 = vld [vmem:[%s1 + $0x80] sm:$0xff]
  %v36 = vld [vmem:[%s1 + $0x88] sm:$0xff]
  %v37 = vld [vmem:[%s1 + $0x90] sm:$0xff]
  %v38 = vld [vmem:[%s1 + $0x98] sm:$0xff]
  %v39 = vld [vmem:[%s1 + $0xa0] sm:$0xff]
  %v40 = vld [vmem:[%s1 + $0xa8] sm:$0xff]
  %v41 = vld [vmem:[%s1 + $0xb0] sm:$0xff]
  %v42 = vld [vmem:[%s1 + $0xb8] sm:$0xff]
  %v43 = vld [vmem:[%s1 + $0xc0] sm:$0xff]
  %v44 = vld [vmem:[%s1 + $0xc8] sm:$0xff]
  %v45 = vld [vmem:[%s1 + $0xd0] sm:$0xff]
  %v46 = vld [vmem:[%s1 + $0xd8] sm:$0xff]
  %v47 = vld [vmem:[%s1 + $0xe0] sm:$0xff]
  %v48 = vld [vmem:[%s1 + $0xe8] sm:$0xff]
  %v49 = vld [vmem:[%s1 + $0xf0] sm:$0xff]
  %v50 = vld [vmem:[%s1 + $0xf8] sm:$0xff]
  %v51 = vld [vmem:[%s2] sm:$0xf]
  %v53 = vlaneseq
  %v54 = vshrl.u32 %v53, 7
  %v55 = vsub.s32 0, %v54
  %v56 = vrot.slane %v51, %v55
  %v57 = vlaneseq
  %v58 = vshrl.u32 %v57, 7
  %v59 = vsub.s32 1, %v58
  %v60 = vrot.slane %v51, %v59
  %v61 = vlaneseq
  %v62 = vshrl.u32 %v61, 7
  %v63 = vsub.s32 2, %v62
  %v64 = vrot.slane %v51, %v63
  %v65 = vlaneseq
  %v66 = vshrl.u32 %v65, 7
  %v67 = vsub.s32 3, %v66
  %v68 = vrot.slane %v51, %v67
  %v77 = vunpack.c.l.b16 %v15
  %v78 = vunpack.c.l.b16 %v16
  %v79 = vunpack.c.l.b16 %v17
  %v80 = vunpack.c.l.b16 %v18
  %v81 = vpack.c.b16 %v78, %v77
  %v82 = vpack.c.b16 %v80, %v79
  %v117 = vunpack.c.l.b16 %v19
  %v118 = vunpack.c.h.b16 %v19
  %v119 = vunpack.c.l.b16 %v20
  %v120 = vunpack.c.h.b16 %v20
  %v121 = vunpack.c.l.b16 %v21
  %v122 = vunpack.c.h.b16 %v21
  %v123 = vunpack.c.l.b16 %v22
  %v124 = vunpack.c.h.b16 %v22
  %v125 = vunpack.c.l.b16 %v23
  %v126 = vunpack.c.h.b16 %v23
  %v127 = vunpack.c.l.b16 %v24
  %v128 = vunpack.c.h.b16 %v24
  %v129 = vunpack.c.l.b16 %v25
  %v130 = vunpack.c.h.b16 %v25
  %v131 = vunpack.c.l.b16 %v26
  %v132 = vunpack.c.h.b16 %v26
  %v133 = vunpack.c.l.b16 %v27
  %v134 = vunpack.c.h.b16 %v27
  %v135 = vunpack.c.l.b16 %v28
  %v136 = vunpack.c.h.b16 %v28
  %v137 = vunpack.c.l.b16 %v29
  %v138 = vunpack.c.h.b16 %v29
  %v139 = vunpack.c.l.b16 %v30
  %v140 = vunpack.c.h.b16 %v30
  %v141 = vunpack.c.l.b16 %v31
  %v142 = vunpack.c.h.b16 %v31
  %v143 = vunpack.c.l.b16 %v32
  %v144 = vunpack.c.h.b16 %v32
  %v145 = vunpack.c.l.b16 %v33
  %v146 = vunpack.c.h.b16 %v33
  %v147 = vunpack.c.l.b16 %v34
  %v148 = vunpack.c.h.b16 %v34
  %v149 = vunpack.c.l.b16 %v35
  %v150 = vunpack.c.h.b16 %v35
  %v151 = vunpack.c.l.b16 %v36
  %v152 = vunpack.c.h.b16 %v36
  %v153 = vunpack.c.l.b16 %v37
  %v154 = vunpack.c.h.b16 %v37
  %v155 = vunpack.c.l.b16 %v38
  %v156 = vunpack.c.h.b16 %v38
  %v157 = vunpack.c.l.b16 %v39
  %v158 = vunpack.c.h.b16 %v39
  %v159 = vunpack.c.l.b16 %v40
  %v160 = vunpack.c.h.b16 %v40
  %v161 = vunpack.c.l.b16 %v41
  %v162 = vunpack.c.h.b16 %v41
  %v163 = vunpack.c.l.b16 %v42
  %v164 = vunpack.c.h.b16 %v42
  %v165 = vunpack.c.l.b16 %v43
  %v166 = vunpack.c.h.b16 %v43
  %v167 = vunpack.c.l.b16 %v44
  %v168 = vunpack.c.h.b16 %v44
  %v169 = vunpack.c.l.b16 %v45
  %v170 = vunpack.c.h.b16 %v45
  %v171 = vunpack.c.l.b16 %v46
  %v172 = vunpack.c.h.b16 %v46
  %v173 = vunpack.c.l.b16 %v47
  %v174 = vunpack.c.h.b16 %v47
  %v175 = vunpack.c.l.b16 %v48
  %v176 = vunpack.c.h.b16 %v48
  %v177 = vunpack.c.l.b16 %v49
  %v178 = vunpack.c.h.b16 %v49
  %v179 = vunpack.c.l.b16 %v50
  %v180 = vunpack.c.h.b16 %v50
  %v181 = vpack.c.b16 %v121, %v117
  %v182 = vpack.c.b16 %v122, %v118
  %v183 = vpack.c.b16 %v123, %v119
  %v184 = vpack.c.b16 %v124, %v120
  %v185 = vpack.c.b16 %v129, %v125
  %v186 = vpack.c.b16 %v130, %v126
  %v187 = vpack.c.b16 %v131, %v127
  %v188 = vpack.c.b16 %v132, %v128
  %v189 = vpack.c.b16 %v137, %v133
  %v190 = vpack.c.b16 %v138, %v134
  %v191 = vpack.c.b16 %v139, %v135
  %v192 = vpack.c.b16 %v140, %v136
  %v193 = vpack.c.b16 %v145, %v141
  %v194 = vpack.c.b16 %v146, %v142
  %v195 = vpack.c.b16 %v147, %v143
  %v196 = vpack.c.b16 %v148, %v144
  %v197 = vpack.c.b16 %v153, %v149
  %v198 = vpack.c.b16 %v154, %v150
  %v199 = vpack.c.b16 %v155, %v151
  %v200 = vpack.c.b16 %v156, %v152
  %v201 = vpack.c.b16 %v161, %v157
  %v202 = vpack.c.b16 %v162, %v158
  %v203 = vpack.c.b16 %v163, %v159
  %v204 = vpack.c.b16 %v164, %v160
  %v205 = vpack.c.b16 %v169, %v165
  %v206 = vpack.c.b16 %v170, %v166
  %v207 = vpack.c.b16 %v171, %v167
  %v208 = vpack.c.b16 %v172, %v168
  %v209 = vpack.c.b16 %v177, %v173
  %v210 = vpack.c.b16 %v178, %v174
  %v211 = vpack.c.b16 %v179, %v175
  %v212 = vpack.c.b16 %v180, %v176
  %245 = vmatprep.subr.bf16.mxu0 %v210
  %246 = vmatpush1.bf16.msra.mxu0 %v209
  %247 = vmatprep.subr.bf16.mxu0 %v206
  %248 = vmatpush1.bf16.msra.mxu0 %v205
  %249 = vmatprep.subr.bf16.mxu0 %v202
  %250 = vmatpush1.bf16.msra.mxu0 %v201
  %251 = vmatprep.subr.bf16.mxu0 %v198
  %252 = vmatpush1.bf16.msra.mxu0 %v197
  %253 = vmatprep.subr.bf16.mxu0 %v194
  %254 = vmatpush1.bf16.msra.mxu0 %v193
  %255 = vmatprep.subr.bf16.mxu0 %v190
  %256 = vmatpush1.bf16.msra.mxu0 %v189
  %257 = vmatprep.subr.bf16.mxu0 %v186
  %258 = vmatpush1.bf16.msra.mxu0 %v185
  %259 = vmatprep.subr.bf16.mxu0 %v182
  %260 = vmatpush1.bf16.msra.mxu0 %v181
  %261 = vmatprep.subr.bf16.mxu0 0
  %262 = vmatpush2.bf16.msra.mxu0 0
  %263 = vmatprep.subr.bf16.mxu0 0
  %264 = vmatpush2.bf16.msra.mxu0 0
  %265 = vmatprep.subr.bf16.mxu0 0
  %266 = vmatpush2.bf16.msra.mxu0 0
  %267 = vmatprep.subr.bf16.mxu0 0
  %268 = vmatpush2.bf16.msra.mxu0 0
  %269 = vmatprep.subr.bf16.mxu0 0
  %270 = vmatpush2.bf16.msra.mxu0 0
  %271 = vmatprep.subr.bf16.mxu0 0
  %272 = vmatpush2.bf16.msra.mxu0 0
  %273 = vmatprep.subr.bf16.mxu0 0
  %274 = vmatpush2.bf16.msra.mxu0 0
  %275 = vmatprep.subr.bf16.mxu0 0
  %276 = vmatpush2.bf16.msra.mxu0 0
  %277 = vmatprep.mubr.bf16.mxu0 0
  %278 = vmatmul.mubr.bf16.gmra.mxu0 %v81
  %v279 = vpop.f32.mrf.mxu0
  %v280 = vadd.f32 %v56, %v279
  %v281 = vpop.f32.mrf.mxu0
  %v282 = vadd.f32 %v60, %v281
  %v283 = vpop.f32.mrf.mxu0
  %v284 = vadd.f32 %v56, %v283
  %v285 = vpop.f32.mrf.mxu0
  %v286 = vadd.f32 %v60, %v285
  %287 = vmatprep.mubr.bf16.mxu0 0
  %288 = vmatmul.mubr.bf16.gmra.mxu0 %v82
  %v289 = vpop.f32.mrf.mxu0
  %v290 = vadd.f32 %v56, %v289
  %v291 = vpop.f32.mrf.mxu0
  %v292 = vadd.f32 %v60, %v291
  %v293 = vpop.f32.mrf.mxu0
  %v294 = vadd.f32 %v56, %v293
  %v295 = vpop.f32.mrf.mxu0
  %v296 = vadd.f32 %v60, %v295
  %297 = vdwg.mxu0
  %298 = vmatprep.subr.bf16.mxu0 %v212
  %299 = vmatpush1.bf16.msra.mxu0 %v211
  %300 = vmatprep.subr.bf16.mxu0 %v208
  %301 = vmatpush1.bf16.msra.mxu0 %v207
  %302 = vmatprep.subr.bf16.mxu0 %v204
  %303 = vmatpush1.bf16.msra.mxu0 %v203
  %304 = vmatprep.subr.bf16.mxu0 %v200
  %305 = vmatpush1.bf16.msra.mxu0 %v199
  %306 = vmatprep.subr.bf16.mxu0 %v196
  %307 = vmatpush1.bf16.msra.mxu0 %v195
  %308 = vmatprep.subr.bf16.mxu0 %v192
  %309 = vmatpush1.bf16.msra.mxu0 %v191
  %310 = vmatprep.subr.bf16.mxu0 %v188
  %311 = vmatpush1.bf16.msra.mxu0 %v187
  %312 = vmatprep.subr.bf16.mxu0 %v184
  %313 = vmatpush1.bf16.msra.mxu0 %v183
  %314 = vmatprep.subr.bf16.mxu0 0
  %315 = vmatpush2.bf16.msra.mxu0 0
  %316 = vmatprep.subr.bf16.mxu0 0
  %317 = vmatpush2.bf16.msra.mxu0 0
  %318 = vmatprep.subr.bf16.mxu0 0
  %319 = vmatpush2.bf16.msra.mxu0 0
  %320 = vmatprep.subr.bf16.mxu0 0
  %321 = vmatpush2.bf16.msra.mxu0 0
  %322 = vmatprep.subr.bf16.mxu0 0
  %323 = vmatpush2.bf16.msra.mxu0 0
  %324 = vmatprep.subr.bf16.mxu0 0
  %325 = vmatpush2.bf16.msra.mxu0 0
  %326 = vmatprep.subr.bf16.mxu0 0
  %327 = vmatpush2.bf16.msra.mxu0 0
  %328 = vmatprep.subr.bf16.mxu0 0
  %329 = vmatpush2.bf16.msra.mxu0 0
  %330 = vmatprep.mubr.bf16.mxu0 0
  %331 = vmatmul.mubr.bf16.gmra.mxu0 %v81
  %v332 = vpop.f32.mrf.mxu0
  %v333 = vadd.f32 %v64, %v332
  %v334 = vpop.f32.mrf.mxu0
  %v335 = vadd.f32 %v68, %v334
  %v336 = vpop.f32.mrf.mxu0
  %v337 = vadd.f32 %v64, %v336
  %v338 = vpop.f32.mrf.mxu0
  %v339 = vadd.f32 %v68, %v338
  %340 = vmatprep.mubr.bf16.mxu0 0
  %341 = vmatmul.mubr.bf16.gmra.mxu0 %v82
  %v342 = vpop.f32.mrf.mxu0
  %v343 = vadd.f32 %v64, %v342
  %v344 = vpop.f32.mrf.mxu0
  %v345 = vadd.f32 %v68, %v344
  %v346 = vpop.f32.mrf.mxu0
  %v347 = vadd.f32 %v64, %v346
  %v348 = vpop.f32.mrf.mxu0
  %v349 = vadd.f32 %v68, %v348
  %350 = vdwg.mxu0
  %v351 = vpack.c.bf16 %v284, %v280
  %v352 = vpack.c.bf16 %v286, %v282
  %v353 = vpack.c.bf16 %v337, %v333
  %v354 = vpack.c.bf16 %v339, %v335
  %v355 = vpack.c.bf16 %v294, %v290
  %v356 = vpack.c.bf16 %v296, %v292
  %v357 = vpack.c.bf16 %v347, %v343
  %v358 = vpack.c.bf16 %v349, %v345
  %v367 = vunpack.c.l.b16 %v351
  %v368 = vunpack.c.l.b16 %v352
  %v369 = vunpack.c.l.b16 %v353
  %v370 = vunpack.c.l.b16 %v354
  %v371 = vunpack.c.h.b16 %v351
  %v372 = vunpack.c.h.b16 %v352
  %v373 = vunpack.c.h.b16 %v353
  %v374 = vunpack.c.h.b16 %v354
  %v375 = vunpack.c.l.b16 %v355
  %v376 = vunpack.c.l.b16 %v356
  %v377 = vunpack.c.l.b16 %v357
  %v378 = vunpack.c.l.b16 %v358
  %v379 = vunpack.c.h.b16 %v355
  %v380 = vunpack.c.h.b16 %v356
  %v381 = vunpack.c.h.b16 %v357
  %v382 = vunpack.c.h.b16 %v358
  %v383 = vpack.c.b16 %v368, %v367
  %v384 = vpack.c.b16 %v370, %v369
  %v385 = vpack.c.b16 %v372, %v371
  %v386 = vpack.c.b16 %v374, %v373
  %v387 = vpack.c.b16 %v376, %v375
  %v388 = vpack.c.b16 %v378, %v377
  %v389 = vpack.c.b16 %v380, %v379
  %v390 = vpack.c.b16 %v382, %v381
  %399 = vst [vmem:[%s3] sm:$0xff] %v383
  %400 = vst [vmem:[%s3 + $0x8] sm:$0xff] %v384
  %401 = vst [vmem:[%s3 + $0x10] sm:$0xff] %v385
  %402 = vst [vmem:[%s3 + $0x18] sm:$0xff] %v386
  %403 = vst [vmem:[%s3 + $0x20] sm:$0xff] %v387
  %404 = vst [vmem:[%s3 + $0x28] sm:$0xff] %v388
  %405 = vst [vmem:[%s3 + $0x30] sm:$0xff] %v389
  %406 = vst [vmem:[%s3 + $0x38] sm:$0xff] %v390
  // Predicated region
  $region14: #{_lambda_.10} parent=0 // pred_check
    _
  $region15: #{_lambda_.10} parent=0 // pred_check_branch
    %408 = sbr.rel (0) target = $region17
  $region16: #{_lambda_.10} parent=0 // pred_region
    _
  $region17: #{_lambda_.10} parent=0 // pred_fallthru
    _
  // Predicated region
  $region18: #{_lambda_.10} parent=0 // pred_check
    _
  $region19: #{_lambda_.10} parent=0 // pred_check_branch
    %410 = sbr.rel (0) target = $region21
  $region20: #{_lambda_.10} parent=0 // pred_region
    _
  $region21: #{_lambda_.10} parent=0 // pred_fallthru
    _

// kernel: _lambda_.7
$region0: #{_lambda_.7}
  #allocation0 [shape = 'u32[]', space=smem, size = 0x4, offset = 0x4, fixed_abs, tag = 'smem constant byte address 0x4 - core index']
  #allocation1 [shape = 'u32[144,128]{1,0:T(1,128)}', space=vmem, size = 0x12000, scoped, tag = 'internal scratch']
  %s0 = inlined_call_operand.vmem [shape: bf16[2,5,8,256], index: 0, kind: input, shape index: {}]
  %s1 = inlined_call_operand.vmem [shape: bf16[2,5,8,256], index: 1, kind: input, shape index: {}]
  %s2 = inlined_call_operand.hbm [shape: bf16[1024,512], index: 2, kind: input, shape index: {}]
  %s3 = inlined_call_operand.hbm [shape: f32[1,128], index: 3, kind: input, shape index: {}]
  %s4 = inlined_call_operand.vmem [shape: bf16[2,4,8,128], index: 4, kind: output, shape index: {}]
  %s5 = sld [smem:[#allocation0]]
  $region57: #{_lambda_.7} parent=0
    _
  %s7 = ssub.s32 1, %s5
  %s8 = scalar_select 0, %s7, %s5
  $region1: #{_lambda_.7} parent=0
    #allocation2 [shape = 'u8[1048576]{0}', space=vmem, size = 0x100000, scoped, tag = 'input window, operand 2, single buffered']
    #allocation3 [shape = 's32[2]{0}', space=sflag, size = 0x8, scoped, tag = 'scoped memory for _lambda_.7']
    #allocation4 [shape = 'u8[512]{0}', space=vmem, size = 0x400, scoped, tag = 'input window, operand 3, single buffered']
    #allocation5 [shape = 's32[1]{0}', space=sflag, size = 0x4, scoped, tag = 'scoped memory for _lambda_.7']
    %9 = vsyncpa [#allocation3], 0
    %10 = vsyncpa [#allocation5], 0
    loop: start=0, step=1, limit=4
    $region2: #{_lambda_.7} parent=1 // loop_pre_header
      _
    $region3: #{_lambda_.7} parent=1 // loop_header
      %s12 = sphi 0, %s16
      %p13 = scmp.ge.s32.totalorder %s12, 4
      %s22 = sphi 0, %s24
      %s25 = sphi 0, %s22
      %s26 = sphi 0, %s25
      %s42 = sphi 0, %s26
      %s48 = sphi 0, %s50
      %s51 = sphi 0, %s48
      %s52 = sphi 0, %s51
      %s68 = sphi 0, %s52
      %s72 = sphi 0, %s72
      %s74 = sphi 0, %s72
      %s75 = sphi 0, %s74
      %s89 = sphi 0, %s75
      %s93 = sphi 0, %s93
      %s95 = sphi 0, %s93
      %s96 = sphi 0, %s95
      %s110 = sphi 0, %s96
      %s116 = sphi 0, %s118
      %s119 = sphi 0, %s116
      %s120 = sphi 0, %s119
      %s136 = sphi 0, %s120
    $region4: #{_lambda_.7} parent=1 // loop_header_branch
      %15 = sbr.rel (%p13) target = $region8
    $region5: #{_lambda_.7} parent=1 // loop_body
      %s17 = ssub.s32 %s12, 1
      %s18 = ssub.s32 %s12, 2
      %s19 = sadd.s32 %s12, 1
      %s20 = ssub.s32 %s12, %s19
      %p21 = scmp.eq.s32.totalorder %s20, 0
      %s23 = sadd.s32 %s22, 1
      %s24 = scalar_select %p21, %s22, %s23
      %p27 = pneg %p21
      %p28 = scmp.eq.s32.totalorder %s12, 1
      %p29 = por %p27, %p28
      %p30 = scmp.ne.s32.totalorder %s22, %s25
      %p31 = scmp.eq.s32.totalorder %s12, 0
      %p32 = por %p30, %p31
      %p33 = scmp.ne.s32.totalorder %s22, %s25
      %p34 = scmp.eq.s32.totalorder %s17, 1
      %p35 = por %p33, %p34
      %p36 = scmp.ne.s32.totalorder %s25, %s26
      %p37 = scmp.eq.s32.totalorder %s17, 0
      %p38 = por %p36, %p37
      %p39 = scmp.ne.s32.totalorder %s25, %s26
      %p40 = scmp.eq.s32.totalorder %s18, 1
      %p41 = por %p39, %p40
      %p43 = scmp.ne.s32.totalorder %s26, %s42
      %p44 = scmp.eq.s32.totalorder %s18, 0
      %p45 = por %p43, %p44
      %s46 = ssub.s32 %s12, %s19
      %p47 = scmp.eq.s32.totalorder %s46, 0
      %s49 = sadd.s32 %s48, 1
      %s50 = scalar_select %p47, %s48, %s49
      %p53 = pneg %p47
      %p54 = scmp.eq.s32.totalorder %s12, 1
      %p55 = por %p53, %p54
      %p56 = scmp.ne.s32.totalorder %s48, %s51
      %p57 = scmp.eq.s32.totalorder %s12, 0
      %p58 = por %p56, %p57
      %p59 = scmp.ne.s32.totalorder %s48, %s51
      %p60 = scmp.eq.s32.totalorder %s17, 1
      %p61 = por %p59, %p60
      %p62 = scmp.ne.s32.totalorder %s51, %s52
      %p63 = scmp.eq.s32.totalorder %s17, 0
      %p64 = por %p62, %p63
      %p65 = scmp.ne.s32.totalorder %s51, %s52
      %p66 = scmp.eq.s32.totalorder %s18, 1
      %p67 = por %p65, %p66
      %p69 = scmp.ne.s32.totalorder %s52, %s68
      %p70 = scmp.eq.s32.totalorder %s18, 0
      %p71 = por %p69, %p70
      %s73 = sadd.s32 %s72, 1
      %p76 = scmp.eq.s32.totalorder %s12, 1
      %p77 = scmp.ne.s32.totalorder %s72, %s74
      %p78 = scmp.eq.s32.totalorder %s12, 0
      %p79 = por %p77, %p78
      %p80 = scmp.ne.s32.totalorder %s72, %s74
      %p81 = scmp.eq.s32.totalorder %s17, 1
      %p82 = por %p80, %p81
      %p83 = scmp.ne.s32.totalorder %s74, %s75
      %p84 = scmp.eq.s32.totalorder %s17, 0
      %p85 = por %p83, %p84
      %p86 = scmp.ne.s32.totalorder %s74, %s75
      %p87 = scmp.eq.s32.totalorder %s18, 1
      %p88 = por %p86, %p87
      %p90 = scmp.ne.s32.totalorder %s75, %s89
      %p91 = scmp.eq.s32.totalorder %s18, 0
      %p92 = por %p90, %p91
      %s94 = sadd.s32 %s93, 1
      %p97 = scmp.eq.s32.totalorder %s12, 1
      %p98 = scmp.ne.s32.totalorder %s93, %s95
      %p99 = scmp.eq.s32.totalorder %s12, 0
      %p100 = por %p98, %p99
      %p101 = scmp.ne.s32.totalorder %s93, %s95
      %p102 = scmp.eq.s32.totalorder %s17, 1
      %p103 = por %p101, %p102
      %p104 = scmp.ne.s32.totalorder %s95, %s96
      %p105 = scmp.eq.s32.totalorder %s17, 0
      %p106 = por %p104, %p105
      %p107 = scmp.ne.s32.totalorder %s95, %s96
      %p108 = scmp.eq.s32.totalorder %s18, 1
      %p109 = por %p107, %p108
      %p111 = scmp.ne.s32.totalorder %s96, %s110
      %p112 = scmp.eq.s32.totalorder %s18, 0
      %p113 = por %p111, %p112
      %s114 = ssub.s32 %s12, %s19
      %p115 = scmp.eq.s32.totalorder %s114, 0
      %s117 = sadd.s32 %s116, 1
      %s118 = scalar_select %p115, %s116, %s117
      %p121 = pneg %p115
      %p122 = scmp.eq.s32.totalorder %s12, 1
      %p123 = por %p121, %p122
      %p124 = scmp.ne.s32.totalorder %s116, %s119
      %p125 = scmp.eq.s32.totalorder %s12, 0
      %p126 = por %p124, %p125
      %p127 = scmp.ne.s32.totalorder %s116, %s119
      %p128 = scmp.eq.s32.totalorder %s17, 1
      %p129 = por %p127, %p128
      %p130 = scmp.ne.s32.totalorder %s119, %s120
      %p131 = scmp.eq.s32.totalorder %s17, 0
      %p132 = por %p130, %p131
      %p133 = scmp.ne.s32.totalorder %s119, %s120
      %p134 = scmp.eq.s32.totalorder %s18, 1
      %p135 = por %p133, %p134
      %p137 = scmp.ne.s32.totalorder %s120, %s136
      %p138 = scmp.eq.s32.totalorder %s18, 0
      %p139 = por %p137, %p138
      %p140 = scmp.le.s32.totalorder 1, %s12
      %p141 = scmp.lt.s32.totalorder %s12, 3
      %p142 = pnand %p140, %p141
      %p143 = pneg %p142
      // Predicated region
      $region9: #{_lambda_.7} parent=5 // pred_check
        _
      $region10: #{_lambda_.7} parent=5 // pred_check_branch
        %145 = sbr.rel (%p142) target = $region12
      $region11: #{_lambda_.7} parent=5 // pred_region
        %s146 = ssub.s32 %s12, 1
        // Predicated region
        $region13: #{_lambda_.7} parent=11 // pred_check
          %p147 = pneg %p85
        $region14: #{_lambda_.7} parent=11 // pred_check_branch
          %149 = sbr.rel (%p147) target = $region16
        $region15: #{_lambda_.7} parent=11 // pred_region
          %s151 = ssub.s32 32768, 32768
          %152 = vsyncadd [#allocation3], %s151
          %s153 = sshll.u32 [#allocation2], 4
          %s154 = int_to_ptr.vmem [resolvable:$true] %s153
          %159 = dma.hbm_to_vmem [thread:$0]  %s2, 32768, %s154, [#allocation3], 256, 256, 16
        $region16: #{_lambda_.7} parent=11 // pred_fallthru
          _
        // Predicated region
        $region17: #{_lambda_.7} parent=11 // pred_check
          %p160 = pneg %p106
        $region18: #{_lambda_.7} parent=11 // pred_check_branch
          %162 = sbr.rel (%p160) target = $region20
        $region19: #{_lambda_.7} parent=11 // pred_region
          %s164 = ssub.s32 16, 16
          %165 = vsyncadd [#allocation5], %s164
          %s167 = sshll.u32 [#allocation4], 4
          %s168 = int_to_ptr.vmem [resolvable:$true] %s167
          %170 = dma.hbm_to_vmem [thread:$0]  %s3, 16, %s168, [#allocation5]
        $region20: #{_lambda_.7} parent=11 // pred_fallthru
          _
      $region12: #{_lambda_.7} parent=5 // pred_fallthru
        _
      %p171 = scmp.lt.s32.totalorder %s12, 2
      // Predicated region
      $region21: #{_lambda_.7} parent=5 // pred_check
        %p172 = pneg %p171
      $region22: #{_lambda_.7} parent=5 // pred_check_branch
        %174 = sbr.rel (%p172) target = $region24
      $region23: #{_lambda_.7} parent=5 // pred_region
        // Predicated region
        $region25: #{_lambda_.7} parent=23 // pred_check
          %p175 = pneg %p32
        $region26: #{_lambda_.7} parent=23 // pred_check_branch
          %177 = sbr.rel (%p175) target = $region28
        $region27: #{_lambda_.7} parent=23 // pred_region
          %p178 = scmp.lt.s32.totalorder %s12, 1
          %s179 = scalar_select %p178, %s12, 1
          %s180 = smul.addr %s179, 10
          %s181 = smul.addr %s180, 4
          %s182 = scalar_lea.vmem %s0, %s181
        $region28: #{_lambda_.7} parent=23 // pred_fallthru
          _
        // Predicated region
        $region29: #{_lambda_.7} parent=23 // pred_check
          %p183 = pneg %p58
        $region30: #{_lambda_.7} parent=23 // pred_check_branch
          %185 = sbr.rel (%p183) target = $region32
        $region31: #{_lambda_.7} parent=23 // pred_region
          %p186 = scmp.lt.s32.totalorder %s12, 1
          %s187 = scalar_select %p186, %s12, 1
          %s188 = smul.addr %s187, 10
          %s189 = smul.addr %s188, 4
          %s190 = scalar_lea.vmem %s1, %s189
        $region32: #{_lambda_.7} parent=23 // pred_fallthru
          _
      $region24: #{_lambda_.7} parent=5 // pred_fallthru
        _
      %p191 = scmp.le.s32.totalorder 1, %s12
      %p192 = scmp.lt.s32.totalorder %s12, 3
      %p193 = pnand %p191, %p192
      %p194 = pneg %p193
      // Predicated region
      $region33: #{_lambda_.7} parent=5 // pred_check
        _
      $region34: #{_lambda_.7} parent=5 // pred_check_branch
        %196 = sbr.rel (%p193) target = $region36
      $region35: #{_lambda_.7} parent=5 // pred_region
        %s197 = ssub.s32 %s12, 1
        // Predicated region
        $region37: #{_lambda_.7} parent=35 // pred_check
          %p198 = pneg %p85
        $region38: #{_lambda_.7} parent=35 // pred_check_branch
          %200 = sbr.rel (%p198) target = $region40
        $region39: #{_lambda_.7} parent=35 // pred_region
          %201 = dma.done [#allocation3], 32768
        $region40: #{_lambda_.7} parent=35 // pred_fallthru
          _
        // Predicated region
        $region41: #{_lambda_.7} parent=35 // pred_check
          %p202 = pneg %p106
        $region42: #{_lambda_.7} parent=35 // pred_check_branch
          %204 = sbr.rel (%p202) target = $region44
        $region43: #{_lambda_.7} parent=35 // pred_region
          %205 = dma.done [#allocation5], 16
        $region44: #{_lambda_.7} parent=35 // pred_fallthru
          _
        %p206 = scmp.lt.s32.totalorder %s17, 1
        %s207 = scalar_select %p206, %s17, 1
        %s208 = smul.addr %s207, 10
        %s209 = smul.addr %s208, 4
        %s210 = scalar_lea.vmem %s0, %s209
        %p211 = pneg %p38
        %p212 = pneg %p35
        %p213 = scmp.lt.s32.totalorder %s17, 1
        %s214 = scalar_select %p213, %s17, 1
        %s215 = smul.addr %s214, 10
        %s216 = smul.addr %s215, 4
        %s217 = scalar_lea.vmem %s1, %s216
        %p218 = pneg %p64
        %p219 = pneg %p61
        %p220 = pneg %p85
        %p221 = pneg %p82
        %p222 = pneg %p106
        %p223 = pneg %p103
        %p224 = pneg %p132
        %p225 = pneg %p129
        %p226 = scmp.lt.s32.totalorder %s17, 1
        %s227 = scalar_select %p226, %s17, 1
        %s228 = smul.addr %s227, 4
        %s229 = smul.addr %s228, 4
        %s230 = scalar_lea.vmem %s4, %s229
        %p231 = scmp.lt.s32.totalorder %s17, 1
        %s232 = scalar_select %p231, %s17, 1
        %s233 = smul.addr %s232, 10
        %s234 = smul.addr %s233, 4
        %s235 = scalar_lea.vmem %s0, %s234
        %p236 = scmp.lt.s32.totalorder %s17, 1
        %s237 = scalar_select %p236, %s17, 1
        %s238 = smul.addr %s237, 10
        %s239 = smul.addr %s238, 4
        %s240 = scalar_lea.vmem %s1, %s239
        %p241 = scmp.lt.s32.totalorder %s17, 1
        %s242 = scalar_select %p241, %s17, 1
        %s243 = smul.addr %s242, 4
        %s244 = smul.addr %s243, 4
        %s245 = scalar_lea.vmem %s4, %s244
        %v246 = vld [vmem:[%s235] sm:$0xff]
        %v247 = vld [vmem:[%s235 + $0x8] sm:$0xff]
        %v248 = vld [vmem:[%s235 + $0x10] sm:$0xff]
        %v249 = vld [vmem:[%s235 + $0x18] sm:$0xff]
        %v250 = vld [vmem:[%s235 + $0x20] sm:$0xff]
        %v251 = vld [vmem:[%s240] sm:$0xff]
        %v252 = vld [vmem:[%s240 + $0x8] sm:$0xff]
        %v253 = vld [vmem:[%s240 + $0x10] sm:$0xff]
        %v254 = vld [vmem:[%s240 + $0x18] sm:$0xff]
        %v255 = vld [vmem:[%s240 + $0x20] sm:$0xff]
        %v256 = vld [vmem:[#allocation2] sm:$0xff]
        %v257 = vld [vmem:[#allocation2 + $0x8] sm:$0xff]
        %v258 = vld [vmem:[#allocation2 + $0x10] sm:$0xff]
        %v259 = vld [vmem:[#allocation2 + $0x18] sm:$0xff]
        %v260 = vld [vmem:[#allocation2 + $0x20] sm:$0xff]
        %v261 = vld [vmem:[#allocation2 + $0x28] sm:$0xff]
        %v262 = vld [vmem:[#allocation2 + $0x30] sm:$0xff]
        %v263 = vld [vmem:[#allocation2 + $0x38] sm:$0xff]
        %v264 = vld [vmem:[#allocation2 + $0x40] sm:$0xff]
        %v265 = vld [vmem:[#allocation2 + $0x48] sm:$0xff]
        %v266 = vld [vmem:[#allocation2 + $0x50] sm:$0xff]
        %v267 = vld [vmem:[#allocation2 + $0x58] sm:$0xff]
        %v268 = vld [vmem:[#allocation2 + $0x60] sm:$0xff]
        %v269 = vld [vmem:[#allocation2 + $0x68] sm:$0xff]
        %v270 = vld [vmem:[#allocation2 + $0x70] sm:$0xff]
        %v271 = vld [vmem:[#allocation2 + $0x78] sm:$0xff]
        %v272 = vld [vmem:[#allocation2 + $0x80] sm:$0xff]
        %v273 = vld [vmem:[#allocation2 + $0x88] sm:$0xff]
        %v274 = vld [vmem:[#allocation2 + $0x90] sm:$0xff]
        %v275 = vld [vmem:[#allocation2 + $0x98] sm:$0xff]
        %v276 = vld [vmem:[#allocation2 + $0xa0] sm:$0xff]
        %v277 = vld [vmem:[#allocation2 + $0xa8] sm:$0xff]
        %v278 = vld [vmem:[#allocation2 + $0xb0] sm:$0xff]
        %v279 = vld [vmem:[#allocation2 + $0xb8] sm:$0xff]
        %v280 = vld [vmem:[#allocation2 + $0xc0] sm:$0xff]
        %v281 = vld [vmem:[#allocation2 + $0xc8] sm:$0xff]
        %v282 = vld [vmem:[#allocation2 + $0xd0] sm:$0xff]
        %v283 = vld [vmem:[#allocation2 + $0xd8] sm:$0xff]
        %v284 = vld [vmem:[#allocation2 + $0xe0] sm:$0xff]
        %v285 = vld [vmem:[#allocation2 + $0xe8] sm:$0xff]
        %v286 = vld [vmem:[#allocation2 + $0xf0] sm:$0xff]
        %v287 = vld [vmem:[#allocation2 + $0xf8] sm:$0xff]
        %v288 = vld [vmem:[#allocation2 + $0x100] sm:$0xff]
        %v289 = vld [vmem:[#allocation2 + $0x108] sm:$0xff]
        %v290 = vld [vmem:[#allocation2 + $0x110] sm:$0xff]
        %v291 = vld [vmem:[#allocation2 + $0x118] sm:$0xff]
        %v292 = vld [vmem:[#allocation2 + $0x120] sm:$0xff]
        %v293 = vld [vmem:[#allocation2 + $0x128] sm:$0xff]
        %v294 = vld [vmem:[#allocation2 + $0x130] sm:$0xff]
        %v295 = vld [vmem:[#allocation2 + $0x138] sm:$0xff]
        %v296 = vld [vmem:[#allocation2 + $0x140] sm:$0xff]
        %v297 = vld [vmem:[#allocation2 + $0x148] sm:$0xff]
        %v298 = vld [vmem:[#allocation2 + $0x150] sm:$0xff]
        %v299 = vld [vmem:[#allocation2 + $0x158] sm:$0xff]
        %v300 = vld [vmem:[#allocation2 + $0x160] sm:$0xff]
        %v301 = vld [vmem:[#allocation2 + $0x168] sm:$0xff]
        %v302 = vld [vmem:[#allocation2 + $0x170] sm:$0xff]
        %v303 = vld [vmem:[#allocation2 + $0x178] sm:$0xff]
        %v304 = vld [vmem:[#allocation2 + $0x180] sm:$0xff]
        %v305 = vld [vmem:[#allocation2 + $0x188] sm:$0xff]
        %v306 = vld [vmem:[#allocation2 + $0x190] sm:$0xff]
        %v307 = vld [vmem:[#allocation2 + $0x198] sm:$0xff]
        %v308 = vld [vmem:[#allocation2 + $0x1a0] sm:$0xff]
        %v309 = vld [vmem:[#allocation2 + $0x1a8] sm:$0xff]
        %v310 = vld [vmem:[#allocation2 + $0x1b0] sm:$0xff]
        %v311 = vld [vmem:[#allocation2 + $0x1b8] sm:$0xff]
        %v312 = vld [vmem:[#allocation2 + $0x1c0] sm:$0xff]
        %v313 = vld [vmem:[#allocation2 + $0x1c8] sm:$0xff]
        %v314 = vld [vmem:[#allocation2 + $0x1d0] sm:$0xff]
        %v315 = vld [vmem:[#allocation2 + $0x1d8] sm:$0xff]
        %v316 = vld [vmem:[#allocation2 + $0x1e0] sm:$0xff]
        %v317 = vld [vmem:[#allocation2 + $0x1e8] sm:$0xff]
        %v318 = vld [vmem:[#allocation2 + $0x1f0] sm:$0xff]
        %v319 = vld [vmem:[#allocation2 + $0x1f8] sm:$0xff]
        %v320 = vld [vmem:[#allocation2 + $0x200] sm:$0xff]
        %v321 = vld [vmem:[#allocation2 + $0x208] sm:$0xff]
        %v322 = vld [vmem:[#allocation2 + $0x210] sm:$0xff]
        %v323 = vld [vmem:[#allocation2 + $0x218] sm:$0xff]
        %v324 = vld [vmem:[#allocation2 + $0x220] sm:$0xff]
        %v325 = vld [vmem:[#allocation2 + $0x228] sm:$0xff]
        %v326 = vld [vmem:[#allocation2 + $0x230] sm:$0xff]
        %v327 = vld [vmem:[#allocation2 + $0x238] sm:$0xff]
        %v328 = vld [vmem:[#allocation2 + $0x240] sm:$0xff]
        %v329 = vld [vmem:[#allocation2 + $0x248] sm:$0xff]
        %v330 = vld [vmem:[#allocation2 + $0x250] sm:$0xff]
        %v331 = vld [vmem:[#allocation2 + $0x258] sm:$0xff]
        %v332 = vld [vmem:[#allocation2 + $0x260] sm:$0xff]
        %v333 = vld [vmem:[#allocation2 + $0x268] sm:$0xff]
        %v334 = vld [vmem:[#allocation2 + $0x270] sm:$0xff]
        %v335 = vld [vmem:[#allocation2 + $0x278] sm:$0xff]
        %v336 = vld [vmem:[#allocation2 + $0x280] sm:$0xff]
        %v337 = vld [vmem:[#allocation2 + $0x288] sm:$0xff]
        %v338 = vld [vmem:[#allocation2 + $0x290] sm:$0xff]
        %v339 = vld [vmem:[#allocation2 + $0x298] sm:$0xff]
        %v340 = vld [vmem:[#allocation2 + $0x2a0] sm:$0xff]
        %v341 = vld [vmem:[#allocation2 + $0x2a8] sm:$0xff]
        %v342 = vld [vmem:[#allocation2 + $0x2b0] sm:$0xff]
        %v343 = vld [vmem:[#allocation2 + $0x2b8] sm:$0xff]
        %v344 = vld [vmem:[#allocation2 + $0x2c0] sm:$0xff]
        %v345 = vld [vmem:[#allocation2 + $0x2c8] sm:$0xff]
        %v346 = vld [vmem:[#allocation2 + $0x2d0] sm:$0xff]
        %v347 = vld [vmem:[#allocation2 + $0x2d8] sm:$0xff]
        %v348 = vld [vmem:[#allocation2 + $0x2e0] sm:$0xff]
        %v349 = vld [vmem:[#allocation2 + $0x2e8] sm:$0xff]
        %v350 = vld [vmem:[#allocation2 + $0x2f0] sm:$0xff]
        %v351 = vld [vmem:[#allocation2 + $0x2f8] sm:$0xff]
        %v352 = vld [vmem:[#allocation2 + $0x300] sm:$0xff]
        %v353 = vld [vmem:[#allocation2 + $0x308] sm:$0xff]
        %v354 = vld [vmem:[#allocation2 + $0x310] sm:$0xff]
        %v355 = vld [vmem:[#allocation2 + $0x318] sm:$0xff]
        %v356 = vld [vmem:[#allocation2 + $0x320] sm:$0xff]
        %v357 = vld [vmem:[#allocation2 + $0x328] sm:$0xff]
        %v358 = vld [vmem:[#allocation2 + $0x330] sm:$0xff]
        %v359 = vld [vmem:[#allocation2 + $0x338] sm:$0xff]
        %v360 = vld [vmem:[#allocation2 + $0x340] sm:$0xff]
        %v361 = vld [vmem:[#allocation2 + $0x348] sm:$0xff]
        %v362 = vld [vmem:[#allocation2 + $0x350] sm:$0xff]
        %v363 = vld [vmem:[#allocation2 + $0x358] sm:$0xff]
        %v364 = vld [vmem:[#allocation2 + $0x360] sm:$0xff]
        %v365 = vld [vmem:[#allocation2 + $0x368] sm:$0xff]
        %v366 = vld [vmem:[#allocation2 + $0x370] sm:$0xff]
        %v367 = vld [vmem:[#allocation2 + $0x378] sm:$0xff]
        %v368 = vld [vmem:[#allocation2 + $0x380] sm:$0xff]
        %v369 = vld [vmem:[#allocation2 + $0x388] sm:$0xff]
        %v370 = vld [vmem:[#allocation2 + $0x390] sm:$0xff]
        %v371 = vld [vmem:[#allocation2 + $0x398] sm:$0xff]
        %v372 = vld [vmem:[#allocation2 + $0x3a0] sm:$0xff]
        %v373 = vld [vmem:[#allocation2 + $0x3a8] sm:$0xff]
        %v374 = vld [vmem:[#allocation2 + $0x3b0] sm:$0xff]
        %v375 = vld [vmem:[#allocation2 + $0x3b8] sm:$0xff]
        %v376 = vld [vmem:[#allocation2 + $0x3c0] sm:$0xff]
        %v377 = vld [vmem:[#allocation2 + $0x3c8] sm:$0xff]
        %v378 = vld [vmem:[#allocation2 + $0x3d0] sm:$0xff]
        %v379 = vld [vmem:[#allocation2 + $0x3d8] sm:$0xff]
        %v380 = vld [vmem:[#allocation2 + $0x3e0] sm:$0xff]
        %v381 = vld [vmem:[#allocation2 + $0x3e8] sm:$0xff]
        %v382 = vld [vmem:[#allocation2 + $0x3f0] sm:$0xff]
        %v383 = vld [vmem:[#allocation2 + $0x3f8] sm:$0xff]
        %v388 = vunpack.c.l.b16 %v251
        %v389 = vunpack.c.h.b16 %v251
        %v390 = vunpack.c.l.b16 %v252
        %v391 = vunpack.c.h.b16 %v252
        %v392 = vunpack.c.l.b16 %v253
        %v393 = vunpack.c.h.b16 %v253
        %v394 = vunpack.c.l.b16 %v254
        %v395 = vunpack.c.h.b16 %v254
        %v396 = vpack.c.b16 %v390, %v388
        %v397 = vpack.c.b16 %v391, %v389
        %v398 = vpack.c.b16 %v394, %v392
        %v399 = vpack.c.b16 %v395, %v393
        %v468 = vunpack.c.l.b16 %v320
        %v469 = vunpack.c.h.b16 %v320
        %v470 = vunpack.c.l.b16 %v321
        %v471 = vunpack.c.h.b16 %v321
        %v472 = vunpack.c.l.b16 %v322
        %v473 = vunpack.c.h.b16 %v322
        %v474 = vunpack.c.l.b16 %v323
        %v475 = vunpack.c.h.b16 %v323
        %v476 = vunpack.c.l.b16 %v324
        %v477 = vunpack.c.h.b16 %v324
        %v478 = vunpack.c.l.b16 %v325
        %v479 = vunpack.c.h.b16 %v325
        %v480 = vunpack.c.l.b16 %v326
        %v481 = vunpack.c.h.b16 %v326
        %v482 = vunpack.c.l.b16 %v327
        %v483 = vunpack.c.h.b16 %v327
        %v484 = vunpack.c.l.b16 %v328
        %v485 = vunpack.c.h.b16 %v328
        %v486 = vunpack.c.l.b16 %v329
        %v487 = vunpack.c.h.b16 %v329
        %v488 = vunpack.c.l.b16 %v330
        %v489 = vunpack.c.h.b16 %v330
        %v490 = vunpack.c.l.b16 %v331
        %v491 = vunpack.c.h.b16 %v331
        %v492 = vunpack.c.l.b16 %v332
        %v493 = vunpack.c.h.b16 %v332
        %v494 = vunpack.c.l.b16 %v333
        %v495 = vunpack.c.h.b16 %v333
        %v496 = vunpack.c.l.b16 %v334
        %v497 = vunpack.c.h.b16 %v334
        %v498 = vunpack.c.l.b16 %v335
        %v499 = vunpack.c.h.b16 %v335
        %v500 = vunpack.c.l.b16 %v336
        %v501 = vunpack.c.h.b16 %v336
        %v502 = vunpack.c.l.b16 %v337
        %v503 = vunpack.c.h.b16 %v337
        %v504 = vunpack.c.l.b16 %v338
        %v505 = vunpack.c.h.b16 %v338
        %v506 = vunpack.c.l.b16 %v339
        %v507 = vunpack.c.h.b16 %v339
        %v508 = vunpack.c.l.b16 %v340
        %v509 = vunpack.c.h.b16 %v340
        %v510 = vunpack.c.l.b16 %v341
        %v511 = vunpack.c.h.b16 %v341
        %v512 = vunpack.c.l.b16 %v342
        %v513 = vunpack.c.h.b16 %v342
        %v514 = vunpack.c.l.b16 %v343
        %v515 = vunpack.c.h.b16 %v343
        %v516 = vunpack.c.l.b16 %v344
        %v517 = vunpack.c.h.b16 %v344
        %v518 = vunpack.c.l.b16 %v345
        %v519 = vunpack.c.h.b16 %v345
        %v520 = vunpack.c.l.b16 %v346
        %v521 = vunpack.c.h.b16 %v346
        %v522 = vunpack.c.l.b16 %v347
        %v523 = vunpack.c.h.b16 %v347
        %v524 = vunpack.c.l.b16 %v348
        %v525 = vunpack.c.h.b16 %v348
        %v526 = vunpack.c.l.b16 %v349
        %v527 = vunpack.c.h.b16 %v349
        %v528 = vunpack.c.l.b16 %v350
        %v529 = vunpack.c.h.b16 %v350
        %v530 = vunpack.c.l.b16 %v351
        %v531 = vunpack.c.h.b16 %v351
        %v532 = vunpack.c.l.b16 %v352
        %v533 = vunpack.c.h.b16 %v352
        %v534 = vunpack.c.l.b16 %v353
        %v535 = vunpack.c.h.b16 %v353
        %v536 = vunpack.c.l.b16 %v354
        %v537 = vunpack.c.h.b16 %v354
        %v538 = vunpack.c.l.b16 %v355
        %v539 = vunpack.c.h.b16 %v355
        %v540 = vunpack.c.l.b16 %v356
        %v541 = vunpack.c.h.b16 %v356
        %v542 = vunpack.c.l.b16 %v357
        %v543 = vunpack.c.h.b16 %v357
        %v544 = vunpack.c.l.b16 %v358
        %v545 = vunpack.c.h.b16 %v358
        %v546 = vunpack.c.l.b16 %v359
        %v547 = vunpack.c.h.b16 %v359
        %v548 = vunpack.c.l.b16 %v360
        %v549 = vunpack.c.h.b16 %v360
        %v550 = vunpack.c.l.b16 %v361
        %v551 = vunpack.c.h.b16 %v361
        %v552 = vunpack.c.l.b16 %v362
        %v553 = vunpack.c.h.b16 %v362
        %v554 = vunpack.c.l.b16 %v363
        %v555 = vunpack.c.h.b16 %v363
        %v556 = vunpack.c.l.b16 %v364
        %v557 = vunpack.c.h.b16 %v364
        %v558 = vunpack.c.l.b16 %v365
        %v559 = vunpack.c.h.b16 %v365
        %v560 = vunpack.c.l.b16 %v366
        %v561 = vunpack.c.h.b16 %v366
        %v562 = vunpack.c.l.b16 %v367
        %v563 = vunpack.c.h.b16 %v367
        %v564 = vunpack.c.l.b16 %v368
        %v565 = vunpack.c.h.b16 %v368
        %v566 = vunpack.c.l.b16 %v369
        %v567 = vunpack.c.h.b16 %v369
        %v568 = vunpack.c.l.b16 %v370
        %v569 = vunpack.c.h.b16 %v370
        %v570 = vunpack.c.l.b16 %v371
        %v571 = vunpack.c.h.b16 %v371
        %v572 = vunpack.c.l.b16 %v372
        %v573 = vunpack.c.h.b16 %v372
        %v574 = vunpack.c.l.b16 %v373
        %v575 = vunpack.c.h.b16 %v373
        %v576 = vunpack.c.l.b16 %v374
        %v577 = vunpack.c.h.b16 %v374
        %v578 = vunpack.c.l.b16 %v375
        %v579 = vunpack.c.h.b16 %v375
        %v580 = vunpack.c.l.b16 %v376
        %v581 = vunpack.c.h.b16 %v376
        %v582 = vunpack.c.l.b16 %v377
        %v583 = vunpack.c.h.b16 %v377
        %v584 = vunpack.c.l.b16 %v378
        %v585 = vunpack.c.h.b16 %v378
        %v586 = vunpack.c.l.b16 %v379
        %v587 = vunpack.c.h.b16 %v379
        %v588 = vunpack.c.l.b16 %v380
        %v589 = vunpack.c.h.b16 %v380
        %v590 = vunpack.c.l.b16 %v381
        %v591 = vunpack.c.h.b16 %v381
        %v592 = vunpack.c.l.b16 %v382
        %v593 = vunpack.c.h.b16 %v382
        %v594 = vunpack.c.l.b16 %v383
        %v595 = vunpack.c.h.b16 %v383
        %v596 = vpack.c.b16 %v472, %v468
        %v597 = vpack.c.b16 %v473, %v469
        %v598 = vpack.c.b16 %v474, %v470
        %v599 = vpack.c.b16 %v475, %v471
        %v600 = vpack.c.b16 %v480, %v476
        %v601 = vpack.c.b16 %v481, %v477
        %v602 = vpack.c.b16 %v482, %v478
        %v603 = vpack.c.b16 %v483, %v479
        %v604 = vpack.c.b16 %v488, %v484
        %v605 = vpack.c.b16 %v489, %v485
        %v606 = vpack.c.b16 %v490, %v486
        %v607 = vpack.c.b16 %v491, %v487
        %v608 = vpack.c.b16 %v496, %v492
        %v609 = vpack.c.b16 %v497, %v493
        %v610 = vpack.c.b16 %v498, %v494
        %v611 = vpack.c.b16 %v499, %v495
        %v612 = vpack.c.b16 %v504, %v500
        %v613 = vpack.c.b16 %v505, %v501
        %v614 = vpack.c.b16 %v506, %v502
        %v615 = vpack.c.b16 %v507, %v503
        %v616 = vpack.c.b16 %v512, %v508
        %v617 = vpack.c.b16 %v513, %v509
        %v618 = vpack.c.b16 %v514, %v510
        %v619 = vpack.c.b16 %v515, %v511
        %v620 = vpack.c.b16 %v520, %v516
        %v621 = vpack.c.b16 %v521, %v517
        %v622 = vpack.c.b16 %v522, %v518
        %v623 = vpack.c.b16 %v523, %v519
        %v624 = vpack.c.b16 %v528, %v524
        %v625 = vpack.c.b16 %v529, %v525
        %v626 = vpack.c.b16 %v530, %v526
        %v627 = vpack.c.b16 %v531, %v527
        %v628 = vpack.c.b16 %v536, %v532
        %v629 = vpack.c.b16 %v537, %v533
        %v630 = vpack.c.b16 %v538, %v534
        %v631 = vpack.c.b16 %v539, %v535
        %v632 = vpack.c.b16 %v544, %v540
        %v633 = vpack.c.b16 %v545, %v541
        %v634 = vpack.c.b16 %v546, %v542
        %v635 = vpack.c.b16 %v547, %v543
        %v636 = vpack.c.b16 %v552, %v548
        %v637 = vpack.c.b16 %v553, %v549
        %v638 = vpack.c.b16 %v554, %v550
        %v639 = vpack.c.b16 %v555, %v551
        %v640 = vpack.c.b16 %v560, %v556
        %v641 = vpack.c.b16 %v561, %v557
        %v642 = vpack.c.b16 %v562, %v558
        %v643 = vpack.c.b16 %v563, %v559
        %v644 = vpack.c.b16 %v568, %v564
        %v645 = vpack.c.b16 %v569, %v565
        %v646 = vpack.c.b16 %v570, %v566
        %v647 = vpack.c.b16 %v571, %v567
        %v648 = vpack.c.b16 %v576, %v572
        %v649 = vpack.c.b16 %v577, %v573
        %v650 = vpack.c.b16 %v578, %v574
        %v651 = vpack.c.b16 %v579, %v575
        %v652 = vpack.c.b16 %v584, %v580
        %v653 = vpack.c.b16 %v585, %v581
        %v654 = vpack.c.b16 %v586, %v582
        %v655 = vpack.c.b16 %v587, %v583
        %v656 = vpack.c.b16 %v592, %v588
        %v657 = vpack.c.b16 %v593, %v589
        %v658 = vpack.c.b16 %v594, %v590
        %v659 = vpack.c.b16 %v595, %v591
        %724 = vmatprep.subr.bf16.mxu0 %v625
        %725 = vmatpush1.bf16.msra.mxu0 %v624
        %726 = vmatprep.subr.bf16.mxu0 %v621
        %727 = vmatpush1.bf16.msra.mxu0 %v620
        %728 = vmatprep.subr.bf16.mxu0 %v617
        %729 = vmatpush1.bf16.msra.mxu0 %v616
        %730 = vmatprep.subr.bf16.mxu0 %v613
        %731 = vmatpush1.bf16.msra.mxu0 %v612
        %732 = vmatprep.subr.bf16.mxu0 %v609
        %733 = vmatpush1.bf16.msra.mxu0 %v608
        %734 = vmatprep.subr.bf16.mxu0 %v605
        %735 = vmatpush1.bf16.msra.mxu0 %v604
        %736 = vmatprep.subr.bf16.mxu0 %v601
        %737 = vmatpush1.bf16.msra.mxu0 %v600
        %738 = vmatprep.subr.bf16.mxu0 %v597
        %739 = vmatpush1.bf16.msra.mxu0 %v596
        %740 = vmatprep.subr.bf16.mxu0 %v657
        %741 = vmatpush2.bf16.msra.mxu0 %v656
        %742 = vmatprep.subr.bf16.mxu0 %v653
        %743 = vmatpush2.bf16.msra.mxu0 %v652
        %744 = vmatprep.subr.bf16.mxu0 %v649
        %745 = vmatpush2.bf16.msra.mxu0 %v648
        %746 = vmatprep.subr.bf16.mxu0 %v645
        %747 = vmatpush2.bf16.msra.mxu0 %v644
        %748 = vmatprep.subr.bf16.mxu0 %v641
        %749 = vmatpush2.bf16.msra.mxu0 %v640
        %750 = vmatprep.subr.bf16.mxu0 %v637
        %751 = vmatpush2.bf16.msra.mxu0 %v636
        %752 = vmatprep.subr.bf16.mxu0 %v633
        %753 = vmatpush2.bf16.msra.mxu0 %v632
        %754 = vmatprep.subr.bf16.mxu0 %v629
        %755 = vmatpush2.bf16.msra.mxu0 %v628
        %756 = vmatprep.mubr.bf16.mxu0 %v397
        %757 = vmatmul.mubr.bf16.gmra.mxu0 %v396
        %v758 = vpop.f32.mrf.mxu0
        %v759 = vadd.f32 0.0, %v758
        %v760 = vpop.f32.mrf.mxu0
        %v761 = vadd.f32 0.0, %v760
        %v762 = vpop.f32.mrf.mxu0
        %v763 = vadd.f32 0.0, %v762
        %v764 = vpop.f32.mrf.mxu0
        %v765 = vadd.f32 0.0, %v764
        %766 = vmatprep.mubr.bf16.mxu0 %v399
        %767 = vmatmul.mubr.bf16.gmra.mxu0 %v398
        %v768 = vpop.f32.mrf.mxu0
        %v769 = vadd.f32 0.0, %v768
        %v770 = vpop.f32.mrf.mxu0
        %v771 = vadd.f32 0.0, %v770
        %v772 = vpop.f32.mrf.mxu0
        %v773 = vadd.f32 0.0, %v772
        %v774 = vpop.f32.mrf.mxu0
        %v775 = vadd.f32 0.0, %v774
        %776 = vdwg.mxu0
        %777 = vmatprep.subr.bf16.mxu0 %v627
        %778 = vmatpush1.bf16.msra.mxu0 %v626
        %779 = vmatprep.subr.bf16.mxu0 %v623
        %780 = vmatpush1.bf16.msra.mxu0 %v622
        %781 = vmatprep.subr.bf16.mxu0 %v619
        %782 = vmatpush1.bf16.msra.mxu0 %v618
        %783 = vmatprep.subr.bf16.mxu0 %v615
        %784 = vmatpush1.bf16.msra.mxu0 %v614
        %785 = vmatprep.subr.bf16.mxu0 %v611
        %786 = vmatpush1.bf16.msra.mxu0 %v610
        %787 = vmatprep.subr.bf16.mxu0 %v607
        %788 = vmatpush1.bf16.msra.mxu0 %v606
        %789 = vmatprep.subr.bf16.mxu0 %v603
        %790 = vmatpush1.bf16.msra.mxu0 %v602
        %791 = vmatprep.subr.bf16.mxu0 %v599
        %792 = vmatpush1.bf16.msra.mxu0 %v598
        %793 = vmatprep.subr.bf16.mxu0 %v659
        %794 = vmatpush2.bf16.msra.mxu0 %v658
        %795 = vmatprep.subr.bf16.mxu0 %v655
        %796 = vmatpush2.bf16.msra.mxu0 %v654
        %797 = vmatprep.subr.bf16.mxu0 %v651
        %798 = vmatpush2.bf16.msra.mxu0 %v650
        %799 = vmatprep.subr.bf16.mxu0 %v647
        %800 = vmatpush2.bf16.msra.mxu0 %v646
        %801 = vmatprep.subr.bf16.mxu0 %v643
        %802 = vmatpush2.bf16.msra.mxu0 %v642
        %803 = vmatprep.subr.bf16.mxu0 %v639
        %804 = vmatpush2.bf16.msra.mxu0 %v638
        %805 = vmatprep.subr.bf16.mxu0 %v635
        %806 = vmatpush2.bf16.msra.mxu0 %v634
        %807 = vmatprep.subr.bf16.mxu0 %v631
        %808 = vmatpush2.bf16.msra.mxu0 %v630
        %809 = vmatprep.mubr.bf16.mxu0 %v397
        %810 = vmatmul.mubr.bf16.gmra.mxu0 %v396
        %v811 = vpop.f32.mrf.mxu0
        %v812 = vadd.f32 0.0, %v811
        %v813 = vpop.f32.mrf.mxu0
        %v814 = vadd.f32 0.0, %v813
        %v815 = vpop.f32.mrf.mxu0
        %v816 = vadd.f32 0.0, %v815
        %v817 = vpop.f32.mrf.mxu0
        %v818 = vadd.f32 0.0, %v817
        %819 = vmatprep.mubr.bf16.mxu0 %v399
        %820 = vmatmul.mubr.bf16.gmra.mxu0 %v398
        %v821 = vpop.f32.mrf.mxu0
        %v822 = vadd.f32 0.0, %v821
        %v823 = vpop.f32.mrf.mxu0
        %v824 = vadd.f32 0.0, %v823
        %v825 = vpop.f32.mrf.mxu0
        %v826 = vadd.f32 0.0, %v825
        %v827 = vpop.f32.mrf.mxu0
        %v828 = vadd.f32 0.0, %v827
        %829 = vdwg.mxu0
        %v834 = vunpack.c.l.b16 %v246
        %v835 = vunpack.c.h.b16 %v246
        %v836 = vunpack.c.l.b16 %v247
        %v837 = vunpack.c.h.b16 %v247
        %v838 = vunpack.c.l.b16 %v248
        %v839 = vunpack.c.h.b16 %v248
        %v840 = vunpack.c.l.b16 %v249
        %v841 = vunpack.c.h.b16 %v249
        %v842 = vpack.c.b16 %v836, %v834
        %v843 = vpack.c.b16 %v837, %v835
        %v844 = vpack.c.b16 %v840, %v838
        %v845 = vpack.c.b16 %v841, %v839
        %v914 = vunpack.c.l.b16 %v256
        %v915 = vunpack.c.h.b16 %v256
        %v916 = vunpack.c.l.b16 %v257
        %v917 = vunpack.c.h.b16 %v257
        %v918 = vunpack.c.l.b16 %v258
        %v919 = vunpack.c.h.b16 %v258
        %v920 = vunpack.c.l.b16 %v259
        %v921 = vunpack.c.h.b16 %v259
        %v922 = vunpack.c.l.b16 %v260
        %v923 = vunpack.c.h.b16 %v260
        %v924 = vunpack.c.l.b16 %v261
        %v925 = vunpack.c.h.b16 %v261
        %v926 = vunpack.c.l.b16 %v262
        %v927 = vunpack.c.h.b16 %v262
        %v928 = vunpack.c.l.b16 %v263
        %v929 = vunpack.c.h.b16 %v263
        %v930 = vunpack.c.l.b16 %v264
        %v931 = vunpack.c.h.b16 %v264
        %v932 = vunpack.c.l.b16 %v265
        %v933 = vunpack.c.h.b16 %v265
        %v934 = vunpack.c.l.b16 %v266
        %v935 = vunpack.c.h.b16 %v266
        %v936 = vunpack.c.l.b16 %v267
        %v937 = vunpack.c.h.b16 %v267
        %v938 = vunpack.c.l.b16 %v268
        %v939 = vunpack.c.h.b16 %v268
        %v940 = vunpack.c.l.b16 %v269
        %v941 = vunpack.c.h.b16 %v269
        %v942 = vunpack.c.l.b16 %v270
        %v943 = vunpack.c.h.b16 %v270
        %v944 = vunpack.c.l.b16 %v271
        %v945 = vunpack.c.h.b16 %v271
        %v946 = vunpack.c.l.b16 %v272
        %v947 = vunpack.c.h.b16 %v272
        %v948 = vunpack.c.l.b16 %v273
        %v949 = vunpack.c.h.b16 %v273
        %v950 = vunpack.c.l.b16 %v274
        %v951 = vunpack.c.h.b16 %v274
        %v952 = vunpack.c.l.b16 %v275
        %v953 = vunpack.c.h.b16 %v275
        %v954 = vunpack.c.l.b16 %v276
        %v955 = vunpack.c.h.b16 %v276
        %v956 = vunpack.c.l.b16 %v277
        %v957 = vunpack.c.h.b16 %v277
        %v958 = vunpack.c.l.b16 %v278
        %v959 = vunpack.c.h.b16 %v278
        %v960 = vunpack.c.l.b16 %v279
        %v961 = vunpack.c.h.b16 %v279
        %v962 = vunpack.c.l.b16 %v280
        %v963 = vunpack.c.h.b16 %v280
        %v964 = vunpack.c.l.b16 %v281
        %v965 = vunpack.c.h.b16 %v281
        %v966 = vunpack.c.l.b16 %v282
        %v967 = vunpack.c.h.b16 %v282
        %v968 = vunpack.c.l.b16 %v283
        %v969 = vunpack.c.h.b16 %v283
        %v970 = vunpack.c.l.b16 %v284
        %v971 = vunpack.c.h.b16 %v284
        %v972 = vunpack.c.l.b16 %v285
        %v973 = vunpack.c.h.b16 %v285
        %v974 = vunpack.c.l.b16 %v286
        %v975 = vunpack.c.h.b16 %v286
        %v976 = vunpack.c.l.b16 %v287
        %v977 = vunpack.c.h.b16 %v287
        %v978 = vunpack.c.l.b16 %v288
        %v979 = vunpack.c.h.b16 %v288
        %v980 = vunpack.c.l.b16 %v289
        %v981 = vunpack.c.h.b16 %v289
        %v982 = vunpack.c.l.b16 %v290
        %v983 = vunpack.c.h.b16 %v290
        %v984 = vunpack.c.l.b16 %v291
        %v985 = vunpack.c.h.b16 %v291
        %v986 = vunpack.c.l.b16 %v292
        %v987 = vunpack.c.h.b16 %v292
        %v988 = vunpack.c.l.b16 %v293
        %v989 = vunpack.c.h.b16 %v293
        %v990 = vunpack.c.l.b16 %v294
        %v991 = vunpack.c.h.b16 %v294
        %v992 = vunpack.c.l.b16 %v295
        %v993 = vunpack.c.h.b16 %v295
        %v994 = vunpack.c.l.b16 %v296
        %v995 = vunpack.c.h.b16 %v296
        %v996 = vunpack.c.l.b16 %v297
        %v997 = vunpack.c.h.b16 %v297
        %v998 = vunpack.c.l.b16 %v298
        %v999 = vunpack.c.h.b16 %v298
        %v1000 = vunpack.c.l.b16 %v299
        %v1001 = vunpack.c.h.b16 %v299
        %v1002 = vunpack.c.l.b16 %v300
        %v1003 = vunpack.c.h.b16 %v300
        %v1004 = vunpack.c.l.b16 %v301
        %v1005 = vunpack.c.h.b16 %v301
        %v1006 = vunpack.c.l.b16 %v302
        %v1007 = vunpack.c.h.b16 %v302
        %v1008 = vunpack.c.l.b16 %v303
        %v1009 = vunpack.c.h.b16 %v303
        %v1010 = vunpack.c.l.b16 %v304
        %v1011 = vunpack.c.h.b16 %v304
        %v1012 = vunpack.c.l.b16 %v305
        %v1013 = vunpack.c.h.b16 %v305
        %v1014 = vunpack.c.l.b16 %v306
        %v1015 = vunpack.c.h.b16 %v306
        %v1016 = vunpack.c.l.b16 %v307
        %v1017 = vunpack.c.h.b16 %v307
        %v1018 = vunpack.c.l.b16 %v308
        %v1019 = vunpack.c.h.b16 %v308
        %v1020 = vunpack.c.l.b16 %v309
        %v1021 = vunpack.c.h.b16 %v309
        %v1022 = vunpack.c.l.b16 %v310
        %v1023 = vunpack.c.h.b16 %v310
        %v1024 = vunpack.c.l.b16 %v311
        %v1025 = vunpack.c.h.b16 %v311
        %v1026 = vunpack.c.l.b16 %v312
        %v1027 = vunpack.c.h.b16 %v312
        %v1028 = vunpack.c.l.b16 %v313
        %v1029 = vunpack.c.h.b16 %v313
        %v1030 = vunpack.c.l.b16 %v314
        %v1031 = vunpack.c.h.b16 %v314
        %v1032 = vunpack.c.l.b16 %v315
        %v1033 = vunpack.c.h.b16 %v315
        %v1034 = vunpack.c.l.b16 %v316
        %v1035 = vunpack.c.h.b16 %v316
        %v1036 = vunpack.c.l.b16 %v317
        %v1037 = vunpack.c.h.b16 %v317
        %v1038 = vunpack.c.l.b16 %v318
        %v1039 = vunpack.c.h.b16 %v318
        %v1040 = vunpack.c.l.b16 %v319
        %v1041 = vunpack.c.h.b16 %v319
        %v1042 = vpack.c.b16 %v918, %v914
        %v1043 = vpack.c.b16 %v919, %v915
        %v1044 = vpack.c.b16 %v920, %v916
        %v1045 = vpack.c.b16 %v921, %v917
        %v1046 = vpack.c.b16 %v926, %v922
        %v1047 = vpack.c.b16 %v927, %v923
        %v1048 = vpack.c.b16 %v928, %v924
        %v1049 = vpack.c.b16 %v929, %v925
        %v1050 = vpack.c.b16 %v934, %v930
        %v1051 = vpack.c.b16 %v935, %v931
        %v1052 = vpack.c.b16 %v936, %v932
        %v1053 = vpack.c.b16 %v937, %v933
        %v1054 = vpack.c.b16 %v942, %v938
        %v1055 = vpack.c.b16 %v943, %v939
        %v1056 = vpack.c.b16 %v944, %v940
        %v1057 = vpack.c.b16 %v945, %v941
        %v1058 = vpack.c.b16 %v950, %v946
        %v1059 = vpack.c.b16 %v951, %v947
        %v1060 = vpack.c.b16 %v952, %v948
        %v1061 = vpack.c.b16 %v953, %v949
        %v1062 = vpack.c.b16 %v958, %v954
        %v1063 = vpack.c.b16 %v959, %v955
        %v1064 = vpack.c.b16 %v960, %v956
        %v1065 = vpack.c.b16 %v961, %v957
        %v1066 = vpack.c.b16 %v966, %v962
        %v1067 = vpack.c.b16 %v967, %v963
        %v1068 = vpack.c.b16 %v968, %v964
        %v1069 = vpack.c.b16 %v969, %v965
        %v1070 = vpack.c.b16 %v974, %v970
        %v1071 = vpack.c.b16 %v975, %v971
        %v1072 = vpack.c.b16 %v976, %v972
        %v1073 = vpack.c.b16 %v977, %v973
        %v1074 = vpack.c.b16 %v982, %v978
        %v1075 = vpack.c.b16 %v983, %v979
        %v1076 = vpack.c.b16 %v984, %v980
        %v1077 = vpack.c.b16 %v985, %v981
        %v1078 = vpack.c.b16 %v990, %v986
        %v1079 = vpack.c.b16 %v991, %v987
        %v1080 = vpack.c.b16 %v992, %v988
        %v1081 = vpack.c.b16 %v993, %v989
        %v1082 = vpack.c.b16 %v998, %v994
        %v1083 = vpack.c.b16 %v999, %v995
        %v1084 = vpack.c.b16 %v1000, %v996
        %v1085 = vpack.c.b16 %v1001, %v997
        %v1086 = vpack.c.b16 %v1006, %v1002
        %v1087 = vpack.c.b16 %v1007, %v1003
        %v1088 = vpack.c.b16 %v1008, %v1004
        %v1089 = vpack.c.b16 %v1009, %v1005
        %v1090 = vpack.c.b16 %v1014, %v1010
        %v1091 = vpack.c.b16 %v1015, %v1011
        %v1092 = vpack.c.b16 %v1016, %v1012
        %v1093 = vpack.c.b16 %v1017, %v1013
        %v1094 = vpack.c.b16 %v1022, %v1018
        %v1095 = vpack.c.b16 %v1023, %v1019
        %v1096 = vpack.c.b16 %v1024, %v1020
        %v1097 = vpack.c.b16 %v1025, %v1021
        %v1098 = vpack.c.b16 %v1030, %v1026
        %v1099 = vpack.c.b16 %v1031, %v1027
        %v1100 = vpack.c.b16 %v1032, %v1028
        %v1101 = vpack.c.b16 %v1033, %v1029
        %v1102 = vpack.c.b16 %v1038, %v1034
        %v1103 = vpack.c.b16 %v1039, %v1035
        %v1104 = vpack.c.b16 %v1040, %v1036
        %v1105 = vpack.c.b16 %v1041, %v1037
        %1170 = vmatprep.subr.bf16.mxu0 %v1071
        %1171 = vmatpush1.bf16.msra.mxu0 %v1070
        %1172 = vmatprep.subr.bf16.mxu0 %v1067
        %1173 = vmatpush1.bf16.msra.mxu0 %v1066
        %1174 = vmatprep.subr.bf16.mxu0 %v1063
        %1175 = vmatpush1.bf16.msra.mxu0 %v1062
        %1176 = vmatprep.subr.bf16.mxu0 %v1059
        %1177 = vmatpush1.bf16.msra.mxu0 %v1058
        %1178 = vmatprep.subr.bf16.mxu0 %v1055
        %1179 = vmatpush1.bf16.msra.mxu0 %v1054
        %1180 = vmatprep.subr.bf16.mxu0 %v1051
        %1181 = vmatpush1.bf16.msra.mxu0 %v1050
        %1182 = vmatprep.subr.bf16.mxu0 %v1047
        %1183 = vmatpush1.bf16.msra.mxu0 %v1046
        %1184 = vmatprep.subr.bf16.mxu0 %v1043
        %1185 = vmatpush1.bf16.msra.mxu0 %v1042
        %1186 = vmatprep.subr.bf16.mxu0 %v1103
        %1187 = vmatpush2.bf16.msra.mxu0 %v1102
        %1188 = vmatprep.subr.bf16.mxu0 %v1099
        %1189 = vmatpush2.bf16.msra.mxu0 %v1098
        %1190 = vmatprep.subr.bf16.mxu0 %v1095
        %1191 = vmatpush2.bf16.msra.mxu0 %v1094
        %1192 = vmatprep.subr.bf16.mxu0 %v1091
        %1193 = vmatpush2.bf16.msra.mxu0 %v1090
        %1194 = vmatprep.subr.bf16.mxu0 %v1087
        %1195 = vmatpush2.bf16.msra.mxu0 %v1086
        %1196 = vmatprep.subr.bf16.mxu0 %v1083
        %1197 = vmatpush2.bf16.msra.mxu0 %v1082
        %1198 = vmatprep.subr.bf16.mxu0 %v1079
        %1199 = vmatpush2.bf16.msra.mxu0 %v1078
        %1200 = vmatprep.subr.bf16.mxu0 %v1075
        %1201 = vmatpush2.bf16.msra.mxu0 %v1074
        %1202 = vmatprep.mubr.bf16.mxu0 %v843
        %1203 = vmatmul.mubr.bf16.gmra.mxu0 %v842
        %v1204 = vpop.f32.mrf.mxu0
        %v1205 = vadd.f32 %v759, %v1204
        %v1206 = vpop.f32.mrf.mxu0
        %v1207 = vadd.f32 %v761, %v1206
        %v1208 = vpop.f32.mrf.mxu0
        %v1209 = vadd.f32 %v763, %v1208
        %v1210 = vpop.f32.mrf.mxu0
        %v1211 = vadd.f32 %v765, %v1210
        %1212 = vmatprep.mubr.bf16.mxu0 %v845
        %1213 = vmatmul.mubr.bf16.gmra.mxu0 %v844
        %v1214 = vpop.f32.mrf.mxu0
        %v1215 = vadd.f32 %v769, %v1214
        %v1216 = vpop.f32.mrf.mxu0
        %v1217 = vadd.f32 %v771, %v1216
        %v1218 = vpop.f32.mrf.mxu0
        %v1219 = vadd.f32 %v773, %v1218
        %v1220 = vpop.f32.mrf.mxu0
        %v1221 = vadd.f32 %v775, %v1220
        %1222 = vdwg.mxu0
        %1223 = vmatprep.subr.bf16.mxu0 %v1073
        %1224 = vmatpush1.bf16.msra.mxu0 %v1072
        %1225 = vmatprep.subr.bf16.mxu0 %v1069
        %1226 = vmatpush1.bf16.msra.mxu0 %v1068
        %1227 = vmatprep.subr.bf16.mxu0 %v1065
        %1228 = vmatpush1.bf16.msra.mxu0 %v1064
        %1229 = vmatprep.subr.bf16.mxu0 %v1061
        %1230 = vmatpush1.bf16.msra.mxu0 %v1060
        %1231 = vmatprep.subr.bf16.mxu0 %v1057
        %1232 = vmatpush1.bf16.msra.mxu0 %v1056
        %1233 = vmatprep.subr.bf16.mxu0 %v1053
        %1234 = vmatpush1.bf16.msra.mxu0 %v1052
        %1235 = vmatprep.subr.bf16.mxu0 %v1049
        %1236 = vmatpush1.bf16.msra.mxu0 %v1048
        %1237 = vmatprep.subr.bf16.mxu0 %v1045
        %1238 = vmatpush1.bf16.msra.mxu0 %v1044
        %1239 = vmatprep.subr.bf16.mxu0 %v1105
        %1240 = vmatpush2.bf16.msra.mxu0 %v1104
        %1241 = vmatprep.subr.bf16.mxu0 %v1101
        %1242 = vmatpush2.bf16.msra.mxu0 %v1100
        %1243 = vmatprep.subr.bf16.mxu0 %v1097
        %1244 = vmatpush2.bf16.msra.mxu0 %v1096
        %1245 = vmatprep.subr.bf16.mxu0 %v1093
        %1246 = vmatpush2.bf16.msra.mxu0 %v1092
        %1247 = vmatprep.subr.bf16.mxu0 %v1089
        %1248 = vmatpush2.bf16.msra.mxu0 %v1088
        %1249 = vmatprep.subr.bf16.mxu0 %v1085
        %1250 = vmatpush2.bf16.msra.mxu0 %v1084
        %1251 = vmatprep.subr.bf16.mxu0 %v1081
        %1252 = vmatpush2.bf16.msra.mxu0 %v1080
        %1253 = vmatprep.subr.bf16.mxu0 %v1077
        %1254 = vmatpush2.bf16.msra.mxu0 %v1076
        %1255 = vmatprep.mubr.bf16.mxu0 %v843
        %1256 = vmatmul.mubr.bf16.gmra.mxu0 %v842
        %v1257 = vpop.f32.mrf.mxu0
        %v1258 = vadd.f32 %v812, %v1257
        %v1259 = vpop.f32.mrf.mxu0
        %v1260 = vadd.f32 %v814, %v1259
        %v1261 = vpop.f32.mrf.mxu0
        %v1262 = vadd.f32 %v816, %v1261
        %v1263 = vpop.f32.mrf.mxu0
        %v1264 = vadd.f32 %v818, %v1263
        %1265 = vmatprep.mubr.bf16.mxu0 %v845
        %1266 = vmatmul.mubr.bf16.gmra.mxu0 %v844
        %v1267 = vpop.f32.mrf.mxu0
        %v1268 = vadd.f32 %v822, %v1267
        %v1269 = vpop.f32.mrf.mxu0
        %v1270 = vadd.f32 %v824, %v1269
        %v1271 = vpop.f32.mrf.mxu0
        %v1272 = vadd.f32 %v826, %v1271
        %v1273 = vpop.f32.mrf.mxu0
        %v1274 = vadd.f32 %v828, %v1273
        %1275 = vdwg.mxu0
        %v1276 = vld [vmem:[#allocation2 + $0x400] sm:$0xff]
        %v1277 = vld [vmem:[#allocation2 + $0x408] sm:$0xff]
        %v1278 = vld [vmem:[#allocation2 + $0x410] sm:$0xff]
        %v1279 = vld [vmem:[#allocation2 + $0x418] sm:$0xff]
        %v1280 = vld [vmem:[#allocation2 + $0x420] sm:$0xff]
        %v1281 = vld [vmem:[#allocation2 + $0x428] sm:$0xff]
        %v1282 = vld [vmem:[#allocation2 + $0x430] sm:$0xff]
        %v1283 = vld [vmem:[#allocation2 + $0x438] sm:$0xff]
        %v1284 = vld [vmem:[#allocation2 + $0x440] sm:$0xff]
        %v1285 = vld [vmem:[#allocation2 + $0x448] sm:$0xff]
        %v1286 = vld [vmem:[#allocation2 + $0x450] sm:$0xff]
        %v1287 = vld [vmem:[#allocation2 + $0x458] sm:$0xff]
        %v1288 = vld [vmem:[#allocation2 + $0x460] sm:$0xff]
        %v1289 = vld [vmem:[#allocation2 + $0x468] sm:$0xff]
        %v1290 = vld [vmem:[#allocation2 + $0x470] sm:$0xff]
        %v1291 = vld [vmem:[#allocation2 + $0x478] sm:$0xff]
        %v1292 = vld [vmem:[#allocation2 + $0x480] sm:$0xff]
        %v1293 = vld [vmem:[#allocation2 + $0x488] sm:$0xff]
        %v1294 = vld [vmem:[#allocation2 + $0x490] sm:$0xff]
        %v1295 = vld [vmem:[#allocation2 + $0x498] sm:$0xff]
        %v1296 = vld [vmem:[#allocation2 + $0x4a0] sm:$0xff]
        %v1297 = vld [vmem:[#allocation2 + $0x4a8] sm:$0xff]
        %v1298 = vld [vmem:[#allocation2 + $0x4b0] sm:$0xff]
        %v1299 = vld [vmem:[#allocation2 + $0x4b8] sm:$0xff]
        %v1300 = vld [vmem:[#allocation2 + $0x4c0] sm:$0xff]
        %v1301 = vld [vmem:[#allocation2 + $0x4c8] sm:$0xff]
        %v1302 = vld [vmem:[#allocation2 + $0x4d0] sm:$0xff]
        %v1303 = vld [vmem:[#allocation2 + $0x4d8] sm:$0xff]
        %v1304 = vld [vmem:[#allocation2 + $0x4e0] sm:$0xff]
        %v1305 = vld [vmem:[#allocation2 + $0x4e8] sm:$0xff]
        %v1306 = vld [vmem:[#allocation2 + $0x4f0] sm:$0xff]
        %v1307 = vld [vmem:[#allocation2 + $0x4f8] sm:$0xff]
        %v1308 = vld [vmem:[#allocation2 + $0x500] sm:$0xff]
        %v1309 = vld [vmem:[#allocation2 + $0x508] sm:$0xff]
        %v1310 = vld [vmem:[#allocation2 + $0x510] sm:$0xff]
        %v1311 = vld [vmem:[#allocation2 + $0x518] sm:$0xff]
        %v1312 = vld [vmem:[#allocation2 + $0x520] sm:$0xff]
        %v1313 = vld [vmem:[#allocation2 + $0x528] sm:$0xff]
        %v1314 = vld [vmem:[#allocation2 + $0x530] sm:$0xff]
        %v1315 = vld [vmem:[#allocation2 + $0x538] sm:$0xff]
        %v1316 = vld [vmem:[#allocation2 + $0x540] sm:$0xff]
        %v1317 = vld [vmem:[#allocation2 + $0x548] sm:$0xff]
        %v1318 = vld [vmem:[#allocation2 + $0x550] sm:$0xff]
        %v1319 = vld [vmem:[#allocation2 + $0x558] sm:$0xff]
        %v1320 = vld [vmem:[#allocation2 + $0x560] sm:$0xff]
        %v1321 = vld [vmem:[#allocation2 + $0x568] sm:$0xff]
        %v1322 = vld [vmem:[#allocation2 + $0x570] sm:$0xff]
        %v1323 = vld [vmem:[#allocation2 + $0x578] sm:$0xff]
        %v1324 = vld [vmem:[#allocation2 + $0x580] sm:$0xff]
        %v1325 = vld [vmem:[#allocation2 + $0x588] sm:$0xff]
        %v1326 = vld [vmem:[#allocation2 + $0x590] sm:$0xff]
        %v1327 = vld [vmem:[#allocation2 + $0x598] sm:$0xff]
        %v1328 = vld [vmem:[#allocation2 + $0x5a0] sm:$0xff]
        %v1329 = vld [vmem:[#allocation2 + $0x5a8] sm:$0xff]
        %v1330 = vld [vmem:[#allocation2 + $0x5b0] sm:$0xff]
        %v1331 = vld [vmem:[#allocation2 + $0x5b8] sm:$0xff]
        %v1332 = vld [vmem:[#allocation2 + $0x5c0] sm:$0xff]
        %v1333 = vld [vmem:[#allocation2 + $0x5c8] sm:$0xff]
        %v1334 = vld [vmem:[#allocation2 + $0x5d0] sm:$0xff]
        %v1335 = vld [vmem:[#allocation2 + $0x5d8] sm:$0xff]
        %v1336 = vld [vmem:[#allocation2 + $0x5e0] sm:$0xff]
        %v1337 = vld [vmem:[#allocation2 + $0x5e8] sm:$0xff]
        %v1338 = vld [vmem:[#allocation2 + $0x5f0] sm:$0xff]
        %v1339 = vld [vmem:[#allocation2 + $0x5f8] sm:$0xff]
        %v1341 = vunpack.c.l.b16 %v250
        %v1342 = vunpack.c.h.b16 %v250
        %v1343 = vpack.c.b16 %v838, %v836
        %v1344 = vpack.c.b16 %v839, %v837
        %v1345 = vpack.c.b16 %v1341, %v840
        %v1346 = vpack.c.b16 %v1342, %v841
        %v1415 = vunpack.c.l.b16 %v1276
        %v1416 = vunpack.c.h.b16 %v1276
        %v1417 = vunpack.c.l.b16 %v1277
        %v1418 = vunpack.c.h.b16 %v1277
        %v1419 = vunpack.c.l.b16 %v1278
        %v1420 = vunpack.c.h.b16 %v1278
        %v1421 = vunpack.c.l.b16 %v1279
        %v1422 = vunpack.c.h.b16 %v1279
        %v1423 = vunpack.c.l.b16 %v1280
        %v1424 = vunpack.c.h.b16 %v1280
        %v1425 = vunpack.c.l.b16 %v1281
        %v1426 = vunpack.c.h.b16 %v1281
        %v1427 = vunpack.c.l.b16 %v1282
        %v1428 = vunpack.c.h.b16 %v1282
        %v1429 = vunpack.c.l.b16 %v1283
        %v1430 = vunpack.c.h.b16 %v1283
        %v1431 = vunpack.c.l.b16 %v1284
        %v1432 = vunpack.c.h.b16 %v1284
        %v1433 = vunpack.c.l.b16 %v1285
        %v1434 = vunpack.c.h.b16 %v1285
        %v1435 = vunpack.c.l.b16 %v1286
        %v1436 = vunpack.c.h.b16 %v1286
        %v1437 = vunpack.c.l.b16 %v1287
        %v1438 = vunpack.c.h.b16 %v1287
        %v1439 = vunpack.c.l.b16 %v1288
        %v1440 = vunpack.c.h.b16 %v1288
        %v1441 = vunpack.c.l.b16 %v1289
        %v1442 = vunpack.c.h.b16 %v1289
        %v1443 = vunpack.c.l.b16 %v1290
        %v1444 = vunpack.c.h.b16 %v1290
        %v1445 = vunpack.c.l.b16 %v1291
        %v1446 = vunpack.c.h.b16 %v1291
        %v1447 = vunpack.c.l.b16 %v1292
        %v1448 = vunpack.c.h.b16 %v1292
        %v1449 = vunpack.c.l.b16 %v1293
        %v1450 = vunpack.c.h.b16 %v1293
        %v1451 = vunpack.c.l.b16 %v1294
        %v1452 = vunpack.c.h.b16 %v1294
        %v1453 = vunpack.c.l.b16 %v1295
        %v1454 = vunpack.c.h.b16 %v1295
        %v1455 = vunpack.c.l.b16 %v1296
        %v1456 = vunpack.c.h.b16 %v1296
        %v1457 = vunpack.c.l.b16 %v1297
        %v1458 = vunpack.c.h.b16 %v1297
        %v1459 = vunpack.c.l.b16 %v1298
        %v1460 = vunpack.c.h.b16 %v1298
        %v1461 = vunpack.c.l.b16 %v1299
        %v1462 = vunpack.c.h.b16 %v1299
        %v1463 = vunpack.c.l.b16 %v1300
        %v1464 = vunpack.c.h.b16 %v1300
        %v1465 = vunpack.c.l.b16 %v1301
        %v1466 = vunpack.c.h.b16 %v1301
        %v1467 = vunpack.c.l.b16 %v1302
        %v1468 = vunpack.c.h.b16 %v1302
        %v1469 = vunpack.c.l.b16 %v1303
        %v1470 = vunpack.c.h.b16 %v1303
        %v1471 = vunpack.c.l.b16 %v1304
        %v1472 = vunpack.c.h.b16 %v1304
        %v1473 = vunpack.c.l.b16 %v1305
        %v1474 = vunpack.c.h.b16 %v1305
        %v1475 = vunpack.c.l.b16 %v1306
        %v1476 = vunpack.c.h.b16 %v1306
        %v1477 = vunpack.c.l.b16 %v1307
        %v1478 = vunpack.c.h.b16 %v1307
        %v1479 = vunpack.c.l.b16 %v1308
        %v1480 = vunpack.c.h.b16 %v1308
        %v1481 = vunpack.c.l.b16 %v1309
        %v1482 = vunpack.c.h.b16 %v1309
        %v1483 = vunpack.c.l.b16 %v1310
        %v1484 = vunpack.c.h.b16 %v1310
        %v1485 = vunpack.c.l.b16 %v1311
        %v1486 = vunpack.c.h.b16 %v1311
        %v1487 = vunpack.c.l.b16 %v1312
        %v1488 = vunpack.c.h.b16 %v1312
        %v1489 = vunpack.c.l.b16 %v1313
        %v1490 = vunpack.c.h.b16 %v1313
        %v1491 = vunpack.c.l.b16 %v1314
        %v1492 = vunpack.c.h.b16 %v1314
        %v1493 = vunpack.c.l.b16 %v1315
        %v1494 = vunpack.c.h.b16 %v1315
        %v1495 = vunpack.c.l.b16 %v1316
        %v1496 = vunpack.c.h.b16 %v1316
        %v1497 = vunpack.c.l.b16 %v1317
        %v1498 = vunpack.c.h.b16 %v1317
        %v1499 = vunpack.c.l.b16 %v1318
        %v1500 = vunpack.c.h.b16 %v1318
        %v1501 = vunpack.c.l.b16 %v1319
        %v1502 = vunpack.c.h.b16 %v1319
        %v1503 = vunpack.c.l.b16 %v1320
        %v1504 = vunpack.c.h.b16 %v1320
        %v1505 = vunpack.c.l.b16 %v1321
        %v1506 = vunpack.c.h.b16 %v1321
        %v1507 = vunpack.c.l.b16 %v1322
        %v1508 = vunpack.c.h.b16 %v1322
        %v1509 = vunpack.c.l.b16 %v1323
        %v1510 = vunpack.c.h.b16 %v1323
        %v1511 = vunpack.c.l.b16 %v1324
        %v1512 = vunpack.c.h.b16 %v1324
        %v1513 = vunpack.c.l.b16 %v1325
        %v1514 = vunpack.c.h.b16 %v1325
        %v1515 = vunpack.c.l.b16 %v1326
        %v1516 = vunpack.c.h.b16 %v1326
        %v1517 = vunpack.c.l.b16 %v1327
        %v1518 = vunpack.c.h.b16 %v1327
        %v1519 = vunpack.c.l.b16 %v1328
        %v1520 = vunpack.c.h.b16 %v1328
        %v1521 = vunpack.c.l.b16 %v1329
        %v1522 = vunpack.c.h.b16 %v1329
        %v1523 = vunpack.c.l.b16 %v1330
        %v1524 = vunpack.c.h.b16 %v1330
        %v1525 = vunpack.c.l.b16 %v1331
        %v1526 = vunpack.c.h.b16 %v1331
        %v1527 = vunpack.c.l.b16 %v1332
        %v1528 = vunpack.c.h.b16 %v1332
        %v1529 = vunpack.c.l.b16 %v1333
        %v1530 = vunpack.c.h.b16 %v1333
        %v1531 = vunpack.c.l.b16 %v1334
        %v1532 = vunpack.c.h.b16 %v1334
        %v1533 = vunpack.c.l.b16 %v1335
        %v1534 = vunpack.c.h.b16 %v1335
        %v1535 = vunpack.c.l.b16 %v1336
        %v1536 = vunpack.c.h.b16 %v1336
        %v1537 = vunpack.c.l.b16 %v1337
        %v1538 = vunpack.c.h.b16 %v1337
        %v1539 = vunpack.c.l.b16 %v1338
        %v1540 = vunpack.c.h.b16 %v1338
        %v1541 = vunpack.c.l.b16 %v1339
        %v1542 = vunpack.c.h.b16 %v1339
        %v1543 = vpack.c.b16 %v1419, %v1415
        %v1544 = vpack.c.b16 %v1420, %v1416
        %v1545 = vpack.c.b16 %v1421, %v1417
        %v1546 = vpack.c.b16 %v1422, %v1418
        %v1547 = vpack.c.b16 %v1427, %v1423
        %v1548 = vpack.c.b16 %v1428, %v1424
        %v1549 = vpack.c.b16 %v1429, %v1425
        %v1550 = vpack.c.b16 %v1430, %v1426
        %v1551 = vpack.c.b16 %v1435, %v1431
        %v1552 = vpack.c.b16 %v1436, %v1432
        %v1553 = vpack.c.b16 %v1437, %v1433
        %v1554 = vpack.c.b16 %v1438, %v1434
        %v1555 = vpack.c.b16 %v1443, %v1439
        %v1556 = vpack.c.b16 %v1444, %v1440
        %v1557 = vpack.c.b16 %v1445, %v1441
        %v1558 = vpack.c.b16 %v1446, %v1442
        %v1559 = vpack.c.b16 %v1451, %v1447
        %v1560 = vpack.c.b16 %v1452, %v1448
        %v1561 = vpack.c.b16 %v1453, %v1449
        %v1562 = vpack.c.b16 %v1454, %v1450
        %v1563 = vpack.c.b16 %v1459, %v1455
        %v1564 = vpack.c.b16 %v1460, %v1456
        %v1565 = vpack.c.b16 %v1461, %v1457
        %v1566 = vpack.c.b16 %v1462, %v1458
        %v1567 = vpack.c.b16 %v1467, %v1463
        %v1568 = vpack.c.b16 %v1468, %v1464
        %v1569 = vpack.c.b16 %v1469, %v1465
        %v1570 = vpack.c.b16 %v1470, %v1466
        %v1571 = vpack.c.b16 %v1475, %v1471
        %v1572 = vpack.c.b16 %v1476, %v1472
        %v1573 = vpack.c.b16 %v1477, %v1473
        %v1574 = vpack.c.b16 %v1478, %v1474
        %v1575 = vpack.c.b16 %v1483, %v1479
        %v1576 = vpack.c.b16 %v1484, %v1480
        %v1577 = vpack.c.b16 %v1485, %v1481
        %v1578 = vpack.c.b16 %v1486, %v1482
        %v1579 = vpack.c.b16 %v1491, %v1487
        %v1580 = vpack.c.b16 %v1492, %v1488
        %v1581 = vpack.c.b16 %v1493, %v1489
        %v1582 = vpack.c.b16 %v1494, %v1490
        %v1583 = vpack.c.b16 %v1499, %v1495
        %v1584 = vpack.c.b16 %v1500, %v1496
        %v1585 = vpack.c.b16 %v1501, %v1497
        %v1586 = vpack.c.b16 %v1502, %v1498
        %v1587 = vpack.c.b16 %v1507, %v1503
        %v1588 = vpack.c.b16 %v1508, %v1504
        %v1589 = vpack.c.b16 %v1509, %v1505
        %v1590 = vpack.c.b16 %v1510, %v1506
        %v1591 = vpack.c.b16 %v1515, %v1511
        %v1592 = vpack.c.b16 %v1516, %v1512
        %v1593 = vpack.c.b16 %v1517, %v1513
        %v1594 = vpack.c.b16 %v1518, %v1514
        %v1595 = vpack.c.b16 %v1523, %v1519
        %v1596 = vpack.c.b16 %v1524, %v1520
        %v1597 = vpack.c.b16 %v1525, %v1521
        %v1598 = vpack.c.b16 %v1526, %v1522
        %v1599 = vpack.c.b16 %v1531, %v1527
        %v1600 = vpack.c.b16 %v1532, %v1528
        %v1601 = vpack.c.b16 %v1533, %v1529
        %v1602 = vpack.c.b16 %v1534, %v1530
        %v1603 = vpack.c.b16 %v1539, %v1535
        %v1604 = vpack.c.b16 %v1540, %v1536
        %v1605 = vpack.c.b16 %v1541, %v1537
        %v1606 = vpack.c.b16 %v1542, %v1538
        %1671 = vmatprep.subr.bf16.mxu0 %v1572
        %1672 = vmatpush1.bf16.msra.mxu0 %v1571
        %1673 = vmatprep.subr.bf16.mxu0 %v1568
        %1674 = vmatpush1.bf16.msra.mxu0 %v1567
        %1675 = vmatprep.subr.bf16.mxu0 %v1564
        %1676 = vmatpush1.bf16.msra.mxu0 %v1563
        %1677 = vmatprep.subr.bf16.mxu0 %v1560
        %1678 = vmatpush1.bf16.msra.mxu0 %v1559
        %1679 = vmatprep.subr.bf16.mxu0 %v1556
        %1680 = vmatpush1.bf16.msra.mxu0 %v1555
        %1681 = vmatprep.subr.bf16.mxu0 %v1552
        %1682 = vmatpush1.bf16.msra.mxu0 %v1551
        %1683 = vmatprep.subr.bf16.mxu0 %v1548
        %1684 = vmatpush1.bf16.msra.mxu0 %v1547
        %1685 = vmatprep.subr.bf16.mxu0 %v1544
        %1686 = vmatpush1.bf16.msra.mxu0 %v1543
        %1687 = vmatprep.subr.bf16.mxu0 %v1604
        %1688 = vmatpush2.bf16.msra.mxu0 %v1603
        %1689 = vmatprep.subr.bf16.mxu0 %v1600
        %1690 = vmatpush2.bf16.msra.mxu0 %v1599
        %1691 = vmatprep.subr.bf16.mxu0 %v1596
        %1692 = vmatpush2.bf16.msra.mxu0 %v1595
        %1693 = vmatprep.subr.bf16.mxu0 %v1592
        %1694 = vmatpush2.bf16.msra.mxu0 %v1591
        %1695 = vmatprep.subr.bf16.mxu0 %v1588
        %1696 = vmatpush2.bf16.msra.mxu0 %v1587
        %1697 = vmatprep.subr.bf16.mxu0 %v1584
        %1698 = vmatpush2.bf16.msra.mxu0 %v1583
        %1699 = vmatprep.subr.bf16.mxu0 %v1580
        %1700 = vmatpush2.bf16.msra.mxu0 %v1579
        %1701 = vmatprep.subr.bf16.mxu0 %v1576
        %1702 = vmatpush2.bf16.msra.mxu0 %v1575
        %1703 = vmatprep.mubr.bf16.mxu0 %v1344
        %1704 = vmatmul.mubr.bf16.gmra.mxu0 %v1343
        %v1705 = vpop.f32.mrf.mxu0
        %v1706 = vadd.f32 0.0, %v1705
        %v1707 = vpop.f32.mrf.mxu0
        %v1708 = vadd.f32 0.0, %v1707
        %v1709 = vpop.f32.mrf.mxu0
        %v1710 = vadd.f32 0.0, %v1709
        %v1711 = vpop.f32.mrf.mxu0
        %v1712 = vadd.f32 0.0, %v1711
        %1713 = vmatprep.mubr.bf16.mxu0 %v1346
        %1714 = vmatmul.mubr.bf16.gmra.mxu0 %v1345
        %v1715 = vpop.f32.mrf.mxu0
        %v1716 = vadd.f32 0.0, %v1715
        %v1717 = vpop.f32.mrf.mxu0
        %v1718 = vadd.f32 0.0, %v1717
        %v1719 = vpop.f32.mrf.mxu0
        %v1720 = vadd.f32 0.0, %v1719
        %v1721 = vpop.f32.mrf.mxu0
        %v1722 = vadd.f32 0.0, %v1721
        %1723 = vdwg.mxu0
        %1724 = vmatprep.subr.bf16.mxu0 %v1574
        %1725 = vmatpush1.bf16.msra.mxu0 %v1573
        %1726 = vmatprep.subr.bf16.mxu0 %v1570
        %1727 = vmatpush1.bf16.msra.mxu0 %v1569
        %1728 = vmatprep.subr.bf16.mxu0 %v1566
        %1729 = vmatpush1.bf16.msra.mxu0 %v1565
        %1730 = vmatprep.subr.bf16.mxu0 %v1562
        %1731 = vmatpush1.bf16.msra.mxu0 %v1561
        %1732 = vmatprep.subr.bf16.mxu0 %v1558
        %1733 = vmatpush1.bf16.msra.mxu0 %v1557
        %1734 = vmatprep.subr.bf16.mxu0 %v1554
        %1735 = vmatpush1.bf16.msra.mxu0 %v1553
        %1736 = vmatprep.subr.bf16.mxu0 %v1550
        %1737 = vmatpush1.bf16.msra.mxu0 %v1549
        %1738 = vmatprep.subr.bf16.mxu0 %v1546
        %1739 = vmatpush1.bf16.msra.mxu0 %v1545
        %1740 = vmatprep.subr.bf16.mxu0 %v1606
        %1741 = vmatpush2.bf16.msra.mxu0 %v1605
        %1742 = vmatprep.subr.bf16.mxu0 %v1602
        %1743 = vmatpush2.bf16.msra.mxu0 %v1601
        %1744 = vmatprep.subr.bf16.mxu0 %v1598
        %1745 = vmatpush2.bf16.msra.mxu0 %v1597
        %1746 = vmatprep.subr.bf16.mxu0 %v1594
        %1747 = vmatpush2.bf16.msra.mxu0 %v1593
        %1748 = vmatprep.subr.bf16.mxu0 %v1590
        %1749 = vmatpush2.bf16.msra.mxu0 %v1589
        %1750 = vmatprep.subr.bf16.mxu0 %v1586
        %1751 = vmatpush2.bf16.msra.mxu0 %v1585
        %1752 = vmatprep.subr.bf16.mxu0 %v1582
        %1753 = vmatpush2.bf16.msra.mxu0 %v1581
        %1754 = vmatprep.subr.bf16.mxu0 %v1578
        %1755 = vmatpush2.bf16.msra.mxu0 %v1577
        %1756 = vmatprep.mubr.bf16.mxu0 %v1344
        %1757 = vmatmul.mubr.bf16.gmra.mxu0 %v1343
        %v1758 = vpop.f32.mrf.mxu0
        %v1759 = vadd.f32 0.0, %v1758
        %v1760 = vpop.f32.mrf.mxu0
        %v1761 = vadd.f32 0.0, %v1760
        %v1762 = vpop.f32.mrf.mxu0
        %v1763 = vadd.f32 0.0, %v1762
        %v1764 = vpop.f32.mrf.mxu0
        %v1765 = vadd.f32 0.0, %v1764
        %1766 = vmatprep.mubr.bf16.mxu0 %v1346
        %1767 = vmatmul.mubr.bf16.gmra.mxu0 %v1345
        %v1768 = vpop.f32.mrf.mxu0
        %v1769 = vadd.f32 0.0, %v1768
        %v1770 = vpop.f32.mrf.mxu0
        %v1771 = vadd.f32 0.0, %v1770
        %v1772 = vpop.f32.mrf.mxu0
        %v1773 = vadd.f32 0.0, %v1772
        %v1774 = vpop.f32.mrf.mxu0
        %v1775 = vadd.f32 0.0, %v1774
        %1776 = vdwg.mxu0
        %v1777 = vadd.f32 %v1205, %v1706
        %v1778 = vadd.f32 %v1207, %v1708
        %v1779 = vadd.f32 %v1258, %v1759
        %v1780 = vadd.f32 %v1260, %v1761
        %v1781 = vadd.f32 %v1209, %v1710
        %v1782 = vadd.f32 %v1211, %v1712
        %v1783 = vadd.f32 %v1262, %v1763
        %v1784 = vadd.f32 %v1264, %v1765
        %v1785 = vadd.f32 %v1215, %v1716
        %v1786 = vadd.f32 %v1217, %v1718
        %v1787 = vadd.f32 %v1268, %v1769
        %v1788 = vadd.f32 %v1270, %v1771
        %v1789 = vadd.f32 %v1219, %v1720
        %v1790 = vadd.f32 %v1221, %v1722
        %v1791 = vadd.f32 %v1272, %v1773
        %v1792 = vadd.f32 %v1274, %v1775
        %v1793 = vld [vmem:[#allocation2 + $0x600] sm:$0xff]
        %v1794 = vld [vmem:[#allocation2 + $0x608] sm:$0xff]
        %v1795 = vld [vmem:[#allocation2 + $0x610] sm:$0xff]
        %v1796 = vld [vmem:[#allocation2 + $0x618] sm:$0xff]
        %v1797 = vld [vmem:[#allocation2 + $0x620] sm:$0xff]
        %v1798 = vld [vmem:[#allocation2 + $0x628] sm:$0xff]
        %v1799 = vld [vmem:[#allocation2 + $0x630] sm:$0xff]
        %v1800 = vld [vmem:[#allocation2 + $0x638] sm:$0xff]
        %v1801 = vld [vmem:[#allocation2 + $0x640] sm:$0xff]
        %v1802 = vld [vmem:[#allocation2 + $0x648] sm:$0xff]
        %v1803 = vld [vmem:[#allocation2 + $0x650] sm:$0xff]
        %v1804 = vld [vmem:[#allocation2 + $0x658] sm:$0xff]
        %v1805 = vld [vmem:[#allocation2 + $0x660] sm:$0xff]
        %v1806 = vld [vmem:[#allocation2 + $0x668] sm:$0xff]
        %v1807 = vld [vmem:[#allocation2 + $0x670] sm:$0xff]
        %v1808 = vld [vmem:[#allocation2 + $0x678] sm:$0xff]
        %v1809 = vld [vmem:[#allocation2 + $0x680] sm:$0xff]
        %v1810 = vld [vmem:[#allocation2 + $0x688] sm:$0xff]
        %v1811 = vld [vmem:[#allocation2 + $0x690] sm:$0xff]
        %v1812 = vld [vmem:[#allocation2 + $0x698] sm:$0xff]
        %v1813 = vld [vmem:[#allocation2 + $0x6a0] sm:$0xff]
        %v1814 = vld [vmem:[#allocation2 + $0x6a8] sm:$0xff]
        %v1815 = vld [vmem:[#allocation2 + $0x6b0] sm:$0xff]
        %v1816 = vld [vmem:[#allocation2 + $0x6b8] sm:$0xff]
        %v1817 = vld [vmem:[#allocation2 + $0x6c0] sm:$0xff]
        %v1818 = vld [vmem:[#allocation2 + $0x6c8] sm:$0xff]
        %v1819 = vld [vmem:[#allocation2 + $0x6d0] sm:$0xff]
        %v1820 = vld [vmem:[#allocation2 + $0x6d8] sm:$0xff]
        %v1821 = vld [vmem:[#allocation2 + $0x6e0] sm:$0xff]
        %v1822 = vld [vmem:[#allocation2 + $0x6e8] sm:$0xff]
        %v1823 = vld [vmem:[#allocation2 + $0x6f0] sm:$0xff]
        %v1824 = vld [vmem:[#allocation2 + $0x6f8] sm:$0xff]
        %v1825 = vld [vmem:[#allocation2 + $0x700] sm:$0xff]
        %v1826 = vld [vmem:[#allocation2 + $0x708] sm:$0xff]
        %v1827 = vld [vmem:[#allocation2 + $0x710] sm:$0xff]
        %v1828 = vld [vmem:[#allocation2 + $0x718] sm:$0xff]
        %v1829 = vld [vmem:[#allocation2 + $0x720] sm:$0xff]
        %v1830 = vld [vmem:[#allocation2 + $0x728] sm:$0xff]
        %v1831 = vld [vmem:[#allocation2 + $0x730] sm:$0xff]
        %v1832 = vld [vmem:[#allocation2 + $0x738] sm:$0xff]
        %v1833 = vld [vmem:[#allocation2 + $0x740] sm:$0xff]
        %v1834 = vld [vmem:[#allocation2 + $0x748] sm:$0xff]
        %v1835 = vld [vmem:[#allocation2 + $0x750] sm:$0xff]
        %v1836 = vld [vmem:[#allocation2 + $0x758] sm:$0xff]
        %v1837 = vld [vmem:[#allocation2 + $0x760] sm:$0xff]
        %v1838 = vld [vmem:[#allocation2 + $0x768] sm:$0xff]
        %v1839 = vld [vmem:[#allocation2 + $0x770] sm:$0xff]
        %v1840 = vld [vmem:[#allocation2 + $0x778] sm:$0xff]
        %v1841 = vld [vmem:[#allocation2 + $0x780] sm:$0xff]
        %v1842 = vld [vmem:[#allocation2 + $0x788] sm:$0xff]
        %v1843 = vld [vmem:[#allocation2 + $0x790] sm:$0xff]
        %v1844 = vld [vmem:[#allocation2 + $0x798] sm:$0xff]
        %v1845 = vld [vmem:[#allocation2 + $0x7a0] sm:$0xff]
        %v1846 = vld [vmem:[#allocation2 + $0x7a8] sm:$0xff]
        %v1847 = vld [vmem:[#allocation2 + $0x7b0] sm:$0xff]
        %v1848 = vld [vmem:[#allocation2 + $0x7b8] sm:$0xff]
        %v1849 = vld [vmem:[#allocation2 + $0x7c0] sm:$0xff]
        %v1850 = vld [vmem:[#allocation2 + $0x7c8] sm:$0xff]
        %v1851 = vld [vmem:[#allocation2 + $0x7d0] sm:$0xff]
        %v1852 = vld [vmem:[#allocation2 + $0x7d8] sm:$0xff]
        %v1853 = vld [vmem:[#allocation2 + $0x7e0] sm:$0xff]
        %v1854 = vld [vmem:[#allocation2 + $0x7e8] sm:$0xff]
        %v1855 = vld [vmem:[#allocation2 + $0x7f0] sm:$0xff]
        %v1856 = vld [vmem:[#allocation2 + $0x7f8] sm:$0xff]
        %v1858 = vunpack.c.l.b16 %v255
        %v1859 = vunpack.c.h.b16 %v255
        %v1860 = vpack.c.b16 %v392, %v390
        %v1861 = vpack.c.b16 %v393, %v391
        %v1862 = vpack.c.b16 %v1858, %v394
        %v1863 = vpack.c.b16 %v1859, %v395
        %v1932 = vunpack.c.l.b16 %v1793
        %v1933 = vunpack.c.h.b16 %v1793
        %v1934 = vunpack.c.l.b16 %v1794
        %v1935 = vunpack.c.h.b16 %v1794
        %v1936 = vunpack.c.l.b16 %v1795
        %v1937 = vunpack.c.h.b16 %v1795
        %v1938 = vunpack.c.l.b16 %v1796
        %v1939 = vunpack.c.h.b16 %v1796
        %v1940 = vunpack.c.l.b16 %v1797
        %v1941 = vunpack.c.h.b16 %v1797
        %v1942 = vunpack.c.l.b16 %v1798
        %v1943 = vunpack.c.h.b16 %v1798
        %v1944 = vunpack.c.l.b16 %v1799
        %v1945 = vunpack.c.h.b16 %v1799
        %v1946 = vunpack.c.l.b16 %v1800
        %v1947 = vunpack.c.h.b16 %v1800
        %v1948 = vunpack.c.l.b16 %v1801
        %v1949 = vunpack.c.h.b16 %v1801
        %v1950 = vunpack.c.l.b16 %v1802
        %v1951 = vunpack.c.h.b16 %v1802
        %v1952 = vunpack.c.l.b16 %v1803
        %v1953 = vunpack.c.h.b16 %v1803
        %v1954 = vunpack.c.l.b16 %v1804
        %v1955 = vunpack.c.h.b16 %v1804
        %v1956 = vunpack.c.l.b16 %v1805
        %v1957 = vunpack.c.h.b16 %v1805
        %v1958 = vunpack.c.l.b16 %v1806
        %v1959 = vunpack.c.h.b16 %v1806
        %v1960 = vunpack.c.l.b16 %v1807
        %v1961 = vunpack.c.h.b16 %v1807
        %v1962 = vunpack.c.l.b16 %v1808
        %v1963 = vunpack.c.h.b16 %v1808
        %v1964 = vunpack.c.l.b16 %v1809
        %v1965 = vunpack.c.h.b16 %v1809
        %v1966 = vunpack.c.l.b16 %v1810
        %v1967 = vunpack.c.h.b16 %v1810
        %v1968 = vunpack.c.l.b16 %v1811
        %v1969 = vunpack.c.h.b16 %v1811
        %v1970 = vunpack.c.l.b16 %v1812
        %v1971 = vunpack.c.h.b16 %v1812
        %v1972 = vunpack.c.l.b16 %v1813
        %v1973 = vunpack.c.h.b16 %v1813
        %v1974 = vunpack.c.l.b16 %v1814
        %v1975 = vunpack.c.h.b16 %v1814
        %v1976 = vunpack.c.l.b16 %v1815
        %v1977 = vunpack.c.h.b16 %v1815
        %v1978 = vunpack.c.l.b16 %v1816
        %v1979 = vunpack.c.h.b16 %v1816
        %v1980 = vunpack.c.l.b16 %v1817
        %v1981 = vunpack.c.h.b16 %v1817
        %v1982 = vunpack.c.l.b16 %v1818
        %v1983 = vunpack.c.h.b16 %v1818
        %v1984 = vunpack.c.l.b16 %v1819
        %v1985 = vunpack.c.h.b16 %v1819
        %v1986 = vunpack.c.l.b16 %v1820
        %v1987 = vunpack.c.h.b16 %v1820
        %v1988 = vunpack.c.l.b16 %v1821
        %v1989 = vunpack.c.h.b16 %v1821
        %v1990 = vunpack.c.l.b16 %v1822
        %v1991 = vunpack.c.h.b16 %v1822
        %v1992 = vunpack.c.l.b16 %v1823
        %v1993 = vunpack.c.h.b16 %v1823
        %v1994 = vunpack.c.l.b16 %v1824
        %v1995 = vunpack.c.h.b16 %v1824
        %v1996 = vunpack.c.l.b16 %v1825
        %v1997 = vunpack.c.h.b16 %v1825
        %v1998 = vunpack.c.l.b16 %v1826
        %v1999 = vunpack.c.h.b16 %v1826
        %v2000 = vunpack.c.l.b16 %v1827
        %v2001 = vunpack.c.h.b16 %v1827
        %v2002 = vunpack.c.l.b16 %v1828
        %v2003 = vunpack.c.h.b16 %v1828
        %v2004 = vunpack.c.l.b16 %v1829
        %v2005 = vunpack.c.h.b16 %v1829
        %v2006 = vunpack.c.l.b16 %v1830
        %v2007 = vunpack.c.h.b16 %v1830
        %v2008 = vunpack.c.l.b16 %v1831
        %v2009 = vunpack.c.h.b16 %v1831
        %v2010 = vunpack.c.l.b16 %v1832
        %v2011 = vunpack.c.h.b16 %v1832
        %v2012 = vunpack.c.l.b16 %v1833
        %v2013 = vunpack.c.h.b16 %v1833
        %v2014 = vunpack.c.l.b16 %v1834
        %v2015 = vunpack.c.h.b16 %v1834
        %v2016 = vunpack.c.l.b16 %v1835
        %v2017 = vunpack.c.h.b16 %v1835
        %v2018 = vunpack.c.l.b16 %v1836
        %v2019 = vunpack.c.h.b16 %v1836
        %v2020 = vunpack.c.l.b16 %v1837
        %v2021 = vunpack.c.h.b16 %v1837
        %v2022 = vunpack.c.l.b16 %v1838
        %v2023 = vunpack.c.h.b16 %v1838
        %v2024 = vunpack.c.l.b16 %v1839
        %v2025 = vunpack.c.h.b16 %v1839
        %v2026 = vunpack.c.l.b16 %v1840
        %v2027 = vunpack.c.h.b16 %v1840
        %v2028 = vunpack.c.l.b16 %v1841
        %v2029 = vunpack.c.h.b16 %v1841
        %v2030 = vunpack.c.l.b16 %v1842
        %v2031 = vunpack.c.h.b16 %v1842
        %v2032 = vunpack.c.l.b16 %v1843
        %v2033 = vunpack.c.h.b16 %v1843
        %v2034 = vunpack.c.l.b16 %v1844
        %v2035 = vunpack.c.h.b16 %v1844
        %v2036 = vunpack.c.l.b16 %v1845
        %v2037 = vunpack.c.h.b16 %v1845
        %v2038 = vunpack.c.l.b16 %v1846
        %v2039 = vunpack.c.h.b16 %v1846
        %v2040 = vunpack.c.l.b16 %v1847
        %v2041 = vunpack.c.h.b16 %v1847
        %v2042 = vunpack.c.l.b16 %v1848
        %v2043 = vunpack.c.h.b16 %v1848
        %v2044 = vunpack.c.l.b16 %v1849
        %v2045 = vunpack.c.h.b16 %v1849
        %v2046 = vunpack.c.l.b16 %v1850
        %v2047 = vunpack.c.h.b16 %v1850
        %v2048 = vunpack.c.l.b16 %v1851
        %v2049 = vunpack.c.h.b16 %v1851
        %v2050 = vunpack.c.l.b16 %v1852
        %v2051 = vunpack.c.h.b16 %v1852
        %v2052 = vunpack.c.l.b16 %v1853
        %v2053 = vunpack.c.h.b16 %v1853
        %v2054 = vunpack.c.l.b16 %v1854
        %v2055 = vunpack.c.h.b16 %v1854
        %v2056 = vunpack.c.l.b16 %v1855
        %v2057 = vunpack.c.h.b16 %v1855
        %v2058 = vunpack.c.l.b16 %v1856
        %v2059 = vunpack.c.h.b16 %v1856
        %v2060 = vpack.c.b16 %v1936, %v1932
        %v2061 = vpack.c.b16 %v1937, %v1933
        %v2062 = vpack.c.b16 %v1938, %v1934
        %v2063 = vpack.c.b16 %v1939, %v1935
        %v2064 = vpack.c.b16 %v1944, %v1940
        %v2065 = vpack.c.b16 %v1945, %v1941
        %v2066 = vpack.c.b16 %v1946, %v1942
        %v2067 = vpack.c.b16 %v1947, %v1943
        %v2068 = vpack.c.b16 %v1952, %v1948
        %v2069 = vpack.c.b16 %v1953, %v1949
        %v2070 = vpack.c.b16 %v1954, %v1950
        %v2071 = vpack.c.b16 %v1955, %v1951
        %v2072 = vpack.c.b16 %v1960, %v1956
        %v2073 = vpack.c.b16 %v1961, %v1957
        %v2074 = vpack.c.b16 %v1962, %v1958
        %v2075 = vpack.c.b16 %v1963, %v1959
        %v2076 = vpack.c.b16 %v1968, %v1964
        %v2077 = vpack.c.b16 %v1969, %v1965
        %v2078 = vpack.c.b16 %v1970, %v1966
        %v2079 = vpack.c.b16 %v1971, %v1967
        %v2080 = vpack.c.b16 %v1976, %v1972
        %v2081 = vpack.c.b16 %v1977, %v1973
        %v2082 = vpack.c.b16 %v1978, %v1974
        %v2083 = vpack.c.b16 %v1979, %v1975
        %v2084 = vpack.c.b16 %v1984, %v1980
        %v2085 = vpack.c.b16 %v1985, %v1981
        %v2086 = vpack.c.b16 %v1986, %v1982
        %v2087 = vpack.c.b16 %v1987, %v1983
        %v2088 = vpack.c.b16 %v1992, %v1988
        %v2089 = vpack.c.b16 %v1993, %v1989
        %v2090 = vpack.c.b16 %v1994, %v1990
        %v2091 = vpack.c.b16 %v1995, %v1991
        %v2092 = vpack.c.b16 %v2000, %v1996
        %v2093 = vpack.c.b16 %v2001, %v1997
        %v2094 = vpack.c.b16 %v2002, %v1998
        %v2095 = vpack.c.b16 %v2003, %v1999
        %v2096 = vpack.c.b16 %v2008, %v2004
        %v2097 = vpack.c.b16 %v2009, %v2005
        %v2098 = vpack.c.b16 %v2010, %v2006
        %v2099 = vpack.c.b16 %v2011, %v2007
        %v2100 = vpack.c.b16 %v2016, %v2012
        %v2101 = vpack.c.b16 %v2017, %v2013
        %v2102 = vpack.c.b16 %v2018, %v2014
        %v2103 = vpack.c.b16 %v2019, %v2015
        %v2104 = vpack.c.b16 %v2024, %v2020
        %v2105 = vpack.c.b16 %v2025, %v2021
        %v2106 = vpack.c.b16 %v2026, %v2022
        %v2107 = vpack.c.b16 %v2027, %v2023
        %v2108 = vpack.c.b16 %v2032, %v2028
        %v2109 = vpack.c.b16 %v2033, %v2029
        %v2110 = vpack.c.b16 %v2034, %v2030
        %v2111 = vpack.c.b16 %v2035, %v2031
        %v2112 = vpack.c.b16 %v2040, %v2036
        %v2113 = vpack.c.b16 %v2041, %v2037
        %v2114 = vpack.c.b16 %v2042, %v2038
        %v2115 = vpack.c.b16 %v2043, %v2039
        %v2116 = vpack.c.b16 %v2048, %v2044
        %v2117 = vpack.c.b16 %v2049, %v2045
        %v2118 = vpack.c.b16 %v2050, %v2046
        %v2119 = vpack.c.b16 %v2051, %v2047
        %v2120 = vpack.c.b16 %v2056, %v2052
        %v2121 = vpack.c.b16 %v2057, %v2053
        %v2122 = vpack.c.b16 %v2058, %v2054
        %v2123 = vpack.c.b16 %v2059, %v2055
        %2188 = vmatprep.subr.bf16.mxu0 %v2089
        %2189 = vmatpush1.bf16.msra.mxu0 %v2088
        %2190 = vmatprep.subr.bf16.mxu0 %v2085
        %2191 = vmatpush1.bf16.msra.mxu0 %v2084
        %2192 = vmatprep.subr.bf16.mxu0 %v2081
        %2193 = vmatpush1.bf16.msra.mxu0 %v2080
        %2194 = vmatprep.subr.bf16.mxu0 %v2077
        %2195 = vmatpush1.bf16.msra.mxu0 %v2076
        %2196 = vmatprep.subr.bf16.mxu0 %v2073
        %2197 = vmatpush1.bf16.msra.mxu0 %v2072
        %2198 = vmatprep.subr.bf16.mxu0 %v2069
        %2199 = vmatpush1.bf16.msra.mxu0 %v2068
        %2200 = vmatprep.subr.bf16.mxu0 %v2065
        %2201 = vmatpush1.bf16.msra.mxu0 %v2064
        %2202 = vmatprep.subr.bf16.mxu0 %v2061
        %2203 = vmatpush1.bf16.msra.mxu0 %v2060
        %2204 = vmatprep.subr.bf16.mxu0 %v2121
        %2205 = vmatpush2.bf16.msra.mxu0 %v2120
        %2206 = vmatprep.subr.bf16.mxu0 %v2117
        %2207 = vmatpush2.bf16.msra.mxu0 %v2116
        %2208 = vmatprep.subr.bf16.mxu0 %v2113
        %2209 = vmatpush2.bf16.msra.mxu0 %v2112
        %2210 = vmatprep.subr.bf16.mxu0 %v2109
        %2211 = vmatpush2.bf16.msra.mxu0 %v2108
        %2212 = vmatprep.subr.bf16.mxu0 %v2105
        %2213 = vmatpush2.bf16.msra.mxu0 %v2104
        %2214 = vmatprep.subr.bf16.mxu0 %v2101
        %2215 = vmatpush2.bf16.msra.mxu0 %v2100
        %2216 = vmatprep.subr.bf16.mxu0 %v2097
        %2217 = vmatpush2.bf16.msra.mxu0 %v2096
        %2218 = vmatprep.subr.bf16.mxu0 %v2093
        %2219 = vmatpush2.bf16.msra.mxu0 %v2092
        %2220 = vmatprep.mubr.bf16.mxu0 %v1861
        %2221 = vmatmul.mubr.bf16.gmra.mxu0 %v1860
        %v2222 = vpop.f32.mrf.mxu0
        %v2223 = vadd.f32 0.0, %v2222
        %v2224 = vpop.f32.mrf.mxu0
        %v2225 = vadd.f32 0.0, %v2224
        %v2226 = vpop.f32.mrf.mxu0
        %v2227 = vadd.f32 0.0, %v2226
        %v2228 = vpop.f32.mrf.mxu0
        %v2229 = vadd.f32 0.0, %v2228
        %2230 = vmatprep.mubr.bf16.mxu0 %v1863
        %2231 = vmatmul.mubr.bf16.gmra.mxu0 %v1862
        %v2232 = vpop.f32.mrf.mxu0
        %v2233 = vadd.f32 0.0, %v2232
        %v2234 = vpop.f32.mrf.mxu0
        %v2235 = vadd.f32 0.0, %v2234
        %v2236 = vpop.f32.mrf.mxu0
        %v2237 = vadd.f32 0.0, %v2236
        %v2238 = vpop.f32.mrf.mxu0
        %v2239 = vadd.f32 0.0, %v2238
        %2240 = vdwg.mxu0
        %2241 = vmatprep.subr.bf16.mxu0 %v2091
        %2242 = vmatpush1.bf16.msra.mxu0 %v2090
        %2243 = vmatprep.subr.bf16.mxu0 %v2087
        %2244 = vmatpush1.bf16.msra.mxu0 %v2086
        %2245 = vmatprep.subr.bf16.mxu0 %v2083
        %2246 = vmatpush1.bf16.msra.mxu0 %v2082
        %2247 = vmatprep.subr.bf16.mxu0 %v2079
        %2248 = vmatpush1.bf16.msra.mxu0 %v2078
        %2249 = vmatprep.subr.bf16.mxu0 %v2075
        %2250 = vmatpush1.bf16.msra.mxu0 %v2074
        %2251 = vmatprep.subr.bf16.mxu0 %v2071
        %2252 = vmatpush1.bf16.msra.mxu0 %v2070
        %2253 = vmatprep.subr.bf16.mxu0 %v2067
        %2254 = vmatpush1.bf16.msra.mxu0 %v2066
        %2255 = vmatprep.subr.bf16.mxu0 %v2063
        %2256 = vmatpush1.bf16.msra.mxu0 %v2062
        %2257 = vmatprep.subr.bf16.mxu0 %v2123
        %2258 = vmatpush2.bf16.msra.mxu0 %v2122
        %2259 = vmatprep.subr.bf16.mxu0 %v2119
        %2260 = vmatpush2.bf16.msra.mxu0 %v2118
        %2261 = vmatprep.subr.bf16.mxu0 %v2115
        %2262 = vmatpush2.bf16.msra.mxu0 %v2114
        %2263 = vmatprep.subr.bf16.mxu0 %v2111
        %2264 = vmatpush2.bf16.msra.mxu0 %v2110
        %2265 = vmatprep.subr.bf16.mxu0 %v2107
        %2266 = vmatpush2.bf16.msra.mxu0 %v2106
        %2267 = vmatprep.subr.bf16.mxu0 %v2103
        %2268 = vmatpush2.bf16.msra.mxu0 %v2102
        %2269 = vmatprep.subr.bf16.mxu0 %v2099
        %2270 = vmatpush2.bf16.msra.mxu0 %v2098
        %2271 = vmatprep.subr.bf16.mxu0 %v2095
        %2272 = vmatpush2.bf16.msra.mxu0 %v2094
        %2273 = vmatprep.mubr.bf16.mxu0 %v1861
        %2274 = vmatmul.mubr.bf16.gmra.mxu0 %v1860
        %v2275 = vpop.f32.mrf.mxu0
        %v2276 = vadd.f32 0.0, %v2275
        %v2277 = vpop.f32.mrf.mxu0
        %v2278 = vadd.f32 0.0, %v2277
        %v2279 = vpop.f32.mrf.mxu0
        %v2280 = vadd.f32 0.0, %v2279
        %v2281 = vpop.f32.mrf.mxu0
        %v2282 = vadd.f32 0.0, %v2281
        %2283 = vmatprep.mubr.bf16.mxu0 %v1863
        %2284 = vmatmul.mubr.bf16.gmra.mxu0 %v1862
        %v2285 = vpop.f32.mrf.mxu0
        %v2286 = vadd.f32 0.0, %v2285
        %v2287 = vpop.f32.mrf.mxu0
        %v2288 = vadd.f32 0.0, %v2287
        %v2289 = vpop.f32.mrf.mxu0
        %v2290 = vadd.f32 0.0, %v2289
        %v2291 = vpop.f32.mrf.mxu0
        %v2292 = vadd.f32 0.0, %v2291
        %2293 = vdwg.mxu0
        %v2294 = vadd.f32 %v1777, %v2223
        %v2295 = vadd.f32 %v1778, %v2225
        %v2296 = vadd.f32 %v1779, %v2276
        %v2297 = vadd.f32 %v1780, %v2278
        %v2298 = vadd.f32 %v1781, %v2227
        %v2299 = vadd.f32 %v1782, %v2229
        %v2300 = vadd.f32 %v1783, %v2280
        %v2301 = vadd.f32 %v1784, %v2282
        %v2302 = vadd.f32 %v1785, %v2233
        %v2303 = vadd.f32 %v1786, %v2235
        %v2304 = vadd.f32 %v1787, %v2286
        %v2305 = vadd.f32 %v1788, %v2288
        %v2306 = vadd.f32 %v1789, %v2237
        %v2307 = vadd.f32 %v1790, %v2239
        %v2308 = vadd.f32 %v1791, %v2290
        %v2309 = vadd.f32 %v1792, %v2292
        %v2310 = vmax.f32 %v2294, %v2295
        %v2311 = vmax.f32 %v2298, %v2299
        %v2312 = vmax.f32 %v2302, %v2303
        %v2313 = vmax.f32 %v2306, %v2307
        %v2314 = vmax.f32 %v2296, %v2297
        %v2315 = vmax.f32 %v2300, %v2301
        %v2316 = vmax.f32 %v2304, %v2305
        %v2317 = vmax.f32 %v2308, %v2309
        %v2318 = vmax.f32 %v2310, %v2314
        %v2319 = vmax.f32 %v2311, %v2315
        %v2320 = vmax.f32 %v2312, %v2316
        %v2321 = vmax.f32 %v2313, %v2317
        %v2322 = vld [vmem:[#allocation4] sm:$0x1]
        %v2324 = vlaneseq
        %v2325 = vshrl.u32 %v2324, 7
        %v2326 = vsub.s32 0, %v2325
        %v2327 = vrot.slane %v2322, %v2326
        %v2329 = vadd.f32 %v2318, %v2327
        %v2330 = vadd.f32 %v2319, %v2327
        %v2331 = vadd.f32 %v2320, %v2327
        %v2332 = vadd.f32 %v2321, %v2327
        %v2333 = vmax.f32 %v2329, 0.0
        %v2334 = vmax.f32 %v2330, 0.0
        %v2335 = vmax.f32 %v2331, 0.0
        %v2336 = vmax.f32 %v2332, 0.0
        %v2337 = vpack.c.bf16 %v2333, %v2333
        %v2338 = vpack.c.bf16 %v2334, %v2334
        %v2339 = vpack.c.bf16 %v2335, %v2335
        %v2340 = vpack.c.bf16 %v2336, %v2336
        %2341 = vst [vmem:[%s245] sm:$0xf] %v2337
        %2342 = vst [vmem:[%s245 + $0x4] sm:$0xf] %v2338
        %2343 = vst [vmem:[%s245 + $0x8] sm:$0xf] %v2339
        %2344 = vst [vmem:[%s245 + $0xc] sm:$0xf] %v2340
        %p2345 = scmp.lt.s32.totalorder %s17, 1
        %s2346 = scalar_select %p2345, %s17, 1
        %s2347 = smul.addr %s2346, 4
        %s2348 = smul.addr %s2347, 4
        %s2349 = scalar_lea.vmem %s4, %s2348
        // Predicated region
        $region45: #{_lambda_.7} parent=35 // pred_check
          %p2350 = pneg %p129
        $region46: #{_lambda_.7} parent=35 // pred_check_branch
          %2352 = sbr.rel (%p2350) target = $region48
        $region47: #{_lambda_.7} parent=35 // pred_region
          _
        $region48: #{_lambda_.7} parent=35 // pred_fallthru
          _
      $region36: #{_lambda_.7} parent=5 // pred_fallthru
        _
      %p2353 = scmp.le.s32.totalorder 2, %s12
      // Predicated region
      $region49: #{_lambda_.7} parent=5 // pred_check
        %p2354 = pneg %p2353
      $region50: #{_lambda_.7} parent=5 // pred_check_branch
        %2356 = sbr.rel (%p2354) target = $region52
      $region51: #{_lambda_.7} parent=5 // pred_region
        %s2357 = ssub.s32 %s12, 2
        // Predicated region
        $region53: #{_lambda_.7} parent=51 // pred_check
          %p2358 = pneg %p135
        $region54: #{_lambda_.7} parent=51 // pred_check_branch
          %2360 = sbr.rel (%p2358) target = $region56
        $region55: #{_lambda_.7} parent=51 // pred_region
          %p2361 = scmp.lt.s32.totalorder %s18, 1
          %s2362 = scalar_select %p2361, %s18, 1
          %s2363 = smul.addr %s2362, 4
          %s2364 = smul.addr %s2363, 4
          %s2365 = scalar_lea.vmem %s4, %s2364
        $region56: #{_lambda_.7} parent=51 // pred_fallthru
          _
      $region52: #{_lambda_.7} parent=5 // pred_fallthru
        _
    $region6: #{_lambda_.7} parent=1 // loop_footer
      %s16 = sadd.s32 1, %s12
    $region7: #{_lambda_.7} parent=1 // loop_footer_branch
      %11 = sbr.rel target = $region3
    $region8: #{_lambda_.7} parent=1 // loop_exit
      _
    %2366 = vsyncpa [#allocation3], 1
    %s2367 = scalar_lea.sflag [#allocation3], 1
    %2368 = vsyncpa %s2367, 1
    %2369 = vsyncpa [#allocation5], 1

// kernel: _lambda_.11
$region0: #{_lambda_.11}
  #allocation0 [shape = 'u32[]', space=smem, size = 0x4, offset = 0x4, fixed_abs, tag = 'smem constant byte address 0x4 - core index']
  #allocation1 [shape = 'u32[144,128]{1,0:T(1,128)}', space=vmem, size = 0x12000, scoped, tag = 'internal scratch']
  %s0 = inlined_call_operand.vmem [shape: bf16[128,128], index: 0, kind: input, shape index: {}]
  %s1 = inlined_call_operand.vmem [shape: bf16[128,128], index: 1, kind: input, shape index: {}]
  %s2 = inlined_call_operand.vmem [shape: f32[1,128], index: 2, kind: input, shape index: {}]
  %s3 = inlined_call_operand.vmem [shape: f32[128,128], index: 3, kind: output, shape index: {}]
  %s4 = sld [smem:[#allocation0]]
  $region22: #{_lambda_.11} parent=0
    _
  %s6 = ssub.s32 1, %s4
  %s7 = scalar_select 0, %s6, %s4
  // Predicated region
  $region2: #{_lambda_.11} parent=0 // pred_check
    _
  $region3: #{_lambda_.11} parent=0 // pred_check_branch
    %9 = sbr.rel (0) target = $region5
  $region4: #{_lambda_.11} parent=0 // pred_region
    _
  $region5: #{_lambda_.11} parent=0 // pred_fallthru
    _
  // Predicated region
  $region6: #{_lambda_.11} parent=0 // pred_check
    _
  $region7: #{_lambda_.11} parent=0 // pred_check_branch
    %11 = sbr.rel (0) target = $region9
  $region8: #{_lambda_.11} parent=0 // pred_region
    _
  $region9: #{_lambda_.11} parent=0 // pred_fallthru
    _
  // Predicated region
  $region10: #{_lambda_.11} parent=0 // pred_check
    _
  $region11: #{_lambda_.11} parent=0 // pred_check_branch
    %13 = sbr.rel (0) target = $region13
  $region12: #{_lambda_.11} parent=0 // pred_region
    _
  $region13: #{_lambda_.11} parent=0 // pred_fallthru
    _
  %v15 = vld [vmem:[%s0] sm:$0xf]
  %v16 = vld [vmem:[%s0 + $0x4] sm:$0xf]
  %v17 = vld [vmem:[%s0 + $0x8] sm:$0xf]
  %v18 = vld [vmem:[%s0 + $0xc] sm:$0xf]
  %v19 = vld [vmem:[%s0 + $0x10] sm:$0xf]
  %v20 = vld [vmem:[%s0 + $0x14] sm:$0xf]
  %v21 = vld [vmem:[%s0 + $0x18] sm:$0xf]
  %v22 = vld [vmem:[%s0 + $0x1c] sm:$0xf]
  %v23 = vld [vmem:[%s0 + $0x20] sm:$0xf]
  %v24 = vld [vmem:[%s0 + $0x24] sm:$0xf]
  %v25 = vld [vmem:[%s0 + $0x28] sm:$0xf]
  %v26 = vld [vmem:[%s0 + $0x2c] sm:$0xf]
  %v27 = vld [vmem:[%s0 + $0x30] sm:$0xf]
  %v28 = vld [vmem:[%s0 + $0x34] sm:$0xf]
  %v29 = vld [vmem:[%s0 + $0x38] sm:$0xf]
  %v30 = vld [vmem:[%s0 + $0x3c] sm:$0xf]
  %v31 = vld [vmem:[%s1] sm:$0xf]
  %v32 = vld [vmem:[%s1 + $0x4] sm:$0xf]
  %v33 = vld [vmem:[%s1 + $0x8] sm:$0xf]
  %v34 = vld [vmem:[%s1 + $0xc] sm:$0xf]
  %v35 = vld [vmem:[%s1 + $0x10] sm:$0xf]
  %v36 = vld [vmem:[%s1 + $0x14] sm:$0xf]
  %v37 = vld [vmem:[%s1 + $0x18] sm:$0xf]
  %v38 = vld [vmem:[%s1 + $0x1c] sm:$0xf]
  %v39 = vld [vmem:[%s1 + $0x20] sm:$0xf]
  %v40 = vld [vmem:[%s1 + $0x24] sm:$0xf]
  %v41 = vld [vmem:[%s1 + $0x28] sm:$0xf]
  %v42 = vld [vmem:[%s1 + $0x2c] sm:$0xf]
  %v43 = vld [vmem:[%s1 + $0x30] sm:$0xf]
  %v44 = vld [vmem:[%s1 + $0x34] sm:$0xf]
  %v45 = vld [vmem:[%s1 + $0x38] sm:$0xf]
  %v46 = vld [vmem:[%s1 + $0x3c] sm:$0xf]
  %v47 = vld [vmem:[%s2] sm:$0x1]
  %v49 = vlaneseq
  %v50 = vshrl.u32 %v49, 7
  %v51 = vsub.s32 0, %v50
  %v52 = vrot.slane %v47, %v51
  %v70 = vunpack.c.l.b16 %v15
  %v71 = vunpack.c.l.b16 %v16
  %v72 = vunpack.c.l.b16 %v17
  %v73 = vunpack.c.l.b16 %v18
  %v74 = vunpack.c.l.b16 %v19
  %v75 = vunpack.c.l.b16 %v20
  %v76 = vunpack.c.l.b16 %v21
  %v77 = vunpack.c.l.b16 %v22
  %v78 = vunpack.c.l.b16 %v23
  %v79 = vunpack.c.l.b16 %v24
  %v80 = vunpack.c.l.b16 %v25
  %v81 = vunpack.c.l.b16 %v26
  %v82 = vunpack.c.l.b16 %v27
  %v83 = vunpack.c.l.b16 %v28
  %v84 = vunpack.c.l.b16 %v29
  %v85 = vunpack.c.l.b16 %v30
  %v86 = vpack.c.b16 %v71, %v70
  %v87 = vpack.c.b16 %v73, %v72
  %v88 = vpack.c.b16 %v75, %v74
  %v89 = vpack.c.b16 %v77, %v76
  %v90 = vpack.c.b16 %v79, %v78
  %v91 = vpack.c.b16 %v81, %v80
  %v92 = vpack.c.b16 %v83, %v82
  %v93 = vpack.c.b16 %v85, %v84
  %v118 = vunpack.c.l.b16 %v31
  %v119 = vunpack.c.l.b16 %v32
  %v120 = vunpack.c.l.b16 %v33
  %v121 = vunpack.c.l.b16 %v34
  %v122 = vunpack.c.l.b16 %v35
  %v123 = vunpack.c.l.b16 %v36
  %v124 = vunpack.c.l.b16 %v37
  %v125 = vunpack.c.l.b16 %v38
  %v126 = vunpack.c.l.b16 %v39
  %v127 = vunpack.c.l.b16 %v40
  %v128 = vunpack.c.l.b16 %v41
  %v129 = vunpack.c.l.b16 %v42
  %v130 = vunpack.c.l.b16 %v43
  %v131 = vunpack.c.l.b16 %v44
  %v132 = vunpack.c.l.b16 %v45
  %v133 = vunpack.c.l.b16 %v46
  %v134 = vpack.c.b16 %v119, %v118
  %v135 = vpack.c.b16 %v121, %v120
  %v136 = vpack.c.b16 %v123, %v122
  %v137 = vpack.c.b16 %v125, %v124
  %v138 = vpack.c.b16 %v127, %v126
  %v139 = vpack.c.b16 %v129, %v128
  %v140 = vpack.c.b16 %v131, %v130
  %v141 = vpack.c.b16 %v133, %v132
  %150 = vmatprep.subr.bf16.mxu0 0
  %151 = vmatpush1.bf16.msra.mxu0 %v141
  %152 = vmatprep.subr.bf16.mxu0 0
  %153 = vmatpush1.bf16.msra.mxu0 %v140
  %154 = vmatprep.subr.bf16.mxu0 0
  %155 = vmatpush1.bf16.msra.mxu0 %v139
  %156 = vmatprep.subr.bf16.mxu0 0
  %157 = vmatpush1.bf16.msra.mxu0 %v138
  %158 = vmatprep.subr.bf16.mxu0 0
  %159 = vmatpush1.bf16.msra.mxu0 %v137
  %160 = vmatprep.subr.bf16.mxu0 0
  %161 = vmatpush1.bf16.msra.mxu0 %v136
  %162 = vmatprep.subr.bf16.mxu0 0
  %163 = vmatpush1.bf16.msra.mxu0 %v135
  %164 = vmatprep.subr.bf16.mxu0 0
  %165 = vmatpush1.bf16.msra.mxu0 %v134
  %166 = vmatprep.subr.bf16.mxu0 0
  %167 = vmatpush2.bf16.msra.mxu0 0
  %168 = vmatprep.subr.bf16.mxu0 0
  %169 = vmatpush2.bf16.msra.mxu0 0
  %170 = vmatprep.subr.bf16.mxu0 0
  %171 = vmatpush2.bf16.msra.mxu0 0
  %172 = vmatprep.subr.bf16.mxu0 0
  %173 = vmatpush2.bf16.msra.mxu0 0
  %174 = vmatprep.subr.bf16.mxu0 0
  %175 = vmatpush2.bf16.msra.mxu0 0
  %176 = vmatprep.subr.bf16.mxu0 0
  %177 = vmatpush2.bf16.msra.mxu0 0
  %178 = vmatprep.subr.bf16.mxu0 0
  %179 = vmatpush2.bf16.msra.mxu0 0
  %180 = vmatprep.subr.bf16.mxu0 0
  %181 = vmatpush2.bf16.msra.mxu0 0
  %182 = vmatprep.mubr.bf16.mxu0 0
  %183 = vmatmul.mubr.bf16.gmra.mxu0 %v86
  %v184 = vpop.f32.mrf.mxu0
  %v185 = vadd.f32 %v52, %v184
  %v186 = vpop.f32.mrf.mxu0
  %v187 = vpop.f32.mrf.mxu0
  %v188 = vadd.f32 %v52, %v187
  %v189 = vpop.f32.mrf.mxu0
  %190 = vmatprep.mubr.bf16.mxu0 0
  %191 = vmatmul.mubr.bf16.gmra.mxu0 %v87
  %v192 = vpop.f32.mrf.mxu0
  %v193 = vadd.f32 %v52, %v192
  %v194 = vpop.f32.mrf.mxu0
  %v195 = vpop.f32.mrf.mxu0
  %v196 = vadd.f32 %v52, %v195
  %v197 = vpop.f32.mrf.mxu0
  %198 = vmatprep.mubr.bf16.mxu0 0
  %199 = vmatmul.mubr.bf16.gmra.mxu0 %v88
  %v200 = vpop.f32.mrf.mxu0
  %v201 = vadd.f32 %v52, %v200
  %v202 = vpop.f32.mrf.mxu0
  %v203 = vpop.f32.mrf.mxu0
  %v204 = vadd.f32 %v52, %v203
  %v205 = vpop.f32.mrf.mxu0
  %206 = vmatprep.mubr.bf16.mxu0 0
  %207 = vmatmul.mubr.bf16.gmra.mxu0 %v89
  %v208 = vpop.f32.mrf.mxu0
  %v209 = vadd.f32 %v52, %v208
  %v210 = vpop.f32.mrf.mxu0
  %v211 = vpop.f32.mrf.mxu0
  %v212 = vadd.f32 %v52, %v211
  %v213 = vpop.f32.mrf.mxu0
  %214 = vmatprep.mubr.bf16.mxu0 0
  %215 = vmatmul.mubr.bf16.gmra.mxu0 %v90
  %v216 = vpop.f32.mrf.mxu0
  %v217 = vadd.f32 %v52, %v216
  %v218 = vpop.f32.mrf.mxu0
  %v219 = vpop.f32.mrf.mxu0
  %v220 = vadd.f32 %v52, %v219
  %v221 = vpop.f32.mrf.mxu0
  %222 = vmatprep.mubr.bf16.mxu0 0
  %223 = vmatmul.mubr.bf16.gmra.mxu0 %v91
  %v224 = vpop.f32.mrf.mxu0
  %v225 = vadd.f32 %v52, %v224
  %v226 = vpop.f32.mrf.mxu0
  %v227 = vpop.f32.mrf.mxu0
  %v228 = vadd.f32 %v52, %v227
  %v229 = vpop.f32.mrf.mxu0
  %230 = vmatprep.mubr.bf16.mxu0 0
  %231 = vmatmul.mubr.bf16.gmra.mxu0 %v92
  %v232 = vpop.f32.mrf.mxu0
  %v233 = vadd.f32 %v52, %v232
  %v234 = vpop.f32.mrf.mxu0
  %v235 = vpop.f32.mrf.mxu0
  %v236 = vadd.f32 %v52, %v235
  %v237 = vpop.f32.mrf.mxu0
  %238 = vmatprep.mubr.bf16.mxu0 0
  %239 = vmatmul.mubr.bf16.gmra.mxu0 %v93
  %v240 = vpop.f32.mrf.mxu0
  %v241 = vadd.f32 %v52, %v240
  %v242 = vpop.f32.mrf.mxu0
  %v243 = vpop.f32.mrf.mxu0
  %v244 = vadd.f32 %v52, %v243
  %v245 = vpop.f32.mrf.mxu0
  %246 = vdwg.mxu0
  %v247 = vsub.f32 0.0, %v185
  %v248 = vsub.f32 0.0, %v188
  %v249 = vsub.f32 0.0, %v193
  %v250 = vsub.f32 0.0, %v196
  %v251 = vsub.f32 0.0, %v201
  %v252 = vsub.f32 0.0, %v204
  %v253 = vsub.f32 0.0, %v209
  %v254 = vsub.f32 0.0, %v212
  %v255 = vsub.f32 0.0, %v217
  %v256 = vsub.f32 0.0, %v220
  %v257 = vsub.f32 0.0, %v225
  %v258 = vsub.f32 0.0, %v228
  %v259 = vsub.f32 0.0, %v233
  %v260 = vsub.f32 0.0, %v236
  %v261 = vsub.f32 0.0, %v241
  %v262 = vsub.f32 0.0, %v244
  %v263 = vmul.f32 %v247, 1.442695
  %v264 = vpow.pop %v263
  %v265 = vmul.f32 %v248, 1.442695
  %v266 = vpow.pop %v265
  %v267 = vmul.f32 %v249, 1.442695
  %v268 = vpow.pop %v267
  %v269 = vmul.f32 %v250, 1.442695
  %v270 = vpow.pop %v269
  %v271 = vmul.f32 %v251, 1.442695
  %v272 = vpow.pop %v271
  %v273 = vmul.f32 %v252, 1.442695
  %v274 = vpow.pop %v273
  %v275 = vmul.f32 %v253, 1.442695
  %v276 = vpow.pop %v275
  %v277 = vmul.f32 %v254, 1.442695
  %v278 = vpow.pop %v277
  %v279 = vmul.f32 %v255, 1.442695
  %v280 = vpow.pop %v279
  %v281 = vmul.f32 %v256, 1.442695
  %v282 = vpow.pop %v281
  %v283 = vmul.f32 %v257, 1.442695
  %v284 = vpow.pop %v283
  %v285 = vmul.f32 %v258, 1.442695
  %v286 = vpow.pop %v285
  %v287 = vmul.f32 %v259, 1.442695
  %v288 = vpow.pop %v287
  %v289 = vmul.f32 %v260, 1.442695
  %v290 = vpow.pop %v289
  %v291 = vmul.f32 %v261, 1.442695
  %v292 = vpow.pop %v291
  %v293 = vmul.f32 %v262, 1.442695
  %v294 = vpow.pop %v293
  %v295 = vadd.f32 %v264, 1.0
  %v296 = vadd.f32 %v266, 1.0
  %v297 = vadd.f32 %v268, 1.0
  %v298 = vadd.f32 %v270, 1.0
  %v299 = vadd.f32 %v272, 1.0
  %v300 = vadd.f32 %v274, 1.0
  %v301 = vadd.f32 %v276, 1.0
  %v302 = vadd.f32 %v278, 1.0
  %v303 = vadd.f32 %v280, 1.0
  %v304 = vadd.f32 %v282, 1.0
  %v305 = vadd.f32 %v284, 1.0
  %v306 = vadd.f32 %v286, 1.0
  %v307 = vadd.f32 %v288, 1.0
  %v308 = vadd.f32 %v290, 1.0
  %v309 = vadd.f32 %v292, 1.0
  %v310 = vadd.f32 %v294, 1.0
  %v311 = vrcp.pop %v295
  %v312 = vrcp.pop %v296
  %v313 = vrcp.pop %v297
  %v314 = vrcp.pop %v298
  %v315 = vrcp.pop %v299
  %v316 = vrcp.pop %v300
  %v317 = vrcp.pop %v301
  %v318 = vrcp.pop %v302
  %v319 = vrcp.pop %v303
  %v320 = vrcp.pop %v304
  %v321 = vrcp.pop %v305
  %v322 = vrcp.pop %v306
  %v323 = vrcp.pop %v307
  %v324 = vrcp.pop %v308
  %v325 = vrcp.pop %v309
  %v326 = vrcp.pop %v310
  %327 = vst [vmem:[%s3] sm:$0xff] %v311
  %328 = vst [vmem:[%s3 + $0x8] sm:$0xff] %v312
  %329 = vst [vmem:[%s3 + $0x10] sm:$0xff] %v313
  %330 = vst [vmem:[%s3 + $0x18] sm:$0xff] %v314
  %331 = vst [vmem:[%s3 + $0x20] sm:$0xff] %v315
  %332 = vst [vmem:[%s3 + $0x28] sm:$0xff] %v316
  %333 = vst [vmem:[%s3 + $0x30] sm:$0xff] %v317
  %334 = vst [vmem:[%s3 + $0x38] sm:$0xff] %v318
  %335 = vst [vmem:[%s3 + $0x40] sm:$0xff] %v319
  %336 = vst [vmem:[%s3 + $0x48] sm:$0xff] %v320
  %337 = vst [vmem:[%s3 + $0x50] sm:$0xff] %v321
  %338 = vst [vmem:[%s3 + $0x58] sm:$0xff] %v322
  %339 = vst [vmem:[%s3 + $0x60] sm:$0xff] %v323
  %340 = vst [vmem:[%s3 + $0x68] sm:$0xff] %v324
  %341 = vst [vmem:[%s3 + $0x70] sm:$0xff] %v325
  %342 = vst [vmem:[%s3 + $0x78] sm:$0xff] %v326
  // Predicated region
  $region14: #{_lambda_.11} parent=0 // pred_check
    _
  $region15: #{_lambda_.11} parent=0 // pred_check_branch
    %344 = sbr.rel (0) target = $region17
  $region16: #{_lambda_.11} parent=0 // pred_region
    _
  $region17: #{_lambda_.11} parent=0 // pred_fallthru
    _
  // Predicated region
  $region18: #{_lambda_.11} parent=0 // pred_check
    _
  $region19: #{_lambda_.11} parent=0 // pred_check_branch
    %346 = sbr.rel (0) target = $region21
  $region20: #{_lambda_.11} parent=0 // pred_region
    _
  $region21: #{_lambda_.11} parent=0 // pred_fallthru
    _

// kernel: _lambda_.8
$region0: #{_lambda_.8}
  #allocation0 [shape = 'u32[]', space=smem, size = 0x4, offset = 0x4, fixed_abs, tag = 'smem constant byte address 0x4 - core index']
  #allocation1 [shape = 'u32[144,128]{1,0:T(1,128)}', space=vmem, size = 0x12000, scoped, tag = 'internal scratch']
  %s0 = inlined_call_operand.vmem [shape: bf16[2,3,8,512], index: 0, kind: input, shape index: {}]
  %s1 = inlined_call_operand.vmem [shape: bf16[2,3,8,512], index: 1, kind: input, shape index: {}]
  %s2 = inlined_call_operand.hbm [shape: bf16[2048,1024], index: 2, kind: input, shape index: {}]
  %s3 = inlined_call_operand.hbm [shape: f32[1,256], index: 3, kind: input, shape index: {}]
  %s4 = inlined_call_operand.vmem [shape: bf16[2,2,8,256], index: 4, kind: output, shape index: {}]
  %s5 = sld [smem:[#allocation0]]
  $region57: #{_lambda_.8} parent=0
    _
  %s7 = ssub.s32 1, %s5
  %s8 = scalar_select 0, %s7, %s5
  $region1: #{_lambda_.8} parent=0
    #allocation2 [shape = 'u8[4194304]{0}', space=vmem, size = 0x400000, scoped, tag = 'input window, operand 2, single buffered']
    #allocation3 [shape = 's32[2]{0}', space=sflag, size = 0x8, scoped, tag = 'scoped memory for _lambda_.8']
    #allocation4 [shape = 'u8[1024]{0}', space=vmem, size = 0x400, scoped, tag = 'input window, operand 3, single buffered']
    #allocation5 [shape = 's32[1]{0}', space=sflag, size = 0x4, scoped, tag = 'scoped memory for _lambda_.8']
    %9 = vsyncpa [#allocation3], 0
    %10 = vsyncpa [#allocation5], 0
    loop: start=0, step=1, limit=4
    $region2: #{_lambda_.8} parent=1 // loop_pre_header
      _
    $region3: #{_lambda_.8} parent=1 // loop_header
      %s12 = sphi 0, %s16
      %p13 = scmp.ge.s32.totalorder %s12, 4
      %s22 = sphi 0, %s24
      %s25 = sphi 0, %s22
      %s26 = sphi 0, %s25
      %s42 = sphi 0, %s26
      %s48 = sphi 0, %s50
      %s51 = sphi 0, %s48
      %s52 = sphi 0, %s51
      %s68 = sphi 0, %s52
      %s72 = sphi 0, %s72
      %s74 = sphi 0, %s72
      %s75 = sphi 0, %s74
      %s89 = sphi 0, %s75
      %s93 = sphi 0, %s93
      %s95 = sphi 0, %s93
      %s96 = sphi 0, %s95
      %s110 = sphi 0, %s96
      %s116 = sphi 0, %s118
      %s119 = sphi 0, %s116
      %s120 = sphi 0, %s119
      %s136 = sphi 0, %s120
    $region4: #{_lambda_.8} parent=1 // loop_header_branch
      %15 = sbr.rel (%p13) target = $region8
    $region5: #{_lambda_.8} parent=1 // loop_body
      %s17 = ssub.s32 %s12, 1
      %s18 = ssub.s32 %s12, 2
      %s19 = sadd.s32 %s12, 1
      %s20 = ssub.s32 %s12, %s19
      %p21 = scmp.eq.s32.totalorder %s20, 0
      %s23 = sadd.s32 %s22, 1
      %s24 = scalar_select %p21, %s22, %s23
      %p27 = pneg %p21
      %p28 = scmp.eq.s32.totalorder %s12, 1
      %p29 = por %p27, %p28
      %p30 = scmp.ne.s32.totalorder %s22, %s25
      %p31 = scmp.eq.s32.totalorder %s12, 0
      %p32 = por %p30, %p31
      %p33 = scmp.ne.s32.totalorder %s22, %s25
      %p34 = scmp.eq.s32.totalorder %s17, 1
      %p35 = por %p33, %p34
      %p36 = scmp.ne.s32.totalorder %s25, %s26
      %p37 = scmp.eq.s32.totalorder %s17, 0
      %p38 = por %p36, %p37
      %p39 = scmp.ne.s32.totalorder %s25, %s26
      %p40 = scmp.eq.s32.totalorder %s18, 1
      %p41 = por %p39, %p40
      %p43 = scmp.ne.s32.totalorder %s26, %s42
      %p44 = scmp.eq.s32.totalorder %s18, 0
      %p45 = por %p43, %p44
      %s46 = ssub.s32 %s12, %s19
      %p47 = scmp.eq.s32.totalorder %s46, 0
      %s49 = sadd.s32 %s48, 1
      %s50 = scalar_select %p47, %s48, %s49
      %p53 = pneg %p47
      %p54 = scmp.eq.s32.totalorder %s12, 1
      %p55 = por %p53, %p54
      %p56 = scmp.ne.s32.totalorder %s48, %s51
      %p57 = scmp.eq.s32.totalorder %s12, 0
      %p58 = por %p56, %p57
      %p59 = scmp.ne.s32.totalorder %s48, %s51
      %p60 = scmp.eq.s32.totalorder %s17, 1
      %p61 = por %p59, %p60
      %p62 = scmp.ne.s32.totalorder %s51, %s52
      %p63 = scmp.eq.s32.totalorder %s17, 0
      %p64 = por %p62, %p63
      %p65 = scmp.ne.s32.totalorder %s51, %s52
      %p66 = scmp.eq.s32.totalorder %s18, 1
      %p67 = por %p65, %p66
      %p69 = scmp.ne.s32.totalorder %s52, %s68
      %p70 = scmp.eq.s32.totalorder %s18, 0
      %p71 = por %p69, %p70
      %s73 = sadd.s32 %s72, 1
      %p76 = scmp.eq.s32.totalorder %s12, 1
      %p77 = scmp.ne.s32.totalorder %s72, %s74
      %p78 = scmp.eq.s32.totalorder %s12, 0
      %p79 = por %p77, %p78
      %p80 = scmp.ne.s32.totalorder %s72, %s74
      %p81 = scmp.eq.s32.totalorder %s17, 1
      %p82 = por %p80, %p81
      %p83 = scmp.ne.s32.totalorder %s74, %s75
      %p84 = scmp.eq.s32.totalorder %s17, 0
      %p85 = por %p83, %p84
      %p86 = scmp.ne.s32.totalorder %s74, %s75
      %p87 = scmp.eq.s32.totalorder %s18, 1
      %p88 = por %p86, %p87
      %p90 = scmp.ne.s32.totalorder %s75, %s89
      %p91 = scmp.eq.s32.totalorder %s18, 0
      %p92 = por %p90, %p91
      %s94 = sadd.s32 %s93, 1
      %p97 = scmp.eq.s32.totalorder %s12, 1
      %p98 = scmp.ne.s32.totalorder %s93, %s95
      %p99 = scmp.eq.s32.totalorder %s12, 0
      %p100 = por %p98, %p99
      %p101 = scmp.ne.s32.totalorder %s93, %s95
      %p102 = scmp.eq.s32.totalorder %s17, 1
      %p103 = por %p101, %p102
      %p104 = scmp.ne.s32.totalorder %s95, %s96
      %p105 = scmp.eq.s32.totalorder %s17, 0
      %p106 = por %p104, %p105
      %p107 = scmp.ne.s32.totalorder %s95, %s96
      %p108 = scmp.eq.s32.totalorder %s18, 1
      %p109 = por %p107, %p108
      %p111 = scmp.ne.s32.totalorder %s96, %s110
      %p112 = scmp.eq.s32.totalorder %s18, 0
      %p113 = por %p111, %p112
      %s114 = ssub.s32 %s12, %s19
      %p115 = scmp.eq.s32.totalorder %s114, 0
      %s117 = sadd.s32 %s116, 1
      %s118 = scalar_select %p115, %s116, %s117
      %p121 = pneg %p115
      %p122 = scmp.eq.s32.totalorder %s12, 1
      %p123 = por %p121, %p122
      %p124 = scmp.ne.s32.totalorder %s116, %s119
      %p125 = scmp.eq.s32.totalorder %s12, 0
      %p126 = por %p124, %p125
      %p127 = scmp.ne.s32.totalorder %s116, %s119
      %p128 = scmp.eq.s32.totalorder %s17, 1
      %p129 = por %p127, %p128
      %p130 = scmp.ne.s32.totalorder %s119, %s120
      %p131 = scmp.eq.s32.totalorder %s17, 0
      %p132 = por %p130, %p131
      %p133 = scmp.ne.s32.totalorder %s119, %s120
      %p134 = scmp.eq.s32.totalorder %s18, 1
      %p135 = por %p133, %p134
      %p137 = scmp.ne.s32.totalorder %s120, %s136
      %p138 = scmp.eq.s32.totalorder %s18, 0
      %p139 = por %p137, %p138
      %p140 = scmp.le.s32.totalorder 1, %s12
      %p141 = scmp.lt.s32.totalorder %s12, 3
      %p142 = pnand %p140, %p141
      %p143 = pneg %p142
      // Predicated region
      $region9: #{_lambda_.8} parent=5 // pred_check
        _
      $region10: #{_lambda_.8} parent=5 // pred_check_branch
        %145 = sbr.rel (%p142) target = $region12
      $region11: #{_lambda_.8} parent=5 // pred_region
        %s146 = ssub.s32 %s12, 1
        // Predicated region
        $region13: #{_lambda_.8} parent=11 // pred_check
          %p147 = pneg %p85
        $region14: #{_lambda_.8} parent=11 // pred_check_branch
          %149 = sbr.rel (%p147) target = $region16
        $region15: #{_lambda_.8} parent=11 // pred_region
          %s151 = ssub.s32 131072, 131072
          %152 = vsyncadd [#allocation3], %s151
          %s153 = sshll.u32 [#allocation2], 4
          %s154 = int_to_ptr.vmem [resolvable:$true] %s153
          %159 = dma.hbm_to_vmem [thread:$0]  %s2, 131072, %s154, [#allocation3], 512, 512, 32
        $region16: #{_lambda_.8} parent=11 // pred_fallthru
          _
        // Predicated region
        $region17: #{_lambda_.8} parent=11 // pred_check
          %p160 = pneg %p106
        $region18: #{_lambda_.8} parent=11 // pred_check_branch
          %162 = sbr.rel (%p160) target = $region20
        $region19: #{_lambda_.8} parent=11 // pred_region
          %s164 = ssub.s32 32, 32
          %165 = vsyncadd [#allocation5], %s164
          %s167 = sshll.u32 [#allocation4], 4
          %s168 = int_to_ptr.vmem [resolvable:$true] %s167
          %170 = dma.hbm_to_vmem [thread:$0]  %s3, 32, %s168, [#allocation5]
        $region20: #{_lambda_.8} parent=11 // pred_fallthru
          _
      $region12: #{_lambda_.8} parent=5 // pred_fallthru
        _
      %p171 = scmp.lt.s32.totalorder %s12, 2
      // Predicated region
      $region21: #{_lambda_.8} parent=5 // pred_check
        %p172 = pneg %p171
      $region22: #{_lambda_.8} parent=5 // pred_check_branch
        %174 = sbr.rel (%p172) target = $region24
      $region23: #{_lambda_.8} parent=5 // pred_region
        // Predicated region
        $region25: #{_lambda_.8} parent=23 // pred_check
          %p175 = pneg %p32
        $region26: #{_lambda_.8} parent=23 // pred_check_branch
          %177 = sbr.rel (%p175) target = $region28
        $region27: #{_lambda_.8} parent=23 // pred_region
          %p178 = scmp.lt.s32.totalorder %s12, 1
          %s179 = scalar_select %p178, %s12, 1
          %s180 = smul.addr %s179, 12
          %s181 = smul.addr %s180, 4
          %s182 = scalar_lea.vmem %s0, %s181
        $region28: #{_lambda_.8} parent=23 // pred_fallthru
          _
        // Predicated region
        $region29: #{_lambda_.8} parent=23 // pred_check
          %p183 = pneg %p58
        $region30: #{_lambda_.8} parent=23 // pred_check_branch
          %185 = sbr.rel (%p183) target = $region32
        $region31: #{_lambda_.8} parent=23 // pred_region
          %p186 = scmp.lt.s32.totalorder %s12, 1
          %s187 = scalar_select %p186, %s12, 1
          %s188 = smul.addr %s187, 12
          %s189 = smul.addr %s188, 4
          %s190 = scalar_lea.vmem %s1, %s189
        $region32: #{_lambda_.8} parent=23 // pred_fallthru
          _
      $region24: #{_lambda_.8} parent=5 // pred_fallthru
        _
      %p191 = scmp.le.s32.totalorder 1, %s12
      %p192 = scmp.lt.s32.totalorder %s12, 3
      %p193 = pnand %p191, %p192
      %p194 = pneg %p193
      // Predicated region
      $region33: #{_lambda_.8} parent=5 // pred_check
        _
      $region34: #{_lambda_.8} parent=5 // pred_check_branch
        %196 = sbr.rel (%p193) target = $region36
      $region35: #{_lambda_.8} parent=5 // pred_region
        %s197 = ssub.s32 %s12, 1
        // Predicated region
        $region37: #{_lambda_.8} parent=35 // pred_check
          %p198 = pneg %p85
        $region38: #{_lambda_.8} parent=35 // pred_check_branch
          %200 = sbr.rel (%p198) target = $region40
        $region39: #{_lambda_.8} parent=35 // pred_region
          %201 = dma.done [#allocation3], 131072
        $region40: #{_lambda_.8} parent=35 // pred_fallthru
          _
        // Predicated region
        $region41: #{_lambda_.8} parent=35 // pred_check
          %p202 = pneg %p106
        $region42: #{_lambda_.8} parent=35 // pred_check_branch
          %204 = sbr.rel (%p202) target = $region44
        $region43: #{_lambda_.8} parent=35 // pred_region
          %205 = dma.done [#allocation5], 32
        $region44: #{_lambda_.8} parent=35 // pred_fallthru
          _
        %p206 = scmp.lt.s32.totalorder %s17, 1
        %s207 = scalar_select %p206, %s17, 1
        %s208 = smul.addr %s207, 12
        %s209 = smul.addr %s208, 4
        %s210 = scalar_lea.vmem %s0, %s209
        %p211 = pneg %p38
        %p212 = pneg %p35
        %p213 = scmp.lt.s32.totalorder %s17, 1
        %s214 = scalar_select %p213, %s17, 1
        %s215 = smul.addr %s214, 12
        %s216 = smul.addr %s215, 4
        %s217 = scalar_lea.vmem %s1, %s216
        %p218 = pneg %p64
        %p219 = pneg %p61
        %p220 = pneg %p85
        %p221 = pneg %p82
        %p222 = pneg %p106
        %p223 = pneg %p103
        %p224 = pneg %p132
        %p225 = pneg %p129
        %p226 = scmp.lt.s32.totalorder %s17, 1
        %s227 = scalar_select %p226, %s17, 1
        %s228 = smul.addr %s227, 4
        %s229 = smul.addr %s228, 4
        %s230 = scalar_lea.vmem %s4, %s229
        %p231 = scmp.lt.s32.totalorder %s17, 1
        %s232 = scalar_select %p231, %s17, 1
        %s233 = smul.addr %s232, 12
        %s234 = smul.addr %s233, 4
        %s235 = scalar_lea.vmem %s0, %s234
        %p236 = scmp.lt.s32.totalorder %s17, 1
        %s237 = scalar_select %p236, %s17, 1
        %s238 = smul.addr %s237, 12
        %s239 = smul.addr %s238, 4
        %s240 = scalar_lea.vmem %s1, %s239
        %p241 = scmp.lt.s32.totalorder %s17, 1
        %s242 = scalar_select %p241, %s17, 1
        %s243 = smul.addr %s242, 4
        %s244 = smul.addr %s243, 4
        %s245 = scalar_lea.vmem %s4, %s244
        %v246 = vld [vmem:[%s235] sm:$0xff]
        %v247 = vld [vmem:[%s235 + $0x8] sm:$0xff]
        %v248 = vld [vmem:[%s235 + $0x10] sm:$0xff]
        %v249 = vld [vmem:[%s235 + $0x18] sm:$0xff]
        %v250 = vld [vmem:[%s235 + $0x20] sm:$0xff]
        %v251 = vld [vmem:[%s235 + $0x28] sm:$0xff]
        %v252 = vld [vmem:[%s240] sm:$0xff]
        %v253 = vld [vmem:[%s240 + $0x8] sm:$0xff]
        %v254 = vld [vmem:[%s240 + $0x10] sm:$0xff]
        %v255 = vld [vmem:[%s240 + $0x18] sm:$0xff]
        %v256 = vld [vmem:[%s240 + $0x20] sm:$0xff]
        %v257 = vld [vmem:[%s240 + $0x28] sm:$0xff]
        %v258 = vld [vmem:[#allocation2] sm:$0xff]
        %v259 = vld [vmem:[#allocation2 + $0x8] sm:$0xff]
        %v260 = vld [vmem:[#allocation2 + $0x10] sm:$0xff]
        %v261 = vld [vmem:[#allocation2 + $0x18] sm:$0xff]
        %v262 = vld [vmem:[#allocation2 + $0x20] sm:$0xff]
        %v263 = vld [vmem:[#allocation2 + $0x28] sm:$0xff]
        %v264 = vld [vmem:[#allocation2 + $0x30] sm:$0xff]
        %v265 = vld [vmem:[#allocation2 + $0x38] sm:$0xff]
        %v266 = vld [vmem:[#allocation2 + $0x40] sm:$0xff]
        %v267 = vld [vmem:[#allocation2 + $0x48] sm:$0xff]
        %v268 = vld [vmem:[#allocation2 + $0x50] sm:$0xff]
        %v269 = vld [vmem:[#allocation2 + $0x58] sm:$0xff]
        %v270 = vld [vmem:[#allocation2 + $0x60] sm:$0xff]
        %v271 = vld [vmem:[#allocation2 + $0x68] sm:$0xff]
        %v272 = vld [vmem:[#allocation2 + $0x70] sm:$0xff]
        %v273 = vld [vmem:[#allocation2 + $0x78] sm:$0xff]
        %v274 = vld [vmem:[#allocation2 + $0x80] sm:$0xff]
        %v275 = vld [vmem:[#allocation2 + $0x88] sm:$0xff]
        %v276 = vld [vmem:[#allocation2 + $0x90] sm:$0xff]
        %v277 = vld [vmem:[#allocation2 + $0x98] sm:$0xff]
        %v278 = vld [vmem:[#allocation2 + $0xa0] sm:$0xff]
        %v279 = vld [vmem:[#allocation2 + $0xa8] sm:$0xff]
        %v280 = vld [vmem:[#allocation2 + $0xb0] sm:$0xff]
        %v281 = vld [vmem:[#allocation2 + $0xb8] sm:$0xff]
        %v282 = vld [vmem:[#allocation2 + $0xc0] sm:$0xff]
        %v283 = vld [vmem:[#allocation2 + $0xc8] sm:$0xff]
        %v284 = vld [vmem:[#allocation2 + $0xd0] sm:$0xff]
        %v285 = vld [vmem:[#allocation2 + $0xd8] sm:$0xff]
        %v286 = vld [vmem:[#allocation2 + $0xe0] sm:$0xff]
        %v287 = vld [vmem:[#allocation2 + $0xe8] sm:$0xff]
        %v288 = vld [vmem:[#allocation2 + $0xf0] sm:$0xff]
        %v289 = vld [vmem:[#allocation2 + $0xf8] sm:$0xff]
        %v290 = vld [vmem:[#allocation2 + $0x100] sm:$0xff]
        %v291 = vld [vmem:[#allocation2 + $0x108] sm:$0xff]
        %v292 = vld [vmem:[#allocation2 + $0x110] sm:$0xff]
        %v293 = vld [vmem:[#allocation2 + $0x118] sm:$0xff]
        %v294 = vld [vmem:[#allocation2 + $0x120] sm:$0xff]
        %v295 = vld [vmem:[#allocation2 + $0x128] sm:$0xff]
        %v296 = vld [vmem:[#allocation2 + $0x130] sm:$0xff]
        %v297 = vld [vmem:[#allocation2 + $0x138] sm:$0xff]
        %v298 = vld [vmem:[#allocation2 + $0x140] sm:$0xff]
        %v299 = vld [vmem:[#allocation2 + $0x148] sm:$0xff]
        %v300 = vld [vmem:[#allocation2 + $0x150] sm:$0xff]
        %v301 = vld [vmem:[#allocation2 + $0x158] sm:$0xff]
        %v302 = vld [vmem:[#allocation2 + $0x160] sm:$0xff]
        %v303 = vld [vmem:[#allocation2 + $0x168] sm:$0xff]
        %v304 = vld [vmem:[#allocation2 + $0x170] sm:$0xff]
        %v305 = vld [vmem:[#allocation2 + $0x178] sm:$0xff]
        %v306 = vld [vmem:[#allocation2 + $0x180] sm:$0xff]
        %v307 = vld [vmem:[#allocation2 + $0x188] sm:$0xff]
        %v308 = vld [vmem:[#allocation2 + $0x190] sm:$0xff]
        %v309 = vld [vmem:[#allocation2 + $0x198] sm:$0xff]
        %v310 = vld [vmem:[#allocation2 + $0x1a0] sm:$0xff]
        %v311 = vld [vmem:[#allocation2 + $0x1a8] sm:$0xff]
        %v312 = vld [vmem:[#allocation2 + $0x1b0] sm:$0xff]
        %v313 = vld [vmem:[#allocation2 + $0x1b8] sm:$0xff]
        %v314 = vld [vmem:[#allocation2 + $0x1c0] sm:$0xff]
        %v315 = vld [vmem:[#allocation2 + $0x1c8] sm:$0xff]
        %v316 = vld [vmem:[#allocation2 + $0x1d0] sm:$0xff]
        %v317 = vld [vmem:[#allocation2 + $0x1d8] sm:$0xff]
        %v318 = vld [vmem:[#allocation2 + $0x1e0] sm:$0xff]
        %v319 = vld [vmem:[#allocation2 + $0x1e8] sm:$0xff]
        %v320 = vld [vmem:[#allocation2 + $0x1f0] sm:$0xff]
        %v321 = vld [vmem:[#allocation2 + $0x1f8] sm:$0xff]
        %v322 = vld [vmem:[#allocation2 + $0x200] sm:$0xff]
        %v323 = vld [vmem:[#allocation2 + $0x208] sm:$0xff]
        %v324 = vld [vmem:[#allocation2 + $0x210] sm:$0xff]
        %v325 = vld [vmem:[#allocation2 + $0x218] sm:$0xff]
        %v326 = vld [vmem:[#allocation2 + $0x220] sm:$0xff]
        %v327 = vld [vmem:[#allocation2 + $0x228] sm:$0xff]
        %v328 = vld [vmem:[#allocation2 + $0x230] sm:$0xff]
        %v329 = vld [vmem:[#allocation2 + $0x238] sm:$0xff]
        %v330 = vld [vmem:[#allocation2 + $0x240] sm:$0xff]
        %v331 = vld [vmem:[#allocation2 + $0x248] sm:$0xff]
        %v332 = vld [vmem:[#allocation2 + $0x250] sm:$0xff]
        %v333 = vld [vmem:[#allocation2 + $0x258] sm:$0xff]
        %v334 = vld [vmem:[#allocation2 + $0x260] sm:$0xff]
        %v335 = vld [vmem:[#allocation2 + $0x268] sm:$0xff]
        %v336 = vld [vmem:[#allocation2 + $0x270] sm:$0xff]
        %v337 = vld [vmem:[#allocation2 + $0x278] sm:$0xff]
        %v338 = vld [vmem:[#allocation2 + $0x280] sm:$0xff]
        %v339 = vld [vmem:[#allocation2 + $0x288] sm:$0xff]
        %v340 = vld [vmem:[#allocation2 + $0x290] sm:$0xff]
        %v341 = vld [vmem:[#allocation2 + $0x298] sm:$0xff]
        %v342 = vld [vmem:[#allocation2 + $0x2a0] sm:$0xff]
        %v343 = vld [vmem:[#allocation2 + $0x2a8] sm:$0xff]
        %v344 = vld [vmem:[#allocation2 + $0x2b0] sm:$0xff]
        %v345 = vld [vmem:[#allocation2 + $0x2b8] sm:$0xff]
        %v346 = vld [vmem:[#allocation2 + $0x2c0] sm:$0xff]
        %v347 = vld [vmem:[#allocation2 + $0x2c8] sm:$0xff]
        %v348 = vld [vmem:[#allocation2 + $0x2d0] sm:$0xff]
        %v349 = vld [vmem:[#allocation2 + $0x2d8] sm:$0xff]
        %v350 = vld [vmem:[#allocation2 + $0x2e0] sm:$0xff]
        %v351 = vld [vmem:[#allocation2 + $0x2e8] sm:$0xff]
        %v352 = vld [vmem:[#allocation2 + $0x2f0] sm:$0xff]
        %v353 = vld [vmem:[#allocation2 + $0x2f8] sm:$0xff]
        %v354 = vld [vmem:[#allocation2 + $0x300] sm:$0xff]
        %v355 = vld [vmem:[#allocation2 + $0x308] sm:$0xff]
        %v356 = vld [vmem:[#allocation2 + $0x310] sm:$0xff]
        %v357 = vld [vmem:[#allocation2 + $0x318] sm:$0xff]
        %v358 = vld [vmem:[#allocation2 + $0x320] sm:$0xff]
        %v359 = vld [vmem:[#allocation2 + $0x328] sm:$0xff]
        %v360 = vld [vmem:[#allocation2 + $0x330] sm:$0xff]
        %v361 = vld [vmem:[#allocation2 + $0x338] sm:$0xff]
        %v362 = vld [vmem:[#allocation2 + $0x340] sm:$0xff]
        %v363 = vld [vmem:[#allocation2 + $0x348] sm:$0xff]
        %v364 = vld [vmem:[#allocation2 + $0x350] sm:$0xff]
        %v365 = vld [vmem:[#allocation2 + $0x358] sm:$0xff]
        %v366 = vld [vmem:[#allocation2 + $0x360] sm:$0xff]
        %v367 = vld [vmem:[#allocation2 + $0x368] sm:$0xff]
        %v368 = vld [vmem:[#allocation2 + $0x370] sm:$0xff]
        %v369 = vld [vmem:[#allocation2 + $0x378] sm:$0xff]
        %v370 = vld [vmem:[#allocation2 + $0x380] sm:$0xff]
        %v371 = vld [vmem:[#allocation2 + $0x388] sm:$0xff]
        %v372 = vld [vmem:[#allocation2 + $0x390] sm:$0xff]
        %v373 = vld [vmem:[#allocation2 + $0x398] sm:$0xff]
        %v374 = vld [vmem:[#allocation2 + $0x3a0] sm:$0xff]
        %v375 = vld [vmem:[#allocation2 + $0x3a8] sm:$0xff]
        %v376 = vld [vmem:[#allocation2 + $0x3b0] sm:$0xff]
        %v377 = vld [vmem:[#allocation2 + $0x3b8] sm:$0xff]
        %v378 = vld [vmem:[#allocation2 + $0x3c0] sm:$0xff]
        %v379 = vld [vmem:[#allocation2 + $0x3c8] sm:$0xff]
        %v380 = vld [vmem:[#allocation2 + $0x3d0] sm:$0xff]
        %v381 = vld [vmem:[#allocation2 + $0x3d8] sm:$0xff]
        %v382 = vld [vmem:[#allocation2 + $0x3e0] sm:$0xff]
        %v383 = vld [vmem:[#allocation2 + $0x3e8] sm:$0xff]
        %v384 = vld [vmem:[#allocation2 + $0x3f0] sm:$0xff]
        %v385 = vld [vmem:[#allocation2 + $0x3f8] sm:$0xff]
        %v386 = vld [vmem:[#allocation2 + $0x400] sm:$0xff]
        %v387 = vld [vmem:[#allocation2 + $0x408] sm:$0xff]
        %v388 = vld [vmem:[#allocation2 + $0x410] sm:$0xff]
        %v389 = vld [vmem:[#allocation2 + $0x418] sm:$0xff]
        %v390 = vld [vmem:[#allocation2 + $0x420] sm:$0xff]
        %v391 = vld [vmem:[#allocation2 + $0x428] sm:$0xff]
        %v392 = vld [vmem:[#allocation2 + $0x430] sm:$0xff]
        %v393 = vld [vmem:[#allocation2 + $0x438] sm:$0xff]
        %v394 = vld [vmem:[#allocation2 + $0x440] sm:$0xff]
        %v395 = vld [vmem:[#allocation2 + $0x448] sm:$0xff]
        %v396 = vld [vmem:[#allocation2 + $0x450] sm:$0xff]
        %v397 = vld [vmem:[#allocation2 + $0x458] sm:$0xff]
        %v398 = vld [vmem:[#allocation2 + $0x460] sm:$0xff]
        %v399 = vld [vmem:[#allocation2 + $0x468] sm:$0xff]
        %v400 = vld [vmem:[#allocation2 + $0x470] sm:$0xff]
        %v401 = vld [vmem:[#allocation2 + $0x478] sm:$0xff]
        %v402 = vld [vmem:[#allocation2 + $0x480] sm:$0xff]
        %v403 = vld [vmem:[#allocation2 + $0x488] sm:$0xff]
        %v404 = vld [vmem:[#allocation2 + $0x490] sm:$0xff]
        %v405 = vld [vmem:[#allocation2 + $0x498] sm:$0xff]
        %v406 = vld [vmem:[#allocation2 + $0x4a0] sm:$0xff]
        %v407 = vld [vmem:[#allocation2 + $0x4a8] sm:$0xff]
        %v408 = vld [vmem:[#allocation2 + $0x4b0] sm:$0xff]
        %v409 = vld [vmem:[#allocation2 + $0x4b8] sm:$0xff]
        %v410 = vld [vmem:[#allocation2 + $0x4c0] sm:$0xff]
        %v411 = vld [vmem:[#allocation2 + $0x4c8] sm:$0xff]
        %v412 = vld [vmem:[#allocation2 + $0x4d0] sm:$0xff]
        %v413 = vld [vmem:[#allocation2 + $0x4d8] sm:$0xff]
        %v414 = vld [vmem:[#allocation2 + $0x4e0] sm:$0xff]
        %v415 = vld [vmem:[#allocation2 + $0x4e8] sm:$0xff]
        %v416 = vld [vmem:[#allocation2 + $0x4f0] sm:$0xff]
        %v417 = vld [vmem:[#allocation2 + $0x4f8] sm:$0xff]
        %v418 = vld [vmem:[#allocation2 + $0x500] sm:$0xff]
        %v419 = vld [vmem:[#allocation2 + $0x508] sm:$0xff]
        %v420 = vld [vmem:[#allocation2 + $0x510] sm:$0xff]
        %v421 = vld [vmem:[#allocation2 + $0x518] sm:$0xff]
        %v422 = vld [vmem:[#allocation2 + $0x520] sm:$0xff]
        %v423 = vld [vmem:[#allocation2 + $0x528] sm:$0xff]
        %v424 = vld [vmem:[#allocation2 + $0x530] sm:$0xff]
        %v425 = vld [vmem:[#allocation2 + $0x538] sm:$0xff]
        %v426 = vld [vmem:[#allocation2 + $0x540] sm:$0xff]
        %v427 = vld [vmem:[#allocation2 + $0x548] sm:$0xff]
        %v428 = vld [vmem:[#allocation2 + $0x550] sm:$0xff]
        %v429 = vld [vmem:[#allocation2 + $0x558] sm:$0xff]
        %v430 = vld [vmem:[#allocation2 + $0x560] sm:$0xff]
        %v431 = vld [vmem:[#allocation2 + $0x568] sm:$0xff]
        %v432 = vld [vmem:[#allocation2 + $0x570] sm:$0xff]
        %v433 = vld [vmem:[#allocation2 + $0x578] sm:$0xff]
        %v434 = vld [vmem:[#allocation2 + $0x580] sm:$0xff]
        %v435 = vld [vmem:[#allocation2 + $0x588] sm:$0xff]
        %v436 = vld [vmem:[#allocation2 + $0x590] sm:$0xff]
        %v437 = vld [vmem:[#allocation2 + $0x598] sm:$0xff]
        %v438 = vld [vmem:[#allocation2 + $0x5a0] sm:$0xff]
        %v439 = vld [vmem:[#allocation2 + $0x5a8] sm:$0xff]
        %v440 = vld [vmem:[#allocation2 + $0x5b0] sm:$0xff]
        %v441 = vld [vmem:[#allocation2 + $0x5b8] sm:$0xff]
        %v442 = vld [vmem:[#allocation2 + $0x5c0] sm:$0xff]
        %v443 = vld [vmem:[#allocation2 + $0x5c8] sm:$0xff]
        %v444 = vld [vmem:[#allocation2 + $0x5d0] sm:$0xff]
        %v445 = vld [vmem:[#allocation2 + $0x5d8] sm:$0xff]
        %v446 = vld [vmem:[#allocation2 + $0x5e0] sm:$0xff]
        %v447 = vld [vmem:[#allocation2 + $0x5e8] sm:$0xff]
        %v448 = vld [vmem:[#allocation2 + $0x5f0] sm:$0xff]
        %v449 = vld [vmem:[#allocation2 + $0x5f8] sm:$0xff]
        %v450 = vld [vmem:[#allocation2 + $0x600] sm:$0xff]
        %v451 = vld [vmem:[#allocation2 + $0x608] sm:$0xff]
        %v452 = vld [vmem:[#allocation2 + $0x610] sm:$0xff]
        %v453 = vld [vmem:[#allocation2 + $0x618] sm:$0xff]
        %v454 = vld [vmem:[#allocation2 + $0x620] sm:$0xff]
        %v455 = vld [vmem:[#allocation2 + $0x628] sm:$0xff]
        %v456 = vld [vmem:[#allocation2 + $0x630] sm:$0xff]
        %v457 = vld [vmem:[#allocation2 + $0x638] sm:$0xff]
        %v458 = vld [vmem:[#allocation2 + $0x640] sm:$0xff]
        %v459 = vld [vmem:[#allocation2 + $0x648] sm:$0xff]
        %v460 = vld [vmem:[#allocation2 + $0x650] sm:$0xff]
        %v461 = vld [vmem:[#allocation2 + $0x658] sm:$0xff]
        %v462 = vld [vmem:[#allocation2 + $0x660] sm:$0xff]
        %v463 = vld [vmem:[#allocation2 + $0x668] sm:$0xff]
        %v464 = vld [vmem:[#allocation2 + $0x670] sm:$0xff]
        %v465 = vld [vmem:[#allocation2 + $0x678] sm:$0xff]
        %v466 = vld [vmem:[#allocation2 + $0x680] sm:$0xff]
        %v467 = vld [vmem:[#allocation2 + $0x688] sm:$0xff]
        %v468 = vld [vmem:[#allocation2 + $0x690] sm:$0xff]
        %v469 = vld [vmem:[#allocation2 + $0x698] sm:$0xff]
        %v470 = vld [vmem:[#allocation2 + $0x6a0] sm:$0xff]
        %v471 = vld [vmem:[#allocation2 + $0x6a8] sm:$0xff]
        %v472 = vld [vmem:[#allocation2 + $0x6b0] sm:$0xff]
        %v473 = vld [vmem:[#allocation2 + $0x6b8] sm:$0xff]
        %v474 = vld [vmem:[#allocation2 + $0x6c0] sm:$0xff]
        %v475 = vld [vmem:[#allocation2 + $0x6c8] sm:$0xff]
        %v476 = vld [vmem:[#allocation2 + $0x6d0] sm:$0xff]
        %v477 = vld [vmem:[#allocation2 + $0x6d8] sm:$0xff]
        %v478 = vld [vmem:[#allocation2 + $0x6e0] sm:$0xff]
        %v479 = vld [vmem:[#allocation2 + $0x6e8] sm:$0xff]
        %v480 = vld [vmem:[#allocation2 + $0x6f0] sm:$0xff]
        %v481 = vld [vmem:[#allocation2 + $0x6f8] sm:$0xff]
        %v482 = vld [vmem:[#allocation2 + $0x700] sm:$0xff]
        %v483 = vld [vmem:[#allocation2 + $0x708] sm:$0xff]
        %v484 = vld [vmem:[#allocation2 + $0x710] sm:$0xff]
        %v485 = vld [vmem:[#allocation2 + $0x718] sm:$0xff]
        %v486 = vld [vmem:[#allocation2 + $0x720] sm:$0xff]
        %v487 = vld [vmem:[#allocation2 + $0x728] sm:$0xff]
        %v488 = vld [vmem:[#allocation2 + $0x730] sm:$0xff]
        %v489 = vld [vmem:[#allocation2 + $0x738] sm:$0xff]
        %v490 = vld [vmem:[#allocation2 + $0x740] sm:$0xff]
        %v491 = vld [vmem:[#allocation2 + $0x748] sm:$0xff]
        %v492 = vld [vmem:[#allocation2 + $0x750] sm:$0xff]
        %v493 = vld [vmem:[#allocation2 + $0x758] sm:$0xff]
        %v494 = vld [vmem:[#allocation2 + $0x760] sm:$0xff]
        %v495 = vld [vmem:[#allocation2 + $0x768] sm:$0xff]
        %v496 = vld [vmem:[#allocation2 + $0x770] sm:$0xff]
        %v497 = vld [vmem:[#allocation2 + $0x778] sm:$0xff]
        %v498 = vld [vmem:[#allocation2 + $0x780] sm:$0xff]
        %v499 = vld [vmem:[#allocation2 + $0x788] sm:$0xff]
        %v500 = vld [vmem:[#allocation2 + $0x790] sm:$0xff]
        %v501 = vld [vmem:[#allocation2 + $0x798] sm:$0xff]
        %v502 = vld [vmem:[#allocation2 + $0x7a0] sm:$0xff]
        %v503 = vld [vmem:[#allocation2 + $0x7a8] sm:$0xff]
        %v504 = vld [vmem:[#allocation2 + $0x7b0] sm:$0xff]
        %v505 = vld [vmem:[#allocation2 + $0x7b8] sm:$0xff]
        %v506 = vld [vmem:[#allocation2 + $0x7c0] sm:$0xff]
        %v507 = vld [vmem:[#allocation2 + $0x7c8] sm:$0xff]
        %v508 = vld [vmem:[#allocation2 + $0x7d0] sm:$0xff]
        %v509 = vld [vmem:[#allocation2 + $0x7d8] sm:$0xff]
        %v510 = vld [vmem:[#allocation2 + $0x7e0] sm:$0xff]
        %v511 = vld [vmem:[#allocation2 + $0x7e8] sm:$0xff]
        %v512 = vld [vmem:[#allocation2 + $0x7f0] sm:$0xff]
        %v513 = vld [vmem:[#allocation2 + $0x7f8] sm:$0xff]
        %v514 = vld [vmem:[#allocation2 + $0x800] sm:$0xff]
        %v515 = vld [vmem:[#allocation2 + $0x808] sm:$0xff]
        %v516 = vld [vmem:[#allocation2 + $0x810] sm:$0xff]
        %v517 = vld [vmem:[#allocation2 + $0x818] sm:$0xff]
        %v518 = vld [vmem:[#allocation2 + $0x820] sm:$0xff]
        %v519 = vld [vmem:[#allocation2 + $0x828] sm:$0xff]
        %v520 = vld [vmem:[#allocation2 + $0x830] sm:$0xff]
        %v521 = vld [vmem:[#allocation2 + $0x838] sm:$0xff]
        %v522 = vld [vmem:[#allocation2 + $0x840] sm:$0xff]
        %v523 = vld [vmem:[#allocation2 + $0x848] sm:$0xff]
        %v524 = vld [vmem:[#allocation2 + $0x850] sm:$0xff]
        %v525 = vld [vmem:[#allocation2 + $0x858] sm:$0xff]
        %v526 = vld [vmem:[#allocation2 + $0x860] sm:$0xff]
        %v527 = vld [vmem:[#allocation2 + $0x868] sm:$0xff]
        %v528 = vld [vmem:[#allocation2 + $0x870] sm:$0xff]
        %v529 = vld [vmem:[#allocation2 + $0x878] sm:$0xff]
        %v530 = vld [vmem:[#allocation2 + $0x880] sm:$0xff]
        %v531 = vld [vmem:[#allocation2 + $0x888] sm:$0xff]
        %v532 = vld [vmem:[#allocation2 + $0x890] sm:$0xff]
        %v533 = vld [vmem:[#allocation2 + $0x898] sm:$0xff]
        %v534 = vld [vmem:[#allocation2 + $0x8a0] sm:$0xff]
        %v535 = vld [vmem:[#allocation2 + $0x8a8] sm:$0xff]
        %v536 = vld [vmem:[#allocation2 + $0x8b0] sm:$0xff]
        %v537 = vld [vmem:[#allocation2 + $0x8b8] sm:$0xff]
        %v538 = vld [vmem:[#allocation2 + $0x8c0] sm:$0xff]
        %v539 = vld [vmem:[#allocation2 + $0x8c8] sm:$0xff]
        %v540 = vld [vmem:[#allocation2 + $0x8d0] sm:$0xff]
        %v541 = vld [vmem:[#allocation2 + $0x8d8] sm:$0xff]
        %v542 = vld [vmem:[#allocation2 + $0x8e0] sm:$0xff]
        %v543 = vld [vmem:[#allocation2 + $0x8e8] sm:$0xff]
        %v544 = vld [vmem:[#allocation2 + $0x8f0] sm:$0xff]
        %v545 = vld [vmem:[#allocation2 + $0x8f8] sm:$0xff]
        %v546 = vld [vmem:[#allocation2 + $0x900] sm:$0xff]
        %v547 = vld [vmem:[#allocation2 + $0x908] sm:$0xff]
        %v548 = vld [vmem:[#allocation2 + $0x910] sm:$0xff]
        %v549 = vld [vmem:[#allocation2 + $0x918] sm:$0xff]
        %v550 = vld [vmem:[#allocation2 + $0x920] sm:$0xff]
        %v551 = vld [vmem:[#allocation2 + $0x928] sm:$0xff]
        %v552 = vld [vmem:[#allocation2 + $0x930] sm:$0xff]
        %v553 = vld [vmem:[#allocation2 + $0x938] sm:$0xff]
        %v554 = vld [vmem:[#allocation2 + $0x940] sm:$0xff]
        %v555 = vld [vmem:[#allocation2 + $0x948] sm:$0xff]
        %v556 = vld [vmem:[#allocation2 + $0x950] sm:$0xff]
        %v557 = vld [vmem:[#allocation2 + $0x958] sm:$0xff]
        %v558 = vld [vmem:[#allocation2 + $0x960] sm:$0xff]
        %v559 = vld [vmem:[#allocation2 + $0x968] sm:$0xff]
        %v560 = vld [vmem:[#allocation2 + $0x970] sm:$0xff]
        %v561 = vld [vmem:[#allocation2 + $0x978] sm:$0xff]
        %v562 = vld [vmem:[#allocation2 + $0x980] sm:$0xff]
        %v563 = vld [vmem:[#allocation2 + $0x988] sm:$0xff]
        %v564 = vld [vmem:[#allocation2 + $0x990] sm:$0xff]
        %v565 = vld [vmem:[#allocation2 + $0x998] sm:$0xff]
        %v566 = vld [vmem:[#allocation2 + $0x9a0] sm:$0xff]
        %v567 = vld [vmem:[#allocation2 + $0x9a8] sm:$0xff]
        %v568 = vld [vmem:[#allocation2 + $0x9b0] sm:$0xff]
        %v569 = vld [vmem:[#allocation2 + $0x9b8] sm:$0xff]
        %v570 = vld [vmem:[#allocation2 + $0x9c0] sm:$0xff]
        %v571 = vld [vmem:[#allocation2 + $0x9c8] sm:$0xff]
        %v572 = vld [vmem:[#allocation2 + $0x9d0] sm:$0xff]
        %v573 = vld [vmem:[#allocation2 + $0x9d8] sm:$0xff]
        %v574 = vld [vmem:[#allocation2 + $0x9e0] sm:$0xff]
        %v575 = vld [vmem:[#allocation2 + $0x9e8] sm:$0xff]
        %v576 = vld [vmem:[#allocation2 + $0x9f0] sm:$0xff]
        %v577 = vld [vmem:[#allocation2 + $0x9f8] sm:$0xff]
        %v578 = vld [vmem:[#allocation2 + $0xa00] sm:$0xff]
        %v579 = vld [vmem:[#allocation2 + $0xa08] sm:$0xff]
        %v580 = vld [vmem:[#allocation2 + $0xa10] sm:$0xff]
        %v581 = vld [vmem:[#allocation2 + $0xa18] sm:$0xff]
        %v582 = vld [vmem:[#allocation2 + $0xa20] sm:$0xff]
        %v583 = vld [vmem:[#allocation2 + $0xa28] sm:$0xff]
        %v584 = vld [vmem:[#allocation2 + $0xa30] sm:$0xff]
        %v585 = vld [vmem:[#allocation2 + $0xa38] sm:$0xff]
        %v586 = vld [vmem:[#allocation2 + $0xa40] sm:$0xff]
        %v587 = vld [vmem:[#allocation2 + $0xa48] sm:$0xff]
        %v588 = vld [vmem:[#allocation2 + $0xa50] sm:$0xff]
        %v589 = vld [vmem:[#allocation2 + $0xa58] sm:$0xff]
        %v590 = vld [vmem:[#allocation2 + $0xa60] sm:$0xff]
        %v591 = vld [vmem:[#allocation2 + $0xa68] sm:$0xff]
        %v592 = vld [vmem:[#allocation2 + $0xa70] sm:$0xff]
        %v593 = vld [vmem:[#allocation2 + $0xa78] sm:$0xff]
        %v594 = vld [vmem:[#allocation2 + $0xa80] sm:$0xff]
        %v595 = vld [vmem:[#allocation2 + $0xa88] sm:$0xff]
        %v596 = vld [vmem:[#allocation2 + $0xa90] sm:$0xff]
        %v597 = vld [vmem:[#allocation2 + $0xa98] sm:$0xff]
        %v598 = vld [vmem:[#allocation2 + $0xaa0] sm:$0xff]
        %v599 = vld [vmem:[#allocation2 + $0xaa8] sm:$0xff]
        %v600 = vld [vmem:[#allocation2 + $0xab0] sm:$0xff]
        %v601 = vld [vmem:[#allocation2 + $0xab8] sm:$0xff]
        %v602 = vld [vmem:[#allocation2 + $0xac0] sm:$0xff]
        %v603 = vld [vmem:[#allocation2 + $0xac8] sm:$0xff]
        %v604 = vld [vmem:[#allocation2 + $0xad0] sm:$0xff]
        %v605 = vld [vmem:[#allocation2 + $0xad8] sm:$0xff]
        %v606 = vld [vmem:[#allocation2 + $0xae0] sm:$0xff]
        %v607 = vld [vmem:[#allocation2 + $0xae8] sm:$0xff]
        %v608 = vld [vmem:[#allocation2 + $0xaf0] sm:$0xff]
        %v609 = vld [vmem:[#allocation2 + $0xaf8] sm:$0xff]
        %v610 = vld [vmem:[#allocation2 + $0xb00] sm:$0xff]
        %v611 = vld [vmem:[#allocation2 + $0xb08] sm:$0xff]
        %v612 = vld [vmem:[#allocation2 + $0xb10] sm:$0xff]
        %v613 = vld [vmem:[#allocation2 + $0xb18] sm:$0xff]
        %v614 = vld [vmem:[#allocation2 + $0xb20] sm:$0xff]
        %v615 = vld [vmem:[#allocation2 + $0xb28] sm:$0xff]
        %v616 = vld [vmem:[#allocation2 + $0xb30] sm:$0xff]
        %v617 = vld [vmem:[#allocation2 + $0xb38] sm:$0xff]
        %v618 = vld [vmem:[#allocation2 + $0xb40] sm:$0xff]
        %v619 = vld [vmem:[#allocation2 + $0xb48] sm:$0xff]
        %v620 = vld [vmem:[#allocation2 + $0xb50] sm:$0xff]
        %v621 = vld [vmem:[#allocation2 + $0xb58] sm:$0xff]
        %v622 = vld [vmem:[#allocation2 + $0xb60] sm:$0xff]
        %v623 = vld [vmem:[#allocation2 + $0xb68] sm:$0xff]
        %v624 = vld [vmem:[#allocation2 + $0xb70] sm:$0xff]
        %v625 = vld [vmem:[#allocation2 + $0xb78] sm:$0xff]
        %v626 = vld [vmem:[#allocation2 + $0xb80] sm:$0xff]
        %v627 = vld [vmem:[#allocation2 + $0xb88] sm:$0xff]
        %v628 = vld [vmem:[#allocation2 + $0xb90] sm:$0xff]
        %v629 = vld [vmem:[#allocation2 + $0xb98] sm:$0xff]
        %v630 = vld [vmem:[#allocation2 + $0xba0] sm:$0xff]
        %v631 = vld [vmem:[#allocation2 + $0xba8] sm:$0xff]
        %v632 = vld [vmem:[#allocation2 + $0xbb0] sm:$0xff]
        %v633 = vld [vmem:[#allocation2 + $0xbb8] sm:$0xff]
        %v634 = vld [vmem:[#allocation2 + $0xbc0] sm:$0xff]
        %v635 = vld [vmem:[#allocation2 + $0xbc8] sm:$0xff]
        %v636 = vld [vmem:[#allocation2 + $0xbd0] sm:$0xff]
        %v637 = vld [vmem:[#allocation2 + $0xbd8] sm:$0xff]
        %v638 = vld [vmem:[#allocation2 + $0xbe0] sm:$0xff]
        %v639 = vld [vmem:[#allocation2 + $0xbe8] sm:$0xff]
        %v640 = vld [vmem:[#allocation2 + $0xbf0] sm:$0xff]
        %v641 = vld [vmem:[#allocation2 + $0xbf8] sm:$0xff]
        %v642 = vld [vmem:[#allocation2 + $0xc00] sm:$0xff]
        %v643 = vld [vmem:[#allocation2 + $0xc08] sm:$0xff]
        %v644 = vld [vmem:[#allocation2 + $0xc10] sm:$0xff]
        %v645 = vld [vmem:[#allocation2 + $0xc18] sm:$0xff]
        %v646 = vld [vmem:[#allocation2 + $0xc20] sm:$0xff]
        %v647 = vld [vmem:[#allocation2 + $0xc28] sm:$0xff]
        %v648 = vld [vmem:[#allocation2 + $0xc30] sm:$0xff]
        %v649 = vld [vmem:[#allocation2 + $0xc38] sm:$0xff]
        %v650 = vld [vmem:[#allocation2 + $0xc40] sm:$0xff]
        %v651 = vld [vmem:[#allocation2 + $0xc48] sm:$0xff]
        %v652 = vld [vmem:[#allocation2 + $0xc50] sm:$0xff]
        %v653 = vld [vmem:[#allocation2 + $0xc58] sm:$0xff]
        %v654 = vld [vmem:[#allocation2 + $0xc60] sm:$0xff]
        %v655 = vld [vmem:[#allocation2 + $0xc68] sm:$0xff]
        %v656 = vld [vmem:[#allocation2 + $0xc70] sm:$0xff]
        %v657 = vld [vmem:[#allocation2 + $0xc78] sm:$0xff]
        %v658 = vld [vmem:[#allocation2 + $0xc80] sm:$0xff]
        %v659 = vld [vmem:[#allocation2 + $0xc88] sm:$0xff]
        %v660 = vld [vmem:[#allocation2 + $0xc90] sm:$0xff]
        %v661 = vld [vmem:[#allocation2 + $0xc98] sm:$0xff]
        %v662 = vld [vmem:[#allocation2 + $0xca0] sm:$0xff]
        %v663 = vld [vmem:[#allocation2 + $0xca8] sm:$0xff]
        %v664 = vld [vmem:[#allocation2 + $0xcb0] sm:$0xff]
        %v665 = vld [vmem:[#allocation2 + $0xcb8] sm:$0xff]
        %v666 = vld [vmem:[#allocation2 + $0xcc0] sm:$0xff]
        %v667 = vld [vmem:[#allocation2 + $0xcc8] sm:$0xff]
        %v668 = vld [vmem:[#allocation2 + $0xcd0] sm:$0xff]
        %v669 = vld [vmem:[#allocation2 + $0xcd8] sm:$0xff]
        %v670 = vld [vmem:[#allocation2 + $0xce0] sm:$0xff]
        %v671 = vld [vmem:[#allocation2 + $0xce8] sm:$0xff]
        %v672 = vld [vmem:[#allocation2 + $0xcf0] sm:$0xff]
        %v673 = vld [vmem:[#allocation2 + $0xcf8] sm:$0xff]
        %v674 = vld [vmem:[#allocation2 + $0xd00] sm:$0xff]
        %v675 = vld [vmem:[#allocation2 + $0xd08] sm:$0xff]
        %v676 = vld [vmem:[#allocation2 + $0xd10] sm:$0xff]
        %v677 = vld [vmem:[#allocation2 + $0xd18] sm:$0xff]
        %v678 = vld [vmem:[#allocation2 + $0xd20] sm:$0xff]
        %v679 = vld [vmem:[#allocation2 + $0xd28] sm:$0xff]
        %v680 = vld [vmem:[#allocation2 + $0xd30] sm:$0xff]
        %v681 = vld [vmem:[#allocation2 + $0xd38] sm:$0xff]
        %v682 = vld [vmem:[#allocation2 + $0xd40] sm:$0xff]
        %v683 = vld [vmem:[#allocation2 + $0xd48] sm:$0xff]
        %v684 = vld [vmem:[#allocation2 + $0xd50] sm:$0xff]
        %v685 = vld [vmem:[#allocation2 + $0xd58] sm:$0xff]
        %v686 = vld [vmem:[#allocation2 + $0xd60] sm:$0xff]
        %v687 = vld [vmem:[#allocation2 + $0xd68] sm:$0xff]
        %v688 = vld [vmem:[#allocation2 + $0xd70] sm:$0xff]
        %v689 = vld [vmem:[#allocation2 + $0xd78] sm:$0xff]
        %v690 = vld [vmem:[#allocation2 + $0xd80] sm:$0xff]
        %v691 = vld [vmem:[#allocation2 + $0xd88] sm:$0xff]
        %v692 = vld [vmem:[#allocation2 + $0xd90] sm:$0xff]
        %v693 = vld [vmem:[#allocation2 + $0xd98] sm:$0xff]
        %v694 = vld [vmem:[#allocation2 + $0xda0] sm:$0xff]
        %v695 = vld [vmem:[#allocation2 + $0xda8] sm:$0xff]
        %v696 = vld [vmem:[#allocation2 + $0xdb0] sm:$0xff]
        %v697 = vld [vmem:[#allocation2 + $0xdb8] sm:$0xff]
        %v698 = vld [vmem:[#allocation2 + $0xdc0] sm:$0xff]
        %v699 = vld [vmem:[#allocation2 + $0xdc8] sm:$0xff]
        %v700 = vld [vmem:[#allocation2 + $0xdd0] sm:$0xff]
        %v701 = vld [vmem:[#allocation2 + $0xdd8] sm:$0xff]
        %v702 = vld [vmem:[#allocation2 + $0xde0] sm:$0xff]
        %v703 = vld [vmem:[#allocation2 + $0xde8] sm:$0xff]
        %v704 = vld [vmem:[#allocation2 + $0xdf0] sm:$0xff]
        %v705 = vld [vmem:[#allocation2 + $0xdf8] sm:$0xff]
        %v706 = vld [vmem:[#allocation2 + $0xe00] sm:$0xff]
        %v707 = vld [vmem:[#allocation2 + $0xe08] sm:$0xff]
        %v708 = vld [vmem:[#allocation2 + $0xe10] sm:$0xff]
        %v709 = vld [vmem:[#allocation2 + $0xe18] sm:$0xff]
        %v710 = vld [vmem:[#allocation2 + $0xe20] sm:$0xff]
        %v711 = vld [vmem:[#allocation2 + $0xe28] sm:$0xff]
        %v712 = vld [vmem:[#allocation2 + $0xe30] sm:$0xff]
        %v713 = vld [vmem:[#allocation2 + $0xe38] sm:$0xff]
        %v714 = vld [vmem:[#allocation2 + $0xe40] sm:$0xff]
        %v715 = vld [vmem:[#allocation2 + $0xe48] sm:$0xff]
        %v716 = vld [vmem:[#allocation2 + $0xe50] sm:$0xff]
        %v717 = vld [vmem:[#allocation2 + $0xe58] sm:$0xff]
        %v718 = vld [vmem:[#allocation2 + $0xe60] sm:$0xff]
        %v719 = vld [vmem:[#allocation2 + $0xe68] sm:$0xff]
        %v720 = vld [vmem:[#allocation2 + $0xe70] sm:$0xff]
        %v721 = vld [vmem:[#allocation2 + $0xe78] sm:$0xff]
        %v722 = vld [vmem:[#allocation2 + $0xe80] sm:$0xff]
        %v723 = vld [vmem:[#allocation2 + $0xe88] sm:$0xff]
        %v724 = vld [vmem:[#allocation2 + $0xe90] sm:$0xff]
        %v725 = vld [vmem:[#allocation2 + $0xe98] sm:$0xff]
        %v726 = vld [vmem:[#allocation2 + $0xea0] sm:$0xff]
        %v727 = vld [vmem:[#allocation2 + $0xea8] sm:$0xff]
        %v728 = vld [vmem:[#allocation2 + $0xeb0] sm:$0xff]
        %v729 = vld [vmem:[#allocation2 + $0xeb8] sm:$0xff]
        %v730 = vld [vmem:[#allocation2 + $0xec0] sm:$0xff]
        %v731 = vld [vmem:[#allocation2 + $0xec8] sm:$0xff]
        %v732 = vld [vmem:[#allocation2 + $0xed0] sm:$0xff]
        %v733 = vld [vmem:[#allocation2 + $0xed8] sm:$0xff]
        %v734 = vld [vmem:[#allocation2 + $0xee0] sm:$0xff]
        %v735 = vld [vmem:[#allocation2 + $0xee8] sm:$0xff]
        %v736 = vld [vmem:[#allocation2 + $0xef0] sm:$0xff]
        %v737 = vld [vmem:[#allocation2 + $0xef8] sm:$0xff]
        %v738 = vld [vmem:[#allocation2 + $0xf00] sm:$0xff]
        %v739 = vld [vmem:[#allocation2 + $0xf08] sm:$0xff]
        %v740 = vld [vmem:[#allocation2 + $0xf10] sm:$0xff]
        %v741 = vld [vmem:[#allocation2 + $0xf18] sm:$0xff]
        %v742 = vld [vmem:[#allocation2 + $0xf20] sm:$0xff]
        %v743 = vld [vmem:[#allocation2 + $0xf28] sm:$0xff]
        %v744 = vld [vmem:[#allocation2 + $0xf30] sm:$0xff]
        %v745 = vld [vmem:[#allocation2 + $0xf38] sm:$0xff]
        %v746 = vld [vmem:[#allocation2 + $0xf40] sm:$0xff]
        %v747 = vld [vmem:[#allocation2 + $0xf48] sm:$0xff]
        %v748 = vld [vmem:[#allocation2 + $0xf50] sm:$0xff]
        %v749 = vld [vmem:[#allocation2 + $0xf58] sm:$0xff]
        %v750 = vld [vmem:[#allocation2 + $0xf60] sm:$0xff]
        %v751 = vld [vmem:[#allocation2 + $0xf68] sm:$0xff]
        %v752 = vld [vmem:[#allocation2 + $0xf70] sm:$0xff]
        %v753 = vld [vmem:[#allocation2 + $0xf78] sm:$0xff]
        %v754 = vld [vmem:[#allocation2 + $0xf80] sm:$0xff]
        %v755 = vld [vmem:[#allocation2 + $0xf88] sm:$0xff]
        %v756 = vld [vmem:[#allocation2 + $0xf90] sm:$0xff]
        %v757 = vld [vmem:[#allocation2 + $0xf98] sm:$0xff]
        %v758 = vld [vmem:[#allocation2 + $0xfa0] sm:$0xff]
        %v759 = vld [vmem:[#allocation2 + $0xfa8] sm:$0xff]
        %v760 = vld [vmem:[#allocation2 + $0xfb0] sm:$0xff]
        %v761 = vld [vmem:[#allocation2 + $0xfb8] sm:$0xff]
        %v762 = vld [vmem:[#allocation2 + $0xfc0] sm:$0xff]
        %v763 = vld [vmem:[#allocation2 + $0xfc8] sm:$0xff]
        %v764 = vld [vmem:[#allocation2 + $0xfd0] sm:$0xff]
        %v765 = vld [vmem:[#allocation2 + $0xfd8] sm:$0xff]
        %v766 = vld [vmem:[#allocation2 + $0xfe0] sm:$0xff]
        %v767 = vld [vmem:[#allocation2 + $0xfe8] sm:$0xff]
        %v768 = vld [vmem:[#allocation2 + $0xff0] sm:$0xff]
        %v769 = vld [vmem:[#allocation2 + $0xff8] sm:$0xff]
        %v774 = vunpack.c.l.b16 %v252
        %v775 = vunpack.c.h.b16 %v252
        %v776 = vunpack.c.l.b16 %v253
        %v777 = vunpack.c.h.b16 %v253
        %v778 = vunpack.c.l.b16 %v254
        %v779 = vunpack.c.h.b16 %v254
        %v780 = vunpack.c.l.b16 %v255
        %v781 = vunpack.c.h.b16 %v255
        %v782 = vpack.c.b16 %v778, %v774
        %v783 = vpack.c.b16 %v779, %v775
        %v784 = vpack.c.b16 %v780, %v776
        %v785 = vpack.c.b16 %v781, %v777
        %v1046 = vunpack.c.l.b16 %v514
        %v1047 = vunpack.c.h.b16 %v514
        %v1048 = vunpack.c.l.b16 %v515
        %v1049 = vunpack.c.h.b16 %v515
        %v1050 = vunpack.c.l.b16 %v516
        %v1051 = vunpack.c.h.b16 %v516
        %v1052 = vunpack.c.l.b16 %v517
        %v1053 = vunpack.c.h.b16 %v517
        %v1054 = vunpack.c.l.b16 %v518
        %v1055 = vunpack.c.h.b16 %v518
        %v1056 = vunpack.c.l.b16 %v519
        %v1057 = vunpack.c.h.b16 %v519
        %v1058 = vunpack.c.l.b16 %v520
        %v1059 = vunpack.c.h.b16 %v520
        %v1060 = vunpack.c.l.b16 %v521
        %v1061 = vunpack.c.h.b16 %v521
        %v1062 = vunpack.c.l.b16 %v522
        %v1063 = vunpack.c.h.b16 %v522
        %v1064 = vunpack.c.l.b16 %v523
        %v1065 = vunpack.c.h.b16 %v523
        %v1066 = vunpack.c.l.b16 %v524
        %v1067 = vunpack.c.h.b16 %v524
        %v1068 = vunpack.c.l.b16 %v525
        %v1069 = vunpack.c.h.b16 %v525
        %v1070 = vunpack.c.l.b16 %v526
        %v1071 = vunpack.c.h.b16 %v526
        %v1072 = vunpack.c.l.b16 %v527
        %v1073 = vunpack.c.h.b16 %v527
        %v1074 = vunpack.c.l.b16 %v528
        %v1075 = vunpack.c.h.b16 %v528
        %v1076 = vunpack.c.l.b16 %v529
        %v1077 = vunpack.c.h.b16 %v529
        %v1078 = vunpack.c.l.b16 %v530
        %v1079 = vunpack.c.h.b16 %v530
        %v1080 = vunpack.c.l.b16 %v531
        %v1081 = vunpack.c.h.b16 %v531
        %v1082 = vunpack.c.l.b16 %v532
        %v1083 = vunpack.c.h.b16 %v532
        %v1084 = vunpack.c.l.b16 %v533
        %v1085 = vunpack.c.h.b16 %v533
        %v1086 = vunpack.c.l.b16 %v534
        %v1087 = vunpack.c.h.b16 %v534
        %v1088 = vunpack.c.l.b16 %v535
        %v1089 = vunpack.c.h.b16 %v535
        %v1090 = vunpack.c.l.b16 %v536
        %v1091 = vunpack.c.h.b16 %v536
        %v1092 = vunpack.c.l.b16 %v537
        %v1093 = vunpack.c.h.b16 %v537
        %v1094 = vunpack.c.l.b16 %v538
        %v1095 = vunpack.c.h.b16 %v538
        %v1096 = vunpack.c.l.b16 %v539
        %v1097 = vunpack.c.h.b16 %v539
        %v1098 = vunpack.c.l.b16 %v540
        %v1099 = vunpack.c.h.b16 %v540
        %v1100 = vunpack.c.l.b16 %v541
        %v1101 = vunpack.c.h.b16 %v541
        %v1102 = vunpack.c.l.b16 %v542
        %v1103 = vunpack.c.h.b16 %v542
        %v1104 = vunpack.c.l.b16 %v543
        %v1105 = vunpack.c.h.b16 %v543
        %v1106 = vunpack.c.l.b16 %v544
        %v1107 = vunpack.c.h.b16 %v544
        %v1108 = vunpack.c.l.b16 %v545
        %v1109 = vunpack.c.h.b16 %v545
        %v1110 = vunpack.c.l.b16 %v546
        %v1111 = vunpack.c.h.b16 %v546
        %v1112 = vunpack.c.l.b16 %v547
        %v1113 = vunpack.c.h.b16 %v547
        %v1114 = vunpack.c.l.b16 %v548
        %v1115 = vunpack.c.h.b16 %v548
        %v1116 = vunpack.c.l.b16 %v549
        %v1117 = vunpack.c.h.b16 %v549
        %v1118 = vunpack.c.l.b16 %v550
        %v1119 = vunpack.c.h.b16 %v550
        %v1120 = vunpack.c.l.b16 %v551
        %v1121 = vunpack.c.h.b16 %v551
        %v1122 = vunpack.c.l.b16 %v552
        %v1123 = vunpack.c.h.b16 %v552
        %v1124 = vunpack.c.l.b16 %v553
        %v1125 = vunpack.c.h.b16 %v553
        %v1126 = vunpack.c.l.b16 %v554
        %v1127 = vunpack.c.h.b16 %v554
        %v1128 = vunpack.c.l.b16 %v555
        %v1129 = vunpack.c.h.b16 %v555
        %v1130 = vunpack.c.l.b16 %v556
        %v1131 = vunpack.c.h.b16 %v556
        %v1132 = vunpack.c.l.b16 %v557
        %v1133 = vunpack.c.h.b16 %v557
        %v1134 = vunpack.c.l.b16 %v558
        %v1135 = vunpack.c.h.b16 %v558
        %v1136 = vunpack.c.l.b16 %v559
        %v1137 = vunpack.c.h.b16 %v559
        %v1138 = vunpack.c.l.b16 %v560
        %v1139 = vunpack.c.h.b16 %v560
        %v1140 = vunpack.c.l.b16 %v561
        %v1141 = vunpack.c.h.b16 %v561
        %v1142 = vunpack.c.l.b16 %v562
        %v1143 = vunpack.c.h.b16 %v562
        %v1144 = vunpack.c.l.b16 %v563
        %v1145 = vunpack.c.h.b16 %v563
        %v1146 = vunpack.c.l.b16 %v564
        %v1147 = vunpack.c.h.b16 %v564
        %v1148 = vunpack.c.l.b16 %v565
        %v1149 = vunpack.c.h.b16 %v565
        %v1150 = vunpack.c.l.b16 %v566
        %v1151 = vunpack.c.h.b16 %v566
        %v1152 = vunpack.c.l.b16 %v567
        %v1153 = vunpack.c.h.b16 %v567
        %v1154 = vunpack.c.l.b16 %v568
        %v1155 = vunpack.c.h.b16 %v568
        %v1156 = vunpack.c.l.b16 %v569
        %v1157 = vunpack.c.h.b16 %v569
        %v1158 = vunpack.c.l.b16 %v570
        %v1159 = vunpack.c.h.b16 %v570
        %v1160 = vunpack.c.l.b16 %v571
        %v1161 = vunpack.c.h.b16 %v571
        %v1162 = vunpack.c.l.b16 %v572
        %v1163 = vunpack.c.h.b16 %v572
        %v1164 = vunpack.c.l.b16 %v573
        %v1165 = vunpack.c.h.b16 %v573
        %v1166 = vunpack.c.l.b16 %v574
        %v1167 = vunpack.c.h.b16 %v574
        %v1168 = vunpack.c.l.b16 %v575
        %v1169 = vunpack.c.h.b16 %v575
        %v1170 = vunpack.c.l.b16 %v576
        %v1171 = vunpack.c.h.b16 %v576
        %v1172 = vunpack.c.l.b16 %v577
        %v1173 = vunpack.c.h.b16 %v577
        %v1174 = vunpack.c.l.b16 %v578
        %v1175 = vunpack.c.h.b16 %v578
        %v1176 = vunpack.c.l.b16 %v579
        %v1177 = vunpack.c.h.b16 %v579
        %v1178 = vunpack.c.l.b16 %v580
        %v1179 = vunpack.c.h.b16 %v580
        %v1180 = vunpack.c.l.b16 %v581
        %v1181 = vunpack.c.h.b16 %v581
        %v1182 = vunpack.c.l.b16 %v582
        %v1183 = vunpack.c.h.b16 %v582
        %v1184 = vunpack.c.l.b16 %v583
        %v1185 = vunpack.c.h.b16 %v583
        %v1186 = vunpack.c.l.b16 %v584
        %v1187 = vunpack.c.h.b16 %v584
        %v1188 = vunpack.c.l.b16 %v585
        %v1189 = vunpack.c.h.b16 %v585
        %v1190 = vunpack.c.l.b16 %v586
        %v1191 = vunpack.c.h.b16 %v586
        %v1192 = vunpack.c.l.b16 %v587
        %v1193 = vunpack.c.h.b16 %v587
        %v1194 = vunpack.c.l.b16 %v588
        %v1195 = vunpack.c.h.b16 %v588
        %v1196 = vunpack.c.l.b16 %v589
        %v1197 = vunpack.c.h.b16 %v589
        %v1198 = vunpack.c.l.b16 %v590
        %v1199 = vunpack.c.h.b16 %v590
        %v1200 = vunpack.c.l.b16 %v591
        %v1201 = vunpack.c.h.b16 %v591
        %v1202 = vunpack.c.l.b16 %v592
        %v1203 = vunpack.c.h.b16 %v592
        %v1204 = vunpack.c.l.b16 %v593
        %v1205 = vunpack.c.h.b16 %v593
        %v1206 = vunpack.c.l.b16 %v594
        %v1207 = vunpack.c.h.b16 %v594
        %v1208 = vunpack.c.l.b16 %v595
        %v1209 = vunpack.c.h.b16 %v595
        %v1210 = vunpack.c.l.b16 %v596
        %v1211 = vunpack.c.h.b16 %v596
        %v1212 = vunpack.c.l.b16 %v597
        %v1213 = vunpack.c.h.b16 %v597
        %v1214 = vunpack.c.l.b16 %v598
        %v1215 = vunpack.c.h.b16 %v598
        %v1216 = vunpack.c.l.b16 %v599
        %v1217 = vunpack.c.h.b16 %v599
        %v1218 = vunpack.c.l.b16 %v600
        %v1219 = vunpack.c.h.b16 %v600
        %v1220 = vunpack.c.l.b16 %v601
        %v1221 = vunpack.c.h.b16 %v601
        %v1222 = vunpack.c.l.b16 %v602
        %v1223 = vunpack.c.h.b16 %v602
        %v1224 = vunpack.c.l.b16 %v603
        %v1225 = vunpack.c.h.b16 %v603
        %v1226 = vunpack.c.l.b16 %v604
        %v1227 = vunpack.c.h.b16 %v604
        %v1228 = vunpack.c.l.b16 %v605
        %v1229 = vunpack.c.h.b16 %v605
        %v1230 = vunpack.c.l.b16 %v606
        %v1231 = vunpack.c.h.b16 %v606
        %v1232 = vunpack.c.l.b16 %v607
        %v1233 = vunpack.c.h.b16 %v607
        %v1234 = vunpack.c.l.b16 %v608
        %v1235 = vunpack.c.h.b16 %v608
        %v1236 = vunpack.c.l.b16 %v609
        %v1237 = vunpack.c.h.b16 %v609
        %v1238 = vunpack.c.l.b16 %v610
        %v1239 = vunpack.c.h.b16 %v610
        %v1240 = vunpack.c.l.b16 %v611
        %v1241 = vunpack.c.h.b16 %v611
        %v1242 = vunpack.c.l.b16 %v612
        %v1243 = vunpack.c.h.b16 %v612
        %v1244 = vunpack.c.l.b16 %v613
        %v1245 = vunpack.c.h.b16 %v613
        %v1246 = vunpack.c.l.b16 %v614
        %v1247 = vunpack.c.h.b16 %v614
        %v1248 = vunpack.c.l.b16 %v615
        %v1249 = vunpack.c.h.b16 %v615
        %v1250 = vunpack.c.l.b16 %v616
        %v1251 = vunpack.c.h.b16 %v616
        %v1252 = vunpack.c.l.b16 %v617
        %v1253 = vunpack.c.h.b16 %v617
        %v1254 = vunpack.c.l.b16 %v618
        %v1255 = vunpack.c.h.b16 %v618
        %v1256 = vunpack.c.l.b16 %v619
        %v1257 = vunpack.c.h.b16 %v619
        %v1258 = vunpack.c.l.b16 %v620
        %v1259 = vunpack.c.h.b16 %v620
        %v1260 = vunpack.c.l.b16 %v621
        %v1261 = vunpack.c.h.b16 %v621
        %v1262 = vunpack.c.l.b16 %v622
        %v1263 = vunpack.c.h.b16 %v622
        %v1264 = vunpack.c.l.b16 %v623
        %v1265 = vunpack.c.h.b16 %v623
        %v1266 = vunpack.c.l.b16 %v624
        %v1267 = vunpack.c.h.b16 %v624
        %v1268 = vunpack.c.l.b16 %v625
        %v1269 = vunpack.c.h.b16 %v625
        %v1270 = vunpack.c.l.b16 %v626
        %v1271 = vunpack.c.h.b16 %v626
        %v1272 = vunpack.c.l.b16 %v627
        %v1273 = vunpack.c.h.b16 %v627
        %v1274 = vunpack.c.l.b16 %v628
        %v1275 = vunpack.c.h.b16 %v628
        %v1276 = vunpack.c.l.b16 %v629
        %v1277 = vunpack.c.h.b16 %v629
        %v1278 = vunpack.c.l.b16 %v630
        %v1279 = vunpack.c.h.b16 %v630
        %v1280 = vunpack.c.l.b16 %v631
        %v1281 = vunpack.c.h.b16 %v631
        %v1282 = vunpack.c.l.b16 %v632
        %v1283 = vunpack.c.h.b16 %v632
        %v1284 = vunpack.c.l.b16 %v633
        %v1285 = vunpack.c.h.b16 %v633
        %v1286 = vunpack.c.l.b16 %v634
        %v1287 = vunpack.c.h.b16 %v634
        %v1288 = vunpack.c.l.b16 %v635
        %v1289 = vunpack.c.h.b16 %v635
        %v1290 = vunpack.c.l.b16 %v636
        %v1291 = vunpack.c.h.b16 %v636
        %v1292 = vunpack.c.l.b16 %v637
        %v1293 = vunpack.c.h.b16 %v637
        %v1294 = vunpack.c.l.b16 %v638
        %v1295 = vunpack.c.h.b16 %v638
        %v1296 = vunpack.c.l.b16 %v639
        %v1297 = vunpack.c.h.b16 %v639
        %v1298 = vunpack.c.l.b16 %v640
        %v1299 = vunpack.c.h.b16 %v640
        %v1300 = vunpack.c.l.b16 %v641
        %v1301 = vunpack.c.h.b16 %v641
        %v1302 = vunpack.c.l.b16 %v642
        %v1303 = vunpack.c.h.b16 %v642
        %v1304 = vunpack.c.l.b16 %v643
        %v1305 = vunpack.c.h.b16 %v643
        %v1306 = vunpack.c.l.b16 %v644
        %v1307 = vunpack.c.h.b16 %v644
        %v1308 = vunpack.c.l.b16 %v645
        %v1309 = vunpack.c.h.b16 %v645
        %v1310 = vunpack.c.l.b16 %v646
        %v1311 = vunpack.c.h.b16 %v646
        %v1312 = vunpack.c.l.b16 %v647
        %v1313 = vunpack.c.h.b16 %v647
        %v1314 = vunpack.c.l.b16 %v648
        %v1315 = vunpack.c.h.b16 %v648
        %v1316 = vunpack.c.l.b16 %v649
        %v1317 = vunpack.c.h.b16 %v649
        %v1318 = vunpack.c.l.b16 %v650
        %v1319 = vunpack.c.h.b16 %v650
        %v1320 = vunpack.c.l.b16 %v651
        %v1321 = vunpack.c.h.b16 %v651
        %v1322 = vunpack.c.l.b16 %v652
        %v1323 = vunpack.c.h.b16 %v652
        %v1324 = vunpack.c.l.b16 %v653
        %v1325 = vunpack.c.h.b16 %v653
        %v1326 = vunpack.c.l.b16 %v654
        %v1327 = vunpack.c.h.b16 %v654
        %v1328 = vunpack.c.l.b16 %v655
        %v1329 = vunpack.c.h.b16 %v655
        %v1330 = vunpack.c.l.b16 %v656
        %v1331 = vunpack.c.h.b16 %v656
        %v1332 = vunpack.c.l.b16 %v657
        %v1333 = vunpack.c.h.b16 %v657
        %v1334 = vunpack.c.l.b16 %v658
        %v1335 = vunpack.c.h.b16 %v658
        %v1336 = vunpack.c.l.b16 %v659
        %v1337 = vunpack.c.h.b16 %v659
        %v1338 = vunpack.c.l.b16 %v660
        %v1339 = vunpack.c.h.b16 %v660
        %v1340 = vunpack.c.l.b16 %v661
        %v1341 = vunpack.c.h.b16 %v661
        %v1342 = vunpack.c.l.b16 %v662
        %v1343 = vunpack.c.h.b16 %v662
        %v1344 = vunpack.c.l.b16 %v663
        %v1345 = vunpack.c.h.b16 %v663
        %v1346 = vunpack.c.l.b16 %v664
        %v1347 = vunpack.c.h.b16 %v664
        %v1348 = vunpack.c.l.b16 %v665
        %v1349 = vunpack.c.h.b16 %v665
        %v1350 = vunpack.c.l.b16 %v666
        %v1351 = vunpack.c.h.b16 %v666
        %v1352 = vunpack.c.l.b16 %v667
        %v1353 = vunpack.c.h.b16 %v667
        %v1354 = vunpack.c.l.b16 %v668
        %v1355 = vunpack.c.h.b16 %v668
        %v1356 = vunpack.c.l.b16 %v669
        %v1357 = vunpack.c.h.b16 %v669
        %v1358 = vunpack.c.l.b16 %v670
        %v1359 = vunpack.c.h.b16 %v670
        %v1360 = vunpack.c.l.b16 %v671
        %v1361 = vunpack.c.h.b16 %v671
        %v1362 = vunpack.c.l.b16 %v672
        %v1363 = vunpack.c.h.b16 %v672
        %v1364 = vunpack.c.l.b16 %v673
        %v1365 = vunpack.c.h.b16 %v673
        %v1366 = vunpack.c.l.b16 %v674
        %v1367 = vunpack.c.h.b16 %v674
        %v1368 = vunpack.c.l.b16 %v675
        %v1369 = vunpack.c.h.b16 %v675
        %v1370 = vunpack.c.l.b16 %v676
        %v1371 = vunpack.c.h.b16 %v676
        %v1372 = vunpack.c.l.b16 %v677
        %v1373 = vunpack.c.h.b16 %v677
        %v1374 = vunpack.c.l.b16 %v678
        %v1375 = vunpack.c.h.b16 %v678
        %v1376 = vunpack.c.l.b16 %v679
        %v1377 = vunpack.c.h.b16 %v679
        %v1378 = vunpack.c.l.b16 %v680
        %v1379 = vunpack.c.h.b16 %v680
        %v1380 = vunpack.c.l.b16 %v681
        %v1381 = vunpack.c.h.b16 %v681
        %v1382 = vunpack.c.l.b16 %v682
        %v1383 = vunpack.c.h.b16 %v682
        %v1384 = vunpack.c.l.b16 %v683
        %v1385 = vunpack.c.h.b16 %v683
        %v1386 = vunpack.c.l.b16 %v684
        %v1387 = vunpack.c.h.b16 %v684
        %v1388 = vunpack.c.l.b16 %v685
        %v1389 = vunpack.c.h.b16 %v685
        %v1390 = vunpack.c.l.b16 %v686
        %v1391 = vunpack.c.h.b16 %v686
        %v1392 = vunpack.c.l.b16 %v687
        %v1393 = vunpack.c.h.b16 %v687
        %v1394 = vunpack.c.l.b16 %v688
        %v1395 = vunpack.c.h.b16 %v688
        %v1396 = vunpack.c.l.b16 %v689
        %v1397 = vunpack.c.h.b16 %v689
        %v1398 = vunpack.c.l.b16 %v690
        %v1399 = vunpack.c.h.b16 %v690
        %v1400 = vunpack.c.l.b16 %v691
        %v1401 = vunpack.c.h.b16 %v691
        %v1402 = vunpack.c.l.b16 %v692
        %v1403 = vunpack.c.h.b16 %v692
        %v1404 = vunpack.c.l.b16 %v693
        %v1405 = vunpack.c.h.b16 %v693
        %v1406 = vunpack.c.l.b16 %v694
        %v1407 = vunpack.c.h.b16 %v694
        %v1408 = vunpack.c.l.b16 %v695
        %v1409 = vunpack.c.h.b16 %v695
        %v1410 = vunpack.c.l.b16 %v696
        %v1411 = vunpack.c.h.b16 %v696
        %v1412 = vunpack.c.l.b16 %v697
        %v1413 = vunpack.c.h.b16 %v697
        %v1414 = vunpack.c.l.b16 %v698
        %v1415 = vunpack.c.h.b16 %v698
        %v1416 = vunpack.c.l.b16 %v699
        %v1417 = vunpack.c.h.b16 %v699
        %v1418 = vunpack.c.l.b16 %v700
        %v1419 = vunpack.c.h.b16 %v700
        %v1420 = vunpack.c.l.b16 %v701
        %v1421 = vunpack.c.h.b16 %v701
        %v1422 = vunpack.c.l.b16 %v702
        %v1423 = vunpack.c.h.b16 %v702
        %v1424 = vunpack.c.l.b16 %v703
        %v1425 = vunpack.c.h.b16 %v703
        %v1426 = vunpack.c.l.b16 %v704
        %v1427 = vunpack.c.h.b16 %v704
        %v1428 = vunpack.c.l.b16 %v705
        %v1429 = vunpack.c.h.b16 %v705
        %v1430 = vunpack.c.l.b16 %v706
        %v1431 = vunpack.c.h.b16 %v706
        %v1432 = vunpack.c.l.b16 %v707
        %v1433 = vunpack.c.h.b16 %v707
        %v1434 = vunpack.c.l.b16 %v708
        %v1435 = vunpack.c.h.b16 %v708
        %v1436 = vunpack.c.l.b16 %v709
        %v1437 = vunpack.c.h.b16 %v709
        %v1438 = vunpack.c.l.b16 %v710
        %v1439 = vunpack.c.h.b16 %v710
        %v1440 = vunpack.c.l.b16 %v711
        %v1441 = vunpack.c.h.b16 %v711
        %v1442 = vunpack.c.l.b16 %v712
        %v1443 = vunpack.c.h.b16 %v712
        %v1444 = vunpack.c.l.b16 %v713
        %v1445 = vunpack.c.h.b16 %v713
        %v1446 = vunpack.c.l.b16 %v714
        %v1447 = vunpack.c.h.b16 %v714
        %v1448 = vunpack.c.l.b16 %v715
        %v1449 = vunpack.c.h.b16 %v715
        %v1450 = vunpack.c.l.b16 %v716
        %v1451 = vunpack.c.h.b16 %v716
        %v1452 = vunpack.c.l.b16 %v717
        %v1453 = vunpack.c.h.b16 %v717
        %v1454 = vunpack.c.l.b16 %v718
        %v1455 = vunpack.c.h.b16 %v718
        %v1456 = vunpack.c.l.b16 %v719
        %v1457 = vunpack.c.h.b16 %v719
        %v1458 = vunpack.c.l.b16 %v720
        %v1459 = vunpack.c.h.b16 %v720
        %v1460 = vunpack.c.l.b16 %v721
        %v1461 = vunpack.c.h.b16 %v721
        %v1462 = vunpack.c.l.b16 %v722
        %v1463 = vunpack.c.h.b16 %v722
        %v1464 = vunpack.c.l.b16 %v723
        %v1465 = vunpack.c.h.b16 %v723
        %v1466 = vunpack.c.l.b16 %v724
        %v1467 = vunpack.c.h.b16 %v724
        %v1468 = vunpack.c.l.b16 %v725
        %v1469 = vunpack.c.h.b16 %v725
        %v1470 = vunpack.c.l.b16 %v726
        %v1471 = vunpack.c.h.b16 %v726
        %v1472 = vunpack.c.l.b16 %v727
        %v1473 = vunpack.c.h.b16 %v727
        %v1474 = vunpack.c.l.b16 %v728
        %v1475 = vunpack.c.h.b16 %v728
        %v1476 = vunpack.c.l.b16 %v729
        %v1477 = vunpack.c.h.b16 %v729
        %v1478 = vunpack.c.l.b16 %v730
        %v1479 = vunpack.c.h.b16 %v730
        %v1480 = vunpack.c.l.b16 %v731
        %v1481 = vunpack.c.h.b16 %v731
        %v1482 = vunpack.c.l.b16 %v732
        %v1483 = vunpack.c.h.b16 %v732
        %v1484 = vunpack.c.l.b16 %v733
        %v1485 = vunpack.c.h.b16 %v733
        %v1486 = vunpack.c.l.b16 %v734
        %v1487 = vunpack.c.h.b16 %v734
        %v1488 = vunpack.c.l.b16 %v735
        %v1489 = vunpack.c.h.b16 %v735
        %v1490 = vunpack.c.l.b16 %v736
        %v1491 = vunpack.c.h.b16 %v736
        %v1492 = vunpack.c.l.b16 %v737
        %v1493 = vunpack.c.h.b16 %v737
        %v1494 = vunpack.c.l.b16 %v738
        %v1495 = vunpack.c.h.b16 %v738
        %v1496 = vunpack.c.l.b16 %v739
        %v1497 = vunpack.c.h.b16 %v739
        %v1498 = vunpack.c.l.b16 %v740
        %v1499 = vunpack.c.h.b16 %v740
        %v1500 = vunpack.c.l.b16 %v741
        %v1501 = vunpack.c.h.b16 %v741
        %v1502 = vunpack.c.l.b16 %v742
        %v1503 = vunpack.c.h.b16 %v742
        %v1504 = vunpack.c.l.b16 %v743
        %v1505 = vunpack.c.h.b16 %v743
        %v1506 = vunpack.c.l.b16 %v744
        %v1507 = vunpack.c.h.b16 %v744
        %v1508 = vunpack.c.l.b16 %v745
        %v1509 = vunpack.c.h.b16 %v745
        %v1510 = vunpack.c.l.b16 %v746
        %v1511 = vunpack.c.h.b16 %v746
        %v1512 = vunpack.c.l.b16 %v747
        %v1513 = vunpack.c.h.b16 %v747
        %v1514 = vunpack.c.l.b16 %v748
        %v1515 = vunpack.c.h.b16 %v748
        %v1516 = vunpack.c.l.b16 %v749
        %v1517 = vunpack.c.h.b16 %v749
        %v1518 = vunpack.c.l.b16 %v750
        %v1519 = vunpack.c.h.b16 %v750
        %v1520 = vunpack.c.l.b16 %v751
        %v1521 = vunpack.c.h.b16 %v751
        %v1522 = vunpack.c.l.b16 %v752
        %v1523 = vunpack.c.h.b16 %v752
        %v1524 = vunpack.c.l.b16 %v753
        %v1525 = vunpack.c.h.b16 %v753
        %v1526 = vunpack.c.l.b16 %v754
        %v1527 = vunpack.c.h.b16 %v754
        %v1528 = vunpack.c.l.b16 %v755
        %v1529 = vunpack.c.h.b16 %v755
        %v1530 = vunpack.c.l.b16 %v756
        %v1531 = vunpack.c.h.b16 %v756
        %v1532 = vunpack.c.l.b16 %v757
        %v1533 = vunpack.c.h.b16 %v757
        %v1534 = vunpack.c.l.b16 %v758
        %v1535 = vunpack.c.h.b16 %v758
        %v1536 = vunpack.c.l.b16 %v759
        %v1537 = vunpack.c.h.b16 %v759
        %v1538 = vunpack.c.l.b16 %v760
        %v1539 = vunpack.c.h.b16 %v760
        %v1540 = vunpack.c.l.b16 %v761
        %v1541 = vunpack.c.h.b16 %v761
        %v1542 = vunpack.c.l.b16 %v762
        %v1543 = vunpack.c.h.b16 %v762
        %v1544 = vunpack.c.l.b16 %v763
        %v1545 = vunpack.c.h.b16 %v763
        %v1546 = vunpack.c.l.b16 %v764
        %v1547 = vunpack.c.h.b16 %v764
        %v1548 = vunpack.c.l.b16 %v765
        %v1549 = vunpack.c.h.b16 %v765
        %v1550 = vunpack.c.l.b16 %v766
        %v1551 = vunpack.c.h.b16 %v766
        %v1552 = vunpack.c.l.b16 %v767
        %v1553 = vunpack.c.h.b16 %v767
        %v1554 = vunpack.c.l.b16 %v768
        %v1555 = vunpack.c.h.b16 %v768
        %v1556 = vunpack.c.l.b16 %v769
        %v1557 = vunpack.c.h.b16 %v769
        %v1558 = vpack.c.b16 %v1054, %v1046
        %v1559 = vpack.c.b16 %v1055, %v1047
        %v1560 = vpack.c.b16 %v1056, %v1048
        %v1561 = vpack.c.b16 %v1057, %v1049
        %v1562 = vpack.c.b16 %v1058, %v1050
        %v1563 = vpack.c.b16 %v1059, %v1051
        %v1564 = vpack.c.b16 %v1060, %v1052
        %v1565 = vpack.c.b16 %v1061, %v1053
        %v1566 = vpack.c.b16 %v1070, %v1062
        %v1567 = vpack.c.b16 %v1071, %v1063
        %v1568 = vpack.c.b16 %v1072, %v1064
        %v1569 = vpack.c.b16 %v1073, %v1065
        %v1570 = vpack.c.b16 %v1074, %v1066
        %v1571 = vpack.c.b16 %v1075, %v1067
        %v1572 = vpack.c.b16 %v1076, %v1068
        %v1573 = vpack.c.b16 %v1077, %v1069
        %v1574 = vpack.c.b16 %v1086, %v1078
        %v1575 = vpack.c.b16 %v1087, %v1079
        %v1576 = vpack.c.b16 %v1088, %v1080
        %v1577 = vpack.c.b16 %v1089, %v1081
        %v1578 = vpack.c.b16 %v1090, %v1082
        %v1579 = vpack.c.b16 %v1091, %v1083
        %v1580 = vpack.c.b16 %v1092, %v1084
        %v1581 = vpack.c.b16 %v1093, %v1085
        %v1582 = vpack.c.b16 %v1102, %v1094
        %v1583 = vpack.c.b16 %v1103, %v1095
        %v1584 = vpack.c.b16 %v1104, %v1096
        %v1585 = vpack.c.b16 %v1105, %v1097
        %v1586 = vpack.c.b16 %v1106, %v1098
        %v1587 = vpack.c.b16 %v1107, %v1099
        %v1588 = vpack.c.b16 %v1108, %v1100
        %v1589 = vpack.c.b16 %v1109, %v1101
        %v1590 = vpack.c.b16 %v1118, %v1110
        %v1591 = vpack.c.b16 %v1119, %v1111
        %v1592 = vpack.c.b16 %v1120, %v1112
        %v1593 = vpack.c.b16 %v1121, %v1113
        %v1594 = vpack.c.b16 %v1122, %v1114
        %v1595 = vpack.c.b16 %v1123, %v1115
        %v1596 = vpack.c.b16 %v1124, %v1116
        %v1597 = vpack.c.b16 %v1125, %v1117
        %v1598 = vpack.c.b16 %v1134, %v1126
        %v1599 = vpack.c.b16 %v1135, %v1127
        %v1600 = vpack.c.b16 %v1136, %v1128
        %v1601 = vpack.c.b16 %v1137, %v1129
        %v1602 = vpack.c.b16 %v1138, %v1130
        %v1603 = vpack.c.b16 %v1139, %v1131
        %v1604 = vpack.c.b16 %v1140, %v1132
        %v1605 = vpack.c.b16 %v1141, %v1133
        %v1606 = vpack.c.b16 %v1150, %v1142
        %v1607 = vpack.c.b16 %v1151, %v1143
        %v1608 = vpack.c.b16 %v1152, %v1144
        %v1609 = vpack.c.b16 %v1153, %v1145
        %v1610 = vpack.c.b16 %v1154, %v1146
        %v1611 = vpack.c.b16 %v1155, %v1147
        %v1612 = vpack.c.b16 %v1156, %v1148
        %v1613 = vpack.c.b16 %v1157, %v1149
        %v1614 = vpack.c.b16 %v1166, %v1158
        %v1615 = vpack.c.b16 %v1167, %v1159
        %v1616 = vpack.c.b16 %v1168, %v1160
        %v1617 = vpack.c.b16 %v1169, %v1161
        %v1618 = vpack.c.b16 %v1170, %v1162
        %v1619 = vpack.c.b16 %v1171, %v1163
        %v1620 = vpack.c.b16 %v1172, %v1164
        %v1621 = vpack.c.b16 %v1173, %v1165
        %v1622 = vpack.c.b16 %v1182, %v1174
        %v1623 = vpack.c.b16 %v1183, %v1175
        %v1624 = vpack.c.b16 %v1184, %v1176
        %v1625 = vpack.c.b16 %v1185, %v1177
        %v1626 = vpack.c.b16 %v1186, %v1178
        %v1627 = vpack.c.b16 %v1187, %v1179
        %v1628 = vpack.c.b16 %v1188, %v1180
        %v1629 = vpack.c.b16 %v1189, %v1181
        %v1630 = vpack.c.b16 %v1198, %v1190
        %v1631 = vpack.c.b16 %v1199, %v1191
        %v1632 = vpack.c.b16 %v1200, %v1192
        %v1633 = vpack.c.b16 %v1201, %v1193
        %v1634 = vpack.c.b16 %v1202, %v1194
        %v1635 = vpack.c.b16 %v1203, %v1195
        %v1636 = vpack.c.b16 %v1204, %v1196
        %v1637 = vpack.c.b16 %v1205, %v1197
        %v1638 = vpack.c.b16 %v1214, %v1206
        %v1639 = vpack.c.b16 %v1215, %v1207
        %v1640 = vpack.c.b16 %v1216, %v1208
        %v1641 = vpack.c.b16 %v1217, %v1209
        %v1642 = vpack.c.b16 %v1218, %v1210
        %v1643 = vpack.c.b16 %v1219, %v1211
        %v1644 = vpack.c.b16 %v1220, %v1212
        %v1645 = vpack.c.b16 %v1221, %v1213
        %v1646 = vpack.c.b16 %v1230, %v1222
        %v1647 = vpack.c.b16 %v1231, %v1223
        %v1648 = vpack.c.b16 %v1232, %v1224
        %v1649 = vpack.c.b16 %v1233, %v1225
        %v1650 = vpack.c.b16 %v1234, %v1226
        %v1651 = vpack.c.b16 %v1235, %v1227
        %v1652 = vpack.c.b16 %v1236, %v1228
        %v1653 = vpack.c.b16 %v1237, %v1229
        %v1654 = vpack.c.b16 %v1246, %v1238
        %v1655 = vpack.c.b16 %v1247, %v1239
        %v1656 = vpack.c.b16 %v1248, %v1240
        %v1657 = vpack.c.b16 %v1249, %v1241
        %v1658 = vpack.c.b16 %v1250, %v1242
        %v1659 = vpack.c.b16 %v1251, %v1243
        %v1660 = vpack.c.b16 %v1252, %v1244
        %v1661 = vpack.c.b16 %v1253, %v1245
        %v1662 = vpack.c.b16 %v1262, %v1254
        %v1663 = vpack.c.b16 %v1263, %v1255
        %v1664 = vpack.c.b16 %v1264, %v1256
        %v1665 = vpack.c.b16 %v1265, %v1257
        %v1666 = vpack.c.b16 %v1266, %v1258
        %v1667 = vpack.c.b16 %v1267, %v1259
        %v1668 = vpack.c.b16 %v1268, %v1260
        %v1669 = vpack.c.b16 %v1269, %v1261
        %v1670 = vpack.c.b16 %v1278, %v1270
        %v1671 = vpack.c.b16 %v1279, %v1271
        %v1672 = vpack.c.b16 %v1280, %v1272
        %v1673 = vpack.c.b16 %v1281, %v1273
        %v1674 = vpack.c.b16 %v1282, %v1274
        %v1675 = vpack.c.b16 %v1283, %v1275
        %v1676 = vpack.c.b16 %v1284, %v1276
        %v1677 = vpack.c.b16 %v1285, %v1277
        %v1678 = vpack.c.b16 %v1294, %v1286
        %v1679 = vpack.c.b16 %v1295, %v1287
        %v1680 = vpack.c.b16 %v1296, %v1288
        %v1681 = vpack.c.b16 %v1297, %v1289
        %v1682 = vpack.c.b16 %v1298, %v1290
        %v1683 = vpack.c.b16 %v1299, %v1291
        %v1684 = vpack.c.b16 %v1300, %v1292
        %v1685 = vpack.c.b16 %v1301, %v1293
        %v1686 = vpack.c.b16 %v1310, %v1302
        %v1687 = vpack.c.b16 %v1311, %v1303
        %v1688 = vpack.c.b16 %v1312, %v1304
        %v1689 = vpack.c.b16 %v1313, %v1305
        %v1690 = vpack.c.b16 %v1314, %v1306
        %v1691 = vpack.c.b16 %v1315, %v1307
        %v1692 = vpack.c.b16 %v1316, %v1308
        %v1693 = vpack.c.b16 %v1317, %v1309
        %v1694 = vpack.c.b16 %v1326, %v1318
        %v1695 = vpack.c.b16 %v1327, %v1319
        %v1696 = vpack.c.b16 %v1328, %v1320
        %v1697 = vpack.c.b16 %v1329, %v1321
        %v1698 = vpack.c.b16 %v1330, %v1322
        %v1699 = vpack.c.b16 %v1331, %v1323
        %v1700 = vpack.c.b16 %v1332, %v1324
        %v1701 = vpack.c.b16 %v1333, %v1325
        %v1702 = vpack.c.b16 %v1342, %v1334
        %v1703 = vpack.c.b16 %v1343, %v1335
        %v1704 = vpack.c.b16 %v1344, %v1336
        %v1705 = vpack.c.b16 %v1345, %v1337
        %v1706 = vpack.c.b16 %v1346, %v1338
        %v1707 = vpack.c.b16 %v1347, %v1339
        %v1708 = vpack.c.b16 %v1348, %v1340
        %v1709 = vpack.c.b16 %v1349, %v1341
        %v1710 = vpack.c.b16 %v1358, %v1350
        %v1711 = vpack.c.b16 %v1359, %v1351
        %v1712 = vpack.c.b16 %v1360, %v1352
        %v1713 = vpack.c.b16 %v1361, %v1353
        %v1714 = vpack.c.b16 %v1362, %v1354
        %v1715 = vpack.c.b16 %v1363, %v1355
        %v1716 = vpack.c.b16 %v1364, %v1356
        %v1717 = vpack.c.b16 %v1365, %v1357
        %v1718 = vpack.c.b16 %v1374, %v1366
        %v1719 = vpack.c.b16 %v1375, %v1367
        %v1720 = vpack.c.b16 %v1376, %v1368
        %v1721 = vpack.c.b16 %v1377, %v1369
        %v1722 = vpack.c.b16 %v1378, %v1370
        %v1723 = vpack.c.b16 %v1379, %v1371
        %v1724 = vpack.c.b16 %v1380, %v1372
        %v1725 = vpack.c.b16 %v1381, %v1373
        %v1726 = vpack.c.b16 %v1390, %v1382
        %v1727 = vpack.c.b16 %v1391, %v1383
        %v1728 = vpack.c.b16 %v1392, %v1384
        %v1729 = vpack.c.b16 %v1393, %v1385
        %v1730 = vpack.c.b16 %v1394, %v1386
        %v1731 = vpack.c.b16 %v1395, %v1387
        %v1732 = vpack.c.b16 %v1396, %v1388
        %v1733 = vpack.c.b16 %v1397, %v1389
        %v1734 = vpack.c.b16 %v1406, %v1398
        %v1735 = vpack.c.b16 %v1407, %v1399
        %v1736 = vpack.c.b16 %v1408, %v1400
        %v1737 = vpack.c.b16 %v1409, %v1401
        %v1738 = vpack.c.b16 %v1410, %v1402
        %v1739 = vpack.c.b16 %v1411, %v1403
        %v1740 = vpack.c.b16 %v1412, %v1404
        %v1741 = vpack.c.b16 %v1413, %v1405
        %v1742 = vpack.c.b16 %v1422, %v1414
        %v1743 = vpack.c.b16 %v1423, %v1415
        %v1744 = vpack.c.b16 %v1424, %v1416
        %v1745 = vpack.c.b16 %v1425, %v1417
        %v1746 = vpack.c.b16 %v1426, %v1418
        %v1747 = vpack.c.b16 %v1427, %v1419
        %v1748 = vpack.c.b16 %v1428, %v1420
        %v1749 = vpack.c.b16 %v1429, %v1421
        %v1750 = vpack.c.b16 %v1438, %v1430
        %v1751 = vpack.c.b16 %v1439, %v1431
        %v1752 = vpack.c.b16 %v1440, %v1432
        %v1753 = vpack.c.b16 %v1441, %v1433
        %v1754 = vpack.c.b16 %v1442, %v1434
        %v1755 = vpack.c.b16 %v1443, %v1435
        %v1756 = vpack.c.b16 %v1444, %v1436
        %v1757 = vpack.c.b16 %v1445, %v1437
        %v1758 = vpack.c.b16 %v1454, %v1446
        %v1759 = vpack.c.b16 %v1455, %v1447
        %v1760 = vpack.c.b16 %v1456, %v1448
        %v1761 = vpack.c.b16 %v1457, %v1449
        %v1762 = vpack.c.b16 %v1458, %v1450
        %v1763 = vpack.c.b16 %v1459, %v1451
        %v1764 = vpack.c.b16 %v1460, %v1452
        %v1765 = vpack.c.b16 %v1461, %v1453
        %v1766 = vpack.c.b16 %v1470, %v1462
        %v1767 = vpack.c.b16 %v1471, %v1463
        %v1768 = vpack.c.b16 %v1472, %v1464
        %v1769 = vpack.c.b16 %v1473, %v1465
        %v1770 = vpack.c.b16 %v1474, %v1466
        %v1771 = vpack.c.b16 %v1475, %v1467
        %v1772 = vpack.c.b16 %v1476, %v1468
        %v1773 = vpack.c.b16 %v1477, %v1469
        %v1774 = vpack.c.b16 %v1486, %v1478
        %v1775 = vpack.c.b16 %v1487, %v1479
        %v1776 = vpack.c.b16 %v1488, %v1480
        %v1777 = vpack.c.b16 %v1489, %v1481
        %v1778 = vpack.c.b16 %v1490, %v1482
        %v1779 = vpack.c.b16 %v1491, %v1483
        %v1780 = vpack.c.b16 %v1492, %v1484
        %v1781 = vpack.c.b16 %v1493, %v1485
        %v1782 = vpack.c.b16 %v1502, %v1494
        %v1783 = vpack.c.b16 %v1503, %v1495
        %v1784 = vpack.c.b16 %v1504, %v1496
        %v1785 = vpack.c.b16 %v1505, %v1497
        %v1786 = vpack.c.b16 %v1506, %v1498
        %v1787 = vpack.c.b16 %v1507, %v1499
        %v1788 = vpack.c.b16 %v1508, %v1500
        %v1789 = vpack.c.b16 %v1509, %v1501
        %v1790 = vpack.c.b16 %v1518, %v1510
        %v1791 = vpack.c.b16 %v1519, %v1511
        %v1792 = vpack.c.b16 %v1520, %v1512
        %v1793 = vpack.c.b16 %v1521, %v1513
        %v1794 = vpack.c.b16 %v1522, %v1514
        %v1795 = vpack.c.b16 %v1523, %v1515
        %v1796 = vpack.c.b16 %v1524, %v1516
        %v1797 = vpack.c.b16 %v1525, %v1517
        %v1798 = vpack.c.b16 %v1534, %v1526
        %v1799 = vpack.c.b16 %v1535, %v1527
        %v1800 = vpack.c.b16 %v1536, %v1528
        %v1801 = vpack.c.b16 %v1537, %v1529
        %v1802 = vpack.c.b16 %v1538, %v1530
        %v1803 = vpack.c.b16 %v1539, %v1531
        %v1804 = vpack.c.b16 %v1540, %v1532
        %v1805 = vpack.c.b16 %v1541, %v1533
        %v1806 = vpack.c.b16 %v1550, %v1542
        %v1807 = vpack.c.b16 %v1551, %v1543
        %v1808 = vpack.c.b16 %v1552, %v1544
        %v1809 = vpack.c.b16 %v1553, %v1545
        %v1810 = vpack.c.b16 %v1554, %v1546
        %v1811 = vpack.c.b16 %v1555, %v1547
        %v1812 = vpack.c.b16 %v1556, %v1548
        %v1813 = vpack.c.b16 %v1557, %v1549
        %2070 = vmatprep.subr.bf16.mxu0 %v1615
        %2071 = vmatpush1.bf16.msra.mxu0 %v1614
        %2072 = vmatprep.subr.bf16.mxu0 %v1607
        %2073 = vmatpush1.bf16.msra.mxu0 %v1606
        %2074 = vmatprep.subr.bf16.mxu0 %v1599
        %2075 = vmatpush1.bf16.msra.mxu0 %v1598
        %2076 = vmatprep.subr.bf16.mxu0 %v1591
        %2077 = vmatpush1.bf16.msra.mxu0 %v1590
        %2078 = vmatprep.subr.bf16.mxu0 %v1583
        %2079 = vmatpush1.bf16.msra.mxu0 %v1582
        %2080 = vmatprep.subr.bf16.mxu0 %v1575
        %2081 = vmatpush1.bf16.msra.mxu0 %v1574
        %2082 = vmatprep.subr.bf16.mxu0 %v1567
        %2083 = vmatpush1.bf16.msra.mxu0 %v1566
        %2084 = vmatprep.subr.bf16.mxu0 %v1559
        %2085 = vmatpush1.bf16.msra.mxu0 %v1558
        %2086 = vmatprep.subr.bf16.mxu0 %v1679
        %2087 = vmatpush2.bf16.msra.mxu0 %v1678
        %2088 = vmatprep.subr.bf16.mxu0 %v1671
        %2089 = vmatpush2.bf16.msra.mxu0 %v1670
        %2090 = vmatprep.subr.bf16.mxu0 %v1663
        %2091 = vmatpush2.bf16.msra.mxu0 %v1662
        %2092 = vmatprep.subr.bf16.mxu0 %v1655
        %2093 = vmatpush2.bf16.msra.mxu0 %v1654
        %2094 = vmatprep.subr.bf16.mxu0 %v1647
        %2095 = vmatpush2.bf16.msra.mxu0 %v1646
        %2096 = vmatprep.subr.bf16.mxu0 %v1639
        %2097 = vmatpush2.bf16.msra.mxu0 %v1638
        %2098 = vmatprep.subr.bf16.mxu0 %v1631
        %2099 = vmatpush2.bf16.msra.mxu0 %v1630
        %2100 = vmatprep.subr.bf16.mxu0 %v1623
        %2101 = vmatpush2.bf16.msra.mxu0 %v1622
        %2102 = vmatprep.mubr.bf16.mxu0 %v783
        %2103 = vmatmul.mubr.bf16.gmra.mxu0 %v782
        %v2104 = vpop.f32.mrf.mxu0
        %v2105 = vadd.f32 0.0, %v2104
        %v2106 = vpop.f32.mrf.mxu0
        %v2107 = vadd.f32 0.0, %v2106
        %v2108 = vpop.f32.mrf.mxu0
        %v2109 = vadd.f32 0.0, %v2108
        %v2110 = vpop.f32.mrf.mxu0
        %v2111 = vadd.f32 0.0, %v2110
        %2112 = vdwg.mxu0
        %2113 = vmatprep.subr.bf16.mxu0 %v1743
        %2114 = vmatpush1.bf16.msra.mxu0 %v1742
        %2115 = vmatprep.subr.bf16.mxu0 %v1735
        %2116 = vmatpush1.bf16.msra.mxu0 %v1734
        %2117 = vmatprep.subr.bf16.mxu0 %v1727
        %2118 = vmatpush1.bf16.msra.mxu0 %v1726
        %2119 = vmatprep.subr.bf16.mxu0 %v1719
        %2120 = vmatpush1.bf16.msra.mxu0 %v1718
        %2121 = vmatprep.subr.bf16.mxu0 %v1711
        %2122 = vmatpush1.bf16.msra.mxu0 %v1710
        %2123 = vmatprep.subr.bf16.mxu0 %v1703
        %2124 = vmatpush1.bf16.msra.mxu0 %v1702
        %2125 = vmatprep.subr.bf16.mxu0 %v1695
        %2126 = vmatpush1.bf16.msra.mxu0 %v1694
        %2127 = vmatprep.subr.bf16.mxu0 %v1687
        %2128 = vmatpush1.bf16.msra.mxu0 %v1686
        %2129 = vmatprep.subr.bf16.mxu0 %v1807
        %2130 = vmatpush2.bf16.msra.mxu0 %v1806
        %2131 = vmatprep.subr.bf16.mxu0 %v1799
        %2132 = vmatpush2.bf16.msra.mxu0 %v1798
        %2133 = vmatprep.subr.bf16.mxu0 %v1791
        %2134 = vmatpush2.bf16.msra.mxu0 %v1790
        %2135 = vmatprep.subr.bf16.mxu0 %v1783
        %2136 = vmatpush2.bf16.msra.mxu0 %v1782
        %2137 = vmatprep.subr.bf16.mxu0 %v1775
        %2138 = vmatpush2.bf16.msra.mxu0 %v1774
        %2139 = vmatprep.subr.bf16.mxu0 %v1767
        %2140 = vmatpush2.bf16.msra.mxu0 %v1766
        %2141 = vmatprep.subr.bf16.mxu0 %v1759
        %2142 = vmatpush2.bf16.msra.mxu0 %v1758
        %2143 = vmatprep.subr.bf16.mxu0 %v1751
        %2144 = vmatpush2.bf16.msra.mxu0 %v1750
        %2145 = vmatprep.mubr.bf16.mxu0 %v785
        %2146 = vmatmul.mubr.bf16.gmra.mxu0 %v784
        %v2147 = vpop.f32.mrf.mxu0
        %v2148 = vadd.f32 %v2105, %v2147
        %v2149 = vpop.f32.mrf.mxu0
        %v2150 = vadd.f32 %v2107, %v2149
        %v2151 = vpop.f32.mrf.mxu0
        %v2152 = vadd.f32 %v2109, %v2151
        %v2153 = vpop.f32.mrf.mxu0
        %v2154 = vadd.f32 %v2111, %v2153
        %2155 = vdwg.mxu0
        %2156 = vmatprep.subr.bf16.mxu0 %v1617
        %2157 = vmatpush1.bf16.msra.mxu0 %v1616
        %2158 = vmatprep.subr.bf16.mxu0 %v1609
        %2159 = vmatpush1.bf16.msra.mxu0 %v1608
        %2160 = vmatprep.subr.bf16.mxu0 %v1601
        %2161 = vmatpush1.bf16.msra.mxu0 %v1600
        %2162 = vmatprep.subr.bf16.mxu0 %v1593
        %2163 = vmatpush1.bf16.msra.mxu0 %v1592
        %2164 = vmatprep.subr.bf16.mxu0 %v1585
        %2165 = vmatpush1.bf16.msra.mxu0 %v1584
        %2166 = vmatprep.subr.bf16.mxu0 %v1577
        %2167 = vmatpush1.bf16.msra.mxu0 %v1576
        %2168 = vmatprep.subr.bf16.mxu0 %v1569
        %2169 = vmatpush1.bf16.msra.mxu0 %v1568
        %2170 = vmatprep.subr.bf16.mxu0 %v1561
        %2171 = vmatpush1.bf16.msra.mxu0 %v1560
        %2172 = vmatprep.subr.bf16.mxu0 %v1681
        %2173 = vmatpush2.bf16.msra.mxu0 %v1680
        %2174 = vmatprep.subr.bf16.mxu0 %v1673
        %2175 = vmatpush2.bf16.msra.mxu0 %v1672
        %2176 = vmatprep.subr.bf16.mxu0 %v1665
        %2177 = vmatpush2.bf16.msra.mxu0 %v1664
        %2178 = vmatprep.subr.bf16.mxu0 %v1657
        %2179 = vmatpush2.bf16.msra.mxu0 %v1656
        %2180 = vmatprep.subr.bf16.mxu0 %v1649
        %2181 = vmatpush2.bf16.msra.mxu0 %v1648
        %2182 = vmatprep.subr.bf16.mxu0 %v1641
        %2183 = vmatpush2.bf16.msra.mxu0 %v1640
        %2184 = vmatprep.subr.bf16.mxu0 %v1633
        %2185 = vmatpush2.bf16.msra.mxu0 %v1632
        %2186 = vmatprep.subr.bf16.mxu0 %v1625
        %2187 = vmatpush2.bf16.msra.mxu0 %v1624
        %2188 = vmatprep.mubr.bf16.mxu0 %v783
        %2189 = vmatmul.mubr.bf16.gmra.mxu0 %v782
        %v2190 = vpop.f32.mrf.mxu0
        %v2191 = vadd.f32 0.0, %v2190
        %v2192 = vpop.f32.mrf.mxu0
        %v2193 = vadd.f32 0.0, %v2192
        %v2194 = vpop.f32.mrf.mxu0
        %v2195 = vadd.f32 0.0, %v2194
        %v2196 = vpop.f32.mrf.mxu0
        %v2197 = vadd.f32 0.0, %v2196
        %2198 = vdwg.mxu0
        %2199 = vmatprep.subr.bf16.mxu0 %v1745
        %2200 = vmatpush1.bf16.msra.mxu0 %v1744
        %2201 = vmatprep.subr.bf16.mxu0 %v1737
        %2202 = vmatpush1.bf16.msra.mxu0 %v1736
        %2203 = vmatprep.subr.bf16.mxu0 %v1729
        %2204 = vmatpush1.bf16.msra.mxu0 %v1728
        %2205 = vmatprep.subr.bf16.mxu0 %v1721
        %2206 = vmatpush1.bf16.msra.mxu0 %v1720
        %2207 = vmatprep.subr.bf16.mxu0 %v1713
        %2208 = vmatpush1.bf16.msra.mxu0 %v1712
        %2209 = vmatprep.subr.bf16.mxu0 %v1705
        %2210 = vmatpush1.bf16.msra.mxu0 %v1704
        %2211 = vmatprep.subr.bf16.mxu0 %v1697
        %2212 = vmatpush1.bf16.msra.mxu0 %v1696
        %2213 = vmatprep.subr.bf16.mxu0 %v1689
        %2214 = vmatpush1.bf16.msra.mxu0 %v1688
        %2215 = vmatprep.subr.bf16.mxu0 %v1809
        %2216 = vmatpush2.bf16.msra.mxu0 %v1808
        %2217 = vmatprep.subr.bf16.mxu0 %v1801
        %2218 = vmatpush2.bf16.msra.mxu0 %v1800
        %2219 = vmatprep.subr.bf16.mxu0 %v1793
        %2220 = vmatpush2.bf16.msra.mxu0 %v1792
        %2221 = vmatprep.subr.bf16.mxu0 %v1785
        %2222 = vmatpush2.bf16.msra.mxu0 %v1784
        %2223 = vmatprep.subr.bf16.mxu0 %v1777
        %2224 = vmatpush2.bf16.msra.mxu0 %v1776
        %2225 = vmatprep.subr.bf16.mxu0 %v1769
        %2226 = vmatpush2.bf16.msra.mxu0 %v1768
        %2227 = vmatprep.subr.bf16.mxu0 %v1761
        %2228 = vmatpush2.bf16.msra.mxu0 %v1760
        %2229 = vmatprep.subr.bf16.mxu0 %v1753
        %2230 = vmatpush2.bf16.msra.mxu0 %v1752
        %2231 = vmatprep.mubr.bf16.mxu0 %v785
        %2232 = vmatmul.mubr.bf16.gmra.mxu0 %v784
        %v2233 = vpop.f32.mrf.mxu0
        %v2234 = vadd.f32 %v2191, %v2233
        %v2235 = vpop.f32.mrf.mxu0
        %v2236 = vadd.f32 %v2193, %v2235
        %v2237 = vpop.f32.mrf.mxu0
        %v2238 = vadd.f32 %v2195, %v2237
        %v2239 = vpop.f32.mrf.mxu0
        %v2240 = vadd.f32 %v2197, %v2239
        %2241 = vdwg.mxu0
        %2242 = vmatprep.subr.bf16.mxu0 %v1619
        %2243 = vmatpush1.bf16.msra.mxu0 %v1618
        %2244 = vmatprep.subr.bf16.mxu0 %v1611
        %2245 = vmatpush1.bf16.msra.mxu0 %v1610
        %2246 = vmatprep.subr.bf16.mxu0 %v1603
        %2247 = vmatpush1.bf16.msra.mxu0 %v1602
        %2248 = vmatprep.subr.bf16.mxu0 %v1595
        %2249 = vmatpush1.bf16.msra.mxu0 %v1594
        %2250 = vmatprep.subr.bf16.mxu0 %v1587
        %2251 = vmatpush1.bf16.msra.mxu0 %v1586
        %2252 = vmatprep.subr.bf16.mxu0 %v1579
        %2253 = vmatpush1.bf16.msra.mxu0 %v1578
        %2254 = vmatprep.subr.bf16.mxu0 %v1571
        %2255 = vmatpush1.bf16.msra.mxu0 %v1570
        %2256 = vmatprep.subr.bf16.mxu0 %v1563
        %2257 = vmatpush1.bf16.msra.mxu0 %v1562
        %2258 = vmatprep.subr.bf16.mxu0 %v1683
        %2259 = vmatpush2.bf16.msra.mxu0 %v1682
        %2260 = vmatprep.subr.bf16.mxu0 %v1675
        %2261 = vmatpush2.bf16.msra.mxu0 %v1674
        %2262 = vmatprep.subr.bf16.mxu0 %v1667
        %2263 = vmatpush2.bf16.msra.mxu0 %v1666
        %2264 = vmatprep.subr.bf16.mxu0 %v1659
        %2265 = vmatpush2.bf16.msra.mxu0 %v1658
        %2266 = vmatprep.subr.bf16.mxu0 %v1651
        %2267 = vmatpush2.bf16.msra.mxu0 %v1650
        %2268 = vmatprep.subr.bf16.mxu0 %v1643
        %2269 = vmatpush2.bf16.msra.mxu0 %v1642
        %2270 = vmatprep.subr.bf16.mxu0 %v1635
        %2271 = vmatpush2.bf16.msra.mxu0 %v1634
        %2272 = vmatprep.subr.bf16.mxu0 %v1627
        %2273 = vmatpush2.bf16.msra.mxu0 %v1626
        %2274 = vmatprep.mubr.bf16.mxu0 %v783
        %2275 = vmatmul.mubr.bf16.gmra.mxu0 %v782
        %v2276 = vpop.f32.mrf.mxu0
        %v2277 = vadd.f32 0.0, %v2276
        %v2278 = vpop.f32.mrf.mxu0
        %v2279 = vadd.f32 0.0, %v2278
        %v2280 = vpop.f32.mrf.mxu0
        %v2281 = vadd.f32 0.0, %v2280
        %v2282 = vpop.f32.mrf.mxu0
        %v2283 = vadd.f32 0.0, %v2282
        %2284 = vdwg.mxu0
        %2285 = vmatprep.subr.bf16.mxu0 %v1747
        %2286 = vmatpush1.bf16.msra.mxu0 %v1746
        %2287 = vmatprep.subr.bf16.mxu0 %v1739
        %2288 = vmatpush1.bf16.msra.mxu0 %v1738
        %2289 = vmatprep.subr.bf16.mxu0 %v1731
        %2290 = vmatpush1.bf16.msra.mxu0 %v1730
        %2291 = vmatprep.subr.bf16.mxu0 %v1723
        %2292 = vmatpush1.bf16.msra.mxu0 %v1722
        %2293 = vmatprep.subr.bf16.mxu0 %v1715
        %2294 = vmatpush1.bf16.msra.mxu0 %v1714
        %2295 = vmatprep.subr.bf16.mxu0 %v1707
        %2296 = vmatpush1.bf16.msra.mxu0 %v1706
        %2297 = vmatprep.subr.bf16.mxu0 %v1699
        %2298 = vmatpush1.bf16.msra.mxu0 %v1698
        %2299 = vmatprep.subr.bf16.mxu0 %v1691
        %2300 = vmatpush1.bf16.msra.mxu0 %v1690
        %2301 = vmatprep.subr.bf16.mxu0 %v1811
        %2302 = vmatpush2.bf16.msra.mxu0 %v1810
        %2303 = vmatprep.subr.bf16.mxu0 %v1803
        %2304 = vmatpush2.bf16.msra.mxu0 %v1802
        %2305 = vmatprep.subr.bf16.mxu0 %v1795
        %2306 = vmatpush2.bf16.msra.mxu0 %v1794
        %2307 = vmatprep.subr.bf16.mxu0 %v1787
        %2308 = vmatpush2.bf16.msra.mxu0 %v1786
        %2309 = vmatprep.subr.bf16.mxu0 %v1779
        %2310 = vmatpush2.bf16.msra.mxu0 %v1778
        %2311 = vmatprep.subr.bf16.mxu0 %v1771
        %2312 = vmatpush2.bf16.msra.mxu0 %v1770
        %2313 = vmatprep.subr.bf16.mxu0 %v1763
        %2314 = vmatpush2.bf16.msra.mxu0 %v1762
        %2315 = vmatprep.subr.bf16.mxu0 %v1755
        %2316 = vmatpush2.bf16.msra.mxu0 %v1754
        %2317 = vmatprep.mubr.bf16.mxu0 %v785
        %2318 = vmatmul.mubr.bf16.gmra.mxu0 %v784
        %v2319 = vpop.f32.mrf.mxu0
        %v2320 = vadd.f32 %v2277, %v2319
        %v2321 = vpop.f32.mrf.mxu0
        %v2322 = vadd.f32 %v2279, %v2321
        %v2323 = vpop.f32.mrf.mxu0
        %v2324 = vadd.f32 %v2281, %v2323
        %v2325 = vpop.f32.mrf.mxu0
        %v2326 = vadd.f32 %v2283, %v2325
        %2327 = vdwg.mxu0
        %2328 = vmatprep.subr.bf16.mxu0 %v1621
        %2329 = vmatpush1.bf16.msra.mxu0 %v1620
        %2330 = vmatprep.subr.bf16.mxu0 %v1613
        %2331 = vmatpush1.bf16.msra.mxu0 %v1612
        %2332 = vmatprep.subr.bf16.mxu0 %v1605
        %2333 = vmatpush1.bf16.msra.mxu0 %v1604
        %2334 = vmatprep.subr.bf16.mxu0 %v1597
        %2335 = vmatpush1.bf16.msra.mxu0 %v1596
        %2336 = vmatprep.subr.bf16.mxu0 %v1589
        %2337 = vmatpush1.bf16.msra.mxu0 %v1588
        %2338 = vmatprep.subr.bf16.mxu0 %v1581
        %2339 = vmatpush1.bf16.msra.mxu0 %v1580
        %2340 = vmatprep.subr.bf16.mxu0 %v1573
        %2341 = vmatpush1.bf16.msra.mxu0 %v1572
        %2342 = vmatprep.subr.bf16.mxu0 %v1565
        %2343 = vmatpush1.bf16.msra.mxu0 %v1564
        %2344 = vmatprep.subr.bf16.mxu0 %v1685
        %2345 = vmatpush2.bf16.msra.mxu0 %v1684
        %2346 = vmatprep.subr.bf16.mxu0 %v1677
        %2347 = vmatpush2.bf16.msra.mxu0 %v1676
        %2348 = vmatprep.subr.bf16.mxu0 %v1669
        %2349 = vmatpush2.bf16.msra.mxu0 %v1668
        %2350 = vmatprep.subr.bf16.mxu0 %v1661
        %2351 = vmatpush2.bf16.msra.mxu0 %v1660
        %2352 = vmatprep.subr.bf16.mxu0 %v1653
        %2353 = vmatpush2.bf16.msra.mxu0 %v1652
        %2354 = vmatprep.subr.bf16.mxu0 %v1645
        %2355 = vmatpush2.bf16.msra.mxu0 %v1644
        %2356 = vmatprep.subr.bf16.mxu0 %v1637
        %2357 = vmatpush2.bf16.msra.mxu0 %v1636
        %2358 = vmatprep.subr.bf16.mxu0 %v1629
        %2359 = vmatpush2.bf16.msra.mxu0 %v1628
        %2360 = vmatprep.mubr.bf16.mxu0 %v783
        %2361 = vmatmul.mubr.bf16.gmra.mxu0 %v782
        %v2362 = vpop.f32.mrf.mxu0
        %v2363 = vadd.f32 0.0, %v2362
        %v2364 = vpop.f32.mrf.mxu0
        %v2365 = vadd.f32 0.0, %v2364
        %v2366 = vpop.f32.mrf.mxu0
        %v2367 = vadd.f32 0.0, %v2366
        %v2368 = vpop.f32.mrf.mxu0
        %v2369 = vadd.f32 0.0, %v2368
        %2370 = vdwg.mxu0
        %2371 = vmatprep.subr.bf16.mxu0 %v1749
        %2372 = vmatpush1.bf16.msra.mxu0 %v1748
        %2373 = vmatprep.subr.bf16.mxu0 %v1741
        %2374 = vmatpush1.bf16.msra.mxu0 %v1740
        %2375 = vmatprep.subr.bf16.mxu0 %v1733
        %2376 = vmatpush1.bf16.msra.mxu0 %v1732
        %2377 = vmatprep.subr.bf16.mxu0 %v1725
        %2378 = vmatpush1.bf16.msra.mxu0 %v1724
        %2379 = vmatprep.subr.bf16.mxu0 %v1717
        %2380 = vmatpush1.bf16.msra.mxu0 %v1716
        %2381 = vmatprep.subr.bf16.mxu0 %v1709
        %2382 = vmatpush1.bf16.msra.mxu0 %v1708
        %2383 = vmatprep.subr.bf16.mxu0 %v1701
        %2384 = vmatpush1.bf16.msra.mxu0 %v1700
        %2385 = vmatprep.subr.bf16.mxu0 %v1693
        %2386 = vmatpush1.bf16.msra.mxu0 %v1692
        %2387 = vmatprep.subr.bf16.mxu0 %v1813
        %2388 = vmatpush2.bf16.msra.mxu0 %v1812
        %2389 = vmatprep.subr.bf16.mxu0 %v1805
        %2390 = vmatpush2.bf16.msra.mxu0 %v1804
        %2391 = vmatprep.subr.bf16.mxu0 %v1797
        %2392 = vmatpush2.bf16.msra.mxu0 %v1796
        %2393 = vmatprep.subr.bf16.mxu0 %v1789
        %2394 = vmatpush2.bf16.msra.mxu0 %v1788
        %2395 = vmatprep.subr.bf16.mxu0 %v1781
        %2396 = vmatpush2.bf16.msra.mxu0 %v1780
        %2397 = vmatprep.subr.bf16.mxu0 %v1773
        %2398 = vmatpush2.bf16.msra.mxu0 %v1772
        %2399 = vmatprep.subr.bf16.mxu0 %v1765
        %2400 = vmatpush2.bf16.msra.mxu0 %v1764
        %2401 = vmatprep.subr.bf16.mxu0 %v1757
        %2402 = vmatpush2.bf16.msra.mxu0 %v1756
        %2403 = vmatprep.mubr.bf16.mxu0 %v785
        %2404 = vmatmul.mubr.bf16.gmra.mxu0 %v784
        %v2405 = vpop.f32.mrf.mxu0
        %v2406 = vadd.f32 %v2363, %v2405
        %v2407 = vpop.f32.mrf.mxu0
        %v2408 = vadd.f32 %v2365, %v2407
        %v2409 = vpop.f32.mrf.mxu0
        %v2410 = vadd.f32 %v2367, %v2409
        %v2411 = vpop.f32.mrf.mxu0
        %v2412 = vadd.f32 %v2369, %v2411
        %2413 = vdwg.mxu0
        %v2418 = vunpack.c.l.b16 %v246
        %v2419 = vunpack.c.h.b16 %v246
        %v2420 = vunpack.c.l.b16 %v247
        %v2421 = vunpack.c.h.b16 %v247
        %v2422 = vunpack.c.l.b16 %v248
        %v2423 = vunpack.c.h.b16 %v248
        %v2424 = vunpack.c.l.b16 %v249
        %v2425 = vunpack.c.h.b16 %v249
        %v2426 = vpack.c.b16 %v2422, %v2418
        %v2427 = vpack.c.b16 %v2423, %v2419
        %v2428 = vpack.c.b16 %v2424, %v2420
        %v2429 = vpack.c.b16 %v2425, %v2421
        %v2690 = vunpack.c.l.b16 %v258
        %v2691 = vunpack.c.h.b16 %v258
        %v2692 = vunpack.c.l.b16 %v259
        %v2693 = vunpack.c.h.b16 %v259
        %v2694 = vunpack.c.l.b16 %v260
        %v2695 = vunpack.c.h.b16 %v260
        %v2696 = vunpack.c.l.b16 %v261
        %v2697 = vunpack.c.h.b16 %v261
        %v2698 = vunpack.c.l.b16 %v262
        %v2699 = vunpack.c.h.b16 %v262
        %v2700 = vunpack.c.l.b16 %v263
        %v2701 = vunpack.c.h.b16 %v263
        %v2702 = vunpack.c.l.b16 %v264
        %v2703 = vunpack.c.h.b16 %v264
        %v2704 = vunpack.c.l.b16 %v265
        %v2705 = vunpack.c.h.b16 %v265
        %v2706 = vunpack.c.l.b16 %v266
        %v2707 = vunpack.c.h.b16 %v266
        %v2708 = vunpack.c.l.b16 %v267
        %v2709 = vunpack.c.h.b16 %v267
        %v2710 = vunpack.c.l.b16 %v268
        %v2711 = vunpack.c.h.b16 %v268
        %v2712 = vunpack.c.l.b16 %v269
        %v2713 = vunpack.c.h.b16 %v269
        %v2714 = vunpack.c.l.b16 %v270
        %v2715 = vunpack.c.h.b16 %v270
        %v2716 = vunpack.c.l.b16 %v271
        %v2717 = vunpack.c.h.b16 %v271
        %v2718 = vunpack.c.l.b16 %v272
        %v2719 = vunpack.c.h.b16 %v272
        %v2720 = vunpack.c.l.b16 %v273
        %v2721 = vunpack.c.h.b16 %v273
        %v2722 = vunpack.c.l.b16 %v274
        %v2723 = vunpack.c.h.b16 %v274
        %v2724 = vunpack.c.l.b16 %v275
        %v2725 = vunpack.c.h.b16 %v275
        %v2726 = vunpack.c.l.b16 %v276
        %v2727 = vunpack.c.h.b16 %v276
        %v2728 = vunpack.c.l.b16 %v277
        %v2729 = vunpack.c.h.b16 %v277
        %v2730 = vunpack.c.l.b16 %v278
        %v2731 = vunpack.c.h.b16 %v278
        %v2732 = vunpack.c.l.b16 %v279
        %v2733 = vunpack.c.h.b16 %v279
        %v2734 = vunpack.c.l.b16 %v280
        %v2735 = vunpack.c.h.b16 %v280
        %v2736 = vunpack.c.l.b16 %v281
        %v2737 = vunpack.c.h.b16 %v281
        %v2738 = vunpack.c.l.b16 %v282
        %v2739 = vunpack.c.h.b16 %v282
        %v2740 = vunpack.c.l.b16 %v283
        %v2741 = vunpack.c.h.b16 %v283
        %v2742 = vunpack.c.l.b16 %v284
        %v2743 = vunpack.c.h.b16 %v284
        %v2744 = vunpack.c.l.b16 %v285
        %v2745 = vunpack.c.h.b16 %v285
        %v2746 = vunpack.c.l.b16 %v286
        %v2747 = vunpack.c.h.b16 %v286
        %v2748 = vunpack.c.l.b16 %v287
        %v2749 = vunpack.c.h.b16 %v287
        %v2750 = vunpack.c.l.b16 %v288
        %v2751 = vunpack.c.h.b16 %v288
        %v2752 = vunpack.c.l.b16 %v289
        %v2753 = vunpack.c.h.b16 %v289
        %v2754 = vunpack.c.l.b16 %v290
        %v2755 = vunpack.c.h.b16 %v290
        %v2756 = vunpack.c.l.b16 %v291
        %v2757 = vunpack.c.h.b16 %v291
        %v2758 = vunpack.c.l.b16 %v292
        %v2759 = vunpack.c.h.b16 %v292
        %v2760 = vunpack.c.l.b16 %v293
        %v2761 = vunpack.c.h.b16 %v293
        %v2762 = vunpack.c.l.b16 %v294
        %v2763 = vunpack.c.h.b16 %v294
        %v2764 = vunpack.c.l.b16 %v295
        %v2765 = vunpack.c.h.b16 %v295
        %v2766 = vunpack.c.l.b16 %v296
        %v2767 = vunpack.c.h.b16 %v296
        %v2768 = vunpack.c.l.b16 %v297
        %v2769 = vunpack.c.h.b16 %v297
        %v2770 = vunpack.c.l.b16 %v298
        %v2771 = vunpack.c.h.b16 %v298
        %v2772 = vunpack.c.l.b16 %v299
        %v2773 = vunpack.c.h.b16 %v299
        %v2774 = vunpack.c.l.b16 %v300
        %v2775 = vunpack.c.h.b16 %v300
        %v2776 = vunpack.c.l.b16 %v301
        %v2777 = vunpack.c.h.b16 %v301
        %v2778 = vunpack.c.l.b16 %v302
        %v2779 = vunpack.c.h.b16 %v302
        %v2780 = vunpack.c.l.b16 %v303
        %v2781 = vunpack.c.h.b16 %v303
        %v2782 = vunpack.c.l.b16 %v304
        %v2783 = vunpack.c.h.b16 %v304
        %v2784 = vunpack.c.l.b16 %v305
        %v2785 = vunpack.c.h.b16 %v305
        %v2786 = vunpack.c.l.b16 %v306
        %v2787 = vunpack.c.h.b16 %v306
        %v2788 = vunpack.c.l.b16 %v307
        %v2789 = vunpack.c.h.b16 %v307
        %v2790 = vunpack.c.l.b16 %v308
        %v2791 = vunpack.c.h.b16 %v308
        %v2792 = vunpack.c.l.b16 %v309
        %v2793 = vunpack.c.h.b16 %v309
        %v2794 = vunpack.c.l.b16 %v310
        %v2795 = vunpack.c.h.b16 %v310
        %v2796 = vunpack.c.l.b16 %v311
        %v2797 = vunpack.c.h.b16 %v311
        %v2798 = vunpack.c.l.b16 %v312
        %v2799 = vunpack.c.h.b16 %v312
        %v2800 = vunpack.c.l.b16 %v313
        %v2801 = vunpack.c.h.b16 %v313
        %v2802 = vunpack.c.l.b16 %v314
        %v2803 = vunpack.c.h.b16 %v314
        %v2804 = vunpack.c.l.b16 %v315
        %v2805 = vunpack.c.h.b16 %v315
        %v2806 = vunpack.c.l.b16 %v316
        %v2807 = vunpack.c.h.b16 %v316
        %v2808 = vunpack.c.l.b16 %v317
        %v2809 = vunpack.c.h.b16 %v317
        %v2810 = vunpack.c.l.b16 %v318
        %v2811 = vunpack.c.h.b16 %v318
        %v2812 = vunpack.c.l.b16 %v319
        %v2813 = vunpack.c.h.b16 %v319
        %v2814 = vunpack.c.l.b16 %v320
        %v2815 = vunpack.c.h.b16 %v320
        %v2816 = vunpack.c.l.b16 %v321
        %v2817 = vunpack.c.h.b16 %v321
        %v2818 = vunpack.c.l.b16 %v322
        %v2819 = vunpack.c.h.b16 %v322
        %v2820 = vunpack.c.l.b16 %v323
        %v2821 = vunpack.c.h.b16 %v323
        %v2822 = vunpack.c.l.b16 %v324
        %v2823 = vunpack.c.h.b16 %v324
        %v2824 = vunpack.c.l.b16 %v325
        %v2825 = vunpack.c.h.b16 %v325
        %v2826 = vunpack.c.l.b16 %v326
        %v2827 = vunpack.c.h.b16 %v326
        %v2828 = vunpack.c.l.b16 %v327
        %v2829 = vunpack.c.h.b16 %v327
        %v2830 = vunpack.c.l.b16 %v328
        %v2831 = vunpack.c.h.b16 %v328
        %v2832 = vunpack.c.l.b16 %v329
        %v2833 = vunpack.c.h.b16 %v329
        %v2834 = vunpack.c.l.b16 %v330
        %v2835 = vunpack.c.h.b16 %v330
        %v2836 = vunpack.c.l.b16 %v331
        %v2837 = vunpack.c.h.b16 %v331
        %v2838 = vunpack.c.l.b16 %v332
        %v2839 = vunpack.c.h.b16 %v332
        %v2840 = vunpack.c.l.b16 %v333
        %v2841 = vunpack.c.h.b16 %v333
        %v2842 = vunpack.c.l.b16 %v334
        %v2843 = vunpack.c.h.b16 %v334
        %v2844 = vunpack.c.l.b16 %v335
        %v2845 = vunpack.c.h.b16 %v335
        %v2846 = vunpack.c.l.b16 %v336
        %v2847 = vunpack.c.h.b16 %v336
        %v2848 = vunpack.c.l.b16 %v337
        %v2849 = vunpack.c.h.b16 %v337
        %v2850 = vunpack.c.l.b16 %v338
        %v2851 = vunpack.c.h.b16 %v338
        %v2852 = vunpack.c.l.b16 %v339
        %v2853 = vunpack.c.h.b16 %v339
        %v2854 = vunpack.c.l.b16 %v340
        %v2855 = vunpack.c.h.b16 %v340
        %v2856 = vunpack.c.l.b16 %v341
        %v2857 = vunpack.c.h.b16 %v341
        %v2858 = vunpack.c.l.b16 %v342
        %v2859 = vunpack.c.h.b16 %v342
        %v2860 = vunpack.c.l.b16 %v343
        %v2861 = vunpack.c.h.b16 %v343
        %v2862 = vunpack.c.l.b16 %v344
        %v2863 = vunpack.c.h.b16 %v344
        %v2864 = vunpack.c.l.b16 %v345
        %v2865 = vunpack.c.h.b16 %v345
        %v2866 = vunpack.c.l.b16 %v346
        %v2867 = vunpack.c.h.b16 %v346
        %v2868 = vunpack.c.l.b16 %v347
        %v2869 = vunpack.c.h.b16 %v347
        %v2870 = vunpack.c.l.b16 %v348
        %v2871 = vunpack.c.h.b16 %v348
        %v2872 = vunpack.c.l.b16 %v349
        %v2873 = vunpack.c.h.b16 %v349
        %v2874 = vunpack.c.l.b16 %v350
        %v2875 = vunpack.c.h.b16 %v350
        %v2876 = vunpack.c.l.b16 %v351
        %v2877 = vunpack.c.h.b16 %v351
        %v2878 = vunpack.c.l.b16 %v352
        %v2879 = vunpack.c.h.b16 %v352
        %v2880 = vunpack.c.l.b16 %v353
        %v2881 = vunpack.c.h.b16 %v353
        %v2882 = vunpack.c.l.b16 %v354
        %v2883 = vunpack.c.h.b16 %v354
        %v2884 = vunpack.c.l.b16 %v355
        %v2885 = vunpack.c.h.b16 %v355
        %v2886 = vunpack.c.l.b16 %v356
        %v2887 = vunpack.c.h.b16 %v356
        %v2888 = vunpack.c.l.b16 %v357
        %v2889 = vunpack.c.h.b16 %v357
        %v2890 = vunpack.c.l.b16 %v358
        %v2891 = vunpack.c.h.b16 %v358
        %v2892 = vunpack.c.l.b16 %v359
        %v2893 = vunpack.c.h.b16 %v359
        %v2894 = vunpack.c.l.b16 %v360
        %v2895 = vunpack.c.h.b16 %v360
        %v2896 = vunpack.c.l.b16 %v361
        %v2897 = vunpack.c.h.b16 %v361
        %v2898 = vunpack.c.l.b16 %v362
        %v2899 = vunpack.c.h.b16 %v362
        %v2900 = vunpack.c.l.b16 %v363
        %v2901 = vunpack.c.h.b16 %v363
        %v2902 = vunpack.c.l.b16 %v364
        %v2903 = vunpack.c.h.b16 %v364
        %v2904 = vunpack.c.l.b16 %v365
        %v2905 = vunpack.c.h.b16 %v365
        %v2906 = vunpack.c.l.b16 %v366
        %v2907 = vunpack.c.h.b16 %v366
        %v2908 = vunpack.c.l.b16 %v367
        %v2909 = vunpack.c.h.b16 %v367
        %v2910 = vunpack.c.l.b16 %v368
        %v2911 = vunpack.c.h.b16 %v368
        %v2912 = vunpack.c.l.b16 %v369
        %v2913 = vunpack.c.h.b16 %v369
        %v2914 = vunpack.c.l.b16 %v370
        %v2915 = vunpack.c.h.b16 %v370
        %v2916 = vunpack.c.l.b16 %v371
        %v2917 = vunpack.c.h.b16 %v371
        %v2918 = vunpack.c.l.b16 %v372
        %v2919 = vunpack.c.h.b16 %v372
        %v2920 = vunpack.c.l.b16 %v373
        %v2921 = vunpack.c.h.b16 %v373
        %v2922 = vunpack.c.l.b16 %v374
        %v2923 = vunpack.c.h.b16 %v374
        %v2924 = vunpack.c.l.b16 %v375
        %v2925 = vunpack.c.h.b16 %v375
        %v2926 = vunpack.c.l.b16 %v376
        %v2927 = vunpack.c.h.b16 %v376
        %v2928 = vunpack.c.l.b16 %v377
        %v2929 = vunpack.c.h.b16 %v377
        %v2930 = vunpack.c.l.b16 %v378
        %v2931 = vunpack.c.h.b16 %v378
        %v2932 = vunpack.c.l.b16 %v379
        %v2933 = vunpack.c.h.b16 %v379
        %v2934 = vunpack.c.l.b16 %v380
        %v2935 = vunpack.c.h.b16 %v380
        %v2936 = vunpack.c.l.b16 %v381
        %v2937 = vunpack.c.h.b16 %v381
        %v2938 = vunpack.c.l.b16 %v382
        %v2939 = vunpack.c.h.b16 %v382
        %v2940 = vunpack.c.l.b16 %v383
        %v2941 = vunpack.c.h.b16 %v383
        %v2942 = vunpack.c.l.b16 %v384
        %v2943 = vunpack.c.h.b16 %v384
        %v2944 = vunpack.c.l.b16 %v385
        %v2945 = vunpack.c.h.b16 %v385
        %v2946 = vunpack.c.l.b16 %v386
        %v2947 = vunpack.c.h.b16 %v386
        %v2948 = vunpack.c.l.b16 %v387
        %v2949 = vunpack.c.h.b16 %v387
        %v2950 = vunpack.c.l.b16 %v388
        %v2951 = vunpack.c.h.b16 %v388
        %v2952 = vunpack.c.l.b16 %v389
        %v2953 = vunpack.c.h.b16 %v389
        %v2954 = vunpack.c.l.b16 %v390
        %v2955 = vunpack.c.h.b16 %v390
        %v2956 = vunpack.c.l.b16 %v391
        %v2957 = vunpack.c.h.b16 %v391
        %v2958 = vunpack.c.l.b16 %v392
        %v2959 = vunpack.c.h.b16 %v392
        %v2960 = vunpack.c.l.b16 %v393
        %v2961 = vunpack.c.h.b16 %v393
        %v2962 = vunpack.c.l.b16 %v394
        %v2963 = vunpack.c.h.b16 %v394
        %v2964 = vunpack.c.l.b16 %v395
        %v2965 = vunpack.c.h.b16 %v395
        %v2966 = vunpack.c.l.b16 %v396
        %v2967 = vunpack.c.h.b16 %v396
        %v2968 = vunpack.c.l.b16 %v397
        %v2969 = vunpack.c.h.b16 %v397
        %v2970 = vunpack.c.l.b16 %v398
        %v2971 = vunpack.c.h.b16 %v398
        %v2972 = vunpack.c.l.b16 %v399
        %v2973 = vunpack.c.h.b16 %v399
        %v2974 = vunpack.c.l.b16 %v400
        %v2975 = vunpack.c.h.b16 %v400
        %v2976 = vunpack.c.l.b16 %v401
        %v2977 = vunpack.c.h.b16 %v401
        %v2978 = vunpack.c.l.b16 %v402
        %v2979 = vunpack.c.h.b16 %v402
        %v2980 = vunpack.c.l.b16 %v403
        %v2981 = vunpack.c.h.b16 %v403
        %v2982 = vunpack.c.l.b16 %v404
        %v2983 = vunpack.c.h.b16 %v404
        %v2984 = vunpack.c.l.b16 %v405
        %v2985 = vunpack.c.h.b16 %v405
        %v2986 = vunpack.c.l.b16 %v406
        %v2987 = vunpack.c.h.b16 %v406
        %v2988 = vunpack.c.l.b16 %v407
        %v2989 = vunpack.c.h.b16 %v407
        %v2990 = vunpack.c.l.b16 %v408
        %v2991 = vunpack.c.h.b16 %v408
        %v2992 = vunpack.c.l.b16 %v409
        %v2993 = vunpack.c.h.b16 %v409
        %v2994 = vunpack.c.l.b16 %v410
        %v2995 = vunpack.c.h.b16 %v410
        %v2996 = vunpack.c.l.b16 %v411
        %v2997 = vunpack.c.h.b16 %v411
        %v2998 = vunpack.c.l.b16 %v412
        %v2999 = vunpack.c.h.b16 %v412
        %v3000 = vunpack.c.l.b16 %v413
        %v3001 = vunpack.c.h.b16 %v413
        %v3002 = vunpack.c.l.b16 %v414
        %v3003 = vunpack.c.h.b16 %v414
        %v3004 = vunpack.c.l.b16 %v415
        %v3005 = vunpack.c.h.b16 %v415
        %v3006 = vunpack.c.l.b16 %v416
        %v3007 = vunpack.c.h.b16 %v416
        %v3008 = vunpack.c.l.b16 %v417
        %v3009 = vunpack.c.h.b16 %v417
        %v3010 = vunpack.c.l.b16 %v418
        %v3011 = vunpack.c.h.b16 %v418
        %v3012 = vunpack.c.l.b16 %v419
        %v3013 = vunpack.c.h.b16 %v419
        %v3014 = vunpack.c.l.b16 %v420
        %v3015 = vunpack.c.h.b16 %v420
        %v3016 = vunpack.c.l.b16 %v421
        %v3017 = vunpack.c.h.b16 %v421
        %v3018 = vunpack.c.l.b16 %v422
        %v3019 = vunpack.c.h.b16 %v422
        %v3020 = vunpack.c.l.b16 %v423
        %v3021 = vunpack.c.h.b16 %v423
        %v3022 = vunpack.c.l.b16 %v424
        %v3023 = vunpack.c.h.b16 %v424
        %v3024 = vunpack.c.l.b16 %v425
        %v3025 = vunpack.c.h.b16 %v425
        %v3026 = vunpack.c.l.b16 %v426
        %v3027 = vunpack.c.h.b16 %v426
        %v3028 = vunpack.c.l.b16 %v427
        %v3029 = vunpack.c.h.b16 %v427
        %v3030 = vunpack.c.l.b16 %v428
        %v3031 = vunpack.c.h.b16 %v428
        %v3032 = vunpack.c.l.b16 %v429
        %v3033 = vunpack.c.h.b16 %v429
        %v3034 = vunpack.c.l.b16 %v430
        %v3035 = vunpack.c.h.b16 %v430
        %v3036 = vunpack.c.l.b16 %v431
        %v3037 = vunpack.c.h.b16 %v431
        %v3038 = vunpack.c.l.b16 %v432
        %v3039 = vunpack.c.h.b16 %v432
        %v3040 = vunpack.c.l.b16 %v433
        %v3041 = vunpack.c.h.b16 %v433
        %v3042 = vunpack.c.l.b16 %v434
        %v3043 = vunpack.c.h.b16 %v434
        %v3044 = vunpack.c.l.b16 %v435
        %v3045 = vunpack.c.h.b16 %v435
        %v3046 = vunpack.c.l.b16 %v436
        %v3047 = vunpack.c.h.b16 %v436
        %v3048 = vunpack.c.l.b16 %v437
        %v3049 = vunpack.c.h.b16 %v437
        %v3050 = vunpack.c.l.b16 %v438
        %v3051 = vunpack.c.h.b16 %v438
        %v3052 = vunpack.c.l.b16 %v439
        %v3053 = vunpack.c.h.b16 %v439
        %v3054 = vunpack.c.l.b16 %v440
        %v3055 = vunpack.c.h.b16 %v440
        %v3056 = vunpack.c.l.b16 %v441
        %v3057 = vunpack.c.h.b16 %v441
        %v3058 = vunpack.c.l.b16 %v442
        %v3059 = vunpack.c.h.b16 %v442
        %v3060 = vunpack.c.l.b16 %v443
        %v3061 = vunpack.c.h.b16 %v443
        %v3062 = vunpack.c.l.b16 %v444
        %v3063 = vunpack.c.h.b16 %v444
        %v3064 = vunpack.c.l.b16 %v445
        %v3065 = vunpack.c.h.b16 %v445
        %v3066 = vunpack.c.l.b16 %v446
        %v3067 = vunpack.c.h.b16 %v446
        %v3068 = vunpack.c.l.b16 %v447
        %v3069 = vunpack.c.h.b16 %v447
        %v3070 = vunpack.c.l.b16 %v448
        %v3071 = vunpack.c.h.b16 %v448
        %v3072 = vunpack.c.l.b16 %v449
        %v3073 = vunpack.c.h.b16 %v449
        %v3074 = vunpack.c.l.b16 %v450
        %v3075 = vunpack.c.h.b16 %v450
        %v3076 = vunpack.c.l.b16 %v451
        %v3077 = vunpack.c.h.b16 %v451
        %v3078 = vunpack.c.l.b16 %v452
        %v3079 = vunpack.c.h.b16 %v452
        %v3080 = vunpack.c.l.b16 %v453
        %v3081 = vunpack.c.h.b16 %v453
        %v3082 = vunpack.c.l.b16 %v454
        %v3083 = vunpack.c.h.b16 %v454
        %v3084 = vunpack.c.l.b16 %v455
        %v3085 = vunpack.c.h.b16 %v455
        %v3086 = vunpack.c.l.b16 %v456
        %v3087 = vunpack.c.h.b16 %v456
        %v3088 = vunpack.c.l.b16 %v457
        %v3089 = vunpack.c.h.b16 %v457
        %v3090 = vunpack.c.l.b16 %v458
        %v3091 = vunpack.c.h.b16 %v458
        %v3092 = vunpack.c.l.b16 %v459
        %v3093 = vunpack.c.h.b16 %v459
        %v3094 = vunpack.c.l.b16 %v460
        %v3095 = vunpack.c.h.b16 %v460
        %v3096 = vunpack.c.l.b16 %v461
        %v3097 = vunpack.c.h.b16 %v461
        %v3098 = vunpack.c.l.b16 %v462
        %v3099 = vunpack.c.h.b16 %v462
        %v3100 = vunpack.c.l.b16 %v463
        %v3101 = vunpack.c.h.b16 %v463
        %v3102 = vunpack.c.l.b16 %v464
        %v3103 = vunpack.c.h.b16 %v464
        %v3104 = vunpack.c.l.b16 %v465
        %v3105 = vunpack.c.h.b16 %v465
        %v3106 = vunpack.c.l.b16 %v466
        %v3107 = vunpack.c.h.b16 %v466
        %v3108 = vunpack.c.l.b16 %v467
        %v3109 = vunpack.c.h.b16 %v467
        %v3110 = vunpack.c.l.b16 %v468
        %v3111 = vunpack.c.h.b16 %v468
        %v3112 = vunpack.c.l.b16 %v469
        %v3113 = vunpack.c.h.b16 %v469
        %v3114 = vunpack.c.l.b16 %v470
        %v3115 = vunpack.c.h.b16 %v470
        %v3116 = vunpack.c.l.b16 %v471
        %v3117 = vunpack.c.h.b16 %v471
        %v3118 = vunpack.c.l.b16 %v472
        %v3119 = vunpack.c.h.b16 %v472
        %v3120 = vunpack.c.l.b16 %v473
        %v3121 = vunpack.c.h.b16 %v473
        %v3122 = vunpack.c.l.b16 %v474
        %v3123 = vunpack.c.h.b16 %v474
        %v3124 = vunpack.c.l.b16 %v475
        %v3125 = vunpack.c.h.b16 %v475
        %v3126 = vunpack.c.l.b16 %v476
        %v3127 = vunpack.c.h.b16 %v476
        %v3128 = vunpack.c.l.b16 %v477
        %v3129 = vunpack.c.h.b16 %v477
        %v3130 = vunpack.c.l.b16 %v478
        %v3131 = vunpack.c.h.b16 %v478
        %v3132 = vunpack.c.l.b16 %v479
        %v3133 = vunpack.c.h.b16 %v479
        %v3134 = vunpack.c.l.b16 %v480
        %v3135 = vunpack.c.h.b16 %v480
        %v3136 = vunpack.c.l.b16 %v481
        %v3137 = vunpack.c.h.b16 %v481
        %v3138 = vunpack.c.l.b16 %v482
        %v3139 = vunpack.c.h.b16 %v482
        %v3140 = vunpack.c.l.b16 %v483
        %v3141 = vunpack.c.h.b16 %v483
        %v3142 = vunpack.c.l.b16 %v484
        %v3143 = vunpack.c.h.b16 %v484
        %v3144 = vunpack.c.l.b16 %v485
        %v3145 = vunpack.c.h.b16 %v485
        %v3146 = vunpack.c.l.b16 %v486
        %v3147 = vunpack.c.h.b16 %v486
        %v3148 = vunpack.c.l.b16 %v487
        %v3149 = vunpack.c.h.b16 %v487
        %v3150 = vunpack.c.l.b16 %v488
        %v3151 = vunpack.c.h.b16 %v488
        %v3152 = vunpack.c.l.b16 %v489
        %v3153 = vunpack.c.h.b16 %v489
        %v3154 = vunpack.c.l.b16 %v490
        %v3155 = vunpack.c.h.b16 %v490
        %v3156 = vunpack.c.l.b16 %v491
        %v3157 = vunpack.c.h.b16 %v491
        %v3158 = vunpack.c.l.b16 %v492
        %v3159 = vunpack.c.h.b16 %v492
        %v3160 = vunpack.c.l.b16 %v493
        %v3161 = vunpack.c.h.b16 %v493
        %v3162 = vunpack.c.l.b16 %v494
        %v3163 = vunpack.c.h.b16 %v494
        %v3164 = vunpack.c.l.b16 %v495
        %v3165 = vunpack.c.h.b16 %v495
        %v3166 = vunpack.c.l.b16 %v496
        %v3167 = vunpack.c.h.b16 %v496
        %v3168 = vunpack.c.l.b16 %v497
        %v3169 = vunpack.c.h.b16 %v497
        %v3170 = vunpack.c.l.b16 %v498
        %v3171 = vunpack.c.h.b16 %v498
        %v3172 = vunpack.c.l.b16 %v499
        %v3173 = vunpack.c.h.b16 %v499
        %v3174 = vunpack.c.l.b16 %v500
        %v3175 = vunpack.c.h.b16 %v500
        %v3176 = vunpack.c.l.b16 %v501
        %v3177 = vunpack.c.h.b16 %v501
        %v3178 = vunpack.c.l.b16 %v502
        %v3179 = vunpack.c.h.b16 %v502
        %v3180 = vunpack.c.l.b16 %v503
        %v3181 = vunpack.c.h.b16 %v503
        %v3182 = vunpack.c.l.b16 %v504
        %v3183 = vunpack.c.h.b16 %v504
        %v3184 = vunpack.c.l.b16 %v505
        %v3185 = vunpack.c.h.b16 %v505
        %v3186 = vunpack.c.l.b16 %v506
        %v3187 = vunpack.c.h.b16 %v506
        %v3188 = vunpack.c.l.b16 %v507
        %v3189 = vunpack.c.h.b16 %v507
        %v3190 = vunpack.c.l.b16 %v508
        %v3191 = vunpack.c.h.b16 %v508
        %v3192 = vunpack.c.l.b16 %v509
        %v3193 = vunpack.c.h.b16 %v509
        %v3194 = vunpack.c.l.b16 %v510
        %v3195 = vunpack.c.h.b16 %v510
        %v3196 = vunpack.c.l.b16 %v511
        %v3197 = vunpack.c.h.b16 %v511
        %v3198 = vunpack.c.l.b16 %v512
        %v3199 = vunpack.c.h.b16 %v512
        %v3200 = vunpack.c.l.b16 %v513
        %v3201 = vunpack.c.h.b16 %v513
        %v3202 = vpack.c.b16 %v2698, %v2690
        %v3203 = vpack.c.b16 %v2699, %v2691
        %v3204 = vpack.c.b16 %v2700, %v2692
        %v3205 = vpack.c.b16 %v2701, %v2693
        %v3206 = vpack.c.b16 %v2702, %v2694
        %v3207 = vpack.c.b16 %v2703, %v2695
        %v3208 = vpack.c.b16 %v2704, %v2696
        %v3209 = vpack.c.b16 %v2705, %v2697
        %v3210 = vpack.c.b16 %v2714, %v2706
        %v3211 = vpack.c.b16 %v2715, %v2707
        %v3212 = vpack.c.b16 %v2716, %v2708
        %v3213 = vpack.c.b16 %v2717, %v2709
        %v3214 = vpack.c.b16 %v2718, %v2710
        %v3215 = vpack.c.b16 %v2719, %v2711
        %v3216 = vpack.c.b16 %v2720, %v2712
        %v3217 = vpack.c.b16 %v2721, %v2713
        %v3218 = vpack.c.b16 %v2730, %v2722
        %v3219 = vpack.c.b16 %v2731, %v2723
        %v3220 = vpack.c.b16 %v2732, %v2724
        %v3221 = vpack.c.b16 %v2733, %v2725
        %v3222 = vpack.c.b16 %v2734, %v2726
        %v3223 = vpack.c.b16 %v2735, %v2727
        %v3224 = vpack.c.b16 %v2736, %v2728
        %v3225 = vpack.c.b16 %v2737, %v2729
        %v3226 = vpack.c.b16 %v2746, %v2738
        %v3227 = vpack.c.b16 %v2747, %v2739
        %v3228 = vpack.c.b16 %v2748, %v2740
        %v3229 = vpack.c.b16 %v2749, %v2741
        %v3230 = vpack.c.b16 %v2750, %v2742
        %v3231 = vpack.c.b16 %v2751, %v2743
        %v3232 = vpack.c.b16 %v2752, %v2744
        %v3233 = vpack.c.b16 %v2753, %v2745
        %v3234 = vpack.c.b16 %v2762, %v2754
        %v3235 = vpack.c.b16 %v2763, %v2755
        %v3236 = vpack.c.b16 %v2764, %v2756
        %v3237 = vpack.c.b16 %v2765, %v2757
        %v3238 = vpack.c.b16 %v2766, %v2758
        %v3239 = vpack.c.b16 %v2767, %v2759
        %v3240 = vpack.c.b16 %v2768, %v2760
        %v3241 = vpack.c.b16 %v2769, %v2761
        %v3242 = vpack.c.b16 %v2778, %v2770
        %v3243 = vpack.c.b16 %v2779, %v2771
        %v3244 = vpack.c.b16 %v2780, %v2772
        %v3245 = vpack.c.b16 %v2781, %v2773
        %v3246 = vpack.c.b16 %v2782, %v2774
        %v3247 = vpack.c.b16 %v2783, %v2775
        %v3248 = vpack.c.b16 %v2784, %v2776
        %v3249 = vpack.c.b16 %v2785, %v2777
        %v3250 = vpack.c.b16 %v2794, %v2786
        %v3251 = vpack.c.b16 %v2795, %v2787
        %v3252 = vpack.c.b16 %v2796, %v2788
        %v3253 = vpack.c.b16 %v2797, %v2789
        %v3254 = vpack.c.b16 %v2798, %v2790
        %v3255 = vpack.c.b16 %v2799, %v2791
        %v3256 = vpack.c.b16 %v2800, %v2792
        %v3257 = vpack.c.b16 %v2801, %v2793
        %v3258 = vpack.c.b16 %v2810, %v2802
        %v3259 = vpack.c.b16 %v2811, %v2803
        %v3260 = vpack.c.b16 %v2812, %v2804
        %v3261 = vpack.c.b16 %v2813, %v2805
        %v3262 = vpack.c.b16 %v2814, %v2806
        %v3263 = vpack.c.b16 %v2815, %v2807
        %v3264 = vpack.c.b16 %v2816, %v2808
        %v3265 = vpack.c.b16 %v2817, %v2809
        %v3266 = vpack.c.b16 %v2826, %v2818
        %v3267 = vpack.c.b16 %v2827, %v2819
        %v3268 = vpack.c.b16 %v2828, %v2820
        %v3269 = vpack.c.b16 %v2829, %v2821
        %v3270 = vpack.c.b16 %v2830, %v2822
        %v3271 = vpack.c.b16 %v2831, %v2823
        %v3272 = vpack.c.b16 %v2832, %v2824
        %v3273 = vpack.c.b16 %v2833, %v2825
        %v3274 = vpack.c.b16 %v2842, %v2834
        %v3275 = vpack.c.b16 %v2843, %v2835
        %v3276 = vpack.c.b16 %v2844, %v2836
        %v3277 = vpack.c.b16 %v2845, %v2837
        %v3278 = vpack.c.b16 %v2846, %v2838
        %v3279 = vpack.c.b16 %v2847, %v2839
        %v3280 = vpack.c.b16 %v2848, %v2840
        %v3281 = vpack.c.b16 %v2849, %v2841
        %v3282 = vpack.c.b16 %v2858, %v2850
        %v3283 = vpack.c.b16 %v2859, %v2851
        %v3284 = vpack.c.b16 %v2860, %v2852
        %v3285 = vpack.c.b16 %v2861, %v2853
        %v3286 = vpack.c.b16 %v2862, %v2854
        %v3287 = vpack.c.b16 %v2863, %v2855
        %v3288 = vpack.c.b16 %v2864, %v2856
        %v3289 = vpack.c.b16 %v2865, %v2857
        %v3290 = vpack.c.b16 %v2874, %v2866
        %v3291 = vpack.c.b16 %v2875, %v2867
        %v3292 = vpack.c.b16 %v2876, %v2868
        %v3293 = vpack.c.b16 %v2877, %v2869
        %v3294 = vpack.c.b16 %v2878, %v2870
        %v3295 = vpack.c.b16 %v2879, %v2871
        %v3296 = vpack.c.b16 %v2880, %v2872
        %v3297 = vpack.c.b16 %v2881, %v2873
        %v3298 = vpack.c.b16 %v2890, %v2882
        %v3299 = vpack.c.b16 %v2891, %v2883
        %v3300 = vpack.c.b16 %v2892, %v2884
        %v3301 = vpack.c.b16 %v2893, %v2885
        %v3302 = vpack.c.b16 %v2894, %v2886
        %v3303 = vpack.c.b16 %v2895, %v2887
        %v3304 = vpack.c.b16 %v2896, %v2888
        %v3305 = vpack.c.b16 %v2897, %v2889
        %v3306 = vpack.c.b16 %v2906, %v2898
        %v3307 = vpack.c.b16 %v2907, %v2899
        %v3308 = vpack.c.b16 %v2908, %v2900
        %v3309 = vpack.c.b16 %v2909, %v2901
        %v3310 = vpack.c.b16 %v2910, %v2902
        %v3311 = vpack.c.b16 %v2911, %v2903
        %v3312 = vpack.c.b16 %v2912, %v2904
        %v3313 = vpack.c.b16 %v2913, %v2905
        %v3314 = vpack.c.b16 %v2922, %v2914
        %v3315 = vpack.c.b16 %v2923, %v2915
        %v3316 = vpack.c.b16 %v2924, %v2916
        %v3317 = vpack.c.b16 %v2925, %v2917
        %v3318 = vpack.c.b16 %v2926, %v2918
        %v3319 = vpack.c.b16 %v2927, %v2919
        %v3320 = vpack.c.b16 %v2928, %v2920
        %v3321 = vpack.c.b16 %v2929, %v2921
        %v3322 = vpack.c.b16 %v2938, %v2930
        %v3323 = vpack.c.b16 %v2939, %v2931
        %v3324 = vpack.c.b16 %v2940, %v2932
        %v3325 = vpack.c.b16 %v2941, %v2933
        %v3326 = vpack.c.b16 %v2942, %v2934
        %v3327 = vpack.c.b16 %v2943, %v2935
        %v3328 = vpack.c.b16 %v2944, %v2936
        %v3329 = vpack.c.b16 %v2945, %v2937
        %v3330 = vpack.c.b16 %v2954, %v2946
        %v3331 = vpack.c.b16 %v2955, %v2947
        %v3332 = vpack.c.b16 %v2956, %v2948
        %v3333 = vpack.c.b16 %v2957, %v2949
        %v3334 = vpack.c.b16 %v2958, %v2950
        %v3335 = vpack.c.b16 %v2959, %v2951
        %v3336 = vpack.c.b16 %v2960, %v2952
        %v3337 = vpack.c.b16 %v2961, %v2953
        %v3338 = vpack.c.b16 %v2970, %v2962
        %v3339 = vpack.c.b16 %v2971, %v2963
        %v3340 = vpack.c.b16 %v2972, %v2964
        %v3341 = vpack.c.b16 %v2973, %v2965
        %v3342 = vpack.c.b16 %v2974, %v2966
        %v3343 = vpack.c.b16 %v2975, %v2967
        %v3344 = vpack.c.b16 %v2976, %v2968
        %v3345 = vpack.c.b16 %v2977, %v2969
        %v3346 = vpack.c.b16 %v2986, %v2978
        %v3347 = vpack.c.b16 %v2987, %v2979
        %v3348 = vpack.c.b16 %v2988, %v2980
        %v3349 = vpack.c.b16 %v2989, %v2981
        %v3350 = vpack.c.b16 %v2990, %v2982
        %v3351 = vpack.c.b16 %v2991, %v2983
        %v3352 = vpack.c.b16 %v2992, %v2984
        %v3353 = vpack.c.b16 %v2993, %v2985
        %v3354 = vpack.c.b16 %v3002, %v2994
        %v3355 = vpack.c.b16 %v3003, %v2995
        %v3356 = vpack.c.b16 %v3004, %v2996
        %v3357 = vpack.c.b16 %v3005, %v2997
        %v3358 = vpack.c.b16 %v3006, %v2998
        %v3359 = vpack.c.b16 %v3007, %v2999
        %v3360 = vpack.c.b16 %v3008, %v3000
        %v3361 = vpack.c.b16 %v3009, %v3001
        %v3362 = vpack.c.b16 %v3018, %v3010
        %v3363 = vpack.c.b16 %v3019, %v3011
        %v3364 = vpack.c.b16 %v3020, %v3012
        %v3365 = vpack.c.b16 %v3021, %v3013
        %v3366 = vpack.c.b16 %v3022, %v3014
        %v3367 = vpack.c.b16 %v3023, %v3015
        %v3368 = vpack.c.b16 %v3024, %v3016
        %v3369 = vpack.c.b16 %v3025, %v3017
        %v3370 = vpack.c.b16 %v3034, %v3026
        %v3371 = vpack.c.b16 %v3035, %v3027
        %v3372 = vpack.c.b16 %v3036, %v3028
        %v3373 = vpack.c.b16 %v3037, %v3029
        %v3374 = vpack.c.b16 %v3038, %v3030
        %v3375 = vpack.c.b16 %v3039, %v3031
        %v3376 = vpack.c.b16 %v3040, %v3032
        %v3377 = vpack.c.b16 %v3041, %v3033
        %v3378 = vpack.c.b16 %v3050, %v3042
        %v3379 = vpack.c.b16 %v3051, %v3043
        %v3380 = vpack.c.b16 %v3052, %v3044
        %v3381 = vpack.c.b16 %v3053, %v3045
        %v3382 = vpack.c.b16 %v3054, %v3046
        %v3383 = vpack.c.b16 %v3055, %v3047
        %v3384 = vpack.c.b16 %v3056, %v3048
        %v3385 = vpack.c.b16 %v3057, %v3049
        %v3386 = vpack.c.b16 %v3066, %v3058
        %v3387 = vpack.c.b16 %v3067, %v3059
        %v3388 = vpack.c.b16 %v3068, %v3060
        %v3389 = vpack.c.b16 %v3069, %v3061
        %v3390 = vpack.c.b16 %v3070, %v3062
        %v3391 = vpack.c.b16 %v3071, %v3063
        %v3392 = vpack.c.b16 %v3072, %v3064
        %v3393 = vpack.c.b16 %v3073, %v3065
        %v3394 = vpack.c.b16 %v3082, %v3074
        %v3395 = vpack.c.b16 %v3083, %v3075
        %v3396 = vpack.c.b16 %v3084, %v3076
        %v3397 = vpack.c.b16 %v3085, %v3077
        %v3398 = vpack.c.b16 %v3086, %v3078
        %v3399 = vpack.c.b16 %v3087, %v3079
        %v3400 = vpack.c.b16 %v3088, %v3080
        %v3401 = vpack.c.b16 %v3089, %v3081
        %v3402 = vpack.c.b16 %v3098, %v3090
        %v3403 = vpack.c.b16 %v3099, %v3091
        %v3404 = vpack.c.b16 %v3100, %v3092
        %v3405 = vpack.c.b16 %v3101, %v3093
        %v3406 = vpack.c.b16 %v3102, %v3094
        %v3407 = vpack.c.b16 %v3103, %v3095
        %v3408 = vpack.c.b16 %v3104, %v3096
        %v3409 = vpack.c.b16 %v3105, %v3097
        %v3410 = vpack.c.b16 %v3114, %v3106
        %v3411 = vpack.c.b16 %v3115, %v3107
        %v3412 = vpack.c.b16 %v3116, %v3108
        %v3413 = vpack.c.b16 %v3117, %v3109
        %v3414 = vpack.c.b16 %v3118, %v3110
        %v3415 = vpack.c.b16 %v3119, %v3111
        %v3416 = vpack.c.b16 %v3120, %v3112
        %v3417 = vpack.c.b16 %v3121, %v3113
        %v3418 = vpack.c.b16 %v3130, %v3122
        %v3419 = vpack.c.b16 %v3131, %v3123
        %v3420 = vpack.c.b16 %v3132, %v3124
        %v3421 = vpack.c.b16 %v3133, %v3125
        %v3422 = vpack.c.b16 %v3134, %v3126
        %v3423 = vpack.c.b16 %v3135, %v3127
        %v3424 = vpack.c.b16 %v3136, %v3128
        %v3425 = vpack.c.b16 %v3137, %v3129
        %v3426 = vpack.c.b16 %v3146, %v3138
        %v3427 = vpack.c.b16 %v3147, %v3139
        %v3428 = vpack.c.b16 %v3148, %v3140
        %v3429 = vpack.c.b16 %v3149, %v3141
        %v3430 = vpack.c.b16 %v3150, %v3142
        %v3431 = vpack.c.b16 %v3151, %v3143
        %v3432 = vpack.c.b16 %v3152, %v3144
        %v3433 = vpack.c.b16 %v3153, %v3145
        %v3434 = vpack.c.b16 %v3162, %v3154
        %v3435 = vpack.c.b16 %v3163, %v3155
        %v3436 = vpack.c.b16 %v3164, %v3156
        %v3437 = vpack.c.b16 %v3165, %v3157
        %v3438 = vpack.c.b16 %v3166, %v3158
        %v3439 = vpack.c.b16 %v3167, %v3159
        %v3440 = vpack.c.b16 %v3168, %v3160
        %v3441 = vpack.c.b16 %v3169, %v3161
        %v3442 = vpack.c.b16 %v3178, %v3170
        %v3443 = vpack.c.b16 %v3179, %v3171
        %v3444 = vpack.c.b16 %v3180, %v3172
        %v3445 = vpack.c.b16 %v3181, %v3173
        %v3446 = vpack.c.b16 %v3182, %v3174
        %v3447 = vpack.c.b16 %v3183, %v3175
        %v3448 = vpack.c.b16 %v3184, %v3176
        %v3449 = vpack.c.b16 %v3185, %v3177
        %v3450 = vpack.c.b16 %v3194, %v3186
        %v3451 = vpack.c.b16 %v3195, %v3187
        %v3452 = vpack.c.b16 %v3196, %v3188
        %v3453 = vpack.c.b16 %v3197, %v3189
        %v3454 = vpack.c.b16 %v3198, %v3190
        %v3455 = vpack.c.b16 %v3199, %v3191
        %v3456 = vpack.c.b16 %v3200, %v3192
        %v3457 = vpack.c.b16 %v3201, %v3193
        %3714 = vmatprep.subr.bf16.mxu0 %v3259
        %3715 = vmatpush1.bf16.msra.mxu0 %v3258
        %3716 = vmatprep.subr.bf16.mxu0 %v3251
        %3717 = vmatpush1.bf16.msra.mxu0 %v3250
        %3718 = vmatprep.subr.bf16.mxu0 %v3243
        %3719 = vmatpush1.bf16.msra.mxu0 %v3242
        %3720 = vmatprep.subr.bf16.mxu0 %v3235
        %3721 = vmatpush1.bf16.msra.mxu0 %v3234
        %3722 = vmatprep.subr.bf16.mxu0 %v3227
        %3723 = vmatpush1.bf16.msra.mxu0 %v3226
        %3724 = vmatprep.subr.bf16.mxu0 %v3219
        %3725 = vmatpush1.bf16.msra.mxu0 %v3218
        %3726 = vmatprep.subr.bf16.mxu0 %v3211
        %3727 = vmatpush1.bf16.msra.mxu0 %v3210
        %3728 = vmatprep.subr.bf16.mxu0 %v3203
        %3729 = vmatpush1.bf16.msra.mxu0 %v3202
        %3730 = vmatprep.subr.bf16.mxu0 %v3323
        %3731 = vmatpush2.bf16.msra.mxu0 %v3322
        %3732 = vmatprep.subr.bf16.mxu0 %v3315
        %3733 = vmatpush2.bf16.msra.mxu0 %v3314
        %3734 = vmatprep.subr.bf16.mxu0 %v3307
        %3735 = vmatpush2.bf16.msra.mxu0 %v3306
        %3736 = vmatprep.subr.bf16.mxu0 %v3299
        %3737 = vmatpush2.bf16.msra.mxu0 %v3298
        %3738 = vmatprep.subr.bf16.mxu0 %v3291
        %3739 = vmatpush2.bf16.msra.mxu0 %v3290
        %3740 = vmatprep.subr.bf16.mxu0 %v3283
        %3741 = vmatpush2.bf16.msra.mxu0 %v3282
        %3742 = vmatprep.subr.bf16.mxu0 %v3275
        %3743 = vmatpush2.bf16.msra.mxu0 %v3274
        %3744 = vmatprep.subr.bf16.mxu0 %v3267
        %3745 = vmatpush2.bf16.msra.mxu0 %v3266
        %3746 = vmatprep.mubr.bf16.mxu0 %v2427
        %3747 = vmatmul.mubr.bf16.gmra.mxu0 %v2426
        %v3748 = vpop.f32.mrf.mxu0
        %v3749 = vadd.f32 %v2148, %v3748
        %v3750 = vpop.f32.mrf.mxu0
        %v3751 = vadd.f32 %v2150, %v3750
        %v3752 = vpop.f32.mrf.mxu0
        %v3753 = vadd.f32 %v2152, %v3752
        %v3754 = vpop.f32.mrf.mxu0
        %v3755 = vadd.f32 %v2154, %v3754
        %3756 = vdwg.mxu0
        %3757 = vmatprep.subr.bf16.mxu0 %v3387
        %3758 = vmatpush1.bf16.msra.mxu0 %v3386
        %3759 = vmatprep.subr.bf16.mxu0 %v3379
        %3760 = vmatpush1.bf16.msra.mxu0 %v3378
        %3761 = vmatprep.subr.bf16.mxu0 %v3371
        %3762 = vmatpush1.bf16.msra.mxu0 %v3370
        %3763 = vmatprep.subr.bf16.mxu0 %v3363
        %3764 = vmatpush1.bf16.msra.mxu0 %v3362
        %3765 = vmatprep.subr.bf16.mxu0 %v3355
        %3766 = vmatpush1.bf16.msra.mxu0 %v3354
        %3767 = vmatprep.subr.bf16.mxu0 %v3347
        %3768 = vmatpush1.bf16.msra.mxu0 %v3346
        %3769 = vmatprep.subr.bf16.mxu0 %v3339
        %3770 = vmatpush1.bf16.msra.mxu0 %v3338
        %3771 = vmatprep.subr.bf16.mxu0 %v3331
        %3772 = vmatpush1.bf16.msra.mxu0 %v3330
        %3773 = vmatprep.subr.bf16.mxu0 %v3451
        %3774 = vmatpush2.bf16.msra.mxu0 %v3450
        %3775 = vmatprep.subr.bf16.mxu0 %v3443
        %3776 = vmatpush2.bf16.msra.mxu0 %v3442
        %3777 = vmatprep.subr.bf16.mxu0 %v3435
        %3778 = vmatpush2.bf16.msra.mxu0 %v3434
        %3779 = vmatprep.subr.bf16.mxu0 %v3427
        %3780 = vmatpush2.bf16.msra.mxu0 %v3426
        %3781 = vmatprep.subr.bf16.mxu0 %v3419
        %3782 = vmatpush2.bf16.msra.mxu0 %v3418
        %3783 = vmatprep.subr.bf16.mxu0 %v3411
        %3784 = vmatpush2.bf16.msra.mxu0 %v3410
        %3785 = vmatprep.subr.bf16.mxu0 %v3403
        %3786 = vmatpush2.bf16.msra.mxu0 %v3402
        %3787 = vmatprep.subr.bf16.mxu0 %v3395
        %3788 = vmatpush2.bf16.msra.mxu0 %v3394
        %3789 = vmatprep.mubr.bf16.mxu0 %v2429
        %3790 = vmatmul.mubr.bf16.gmra.mxu0 %v2428
        %v3791 = vpop.f32.mrf.mxu0
        %v3792 = vadd.f32 %v3749, %v3791
        %v3793 = vpop.f32.mrf.mxu0
        %v3794 = vadd.f32 %v3751, %v3793
        %v3795 = vpop.f32.mrf.mxu0
        %v3796 = vadd.f32 %v3753, %v3795
        %v3797 = vpop.f32.mrf.mxu0
        %v3798 = vadd.f32 %v3755, %v3797
        %3799 = vdwg.mxu0
        %3800 = vmatprep.subr.bf16.mxu0 %v3261
        %3801 = vmatpush1.bf16.msra.mxu0 %v3260
        %3802 = vmatprep.subr.bf16.mxu0 %v3253
        %3803 = vmatpush1.bf16.msra.mxu0 %v3252
        %3804 = vmatprep.subr.bf16.mxu0 %v3245
        %3805 = vmatpush1.bf16.msra.mxu0 %v3244
        %3806 = vmatprep.subr.bf16.mxu0 %v3237
        %3807 = vmatpush1.bf16.msra.mxu0 %v3236
        %3808 = vmatprep.subr.bf16.mxu0 %v3229
        %3809 = vmatpush1.bf16.msra.mxu0 %v3228
        %3810 = vmatprep.subr.bf16.mxu0 %v3221
        %3811 = vmatpush1.bf16.msra.mxu0 %v3220
        %3812 = vmatprep.subr.bf16.mxu0 %v3213
        %3813 = vmatpush1.bf16.msra.mxu0 %v3212
        %3814 = vmatprep.subr.bf16.mxu0 %v3205
        %3815 = vmatpush1.bf16.msra.mxu0 %v3204
        %3816 = vmatprep.subr.bf16.mxu0 %v3325
        %3817 = vmatpush2.bf16.msra.mxu0 %v3324
        %3818 = vmatprep.subr.bf16.mxu0 %v3317
        %3819 = vmatpush2.bf16.msra.mxu0 %v3316
        %3820 = vmatprep.subr.bf16.mxu0 %v3309
        %3821 = vmatpush2.bf16.msra.mxu0 %v3308
        %3822 = vmatprep.subr.bf16.mxu0 %v3301
        %3823 = vmatpush2.bf16.msra.mxu0 %v3300
        %3824 = vmatprep.subr.bf16.mxu0 %v3293
        %3825 = vmatpush2.bf16.msra.mxu0 %v3292
        %3826 = vmatprep.subr.bf16.mxu0 %v3285
        %3827 = vmatpush2.bf16.msra.mxu0 %v3284
        %3828 = vmatprep.subr.bf16.mxu0 %v3277
        %3829 = vmatpush2.bf16.msra.mxu0 %v3276
        %3830 = vmatprep.subr.bf16.mxu0 %v3269
        %3831 = vmatpush2.bf16.msra.mxu0 %v3268
        %3832 = vmatprep.mubr.bf16.mxu0 %v2427
        %3833 = vmatmul.mubr.bf16.gmra.mxu0 %v2426
        %v3834 = vpop.f32.mrf.mxu0
        %v3835 = vadd.f32 %v2234, %v3834
        %v3836 = vpop.f32.mrf.mxu0
        %v3837 = vadd.f32 %v2236, %v3836
        %v3838 = vpop.f32.mrf.mxu0
        %v3839 = vadd.f32 %v2238, %v3838
        %v3840 = vpop.f32.mrf.mxu0
        %v3841 = vadd.f32 %v2240, %v3840
        %3842 = vdwg.mxu0
        %3843 = vmatprep.subr.bf16.mxu0 %v3389
        %3844 = vmatpush1.bf16.msra.mxu0 %v3388
        %3845 = vmatprep.subr.bf16.mxu0 %v3381
        %3846 = vmatpush1.bf16.msra.mxu0 %v3380
        %3847 = vmatprep.subr.bf16.mxu0 %v3373
        %3848 = vmatpush1.bf16.msra.mxu0 %v3372
        %3849 = vmatprep.subr.bf16.mxu0 %v3365
        %3850 = vmatpush1.bf16.msra.mxu0 %v3364
        %3851 = vmatprep.subr.bf16.mxu0 %v3357
        %3852 = vmatpush1.bf16.msra.mxu0 %v3356
        %3853 = vmatprep.subr.bf16.mxu0 %v3349
        %3854 = vmatpush1.bf16.msra.mxu0 %v3348
        %3855 = vmatprep.subr.bf16.mxu0 %v3341
        %3856 = vmatpush1.bf16.msra.mxu0 %v3340
        %3857 = vmatprep.subr.bf16.mxu0 %v3333
        %3858 = vmatpush1.bf16.msra.mxu0 %v3332
        %3859 = vmatprep.subr.bf16.mxu0 %v3453
        %3860 = vmatpush2.bf16.msra.mxu0 %v3452
        %3861 = vmatprep.subr.bf16.mxu0 %v3445
        %3862 = vmatpush2.bf16.msra.mxu0 %v3444
        %3863 = vmatprep.subr.bf16.mxu0 %v3437
        %3864 = vmatpush2.bf16.msra.mxu0 %v3436
        %3865 = vmatprep.subr.bf16.mxu0 %v3429
        %3866 = vmatpush2.bf16.msra.mxu0 %v3428
        %3867 = vmatprep.subr.bf16.mxu0 %v3421
        %3868 = vmatpush2.bf16.msra.mxu0 %v3420
        %3869 = vmatprep.subr.bf16.mxu0 %v3413
        %3870 = vmatpush2.bf16.msra.mxu0 %v3412
        %3871 = vmatprep.subr.bf16.mxu0 %v3405
        %3872 = vmatpush2.bf16.msra.mxu0 %v3404
        %3873 = vmatprep.subr.bf16.mxu0 %v3397
        %3874 = vmatpush2.bf16.msra.mxu0 %v3396
        %3875 = vmatprep.mubr.bf16.mxu0 %v2429
        %3876 = vmatmul.mubr.bf16.gmra.mxu0 %v2428
        %v3877 = vpop.f32.mrf.mxu0
        %v3878 = vadd.f32 %v3835, %v3877
        %v3879 = vpop.f32.mrf.mxu0
        %v3880 = vadd.f32 %v3837, %v3879
        %v3881 = vpop.f32.mrf.mxu0
        %v3882 = vadd.f32 %v3839, %v3881
        %v3883 = vpop.f32.mrf.mxu0
        %v3884 = vadd.f32 %v3841, %v3883
        %3885 = vdwg.mxu0
        %3886 = vmatprep.subr.bf16.mxu0 %v3263
        %3887 = vmatpush1.bf16.msra.mxu0 %v3262
        %3888 = vmatprep.subr.bf16.mxu0 %v3255
        %3889 = vmatpush1.bf16.msra.mxu0 %v3254
        %3890 = vmatprep.subr.bf16.mxu0 %v3247
        %3891 = vmatpush1.bf16.msra.mxu0 %v3246
        %3892 = vmatprep.subr.bf16.mxu0 %v3239
        %3893 = vmatpush1.bf16.msra.mxu0 %v3238
        %3894 = vmatprep.subr.bf16.mxu0 %v3231
        %3895 = vmatpush1.bf16.msra.mxu0 %v3230
        %3896 = vmatprep.subr.bf16.mxu0 %v3223
        %3897 = vmatpush1.bf16.msra.mxu0 %v3222
        %3898 = vmatprep.subr.bf16.mxu0 %v3215
        %3899 = vmatpush1.bf16.msra.mxu0 %v3214
        %3900 = vmatprep.subr.bf16.mxu0 %v3207
        %3901 = vmatpush1.bf16.msra.mxu0 %v3206
        %3902 = vmatprep.subr.bf16.mxu0 %v3327
        %3903 = vmatpush2.bf16.msra.mxu0 %v3326
        %3904 = vmatprep.subr.bf16.mxu0 %v3319
        %3905 = vmatpush2.bf16.msra.mxu0 %v3318
        %3906 = vmatprep.subr.bf16.mxu0 %v3311
        %3907 = vmatpush2.bf16.msra.mxu0 %v3310
        %3908 = vmatprep.subr.bf16.mxu0 %v3303
        %3909 = vmatpush2.bf16.msra.mxu0 %v3302
        %3910 = vmatprep.subr.bf16.mxu0 %v3295
        %3911 = vmatpush2.bf16.msra.mxu0 %v3294
        %3912 = vmatprep.subr.bf16.mxu0 %v3287
        %3913 = vmatpush2.bf16.msra.mxu0 %v3286
        %3914 = vmatprep.subr.bf16.mxu0 %v3279
        %3915 = vmatpush2.bf16.msra.mxu0 %v3278
        %3916 = vmatprep.subr.bf16.mxu0 %v3271
        %3917 = vmatpush2.bf16.msra.mxu0 %v3270
        %3918 = vmatprep.mubr.bf16.mxu0 %v2427
        %3919 = vmatmul.mubr.bf16.gmra.mxu0 %v2426
        %v3920 = vpop.f32.mrf.mxu0
        %v3921 = vadd.f32 %v2320, %v3920
        %v3922 = vpop.f32.mrf.mxu0
        %v3923 = vadd.f32 %v2322, %v3922
        %v3924 = vpop.f32.mrf.mxu0
        %v3925 = vadd.f32 %v2324, %v3924
        %v3926 = vpop.f32.mrf.mxu0
        %v3927 = vadd.f32 %v2326, %v3926
        %3928 = vdwg.mxu0
        %3929 = vmatprep.subr.bf16.mxu0 %v3391
        %3930 = vmatpush1.bf16.msra.mxu0 %v3390
        %3931 = vmatprep.subr.bf16.mxu0 %v3383
        %3932 = vmatpush1.bf16.msra.mxu0 %v3382
        %3933 = vmatprep.subr.bf16.mxu0 %v3375
        %3934 = vmatpush1.bf16.msra.mxu0 %v3374
        %3935 = vmatprep.subr.bf16.mxu0 %v3367
        %3936 = vmatpush1.bf16.msra.mxu0 %v3366
        %3937 = vmatprep.subr.bf16.mxu0 %v3359
        %3938 = vmatpush1.bf16.msra.mxu0 %v3358
        %3939 = vmatprep.subr.bf16.mxu0 %v3351
        %3940 = vmatpush1.bf16.msra.mxu0 %v3350
        %3941 = vmatprep.subr.bf16.mxu0 %v3343
        %3942 = vmatpush1.bf16.msra.mxu0 %v3342
        %3943 = vmatprep.subr.bf16.mxu0 %v3335
        %3944 = vmatpush1.bf16.msra.mxu0 %v3334
        %3945 = vmatprep.subr.bf16.mxu0 %v3455
        %3946 = vmatpush2.bf16.msra.mxu0 %v3454
        %3947 = vmatprep.subr.bf16.mxu0 %v3447
        %3948 = vmatpush2.bf16.msra.mxu0 %v3446
        %3949 = vmatprep.subr.bf16.mxu0 %v3439
        %3950 = vmatpush2.bf16.msra.mxu0 %v3438
        %3951 = vmatprep.subr.bf16.mxu0 %v3431
        %3952 = vmatpush2.bf16.msra.mxu0 %v3430
        %3953 = vmatprep.subr.bf16.mxu0 %v3423
        %3954 = vmatpush2.bf16.msra.mxu0 %v3422
        %3955 = vmatprep.subr.bf16.mxu0 %v3415
        %3956 = vmatpush2.bf16.msra.mxu0 %v3414
        %3957 = vmatprep.subr.bf16.mxu0 %v3407
        %3958 = vmatpush2.bf16.msra.mxu0 %v3406
        %3959 = vmatprep.subr.bf16.mxu0 %v3399
        %3960 = vmatpush2.bf16.msra.mxu0 %v3398
        %3961 = vmatprep.mubr.bf16.mxu0 %v2429
        %3962 = vmatmul.mubr.bf16.gmra.mxu0 %v2428
        %v3963 = vpop.f32.mrf.mxu0
        %v3964 = vadd.f32 %v3921, %v3963
        %v3965 = vpop.f32.mrf.mxu0
        %v3966 = vadd.f32 %v3923, %v3965
        %v3967 = vpop.f32.mrf.mxu0
        %v3968 = vadd.f32 %v3925, %v3967
        %v3969 = vpop.f32.mrf.mxu0
        %v3970 = vadd.f32 %v3927, %v3969
        %3971 = vdwg.mxu0
        %3972 = vmatprep.subr.bf16.mxu0 %v3265
        %3973 = vmatpush1.bf16.msra.mxu0 %v3264
        %3974 = vmatprep.subr.bf16.mxu0 %v3257
        %3975 = vmatpush1.bf16.msra.mxu0 %v3256
        %3976 = vmatprep.subr.bf16.mxu0 %v3249
        %3977 = vmatpush1.bf16.msra.mxu0 %v3248
        %3978 = vmatprep.subr.bf16.mxu0 %v3241
        %3979 = vmatpush1.bf16.msra.mxu0 %v3240
        %3980 = vmatprep.subr.bf16.mxu0 %v3233
        %3981 = vmatpush1.bf16.msra.mxu0 %v3232
        %3982 = vmatprep.subr.bf16.mxu0 %v3225
        %3983 = vmatpush1.bf16.msra.mxu0 %v3224
        %3984 = vmatprep.subr.bf16.mxu0 %v3217
        %3985 = vmatpush1.bf16.msra.mxu0 %v3216
        %3986 = vmatprep.subr.bf16.mxu0 %v3209
        %3987 = vmatpush1.bf16.msra.mxu0 %v3208
        %3988 = vmatprep.subr.bf16.mxu0 %v3329
        %3989 = vmatpush2.bf16.msra.mxu0 %v3328
        %3990 = vmatprep.subr.bf16.mxu0 %v3321
        %3991 = vmatpush2.bf16.msra.mxu0 %v3320
        %3992 = vmatprep.subr.bf16.mxu0 %v3313
        %3993 = vmatpush2.bf16.msra.mxu0 %v3312
        %3994 = vmatprep.subr.bf16.mxu0 %v3305
        %3995 = vmatpush2.bf16.msra.mxu0 %v3304
        %3996 = vmatprep.subr.bf16.mxu0 %v3297
        %3997 = vmatpush2.bf16.msra.mxu0 %v3296
        %3998 = vmatprep.subr.bf16.mxu0 %v3289
        %3999 = vmatpush2.bf16.msra.mxu0 %v3288
        %4000 = vmatprep.subr.bf16.mxu0 %v3281
        %4001 = vmatpush2.bf16.msra.mxu0 %v3280
        %4002 = vmatprep.subr.bf16.mxu0 %v3273
        %4003 = vmatpush2.bf16.msra.mxu0 %v3272
        %4004 = vmatprep.mubr.bf16.mxu0 %v2427
        %4005 = vmatmul.mubr.bf16.gmra.mxu0 %v2426
        %v4006 = vpop.f32.mrf.mxu0
        %v4007 = vadd.f32 %v2406, %v4006
        %v4008 = vpop.f32.mrf.mxu0
        %v4009 = vadd.f32 %v2408, %v4008
        %v4010 = vpop.f32.mrf.mxu0
        %v4011 = vadd.f32 %v2410, %v4010
        %v4012 = vpop.f32.mrf.mxu0
        %v4013 = vadd.f32 %v2412, %v4012
        %4014 = vdwg.mxu0
        %4015 = vmatprep.subr.bf16.mxu0 %v3393
        %4016 = vmatpush1.bf16.msra.mxu0 %v3392
        %4017 = vmatprep.subr.bf16.mxu0 %v3385
        %4018 = vmatpush1.bf16.msra.mxu0 %v3384
        %4019 = vmatprep.subr.bf16.mxu0 %v3377
        %4020 = vmatpush1.bf16.msra.mxu0 %v3376
        %4021 = vmatprep.subr.bf16.mxu0 %v3369
        %4022 = vmatpush1.bf16.msra.mxu0 %v3368
        %4023 = vmatprep.subr.bf16.mxu0 %v3361
        %4024 = vmatpush1.bf16.msra.mxu0 %v3360
        %4025 = vmatprep.subr.bf16.mxu0 %v3353
        %4026 = vmatpush1.bf16.msra.mxu0 %v3352
        %4027 = vmatprep.subr.bf16.mxu0 %v3345
        %4028 = vmatpush1.bf16.msra.mxu0 %v3344
        %4029 = vmatprep.subr.bf16.mxu0 %v3337
        %4030 = vmatpush1.bf16.msra.mxu0 %v3336
        %4031 = vmatprep.subr.bf16.mxu0 %v3457
        %4032 = vmatpush2.bf16.msra.mxu0 %v3456
        %4033 = vmatprep.subr.bf16.mxu0 %v3449
        %4034 = vmatpush2.bf16.msra.mxu0 %v3448
        %4035 = vmatprep.subr.bf16.mxu0 %v3441
        %4036 = vmatpush2.bf16.msra.mxu0 %v3440
        %4037 = vmatprep.subr.bf16.mxu0 %v3433
        %4038 = vmatpush2.bf16.msra.mxu0 %v3432
        %4039 = vmatprep.subr.bf16.mxu0 %v3425
        %4040 = vmatpush2.bf16.msra.mxu0 %v3424
        %4041 = vmatprep.subr.bf16.mxu0 %v3417
        %4042 = vmatpush2.bf16.msra.mxu0 %v3416
        %4043 = vmatprep.subr.bf16.mxu0 %v3409
        %4044 = vmatpush2.bf16.msra.mxu0 %v3408
        %4045 = vmatprep.subr.bf16.mxu0 %v3401
        %4046 = vmatpush2.bf16.msra.mxu0 %v3400
        %4047 = vmatprep.mubr.bf16.mxu0 %v2429
        %4048 = vmatmul.mubr.bf16.gmra.mxu0 %v2428
        %v4049 = vpop.f32.mrf.mxu0
        %v4050 = vadd.f32 %v4007, %v4049
        %v4051 = vpop.f32.mrf.mxu0
        %v4052 = vadd.f32 %v4009, %v4051
        %v4053 = vpop.f32.mrf.mxu0
        %v4054 = vadd.f32 %v4011, %v4053
        %v4055 = vpop.f32.mrf.mxu0
        %v4056 = vadd.f32 %v4013, %v4055
        %4057 = vdwg.mxu0
        %v4058 = vld [vmem:[#allocation2 + $0x1000] sm:$0xff]
        %v4059 = vld [vmem:[#allocation2 + $0x1008] sm:$0xff]
        %v4060 = vld [vmem:[#allocation2 + $0x1010] sm:$0xff]
        %v4061 = vld [vmem:[#allocation2 + $0x1018] sm:$0xff]
        %v4062 = vld [vmem:[#allocation2 + $0x1020] sm:$0xff]
        %v4063 = vld [vmem:[#allocation2 + $0x1028] sm:$0xff]
        %v4064 = vld [vmem:[#allocation2 + $0x1030] sm:$0xff]
        %v4065 = vld [vmem:[#allocation2 + $0x1038] sm:$0xff]
        %v4066 = vld [vmem:[#allocation2 + $0x1040] sm:$0xff]
        %v4067 = vld [vmem:[#allocation2 + $0x1048] sm:$0xff]
        %v4068 = vld [vmem:[#allocation2 + $0x1050] sm:$0xff]
        %v4069 = vld [vmem:[#allocation2 + $0x1058] sm:$0xff]
        %v4070 = vld [vmem:[#allocation2 + $0x1060] sm:$0xff]
        %v4071 = vld [vmem:[#allocation2 + $0x1068] sm:$0xff]
        %v4072 = vld [vmem:[#allocation2 + $0x1070] sm:$0xff]
        %v4073 = vld [vmem:[#allocation2 + $0x1078] sm:$0xff]
        %v4074 = vld [vmem:[#allocation2 + $0x1080] sm:$0xff]
        %v4075 = vld [vmem:[#allocation2 + $0x1088] sm:$0xff]
        %v4076 = vld [vmem:[#allocation2 + $0x1090] sm:$0xff]
        %v4077 = vld [vmem:[#allocation2 + $0x1098] sm:$0xff]
        %v4078 = vld [vmem:[#allocation2 + $0x10a0] sm:$0xff]
        %v4079 = vld [vmem:[#allocation2 + $0x10a8] sm:$0xff]
        %v4080 = vld [vmem:[#allocation2 + $0x10b0] sm:$0xff]
        %v4081 = vld [vmem:[#allocation2 + $0x10b8] sm:$0xff]
        %v4082 = vld [vmem:[#allocation2 + $0x10c0] sm:$0xff]
        %v4083 = vld [vmem:[#allocation2 + $0x10c8] sm:$0xff]
        %v4084 = vld [vmem:[#allocation2 + $0x10d0] sm:$0xff]
        %v4085 = vld [vmem:[#allocation2 + $0x10d8] sm:$0xff]
        %v4086 = vld [vmem:[#allocation2 + $0x10e0] sm:$0xff]
        %v4087 = vld [vmem:[#allocation2 + $0x10e8] sm:$0xff]
        %v4088 = vld [vmem:[#allocation2 + $0x10f0] sm:$0xff]
        %v4089 = vld [vmem:[#allocation2 + $0x10f8] sm:$0xff]
        %v4090 = vld [vmem:[#allocation2 + $0x1100] sm:$0xff]
        %v4091 = vld [vmem:[#allocation2 + $0x1108] sm:$0xff]
        %v4092 = vld [vmem:[#allocation2 + $0x1110] sm:$0xff]
        %v4093 = vld [vmem:[#allocation2 + $0x1118] sm:$0xff]
        %v4094 = vld [vmem:[#allocation2 + $0x1120] sm:$0xff]
        %v4095 = vld [vmem:[#allocation2 + $0x1128] sm:$0xff]
        %v4096 = vld [vmem:[#allocation2 + $0x1130] sm:$0xff]
        %v4097 = vld [vmem:[#allocation2 + $0x1138] sm:$0xff]
        %v4098 = vld [vmem:[#allocation2 + $0x1140] sm:$0xff]
        %v4099 = vld [vmem:[#allocation2 + $0x1148] sm:$0xff]
        %v4100 = vld [vmem:[#allocation2 + $0x1150] sm:$0xff]
        %v4101 = vld [vmem:[#allocation2 + $0x1158] sm:$0xff]
        %v4102 = vld [vmem:[#allocation2 + $0x1160] sm:$0xff]
        %v4103 = vld [vmem:[#allocation2 + $0x1168] sm:$0xff]
        %v4104 = vld [vmem:[#allocation2 + $0x1170] sm:$0xff]
        %v4105 = vld [vmem:[#allocation2 + $0x1178] sm:$0xff]
        %v4106 = vld [vmem:[#allocation2 + $0x1180] sm:$0xff]
        %v4107 = vld [vmem:[#allocation2 + $0x1188] sm:$0xff]
        %v4108 = vld [vmem:[#allocation2 + $0x1190] sm:$0xff]
        %v4109 = vld [vmem:[#allocation2 + $0x1198] sm:$0xff]
        %v4110 = vld [vmem:[#allocation2 + $0x11a0] sm:$0xff]
        %v4111 = vld [vmem:[#allocation2 + $0x11a8] sm:$0xff]
        %v4112 = vld [vmem:[#allocation2 + $0x11b0] sm:$0xff]
        %v4113 = vld [vmem:[#allocation2 + $0x11b8] sm:$0xff]
        %v4114 = vld [vmem:[#allocation2 + $0x11c0] sm:$0xff]
        %v4115 = vld [vmem:[#allocation2 + $0x11c8] sm:$0xff]
        %v4116 = vld [vmem:[#allocation2 + $0x11d0] sm:$0xff]
        %v4117 = vld [vmem:[#allocation2 + $0x11d8] sm:$0xff]
        %v4118 = vld [vmem:[#allocation2 + $0x11e0] sm:$0xff]
        %v4119 = vld [vmem:[#allocation2 + $0x11e8] sm:$0xff]
        %v4120 = vld [vmem:[#allocation2 + $0x11f0] sm:$0xff]
        %v4121 = vld [vmem:[#allocation2 + $0x11f8] sm:$0xff]
        %v4122 = vld [vmem:[#allocation2 + $0x1200] sm:$0xff]
        %v4123 = vld [vmem:[#allocation2 + $0x1208] sm:$0xff]
        %v4124 = vld [vmem:[#allocation2 + $0x1210] sm:$0xff]
        %v4125 = vld [vmem:[#allocation2 + $0x1218] sm:$0xff]
        %v4126 = vld [vmem:[#allocation2 + $0x1220] sm:$0xff]
        %v4127 = vld [vmem:[#allocation2 + $0x1228] sm:$0xff]
        %v4128 = vld [vmem:[#allocation2 + $0x1230] sm:$0xff]
        %v4129 = vld [vmem:[#allocation2 + $0x1238] sm:$0xff]
        %v4130 = vld [vmem:[#allocation2 + $0x1240] sm:$0xff]
        %v4131 = vld [vmem:[#allocation2 + $0x1248] sm:$0xff]
        %v4132 = vld [vmem:[#allocation2 + $0x1250] sm:$0xff]
        %v4133 = vld [vmem:[#allocation2 + $0x1258] sm:$0xff]
        %v4134 = vld [vmem:[#allocation2 + $0x1260] sm:$0xff]
        %v4135 = vld [vmem:[#allocation2 + $0x1268] sm:$0xff]
        %v4136 = vld [vmem:[#allocation2 + $0x1270] sm:$0xff]
        %v4137 = vld [vmem:[#allocation2 + $0x1278] sm:$0xff]
        %v4138 = vld [vmem:[#allocation2 + $0x1280] sm:$0xff]
        %v4139 = vld [vmem:[#allocation2 + $0x1288] sm:$0xff]
        %v4140 = vld [vmem:[#allocation2 + $0x1290] sm:$0xff]
        %v4141 = vld [vmem:[#allocation2 + $0x1298] sm:$0xff]
        %v4142 = vld [vmem:[#allocation2 + $0x12a0] sm:$0xff]
        %v4143 = vld [vmem:[#allocation2 + $0x12a8] sm:$0xff]
        %v4144 = vld [vmem:[#allocation2 + $0x12b0] sm:$0xff]
        %v4145 = vld [vmem:[#allocation2 + $0x12b8] sm:$0xff]
        %v4146 = vld [vmem:[#allocation2 + $0x12c0] sm:$0xff]
        %v4147 = vld [vmem:[#allocation2 + $0x12c8] sm:$0xff]
        %v4148 = vld [vmem:[#allocation2 + $0x12d0] sm:$0xff]
        %v4149 = vld [vmem:[#allocation2 + $0x12d8] sm:$0xff]
        %v4150 = vld [vmem:[#allocation2 + $0x12e0] sm:$0xff]
        %v4151 = vld [vmem:[#allocation2 + $0x12e8] sm:$0xff]
        %v4152 = vld [vmem:[#allocation2 + $0x12f0] sm:$0xff]
        %v4153 = vld [vmem:[#allocation2 + $0x12f8] sm:$0xff]
        %v4154 = vld [vmem:[#allocation2 + $0x1300] sm:$0xff]
        %v4155 = vld [vmem:[#allocation2 + $0x1308] sm:$0xff]
        %v4156 = vld [vmem:[#allocation2 + $0x1310] sm:$0xff]
        %v4157 = vld [vmem:[#allocation2 + $0x1318] sm:$0xff]
        %v4158 = vld [vmem:[#allocation2 + $0x1320] sm:$0xff]
        %v4159 = vld [vmem:[#allocation2 + $0x1328] sm:$0xff]
        %v4160 = vld [vmem:[#allocation2 + $0x1330] sm:$0xff]
        %v4161 = vld [vmem:[#allocation2 + $0x1338] sm:$0xff]
        %v4162 = vld [vmem:[#allocation2 + $0x1340] sm:$0xff]
        %v4163 = vld [vmem:[#allocation2 + $0x1348] sm:$0xff]
        %v4164 = vld [vmem:[#allocation2 + $0x1350] sm:$0xff]
        %v4165 = vld [vmem:[#allocation2 + $0x1358] sm:$0xff]
        %v4166 = vld [vmem:[#allocation2 + $0x1360] sm:$0xff]
        %v4167 = vld [vmem:[#allocation2 + $0x1368] sm:$0xff]
        %v4168 = vld [vmem:[#allocation2 + $0x1370] sm:$0xff]
        %v4169 = vld [vmem:[#allocation2 + $0x1378] sm:$0xff]
        %v4170 = vld [vmem:[#allocation2 + $0x1380] sm:$0xff]
        %v4171 = vld [vmem:[#allocation2 + $0x1388] sm:$0xff]
        %v4172 = vld [vmem:[#allocation2 + $0x1390] sm:$0xff]
        %v4173 = vld [vmem:[#allocation2 + $0x1398] sm:$0xff]
        %v4174 = vld [vmem:[#allocation2 + $0x13a0] sm:$0xff]
        %v4175 = vld [vmem:[#allocation2 + $0x13a8] sm:$0xff]
        %v4176 = vld [vmem:[#allocation2 + $0x13b0] sm:$0xff]
        %v4177 = vld [vmem:[#allocation2 + $0x13b8] sm:$0xff]
        %v4178 = vld [vmem:[#allocation2 + $0x13c0] sm:$0xff]
        %v4179 = vld [vmem:[#allocation2 + $0x13c8] sm:$0xff]
        %v4180 = vld [vmem:[#allocation2 + $0x13d0] sm:$0xff]
        %v4181 = vld [vmem:[#allocation2 + $0x13d8] sm:$0xff]
        %v4182 = vld [vmem:[#allocation2 + $0x13e0] sm:$0xff]
        %v4183 = vld [vmem:[#allocation2 + $0x13e8] sm:$0xff]
        %v4184 = vld [vmem:[#allocation2 + $0x13f0] sm:$0xff]
        %v4185 = vld [vmem:[#allocation2 + $0x13f8] sm:$0xff]
        %v4186 = vld [vmem:[#allocation2 + $0x1400] sm:$0xff]
        %v4187 = vld [vmem:[#allocation2 + $0x1408] sm:$0xff]
        %v4188 = vld [vmem:[#allocation2 + $0x1410] sm:$0xff]
        %v4189 = vld [vmem:[#allocation2 + $0x1418] sm:$0xff]
        %v4190 = vld [vmem:[#allocation2 + $0x1420] sm:$0xff]
        %v4191 = vld [vmem:[#allocation2 + $0x1428] sm:$0xff]
        %v4192 = vld [vmem:[#allocation2 + $0x1430] sm:$0xff]
        %v4193 = vld [vmem:[#allocation2 + $0x1438] sm:$0xff]
        %v4194 = vld [vmem:[#allocation2 + $0x1440] sm:$0xff]
        %v4195 = vld [vmem:[#allocation2 + $0x1448] sm:$0xff]
        %v4196 = vld [vmem:[#allocation2 + $0x1450] sm:$0xff]
        %v4197 = vld [vmem:[#allocation2 + $0x1458] sm:$0xff]
        %v4198 = vld [vmem:[#allocation2 + $0x1460] sm:$0xff]
        %v4199 = vld [vmem:[#allocation2 + $0x1468] sm:$0xff]
        %v4200 = vld [vmem:[#allocation2 + $0x1470] sm:$0xff]
        %v4201 = vld [vmem:[#allocation2 + $0x1478] sm:$0xff]
        %v4202 = vld [vmem:[#allocation2 + $0x1480] sm:$0xff]
        %v4203 = vld [vmem:[#allocation2 + $0x1488] sm:$0xff]
        %v4204 = vld [vmem:[#allocation2 + $0x1490] sm:$0xff]
        %v4205 = vld [vmem:[#allocation2 + $0x1498] sm:$0xff]
        %v4206 = vld [vmem:[#allocation2 + $0x14a0] sm:$0xff]
        %v4207 = vld [vmem:[#allocation2 + $0x14a8] sm:$0xff]
        %v4208 = vld [vmem:[#allocation2 + $0x14b0] sm:$0xff]
        %v4209 = vld [vmem:[#allocation2 + $0x14b8] sm:$0xff]
        %v4210 = vld [vmem:[#allocation2 + $0x14c0] sm:$0xff]
        %v4211 = vld [vmem:[#allocation2 + $0x14c8] sm:$0xff]
        %v4212 = vld [vmem:[#allocation2 + $0x14d0] sm:$0xff]
        %v4213 = vld [vmem:[#allocation2 + $0x14d8] sm:$0xff]
        %v4214 = vld [vmem:[#allocation2 + $0x14e0] sm:$0xff]
        %v4215 = vld [vmem:[#allocation2 + $0x14e8] sm:$0xff]
        %v4216 = vld [vmem:[#allocation2 + $0x14f0] sm:$0xff]
        %v4217 = vld [vmem:[#allocation2 + $0x14f8] sm:$0xff]
        %v4218 = vld [vmem:[#allocation2 + $0x1500] sm:$0xff]
        %v4219 = vld [vmem:[#allocation2 + $0x1508] sm:$0xff]
        %v4220 = vld [vmem:[#allocation2 + $0x1510] sm:$0xff]
        %v4221 = vld [vmem:[#allocation2 + $0x1518] sm:$0xff]
        %v4222 = vld [vmem:[#allocation2 + $0x1520] sm:$0xff]
        %v4223 = vld [vmem:[#allocation2 + $0x1528] sm:$0xff]
        %v4224 = vld [vmem:[#allocation2 + $0x1530] sm:$0xff]
        %v4225 = vld [vmem:[#allocation2 + $0x1538] sm:$0xff]
        %v4226 = vld [vmem:[#allocation2 + $0x1540] sm:$0xff]
        %v4227 = vld [vmem:[#allocation2 + $0x1548] sm:$0xff]
        %v4228 = vld [vmem:[#allocation2 + $0x1550] sm:$0xff]
        %v4229 = vld [vmem:[#allocation2 + $0x1558] sm:$0xff]
        %v4230 = vld [vmem:[#allocation2 + $0x1560] sm:$0xff]
        %v4231 = vld [vmem:[#allocation2 + $0x1568] sm:$0xff]
        %v4232 = vld [vmem:[#allocation2 + $0x1570] sm:$0xff]
        %v4233 = vld [vmem:[#allocation2 + $0x1578] sm:$0xff]
        %v4234 = vld [vmem:[#allocation2 + $0x1580] sm:$0xff]
        %v4235 = vld [vmem:[#allocation2 + $0x1588] sm:$0xff]
        %v4236 = vld [vmem:[#allocation2 + $0x1590] sm:$0xff]
        %v4237 = vld [vmem:[#allocation2 + $0x1598] sm:$0xff]
        %v4238 = vld [vmem:[#allocation2 + $0x15a0] sm:$0xff]
        %v4239 = vld [vmem:[#allocation2 + $0x15a8] sm:$0xff]
        %v4240 = vld [vmem:[#allocation2 + $0x15b0] sm:$0xff]
        %v4241 = vld [vmem:[#allocation2 + $0x15b8] sm:$0xff]
        %v4242 = vld [vmem:[#allocation2 + $0x15c0] sm:$0xff]
        %v4243 = vld [vmem:[#allocation2 + $0x15c8] sm:$0xff]
        %v4244 = vld [vmem:[#allocation2 + $0x15d0] sm:$0xff]
        %v4245 = vld [vmem:[#allocation2 + $0x15d8] sm:$0xff]
        %v4246 = vld [vmem:[#allocation2 + $0x15e0] sm:$0xff]
        %v4247 = vld [vmem:[#allocation2 + $0x15e8] sm:$0xff]
        %v4248 = vld [vmem:[#allocation2 + $0x15f0] sm:$0xff]
        %v4249 = vld [vmem:[#allocation2 + $0x15f8] sm:$0xff]
        %v4250 = vld [vmem:[#allocation2 + $0x1600] sm:$0xff]
        %v4251 = vld [vmem:[#allocation2 + $0x1608] sm:$0xff]
        %v4252 = vld [vmem:[#allocation2 + $0x1610] sm:$0xff]
        %v4253 = vld [vmem:[#allocation2 + $0x1618] sm:$0xff]
        %v4254 = vld [vmem:[#allocation2 + $0x1620] sm:$0xff]
        %v4255 = vld [vmem:[#allocation2 + $0x1628] sm:$0xff]
        %v4256 = vld [vmem:[#allocation2 + $0x1630] sm:$0xff]
        %v4257 = vld [vmem:[#allocation2 + $0x1638] sm:$0xff]
        %v4258 = vld [vmem:[#allocation2 + $0x1640] sm:$0xff]
        %v4259 = vld [vmem:[#allocation2 + $0x1648] sm:$0xff]
        %v4260 = vld [vmem:[#allocation2 + $0x1650] sm:$0xff]
        %v4261 = vld [vmem:[#allocation2 + $0x1658] sm:$0xff]
        %v4262 = vld [vmem:[#allocation2 + $0x1660] sm:$0xff]
        %v4263 = vld [vmem:[#allocation2 + $0x1668] sm:$0xff]
        %v4264 = vld [vmem:[#allocation2 + $0x1670] sm:$0xff]
        %v4265 = vld [vmem:[#allocation2 + $0x1678] sm:$0xff]
        %v4266 = vld [vmem:[#allocation2 + $0x1680] sm:$0xff]
        %v4267 = vld [vmem:[#allocation2 + $0x1688] sm:$0xff]
        %v4268 = vld [vmem:[#allocation2 + $0x1690] sm:$0xff]
        %v4269 = vld [vmem:[#allocation2 + $0x1698] sm:$0xff]
        %v4270 = vld [vmem:[#allocation2 + $0x16a0] sm:$0xff]
        %v4271 = vld [vmem:[#allocation2 + $0x16a8] sm:$0xff]
        %v4272 = vld [vmem:[#allocation2 + $0x16b0] sm:$0xff]
        %v4273 = vld [vmem:[#allocation2 + $0x16b8] sm:$0xff]
        %v4274 = vld [vmem:[#allocation2 + $0x16c0] sm:$0xff]
        %v4275 = vld [vmem:[#allocation2 + $0x16c8] sm:$0xff]
        %v4276 = vld [vmem:[#allocation2 + $0x16d0] sm:$0xff]
        %v4277 = vld [vmem:[#allocation2 + $0x16d8] sm:$0xff]
        %v4278 = vld [vmem:[#allocation2 + $0x16e0] sm:$0xff]
        %v4279 = vld [vmem:[#allocation2 + $0x16e8] sm:$0xff]
        %v4280 = vld [vmem:[#allocation2 + $0x16f0] sm:$0xff]
        %v4281 = vld [vmem:[#allocation2 + $0x16f8] sm:$0xff]
        %v4282 = vld [vmem:[#allocation2 + $0x1700] sm:$0xff]
        %v4283 = vld [vmem:[#allocation2 + $0x1708] sm:$0xff]
        %v4284 = vld [vmem:[#allocation2 + $0x1710] sm:$0xff]
        %v4285 = vld [vmem:[#allocation2 + $0x1718] sm:$0xff]
        %v4286 = vld [vmem:[#allocation2 + $0x1720] sm:$0xff]
        %v4287 = vld [vmem:[#allocation2 + $0x1728] sm:$0xff]
        %v4288 = vld [vmem:[#allocation2 + $0x1730] sm:$0xff]
        %v4289 = vld [vmem:[#allocation2 + $0x1738] sm:$0xff]
        %v4290 = vld [vmem:[#allocation2 + $0x1740] sm:$0xff]
        %v4291 = vld [vmem:[#allocation2 + $0x1748] sm:$0xff]
        %v4292 = vld [vmem:[#allocation2 + $0x1750] sm:$0xff]
        %v4293 = vld [vmem:[#allocation2 + $0x1758] sm:$0xff]
        %v4294 = vld [vmem:[#allocation2 + $0x1760] sm:$0xff]
        %v4295 = vld [vmem:[#allocation2 + $0x1768] sm:$0xff]
        %v4296 = vld [vmem:[#allocation2 + $0x1770] sm:$0xff]
        %v4297 = vld [vmem:[#allocation2 + $0x1778] sm:$0xff]
        %v4298 = vld [vmem:[#allocation2 + $0x1780] sm:$0xff]
        %v4299 = vld [vmem:[#allocation2 + $0x1788] sm:$0xff]
        %v4300 = vld [vmem:[#allocation2 + $0x1790] sm:$0xff]
        %v4301 = vld [vmem:[#allocation2 + $0x1798] sm:$0xff]
        %v4302 = vld [vmem:[#allocation2 + $0x17a0] sm:$0xff]
        %v4303 = vld [vmem:[#allocation2 + $0x17a8] sm:$0xff]
        %v4304 = vld [vmem:[#allocation2 + $0x17b0] sm:$0xff]
        %v4305 = vld [vmem:[#allocation2 + $0x17b8] sm:$0xff]
        %v4306 = vld [vmem:[#allocation2 + $0x17c0] sm:$0xff]
        %v4307 = vld [vmem:[#allocation2 + $0x17c8] sm:$0xff]
        %v4308 = vld [vmem:[#allocation2 + $0x17d0] sm:$0xff]
        %v4309 = vld [vmem:[#allocation2 + $0x17d8] sm:$0xff]
        %v4310 = vld [vmem:[#allocation2 + $0x17e0] sm:$0xff]
        %v4311 = vld [vmem:[#allocation2 + $0x17e8] sm:$0xff]
        %v4312 = vld [vmem:[#allocation2 + $0x17f0] sm:$0xff]
        %v4313 = vld [vmem:[#allocation2 + $0x17f8] sm:$0xff]
        %v4316 = vunpack.c.l.b16 %v250
        %v4317 = vunpack.c.h.b16 %v250
        %v4318 = vunpack.c.l.b16 %v251
        %v4319 = vunpack.c.h.b16 %v251
        %v4320 = vpack.c.b16 %v4316, %v2422
        %v4321 = vpack.c.b16 %v4317, %v2423
        %v4322 = vpack.c.b16 %v4318, %v2424
        %v4323 = vpack.c.b16 %v4319, %v2425
        %v4584 = vunpack.c.l.b16 %v4058
        %v4585 = vunpack.c.h.b16 %v4058
        %v4586 = vunpack.c.l.b16 %v4059
        %v4587 = vunpack.c.h.b16 %v4059
        %v4588 = vunpack.c.l.b16 %v4060
        %v4589 = vunpack.c.h.b16 %v4060
        %v4590 = vunpack.c.l.b16 %v4061
        %v4591 = vunpack.c.h.b16 %v4061
        %v4592 = vunpack.c.l.b16 %v4062
        %v4593 = vunpack.c.h.b16 %v4062
        %v4594 = vunpack.c.l.b16 %v4063
        %v4595 = vunpack.c.h.b16 %v4063
        %v4596 = vunpack.c.l.b16 %v4064
        %v4597 = vunpack.c.h.b16 %v4064
        %v4598 = vunpack.c.l.b16 %v4065
        %v4599 = vunpack.c.h.b16 %v4065
        %v4600 = vunpack.c.l.b16 %v4066
        %v4601 = vunpack.c.h.b16 %v4066
        %v4602 = vunpack.c.l.b16 %v4067
        %v4603 = vunpack.c.h.b16 %v4067
        %v4604 = vunpack.c.l.b16 %v4068
        %v4605 = vunpack.c.h.b16 %v4068
        %v4606 = vunpack.c.l.b16 %v4069
        %v4607 = vunpack.c.h.b16 %v4069
        %v4608 = vunpack.c.l.b16 %v4070
        %v4609 = vunpack.c.h.b16 %v4070
        %v4610 = vunpack.c.l.b16 %v4071
        %v4611 = vunpack.c.h.b16 %v4071
        %v4612 = vunpack.c.l.b16 %v4072
        %v4613 = vunpack.c.h.b16 %v4072
        %v4614 = vunpack.c.l.b16 %v4073
        %v4615 = vunpack.c.h.b16 %v4073
        %v4616 = vunpack.c.l.b16 %v4074
        %v4617 = vunpack.c.h.b16 %v4074
        %v4618 = vunpack.c.l.b16 %v4075
        %v4619 = vunpack.c.h.b16 %v4075
        %v4620 = vunpack.c.l.b16 %v4076
        %v4621 = vunpack.c.h.b16 %v4076
        %v4622 = vunpack.c.l.b16 %v4077
        %v4623 = vunpack.c.h.b16 %v4077
        %v4624 = vunpack.c.l.b16 %v4078
        %v4625 = vunpack.c.h.b16 %v4078
        %v4626 = vunpack.c.l.b16 %v4079
        %v4627 = vunpack.c.h.b16 %v4079
        %v4628 = vunpack.c.l.b16 %v4080
        %v4629 = vunpack.c.h.b16 %v4080
        %v4630 = vunpack.c.l.b16 %v4081
        %v4631 = vunpack.c.h.b16 %v4081
        %v4632 = vunpack.c.l.b16 %v4082
        %v4633 = vunpack.c.h.b16 %v4082
        %v4634 = vunpack.c.l.b16 %v4083
        %v4635 = vunpack.c.h.b16 %v4083
        %v4636 = vunpack.c.l.b16 %v4084
        %v4637 = vunpack.c.h.b16 %v4084
        %v4638 = vunpack.c.l.b16 %v4085
        %v4639 = vunpack.c.h.b16 %v4085
        %v4640 = vunpack.c.l.b16 %v4086
        %v4641 = vunpack.c.h.b16 %v4086
        %v4642 = vunpack.c.l.b16 %v4087
        %v4643 = vunpack.c.h.b16 %v4087
        %v4644 = vunpack.c.l.b16 %v4088
        %v4645 = vunpack.c.h.b16 %v4088
        %v4646 = vunpack.c.l.b16 %v4089
        %v4647 = vunpack.c.h.b16 %v4089
        %v4648 = vunpack.c.l.b16 %v4090
        %v4649 = vunpack.c.h.b16 %v4090
        %v4650 = vunpack.c.l.b16 %v4091
        %v4651 = vunpack.c.h.b16 %v4091
        %v4652 = vunpack.c.l.b16 %v4092
        %v4653 = vunpack.c.h.b16 %v4092
        %v4654 = vunpack.c.l.b16 %v4093
        %v4655 = vunpack.c.h.b16 %v4093
        %v4656 = vunpack.c.l.b16 %v4094
        %v4657 = vunpack.c.h.b16 %v4094
        %v4658 = vunpack.c.l.b16 %v4095
        %v4659 = vunpack.c.h.b16 %v4095
        %v4660 = vunpack.c.l.b16 %v4096
        %v4661 = vunpack.c.h.b16 %v4096
        %v4662 = vunpack.c.l.b16 %v4097
        %v4663 = vunpack.c.h.b16 %v4097
        %v4664 = vunpack.c.l.b16 %v4098
        %v4665 = vunpack.c.h.b16 %v4098
        %v4666 = vunpack.c.l.b16 %v4099
        %v4667 = vunpack.c.h.b16 %v4099
        %v4668 = vunpack.c.l.b16 %v4100
        %v4669 = vunpack.c.h.b16 %v4100
        %v4670 = vunpack.c.l.b16 %v4101
        %v4671 = vunpack.c.h.b16 %v4101
        %v4672 = vunpack.c.l.b16 %v4102
        %v4673 = vunpack.c.h.b16 %v4102
        %v4674 = vunpack.c.l.b16 %v4103
        %v4675 = vunpack.c.h.b16 %v4103
        %v4676 = vunpack.c.l.b16 %v4104
        %v4677 = vunpack.c.h.b16 %v4104
        %v4678 = vunpack.c.l.b16 %v4105
        %v4679 = vunpack.c.h.b16 %v4105
        %v4680 = vunpack.c.l.b16 %v4106
        %v4681 = vunpack.c.h.b16 %v4106
        %v4682 = vunpack.c.l.b16 %v4107
        %v4683 = vunpack.c.h.b16 %v4107
        %v4684 = vunpack.c.l.b16 %v4108
        %v4685 = vunpack.c.h.b16 %v4108
        %v4686 = vunpack.c.l.b16 %v4109
        %v4687 = vunpack.c.h.b16 %v4109
        %v4688 = vunpack.c.l.b16 %v4110
        %v4689 = vunpack.c.h.b16 %v4110
        %v4690 = vunpack.c.l.b16 %v4111
        %v4691 = vunpack.c.h.b16 %v4111
        %v4692 = vunpack.c.l.b16 %v4112
        %v4693 = vunpack.c.h.b16 %v4112
        %v4694 = vunpack.c.l.b16 %v4113
        %v4695 = vunpack.c.h.b16 %v4113
        %v4696 = vunpack.c.l.b16 %v4114
        %v4697 = vunpack.c.h.b16 %v4114
        %v4698 = vunpack.c.l.b16 %v4115
        %v4699 = vunpack.c.h.b16 %v4115
        %v4700 = vunpack.c.l.b16 %v4116
        %v4701 = vunpack.c.h.b16 %v4116
        %v4702 = vunpack.c.l.b16 %v4117
        %v4703 = vunpack.c.h.b16 %v4117
        %v4704 = vunpack.c.l.b16 %v4118
        %v4705 = vunpack.c.h.b16 %v4118
        %v4706 = vunpack.c.l.b16 %v4119
        %v4707 = vunpack.c.h.b16 %v4119
        %v4708 = vunpack.c.l.b16 %v4120
        %v4709 = vunpack.c.h.b16 %v4120
        %v4710 = vunpack.c.l.b16 %v4121
        %v4711 = vunpack.c.h.b16 %v4121
        %v4712 = vunpack.c.l.b16 %v4122
        %v4713 = vunpack.c.h.b16 %v4122
        %v4714 = vunpack.c.l.b16 %v4123
        %v4715 = vunpack.c.h.b16 %v4123
        %v4716 = vunpack.c.l.b16 %v4124
        %v4717 = vunpack.c.h.b16 %v4124
        %v4718 = vunpack.c.l.b16 %v4125
        %v4719 = vunpack.c.h.b16 %v4125
        %v4720 = vunpack.c.l.b16 %v4126
        %v4721 = vunpack.c.h.b16 %v4126
        %v4722 = vunpack.c.l.b16 %v4127
        %v4723 = vunpack.c.h.b16 %v4127
        %v4724 = vunpack.c.l.b16 %v4128
        %v4725 = vunpack.c.h.b16 %v4128
        %v4726 = vunpack.c.l.b16 %v4129
        %v4727 = vunpack.c.h.b16 %v4129
        %v4728 = vunpack.c.l.b16 %v4130
        %v4729 = vunpack.c.h.b16 %v4130
        %v4730 = vunpack.c.l.b16 %v4131
        %v4731 = vunpack.c.h.b16 %v4131
        %v4732 = vunpack.c.l.b16 %v4132
        %v4733 = vunpack.c.h.b16 %v4132
        %v4734 = vunpack.c.l.b16 %v4133
        %v4735 = vunpack.c.h.b16 %v4133
        %v4736 = vunpack.c.l.b16 %v4134
        %v4737 = vunpack.c.h.b16 %v4134
        %v4738 = vunpack.c.l.b16 %v4135
        %v4739 = vunpack.c.h.b16 %v4135
        %v4740 = vunpack.c.l.b16 %v4136
        %v4741 = vunpack.c.h.b16 %v4136
        %v4742 = vunpack.c.l.b16 %v4137
        %v4743 = vunpack.c.h.b16 %v4137
        %v4744 = vunpack.c.l.b16 %v4138
        %v4745 = vunpack.c.h.b16 %v4138
        %v4746 = vunpack.c.l.b16 %v4139
        %v4747 = vunpack.c.h.b16 %v4139
        %v4748 = vunpack.c.l.b16 %v4140
        %v4749 = vunpack.c.h.b16 %v4140
        %v4750 = vunpack.c.l.b16 %v4141
        %v4751 = vunpack.c.h.b16 %v4141
        %v4752 = vunpack.c.l.b16 %v4142
        %v4753 = vunpack.c.h.b16 %v4142
        %v4754 = vunpack.c.l.b16 %v4143
        %v4755 = vunpack.c.h.b16 %v4143
        %v4756 = vunpack.c.l.b16 %v4144
        %v4757 = vunpack.c.h.b16 %v4144
        %v4758 = vunpack.c.l.b16 %v4145
        %v4759 = vunpack.c.h.b16 %v4145
        %v4760 = vunpack.c.l.b16 %v4146
        %v4761 = vunpack.c.h.b16 %v4146
        %v4762 = vunpack.c.l.b16 %v4147
        %v4763 = vunpack.c.h.b16 %v4147
        %v4764 = vunpack.c.l.b16 %v4148
        %v4765 = vunpack.c.h.b16 %v4148
        %v4766 = vunpack.c.l.b16 %v4149
        %v4767 = vunpack.c.h.b16 %v4149
        %v4768 = vunpack.c.l.b16 %v4150
        %v4769 = vunpack.c.h.b16 %v4150
        %v4770 = vunpack.c.l.b16 %v4151
        %v4771 = vunpack.c.h.b16 %v4151
        %v4772 = vunpack.c.l.b16 %v4152
        %v4773 = vunpack.c.h.b16 %v4152
        %v4774 = vunpack.c.l.b16 %v4153
        %v4775 = vunpack.c.h.b16 %v4153
        %v4776 = vunpack.c.l.b16 %v4154
        %v4777 = vunpack.c.h.b16 %v4154
        %v4778 = vunpack.c.l.b16 %v4155
        %v4779 = vunpack.c.h.b16 %v4155
        %v4780 = vunpack.c.l.b16 %v4156
        %v4781 = vunpack.c.h.b16 %v4156
        %v4782 = vunpack.c.l.b16 %v4157
        %v4783 = vunpack.c.h.b16 %v4157
        %v4784 = vunpack.c.l.b16 %v4158
        %v4785 = vunpack.c.h.b16 %v4158
        %v4786 = vunpack.c.l.b16 %v4159
        %v4787 = vunpack.c.h.b16 %v4159
        %v4788 = vunpack.c.l.b16 %v4160
        %v4789 = vunpack.c.h.b16 %v4160
        %v4790 = vunpack.c.l.b16 %v4161
        %v4791 = vunpack.c.h.b16 %v4161
        %v4792 = vunpack.c.l.b16 %v4162
        %v4793 = vunpack.c.h.b16 %v4162
        %v4794 = vunpack.c.l.b16 %v4163
        %v4795 = vunpack.c.h.b16 %v4163
        %v4796 = vunpack.c.l.b16 %v4164
        %v4797 = vunpack.c.h.b16 %v4164
        %v4798 = vunpack.c.l.b16 %v4165
        %v4799 = vunpack.c.h.b16 %v4165
        %v4800 = vunpack.c.l.b16 %v4166
        %v4801 = vunpack.c.h.b16 %v4166
        %v4802 = vunpack.c.l.b16 %v4167
        %v4803 = vunpack.c.h.b16 %v4167
        %v4804 = vunpack.c.l.b16 %v4168
        %v4805 = vunpack.c.h.b16 %v4168
        %v4806 = vunpack.c.l.b16 %v4169
        %v4807 = vunpack.c.h.b16 %v4169
        %v4808 = vunpack.c.l.b16 %v4170
        %v4809 = vunpack.c.h.b16 %v4170
        %v4810 = vunpack.c.l.b16 %v4171
        %v4811 = vunpack.c.h.b16 %v4171
        %v4812 = vunpack.c.l.b16 %v4172
        %v4813 = vunpack.c.h.b16 %v4172
        %v4814 = vunpack.c.l.b16 %v4173
        %v4815 = vunpack.c.h.b16 %v4173
        %v4816 = vunpack.c.l.b16 %v4174
        %v4817 = vunpack.c.h.b16 %v4174
        %v4818 = vunpack.c.l.b16 %v4175
        %v4819 = vunpack.c.h.b16 %v4175
        %v4820 = vunpack.c.l.b16 %v4176
        %v4821 = vunpack.c.h.b16 %v4176
        %v4822 = vunpack.c.l.b16 %v4177
        %v4823 = vunpack.c.h.b16 %v4177
        %v4824 = vunpack.c.l.b16 %v4178
        %v4825 = vunpack.c.h.b16 %v4178
        %v4826 = vunpack.c.l.b16 %v4179
        %v4827 = vunpack.c.h.b16 %v4179
        %v4828 = vunpack.c.l.b16 %v4180
        %v4829 = vunpack.c.h.b16 %v4180
        %v4830 = vunpack.c.l.b16 %v4181
        %v4831 = vunpack.c.h.b16 %v4181
        %v4832 = vunpack.c.l.b16 %v4182
        %v4833 = vunpack.c.h.b16 %v4182
        %v4834 = vunpack.c.l.b16 %v4183
        %v4835 = vunpack.c.h.b16 %v4183
        %v4836 = vunpack.c.l.b16 %v4184
        %v4837 = vunpack.c.h.b16 %v4184
        %v4838 = vunpack.c.l.b16 %v4185
        %v4839 = vunpack.c.h.b16 %v4185
        %v4840 = vunpack.c.l.b16 %v4186
        %v4841 = vunpack.c.h.b16 %v4186
        %v4842 = vunpack.c.l.b16 %v4187
        %v4843 = vunpack.c.h.b16 %v4187
        %v4844 = vunpack.c.l.b16 %v4188
        %v4845 = vunpack.c.h.b16 %v4188
        %v4846 = vunpack.c.l.b16 %v4189
        %v4847 = vunpack.c.h.b16 %v4189
        %v4848 = vunpack.c.l.b16 %v4190
        %v4849 = vunpack.c.h.b16 %v4190
        %v4850 = vunpack.c.l.b16 %v4191
        %v4851 = vunpack.c.h.b16 %v4191
        %v4852 = vunpack.c.l.b16 %v4192
        %v4853 = vunpack.c.h.b16 %v4192
        %v4854 = vunpack.c.l.b16 %v4193
        %v4855 = vunpack.c.h.b16 %v4193
        %v4856 = vunpack.c.l.b16 %v4194
        %v4857 = vunpack.c.h.b16 %v4194
        %v4858 = vunpack.c.l.b16 %v4195
        %v4859 = vunpack.c.h.b16 %v4195
        %v4860 = vunpack.c.l.b16 %v4196
        %v4861 = vunpack.c.h.b16 %v4196
        %v4862 = vunpack.c.l.b16 %v4197
        %v4863 = vunpack.c.h.b16 %v4197
        %v4864 = vunpack.c.l.b16 %v4198
        %v4865 = vunpack.c.h.b16 %v4198
        %v4866 = vunpack.c.l.b16 %v4199
        %v4867 = vunpack.c.h.b16 %v4199
        %v4868 = vunpack.c.l.b16 %v4200
        %v4869 = vunpack.c.h.b16 %v4200
        %v4870 = vunpack.c.l.b16 %v4201
        %v4871 = vunpack.c.h.b16 %v4201
        %v4872 = vunpack.c.l.b16 %v4202
        %v4873 = vunpack.c.h.b16 %v4202
        %v4874 = vunpack.c.l.b16 %v4203
        %v4875 = vunpack.c.h.b16 %v4203
        %v4876 = vunpack.c.l.b16 %v4204
        %v4877 = vunpack.c.h.b16 %v4204
        %v4878 = vunpack.c.l.b16 %v4205
        %v4879 = vunpack.c.h.b16 %v4205
        %v4880 = vunpack.c.l.b16 %v4206
        %v4881 = vunpack.c.h.b16 %v4206
        %v4882 = vunpack.c.l.b16 %v4207
        %v4883 = vunpack.c.h.b16 %v4207
        %v4884 = vunpack.c.l.b16 %v4208
        %v4885 = vunpack.c.h.b16 %v4208
        %v4886 = vunpack.c.l.b16 %v4209
        %v4887 = vunpack.c.h.b16 %v4209
        %v4888 = vunpack.c.l.b16 %v4210
        %v4889 = vunpack.c.h.b16 %v4210
        %v4890 = vunpack.c.l.b16 %v4211
        %v4891 = vunpack.c.h.b16 %v4211
        %v4892 = vunpack.c.l.b16 %v4212
        %v4893 = vunpack.c.h.b16 %v4212
        %v4894 = vunpack.c.l.b16 %v4213
        %v4895 = vunpack.c.h.b16 %v4213
        %v4896 = vunpack.c.l.b16 %v4214
        %v4897 = vunpack.c.h.b16 %v4214
        %v4898 = vunpack.c.l.b16 %v4215
        %v4899 = vunpack.c.h.b16 %v4215
        %v4900 = vunpack.c.l.b16 %v4216
        %v4901 = vunpack.c.h.b16 %v4216
        %v4902 = vunpack.c.l.b16 %v4217
        %v4903 = vunpack.c.h.b16 %v4217
        %v4904 = vunpack.c.l.b16 %v4218
        %v4905 = vunpack.c.h.b16 %v4218
        %v4906 = vunpack.c.l.b16 %v4219
        %v4907 = vunpack.c.h.b16 %v4219
        %v4908 = vunpack.c.l.b16 %v4220
        %v4909 = vunpack.c.h.b16 %v4220
        %v4910 = vunpack.c.l.b16 %v4221
        %v4911 = vunpack.c.h.b16 %v4221
        %v4912 = vunpack.c.l.b16 %v4222
        %v4913 = vunpack.c.h.b16 %v4222
        %v4914 = vunpack.c.l.b16 %v4223
        %v4915 = vunpack.c.h.b16 %v4223
        %v4916 = vunpack.c.l.b16 %v4224
        %v4917 = vunpack.c.h.b16 %v4224
        %v4918 = vunpack.c.l.b16 %v4225
        %v4919 = vunpack.c.h.b16 %v4225
        %v4920 = vunpack.c.l.b16 %v4226
        %v4921 = vunpack.c.h.b16 %v4226
        %v4922 = vunpack.c.l.b16 %v4227
        %v4923 = vunpack.c.h.b16 %v4227
        %v4924 = vunpack.c.l.b16 %v4228
        %v4925 = vunpack.c.h.b16 %v4228
        %v4926 = vunpack.c.l.b16 %v4229
        %v4927 = vunpack.c.h.b16 %v4229
        %v4928 = vunpack.c.l.b16 %v4230
        %v4929 = vunpack.c.h.b16 %v4230
        %v4930 = vunpack.c.l.b16 %v4231
        %v4931 = vunpack.c.h.b16 %v4231
        %v4932 = vunpack.c.l.b16 %v4232
        %v4933 = vunpack.c.h.b16 %v4232
        %v4934 = vunpack.c.l.b16 %v4233
        %v4935 = vunpack.c.h.b16 %v4233
        %v4936 = vunpack.c.l.b16 %v4234
        %v4937 = vunpack.c.h.b16 %v4234
        %v4938 = vunpack.c.l.b16 %v4235
        %v4939 = vunpack.c.h.b16 %v4235
        %v4940 = vunpack.c.l.b16 %v4236
        %v4941 = vunpack.c.h.b16 %v4236
        %v4942 = vunpack.c.l.b16 %v4237
        %v4943 = vunpack.c.h.b16 %v4237
        %v4944 = vunpack.c.l.b16 %v4238
        %v4945 = vunpack.c.h.b16 %v4238
        %v4946 = vunpack.c.l.b16 %v4239
        %v4947 = vunpack.c.h.b16 %v4239
        %v4948 = vunpack.c.l.b16 %v4240
        %v4949 = vunpack.c.h.b16 %v4240
        %v4950 = vunpack.c.l.b16 %v4241
        %v4951 = vunpack.c.h.b16 %v4241
        %v4952 = vunpack.c.l.b16 %v4242
        %v4953 = vunpack.c.h.b16 %v4242
        %v4954 = vunpack.c.l.b16 %v4243
        %v4955 = vunpack.c.h.b16 %v4243
        %v4956 = vunpack.c.l.b16 %v4244
        %v4957 = vunpack.c.h.b16 %v4244
        %v4958 = vunpack.c.l.b16 %v4245
        %v4959 = vunpack.c.h.b16 %v4245
        %v4960 = vunpack.c.l.b16 %v4246
        %v4961 = vunpack.c.h.b16 %v4246
        %v4962 = vunpack.c.l.b16 %v4247
        %v4963 = vunpack.c.h.b16 %v4247
        %v4964 = vunpack.c.l.b16 %v4248
        %v4965 = vunpack.c.h.b16 %v4248
        %v4966 = vunpack.c.l.b16 %v4249
        %v4967 = vunpack.c.h.b16 %v4249
        %v4968 = vunpack.c.l.b16 %v4250
        %v4969 = vunpack.c.h.b16 %v4250
        %v4970 = vunpack.c.l.b16 %v4251
        %v4971 = vunpack.c.h.b16 %v4251
        %v4972 = vunpack.c.l.b16 %v4252
        %v4973 = vunpack.c.h.b16 %v4252
        %v4974 = vunpack.c.l.b16 %v4253
        %v4975 = vunpack.c.h.b16 %v4253
        %v4976 = vunpack.c.l.b16 %v4254
        %v4977 = vunpack.c.h.b16 %v4254
        %v4978 = vunpack.c.l.b16 %v4255
        %v4979 = vunpack.c.h.b16 %v4255
        %v4980 = vunpack.c.l.b16 %v4256
        %v4981 = vunpack.c.h.b16 %v4256
        %v4982 = vunpack.c.l.b16 %v4257
        %v4983 = vunpack.c.h.b16 %v4257
        %v4984 = vunpack.c.l.b16 %v4258
        %v4985 = vunpack.c.h.b16 %v4258
        %v4986 = vunpack.c.l.b16 %v4259
        %v4987 = vunpack.c.h.b16 %v4259
        %v4988 = vunpack.c.l.b16 %v4260
        %v4989 = vunpack.c.h.b16 %v4260
        %v4990 = vunpack.c.l.b16 %v4261
        %v4991 = vunpack.c.h.b16 %v4261
        %v4992 = vunpack.c.l.b16 %v4262
        %v4993 = vunpack.c.h.b16 %v4262
        %v4994 = vunpack.c.l.b16 %v4263
        %v4995 = vunpack.c.h.b16 %v4263
        %v4996 = vunpack.c.l.b16 %v4264
        %v4997 = vunpack.c.h.b16 %v4264
        %v4998 = vunpack.c.l.b16 %v4265
        %v4999 = vunpack.c.h.b16 %v4265
        %v5000 = vunpack.c.l.b16 %v4266
        %v5001 = vunpack.c.h.b16 %v4266
        %v5002 = vunpack.c.l.b16 %v4267
        %v5003 = vunpack.c.h.b16 %v4267
        %v5004 = vunpack.c.l.b16 %v4268
        %v5005 = vunpack.c.h.b16 %v4268
        %v5006 = vunpack.c.l.b16 %v4269
        %v5007 = vunpack.c.h.b16 %v4269
        %v5008 = vunpack.c.l.b16 %v4270
        %v5009 = vunpack.c.h.b16 %v4270
        %v5010 = vunpack.c.l.b16 %v4271
        %v5011 = vunpack.c.h.b16 %v4271
        %v5012 = vunpack.c.l.b16 %v4272
        %v5013 = vunpack.c.h.b16 %v4272
        %v5014 = vunpack.c.l.b16 %v4273
        %v5015 = vunpack.c.h.b16 %v4273
        %v5016 = vunpack.c.l.b16 %v4274
        %v5017 = vunpack.c.h.b16 %v4274
        %v5018 = vunpack.c.l.b16 %v4275
        %v5019 = vunpack.c.h.b16 %v4275
        %v5020 = vunpack.c.l.b16 %v4276
        %v5021 = vunpack.c.h.b16 %v4276
        %v5022 = vunpack.c.l.b16 %v4277
        %v5023 = vunpack.c.h.b16 %v4277
        %v5024 = vunpack.c.l.b16 %v4278
        %v5025 = vunpack.c.h.b16 %v4278
        %v5026 = vunpack.c.l.b16 %v4279
        %v5027 = vunpack.c.h.b16 %v4279
        %v5028 = vunpack.c.l.b16 %v4280
        %v5029 = vunpack.c.h.b16 %v4280
        %v5030 = vunpack.c.l.b16 %v4281
        %v5031 = vunpack.c.h.b16 %v4281
        %v5032 = vunpack.c.l.b16 %v4282
        %v5033 = vunpack.c.h.b16 %v4282
        %v5034 = vunpack.c.l.b16 %v4283
        %v5035 = vunpack.c.h.b16 %v4283
        %v5036 = vunpack.c.l.b16 %v4284
        %v5037 = vunpack.c.h.b16 %v4284
        %v5038 = vunpack.c.l.b16 %v4285
        %v5039 = vunpack.c.h.b16 %v4285
        %v5040 = vunpack.c.l.b16 %v4286
        %v5041 = vunpack.c.h.b16 %v4286
        %v5042 = vunpack.c.l.b16 %v4287
        %v5043 = vunpack.c.h.b16 %v4287
        %v5044 = vunpack.c.l.b16 %v4288
        %v5045 = vunpack.c.h.b16 %v4288
        %v5046 = vunpack.c.l.b16 %v4289
        %v5047 = vunpack.c.h.b16 %v4289
        %v5048 = vunpack.c.l.b16 %v4290
        %v5049 = vunpack.c.h.b16 %v4290
        %v5050 = vunpack.c.l.b16 %v4291
        %v5051 = vunpack.c.h.b16 %v4291
        %v5052 = vunpack.c.l.b16 %v4292
        %v5053 = vunpack.c.h.b16 %v4292
        %v5054 = vunpack.c.l.b16 %v4293
        %v5055 = vunpack.c.h.b16 %v4293
        %v5056 = vunpack.c.l.b16 %v4294
        %v5057 = vunpack.c.h.b16 %v4294
        %v5058 = vunpack.c.l.b16 %v4295
        %v5059 = vunpack.c.h.b16 %v4295
        %v5060 = vunpack.c.l.b16 %v4296
        %v5061 = vunpack.c.h.b16 %v4296
        %v5062 = vunpack.c.l.b16 %v4297
        %v5063 = vunpack.c.h.b16 %v4297
        %v5064 = vunpack.c.l.b16 %v4298
        %v5065 = vunpack.c.h.b16 %v4298
        %v5066 = vunpack.c.l.b16 %v4299
        %v5067 = vunpack.c.h.b16 %v4299
        %v5068 = vunpack.c.l.b16 %v4300
        %v5069 = vunpack.c.h.b16 %v4300
        %v5070 = vunpack.c.l.b16 %v4301
        %v5071 = vunpack.c.h.b16 %v4301
        %v5072 = vunpack.c.l.b16 %v4302
        %v5073 = vunpack.c.h.b16 %v4302
        %v5074 = vunpack.c.l.b16 %v4303
        %v5075 = vunpack.c.h.b16 %v4303
        %v5076 = vunpack.c.l.b16 %v4304
        %v5077 = vunpack.c.h.b16 %v4304
        %v5078 = vunpack.c.l.b16 %v4305
        %v5079 = vunpack.c.h.b16 %v4305
        %v5080 = vunpack.c.l.b16 %v4306
        %v5081 = vunpack.c.h.b16 %v4306
        %v5082 = vunpack.c.l.b16 %v4307
        %v5083 = vunpack.c.h.b16 %v4307
        %v5084 = vunpack.c.l.b16 %v4308
        %v5085 = vunpack.c.h.b16 %v4308
        %v5086 = vunpack.c.l.b16 %v4309
        %v5087 = vunpack.c.h.b16 %v4309
        %v5088 = vunpack.c.l.b16 %v4310
        %v5089 = vunpack.c.h.b16 %v4310
        %v5090 = vunpack.c.l.b16 %v4311
        %v5091 = vunpack.c.h.b16 %v4311
        %v5092 = vunpack.c.l.b16 %v4312
        %v5093 = vunpack.c.h.b16 %v4312
        %v5094 = vunpack.c.l.b16 %v4313
        %v5095 = vunpack.c.h.b16 %v4313
        %v5096 = vpack.c.b16 %v4592, %v4584
        %v5097 = vpack.c.b16 %v4593, %v4585
        %v5098 = vpack.c.b16 %v4594, %v4586
        %v5099 = vpack.c.b16 %v4595, %v4587
        %v5100 = vpack.c.b16 %v4596, %v4588
        %v5101 = vpack.c.b16 %v4597, %v4589
        %v5102 = vpack.c.b16 %v4598, %v4590
        %v5103 = vpack.c.b16 %v4599, %v4591
        %v5104 = vpack.c.b16 %v4608, %v4600
        %v5105 = vpack.c.b16 %v4609, %v4601
        %v5106 = vpack.c.b16 %v4610, %v4602
        %v5107 = vpack.c.b16 %v4611, %v4603
        %v5108 = vpack.c.b16 %v4612, %v4604
        %v5109 = vpack.c.b16 %v4613, %v4605
        %v5110 = vpack.c.b16 %v4614, %v4606
        %v5111 = vpack.c.b16 %v4615, %v4607
        %v5112 = vpack.c.b16 %v4624, %v4616
        %v5113 = vpack.c.b16 %v4625, %v4617
        %v5114 = vpack.c.b16 %v4626, %v4618
        %v5115 = vpack.c.b16 %v4627, %v4619
        %v5116 = vpack.c.b16 %v4628, %v4620
        %v5117 = vpack.c.b16 %v4629, %v4621
        %v5118 = vpack.c.b16 %v4630, %v4622
        %v5119 = vpack.c.b16 %v4631, %v4623
        %v5120 = vpack.c.b16 %v4640, %v4632
        %v5121 = vpack.c.b16 %v4641, %v4633
        %v5122 = vpack.c.b16 %v4642, %v4634
        %v5123 = vpack.c.b16 %v4643, %v4635
        %v5124 = vpack.c.b16 %v4644, %v4636
        %v5125 = vpack.c.b16 %v4645, %v4637
        %v5126 = vpack.c.b16 %v4646, %v4638
        %v5127 = vpack.c.b16 %v4647, %v4639
        %v5128 = vpack.c.b16 %v4656, %v4648
        %v5129 = vpack.c.b16 %v4657, %v4649
        %v5130 = vpack.c.b16 %v4658, %v4650
        %v5131 = vpack.c.b16 %v4659, %v4651
        %v5132 = vpack.c.b16 %v4660, %v4652
        %v5133 = vpack.c.b16 %v4661, %v4653
        %v5134 = vpack.c.b16 %v4662, %v4654
        %v5135 = vpack.c.b16 %v4663, %v4655
        %v5136 = vpack.c.b16 %v4672, %v4664
        %v5137 = vpack.c.b16 %v4673, %v4665
        %v5138 = vpack.c.b16 %v4674, %v4666
        %v5139 = vpack.c.b16 %v4675, %v4667
        %v5140 = vpack.c.b16 %v4676, %v4668
        %v5141 = vpack.c.b16 %v4677, %v4669
        %v5142 = vpack.c.b16 %v4678, %v4670
        %v5143 = vpack.c.b16 %v4679, %v4671
        %v5144 = vpack.c.b16 %v4688, %v4680
        %v5145 = vpack.c.b16 %v4689, %v4681
        %v5146 = vpack.c.b16 %v4690, %v4682
        %v5147 = vpack.c.b16 %v4691, %v4683
        %v5148 = vpack.c.b16 %v4692, %v4684
        %v5149 = vpack.c.b16 %v4693, %v4685
        %v5150 = vpack.c.b16 %v4694, %v4686
        %v5151 = vpack.c.b16 %v4695, %v4687
        %v5152 = vpack.c.b16 %v4704, %v4696
        %v5153 = vpack.c.b16 %v4705, %v4697
        %v5154 = vpack.c.b16 %v4706, %v4698
        %v5155 = vpack.c.b16 %v4707, %v4699
        %v5156 = vpack.c.b16 %v4708, %v4700
        %v5157 = vpack.c.b16 %v4709, %v4701
        %v5158 = vpack.c.b16 %v4710, %v4702
        %v5159 = vpack.c.b16 %v4711, %v4703
        %v5160 = vpack.c.b16 %v4720, %v4712
        %v5161 = vpack.c.b16 %v4721, %v4713
        %v5162 = vpack.c.b16 %v4722, %v4714
        %v5163 = vpack.c.b16 %v4723, %v4715
        %v5164 = vpack.c.b16 %v4724, %v4716
        %v5165 = vpack.c.b16 %v4725, %v4717
        %v5166 = vpack.c.b16 %v4726, %v4718
        %v5167 = vpack.c.b16 %v4727, %v4719
        %v5168 = vpack.c.b16 %v4736, %v4728
        %v5169 = vpack.c.b16 %v4737, %v4729
        %v5170 = vpack.c.b16 %v4738, %v4730
        %v5171 = vpack.c.b16 %v4739, %v4731
        %v5172 = vpack.c.b16 %v4740, %v4732
        %v5173 = vpack.c.b16 %v4741, %v4733
        %v5174 = vpack.c.b16 %v4742, %v4734
        %v5175 = vpack.c.b16 %v4743, %v4735
        %v5176 = vpack.c.b16 %v4752, %v4744
        %v5177 = vpack.c.b16 %v4753, %v4745
        %v5178 = vpack.c.b16 %v4754, %v4746
        %v5179 = vpack.c.b16 %v4755, %v4747
        %v5180 = vpack.c.b16 %v4756, %v4748
        %v5181 = vpack.c.b16 %v4757, %v4749
        %v5182 = vpack.c.b16 %v4758, %v4750
        %v5183 = vpack.c.b16 %v4759, %v4751
        %v5184 = vpack.c.b16 %v4768, %v4760
        %v5185 = vpack.c.b16 %v4769, %v4761
        %v5186 = vpack.c.b16 %v4770, %v4762
        %v5187 = vpack.c.b16 %v4771, %v4763
        %v5188 = vpack.c.b16 %v4772, %v4764
        %v5189 = vpack.c.b16 %v4773, %v4765
        %v5190 = vpack.c.b16 %v4774, %v4766
        %v5191 = vpack.c.b16 %v4775, %v4767
        %v5192 = vpack.c.b16 %v4784, %v4776
        %v5193 = vpack.c.b16 %v4785, %v4777
        %v5194 = vpack.c.b16 %v4786, %v4778
        %v5195 = vpack.c.b16 %v4787, %v4779
        %v5196 = vpack.c.b16 %v4788, %v4780
        %v5197 = vpack.c.b16 %v4789, %v4781
        %v5198 = vpack.c.b16 %v4790, %v4782
        %v5199 = vpack.c.b16 %v4791, %v4783
        %v5200 = vpack.c.b16 %v4800, %v4792
        %v5201 = vpack.c.b16 %v4801, %v4793
        %v5202 = vpack.c.b16 %v4802, %v4794
        %v5203 = vpack.c.b16 %v4803, %v4795
        %v5204 = vpack.c.b16 %v4804, %v4796
        %v5205 = vpack.c.b16 %v4805, %v4797
        %v5206 = vpack.c.b16 %v4806, %v4798
        %v5207 = vpack.c.b16 %v4807, %v4799
        %v5208 = vpack.c.b16 %v4816, %v4808
        %v5209 = vpack.c.b16 %v4817, %v4809
        %v5210 = vpack.c.b16 %v4818, %v4810
        %v5211 = vpack.c.b16 %v4819, %v4811
        %v5212 = vpack.c.b16 %v4820, %v4812
        %v5213 = vpack.c.b16 %v4821, %v4813
        %v5214 = vpack.c.b16 %v4822, %v4814
        %v5215 = vpack.c.b16 %v4823, %v4815
        %v5216 = vpack.c.b16 %v4832, %v4824
        %v5217 = vpack.c.b16 %v4833, %v4825
        %v5218 = vpack.c.b16 %v4834, %v4826
        %v5219 = vpack.c.b16 %v4835, %v4827
        %v5220 = vpack.c.b16 %v4836, %v4828
        %v5221 = vpack.c.b16 %v4837, %v4829
        %v5222 = vpack.c.b16 %v4838, %v4830
        %v5223 = vpack.c.b16 %v4839, %v4831
        %v5224 = vpack.c.b16 %v4848, %v4840
        %v5225 = vpack.c.b16 %v4849, %v4841
        %v5226 = vpack.c.b16 %v4850, %v4842
        %v5227 = vpack.c.b16 %v4851, %v4843
        %v5228 = vpack.c.b16 %v4852, %v4844
        %v5229 = vpack.c.b16 %v4853, %v4845
        %v5230 = vpack.c.b16 %v4854, %v4846
        %v5231 = vpack.c.b16 %v4855, %v4847
        %v5232 = vpack.c.b16 %v4864, %v4856
        %v5233 = vpack.c.b16 %v4865, %v4857
        %v5234 = vpack.c.b16 %v4866, %v4858
        %v5235 = vpack.c.b16 %v4867, %v4859
        %v5236 = vpack.c.b16 %v4868, %v4860
        %v5237 = vpack.c.b16 %v4869, %v4861
        %v5238 = vpack.c.b16 %v4870, %v4862
        %v5239 = vpack.c.b16 %v4871, %v4863
        %v5240 = vpack.c.b16 %v4880, %v4872
        %v5241 = vpack.c.b16 %v4881, %v4873
        %v5242 = vpack.c.b16 %v4882, %v4874
        %v5243 = vpack.c.b16 %v4883, %v4875
        %v5244 = vpack.c.b16 %v4884, %v4876
        %v5245 = vpack.c.b16 %v4885, %v4877
        %v5246 = vpack.c.b16 %v4886, %v4878
        %v5247 = vpack.c.b16 %v4887, %v4879
        %v5248 = vpack.c.b16 %v4896, %v4888
        %v5249 = vpack.c.b16 %v4897, %v4889
        %v5250 = vpack.c.b16 %v4898, %v4890
        %v5251 = vpack.c.b16 %v4899, %v4891
        %v5252 = vpack.c.b16 %v4900, %v4892
        %v5253 = vpack.c.b16 %v4901, %v4893
        %v5254 = vpack.c.b16 %v4902, %v4894
        %v5255 = vpack.c.b16 %v4903, %v4895
        %v5256 = vpack.c.b16 %v4912, %v4904
        %v5257 = vpack.c.b16 %v4913, %v4905
        %v5258 = vpack.c.b16 %v4914, %v4906
        %v5259 = vpack.c.b16 %v4915, %v4907
        %v5260 = vpack.c.b16 %v4916, %v4908
        %v5261 = vpack.c.b16 %v4917, %v4909
        %v5262 = vpack.c.b16 %v4918, %v4910
        %v5263 = vpack.c.b16 %v4919, %v4911
        %v5264 = vpack.c.b16 %v4928, %v4920
        %v5265 = vpack.c.b16 %v4929, %v4921
        %v5266 = vpack.c.b16 %v4930, %v4922
        %v5267 = vpack.c.b16 %v4931, %v4923
        %v5268 = vpack.c.b16 %v4932, %v4924
        %v5269 = vpack.c.b16 %v4933, %v4925
        %v5270 = vpack.c.b16 %v4934, %v4926
        %v5271 = vpack.c.b16 %v4935, %v4927
        %v5272 = vpack.c.b16 %v4944, %v4936
        %v5273 = vpack.c.b16 %v4945, %v4937
        %v5274 = vpack.c.b16 %v4946, %v4938
        %v5275 = vpack.c.b16 %v4947, %v4939
        %v5276 = vpack.c.b16 %v4948, %v4940
        %v5277 = vpack.c.b16 %v4949, %v4941
        %v5278 = vpack.c.b16 %v4950, %v4942
        %v5279 = vpack.c.b16 %v4951, %v4943
        %v5280 = vpack.c.b16 %v4960, %v4952
        %v5281 = vpack.c.b16 %v4961, %v4953
        %v5282 = vpack.c.b16 %v4962, %v4954
        %v5283 = vpack.c.b16 %v4963, %v4955
        %v5284 = vpack.c.b16 %v4964, %v4956
        %v5285 = vpack.c.b16 %v4965, %v4957
        %v5286 = vpack.c.b16 %v4966, %v4958
        %v5287 = vpack.c.b16 %v4967, %v4959
        %v5288 = vpack.c.b16 %v4976, %v4968
        %v5289 = vpack.c.b16 %v4977, %v4969
        %v5290 = vpack.c.b16 %v4978, %v4970
        %v5291 = vpack.c.b16 %v4979, %v4971
        %v5292 = vpack.c.b16 %v4980, %v4972
        %v5293 = vpack.c.b16 %v4981, %v4973
        %v5294 = vpack.c.b16 %v4982, %v4974
        %v5295 = vpack.c.b16 %v4983, %v4975
        %v5296 = vpack.c.b16 %v4992, %v4984
        %v5297 = vpack.c.b16 %v4993, %v4985
        %v5298 = vpack.c.b16 %v4994, %v4986
        %v5299 = vpack.c.b16 %v4995, %v4987
        %v5300 = vpack.c.b16 %v4996, %v4988
        %v5301 = vpack.c.b16 %v4997, %v4989
        %v5302 = vpack.c.b16 %v4998, %v4990
        %v5303 = vpack.c.b16 %v4999, %v4991
        %v5304 = vpack.c.b16 %v5008, %v5000
        %v5305 = vpack.c.b16 %v5009, %v5001
        %v5306 = vpack.c.b16 %v5010, %v5002
        %v5307 = vpack.c.b16 %v5011, %v5003
        %v5308 = vpack.c.b16 %v5012, %v5004
        %v5309 = vpack.c.b16 %v5013, %v5005
        %v5310 = vpack.c.b16 %v5014, %v5006
        %v5311 = vpack.c.b16 %v5015, %v5007
        %v5312 = vpack.c.b16 %v5024, %v5016
        %v5313 = vpack.c.b16 %v5025, %v5017
        %v5314 = vpack.c.b16 %v5026, %v5018
        %v5315 = vpack.c.b16 %v5027, %v5019
        %v5316 = vpack.c.b16 %v5028, %v5020
        %v5317 = vpack.c.b16 %v5029, %v5021
        %v5318 = vpack.c.b16 %v5030, %v5022
        %v5319 = vpack.c.b16 %v5031, %v5023
        %v5320 = vpack.c.b16 %v5040, %v5032
        %v5321 = vpack.c.b16 %v5041, %v5033
        %v5322 = vpack.c.b16 %v5042, %v5034
        %v5323 = vpack.c.b16 %v5043, %v5035
        %v5324 = vpack.c.b16 %v5044, %v5036
        %v5325 = vpack.c.b16 %v5045, %v5037
        %v5326 = vpack.c.b16 %v5046, %v5038
        %v5327 = vpack.c.b16 %v5047, %v5039
        %v5328 = vpack.c.b16 %v5056, %v5048
        %v5329 = vpack.c.b16 %v5057, %v5049
        %v5330 = vpack.c.b16 %v5058, %v5050
        %v5331 = vpack.c.b16 %v5059, %v5051
        %v5332 = vpack.c.b16 %v5060, %v5052
        %v5333 = vpack.c.b16 %v5061, %v5053
        %v5334 = vpack.c.b16 %v5062, %v5054
        %v5335 = vpack.c.b16 %v5063, %v5055
        %v5336 = vpack.c.b16 %v5072, %v5064
        %v5337 = vpack.c.b16 %v5073, %v5065
        %v5338 = vpack.c.b16 %v5074, %v5066
        %v5339 = vpack.c.b16 %v5075, %v5067
        %v5340 = vpack.c.b16 %v5076, %v5068
        %v5341 = vpack.c.b16 %v5077, %v5069
        %v5342 = vpack.c.b16 %v5078, %v5070
        %v5343 = vpack.c.b16 %v5079, %v5071
        %v5344 = vpack.c.b16 %v5088, %v5080
        %v5345 = vpack.c.b16 %v5089, %v5081
        %v5346 = vpack.c.b16 %v5090, %v5082
        %v5347 = vpack.c.b16 %v5091, %v5083
        %v5348 = vpack.c.b16 %v5092, %v5084
        %v5349 = vpack.c.b16 %v5093, %v5085
        %v5350 = vpack.c.b16 %v5094, %v5086
        %v5351 = vpack.c.b16 %v5095, %v5087
        %5608 = vmatprep.subr.bf16.mxu0 %v5153
        %5609 = vmatpush1.bf16.msra.mxu0 %v5152
        %5610 = vmatprep.subr.bf16.mxu0 %v5145
        %5611 = vmatpush1.bf16.msra.mxu0 %v5144
        %5612 = vmatprep.subr.bf16.mxu0 %v5137
        %5613 = vmatpush1.bf16.msra.mxu0 %v5136
        %5614 = vmatprep.subr.bf16.mxu0 %v5129
        %5615 = vmatpush1.bf16.msra.mxu0 %v5128
        %5616 = vmatprep.subr.bf16.mxu0 %v5121
        %5617 = vmatpush1.bf16.msra.mxu0 %v5120
        %5618 = vmatprep.subr.bf16.mxu0 %v5113
        %5619 = vmatpush1.bf16.msra.mxu0 %v5112
        %5620 = vmatprep.subr.bf16.mxu0 %v5105
        %5621 = vmatpush1.bf16.msra.mxu0 %v5104
        %5622 = vmatprep.subr.bf16.mxu0 %v5097
        %5623 = vmatpush1.bf16.msra.mxu0 %v5096
        %5624 = vmatprep.subr.bf16.mxu0 %v5217
        %5625 = vmatpush2.bf16.msra.mxu0 %v5216
        %5626 = vmatprep.subr.bf16.mxu0 %v5209
        %5627 = vmatpush2.bf16.msra.mxu0 %v5208
        %5628 = vmatprep.subr.bf16.mxu0 %v5201
        %5629 = vmatpush2.bf16.msra.mxu0 %v5200
        %5630 = vmatprep.subr.bf16.mxu0 %v5193
        %5631 = vmatpush2.bf16.msra.mxu0 %v5192
        %5632 = vmatprep.subr.bf16.mxu0 %v5185
        %5633 = vmatpush2.bf16.msra.mxu0 %v5184
        %5634 = vmatprep.subr.bf16.mxu0 %v5177
        %5635 = vmatpush2.bf16.msra.mxu0 %v5176
        %5636 = vmatprep.subr.bf16.mxu0 %v5169
        %5637 = vmatpush2.bf16.msra.mxu0 %v5168
        %5638 = vmatprep.subr.bf16.mxu0 %v5161
        %5639 = vmatpush2.bf16.msra.mxu0 %v5160
        %5640 = vmatprep.mubr.bf16.mxu0 %v4321
        %5641 = vmatmul.mubr.bf16.gmra.mxu0 %v4320
        %v5642 = vpop.f32.mrf.mxu0
        %v5643 = vadd.f32 0.0, %v5642
        %v5644 = vpop.f32.mrf.mxu0
        %v5645 = vadd.f32 0.0, %v5644
        %v5646 = vpop.f32.mrf.mxu0
        %v5647 = vadd.f32 0.0, %v5646
        %v5648 = vpop.f32.mrf.mxu0
        %v5649 = vadd.f32 0.0, %v5648
        %5650 = vdwg.mxu0
        %5651 = vmatprep.subr.bf16.mxu0 %v5281
        %5652 = vmatpush1.bf16.msra.mxu0 %v5280
        %5653 = vmatprep.subr.bf16.mxu0 %v5273
        %5654 = vmatpush1.bf16.msra.mxu0 %v5272
        %5655 = vmatprep.subr.bf16.mxu0 %v5265
        %5656 = vmatpush1.bf16.msra.mxu0 %v5264
        %5657 = vmatprep.subr.bf16.mxu0 %v5257
        %5658 = vmatpush1.bf16.msra.mxu0 %v5256
        %5659 = vmatprep.subr.bf16.mxu0 %v5249
        %5660 = vmatpush1.bf16.msra.mxu0 %v5248
        %5661 = vmatprep.subr.bf16.mxu0 %v5241
        %5662 = vmatpush1.bf16.msra.mxu0 %v5240
        %5663 = vmatprep.subr.bf16.mxu0 %v5233
        %5664 = vmatpush1.bf16.msra.mxu0 %v5232
        %5665 = vmatprep.subr.bf16.mxu0 %v5225
        %5666 = vmatpush1.bf16.msra.mxu0 %v5224
        %5667 = vmatprep.subr.bf16.mxu0 %v5345
        %5668 = vmatpush2.bf16.msra.mxu0 %v5344
        %5669 = vmatprep.subr.bf16.mxu0 %v5337
        %5670 = vmatpush2.bf16.msra.mxu0 %v5336
        %5671 = vmatprep.subr.bf16.mxu0 %v5329
        %5672 = vmatpush2.bf16.msra.mxu0 %v5328
        %5673 = vmatprep.subr.bf16.mxu0 %v5321
        %5674 = vmatpush2.bf16.msra.mxu0 %v5320
        %5675 = vmatprep.subr.bf16.mxu0 %v5313
        %5676 = vmatpush2.bf16.msra.mxu0 %v5312
        %5677 = vmatprep.subr.bf16.mxu0 %v5305
        %5678 = vmatpush2.bf16.msra.mxu0 %v5304
        %5679 = vmatprep.subr.bf16.mxu0 %v5297
        %5680 = vmatpush2.bf16.msra.mxu0 %v5296
        %5681 = vmatprep.subr.bf16.mxu0 %v5289
        %5682 = vmatpush2.bf16.msra.mxu0 %v5288
        %5683 = vmatprep.mubr.bf16.mxu0 %v4323
        %5684 = vmatmul.mubr.bf16.gmra.mxu0 %v4322
        %v5685 = vpop.f32.mrf.mxu0
        %v5686 = vadd.f32 %v5643, %v5685
        %v5687 = vpop.f32.mrf.mxu0
        %v5688 = vadd.f32 %v5645, %v5687
        %v5689 = vpop.f32.mrf.mxu0
        %v5690 = vadd.f32 %v5647, %v5689
        %v5691 = vpop.f32.mrf.mxu0
        %v5692 = vadd.f32 %v5649, %v5691
        %5693 = vdwg.mxu0
        %5694 = vmatprep.subr.bf16.mxu0 %v5155
        %5695 = vmatpush1.bf16.msra.mxu0 %v5154
        %5696 = vmatprep.subr.bf16.mxu0 %v5147
        %5697 = vmatpush1.bf16.msra.mxu0 %v5146
        %5698 = vmatprep.subr.bf16.mxu0 %v5139
        %5699 = vmatpush1.bf16.msra.mxu0 %v5138
        %5700 = vmatprep.subr.bf16.mxu0 %v5131
        %5701 = vmatpush1.bf16.msra.mxu0 %v5130
        %5702 = vmatprep.subr.bf16.mxu0 %v5123
        %5703 = vmatpush1.bf16.msra.mxu0 %v5122
        %5704 = vmatprep.subr.bf16.mxu0 %v5115
        %5705 = vmatpush1.bf16.msra.mxu0 %v5114
        %5706 = vmatprep.subr.bf16.mxu0 %v5107
        %5707 = vmatpush1.bf16.msra.mxu0 %v5106
        %5708 = vmatprep.subr.bf16.mxu0 %v5099
        %5709 = vmatpush1.bf16.msra.mxu0 %v5098
        %5710 = vmatprep.subr.bf16.mxu0 %v5219
        %5711 = vmatpush2.bf16.msra.mxu0 %v5218
        %5712 = vmatprep.subr.bf16.mxu0 %v5211
        %5713 = vmatpush2.bf16.msra.mxu0 %v5210
        %5714 = vmatprep.subr.bf16.mxu0 %v5203
        %5715 = vmatpush2.bf16.msra.mxu0 %v5202
        %5716 = vmatprep.subr.bf16.mxu0 %v5195
        %5717 = vmatpush2.bf16.msra.mxu0 %v5194
        %5718 = vmatprep.subr.bf16.mxu0 %v5187
        %5719 = vmatpush2.bf16.msra.mxu0 %v5186
        %5720 = vmatprep.subr.bf16.mxu0 %v5179
        %5721 = vmatpush2.bf16.msra.mxu0 %v5178
        %5722 = vmatprep.subr.bf16.mxu0 %v5171
        %5723 = vmatpush2.bf16.msra.mxu0 %v5170
        %5724 = vmatprep.subr.bf16.mxu0 %v5163
        %5725 = vmatpush2.bf16.msra.mxu0 %v5162
        %5726 = vmatprep.mubr.bf16.mxu0 %v4321
        %5727 = vmatmul.mubr.bf16.gmra.mxu0 %v4320
        %v5728 = vpop.f32.mrf.mxu0
        %v5729 = vadd.f32 0.0, %v5728
        %v5730 = vpop.f32.mrf.mxu0
        %v5731 = vadd.f32 0.0, %v5730
        %v5732 = vpop.f32.mrf.mxu0
        %v5733 = vadd.f32 0.0, %v5732
        %v5734 = vpop.f32.mrf.mxu0
        %v5735 = vadd.f32 0.0, %v5734
        %5736 = vdwg.mxu0
        %5737 = vmatprep.subr.bf16.mxu0 %v5283
        %5738 = vmatpush1.bf16.msra.mxu0 %v5282
        %5739 = vmatprep.subr.bf16.mxu0 %v5275
        %5740 = vmatpush1.bf16.msra.mxu0 %v5274
        %5741 = vmatprep.subr.bf16.mxu0 %v5267
        %5742 = vmatpush1.bf16.msra.mxu0 %v5266
        %5743 = vmatprep.subr.bf16.mxu0 %v5259
        %5744 = vmatpush1.bf16.msra.mxu0 %v5258
        %5745 = vmatprep.subr.bf16.mxu0 %v5251
        %5746 = vmatpush1.bf16.msra.mxu0 %v5250
        %5747 = vmatprep.subr.bf16.mxu0 %v5243
        %5748 = vmatpush1.bf16.msra.mxu0 %v5242
        %5749 = vmatprep.subr.bf16.mxu0 %v5235
        %5750 = vmatpush1.bf16.msra.mxu0 %v5234
        %5751 = vmatprep.subr.bf16.mxu0 %v5227
        %5752 = vmatpush1.bf16.msra.mxu0 %v5226
        %5753 = vmatprep.subr.bf16.mxu0 %v5347
        %5754 = vmatpush2.bf16.msra.mxu0 %v5346
        %5755 = vmatprep.subr.bf16.mxu0 %v5339
        %5756 = vmatpush2.bf16.msra.mxu0 %v5338
        %5757 = vmatprep.subr.bf16.mxu0 %v5331
        %5758 = vmatpush2.bf16.msra.mxu0 %v5330
        %5759 = vmatprep.subr.bf16.mxu0 %v5323
        %5760 = vmatpush2.bf16.msra.mxu0 %v5322
        %5761 = vmatprep.subr.bf16.mxu0 %v5315
        %5762 = vmatpush2.bf16.msra.mxu0 %v5314
        %5763 = vmatprep.subr.bf16.mxu0 %v5307
        %5764 = vmatpush2.bf16.msra.mxu0 %v5306
        %5765 = vmatprep.subr.bf16.mxu0 %v5299
        %5766 = vmatpush2.bf16.msra.mxu0 %v5298
        %5767 = vmatprep.subr.bf16.mxu0 %v5291
        %5768 = vmatpush2.bf16.msra.mxu0 %v5290
        %5769 = vmatprep.mubr.bf16.mxu0 %v4323
        %5770 = vmatmul.mubr.bf16.gmra.mxu0 %v4322
        %v5771 = vpop.f32.mrf.mxu0
        %v5772 = vadd.f32 %v5729, %v5771
        %v5773 = vpop.f32.mrf.mxu0
        %v5774 = vadd.f32 %v5731, %v5773
        %v5775 = vpop.f32.mrf.mxu0
        %v5776 = vadd.f32 %v5733, %v5775
        %v5777 = vpop.f32.mrf.mxu0
        %v5778 = vadd.f32 %v5735, %v5777
        %5779 = vdwg.mxu0
        %5780 = vmatprep.subr.bf16.mxu0 %v5157
        %5781 = vmatpush1.bf16.msra.mxu0 %v5156
        %5782 = vmatprep.subr.bf16.mxu0 %v5149
        %5783 = vmatpush1.bf16.msra.mxu0 %v5148
        %5784 = vmatprep.subr.bf16.mxu0 %v5141
        %5785 = vmatpush1.bf16.msra.mxu0 %v5140
        %5786 = vmatprep.subr.bf16.mxu0 %v5133
        %5787 = vmatpush1.bf16.msra.mxu0 %v5132
        %5788 = vmatprep.subr.bf16.mxu0 %v5125
        %5789 = vmatpush1.bf16.msra.mxu0 %v5124
        %5790 = vmatprep.subr.bf16.mxu0 %v5117
        %5791 = vmatpush1.bf16.msra.mxu0 %v5116
        %5792 = vmatprep.subr.bf16.mxu0 %v5109
        %5793 = vmatpush1.bf16.msra.mxu0 %v5108
        %5794 = vmatprep.subr.bf16.mxu0 %v5101
        %5795 = vmatpush1.bf16.msra.mxu0 %v5100
        %5796 = vmatprep.subr.bf16.mxu0 %v5221
        %5797 = vmatpush2.bf16.msra.mxu0 %v5220
        %5798 = vmatprep.subr.bf16.mxu0 %v5213
        %5799 = vmatpush2.bf16.msra.mxu0 %v5212
        %5800 = vmatprep.subr.bf16.mxu0 %v5205
        %5801 = vmatpush2.bf16.msra.mxu0 %v5204
        %5802 = vmatprep.subr.bf16.mxu0 %v5197
        %5803 = vmatpush2.bf16.msra.mxu0 %v5196
        %5804 = vmatprep.subr.bf16.mxu0 %v5189
        %5805 = vmatpush2.bf16.msra.mxu0 %v5188
        %5806 = vmatprep.subr.bf16.mxu0 %v5181
        %5807 = vmatpush2.bf16.msra.mxu0 %v5180
        %5808 = vmatprep.subr.bf16.mxu0 %v5173
        %5809 = vmatpush2.bf16.msra.mxu0 %v5172
        %5810 = vmatprep.subr.bf16.mxu0 %v5165
        %5811 = vmatpush2.bf16.msra.mxu0 %v5164
        %5812 = vmatprep.mubr.bf16.mxu0 %v4321
        %5813 = vmatmul.mubr.bf16.gmra.mxu0 %v4320
        %v5814 = vpop.f32.mrf.mxu0
        %v5815 = vadd.f32 0.0, %v5814
        %v5816 = vpop.f32.mrf.mxu0
        %v5817 = vadd.f32 0.0, %v5816
        %v5818 = vpop.f32.mrf.mxu0
        %v5819 = vadd.f32 0.0, %v5818
        %v5820 = vpop.f32.mrf.mxu0
        %v5821 = vadd.f32 0.0, %v5820
        %5822 = vdwg.mxu0
        %5823 = vmatprep.subr.bf16.mxu0 %v5285
        %5824 = vmatpush1.bf16.msra.mxu0 %v5284
        %5825 = vmatprep.subr.bf16.mxu0 %v5277
        %5826 = vmatpush1.bf16.msra.mxu0 %v5276
        %5827 = vmatprep.subr.bf16.mxu0 %v5269
        %5828 = vmatpush1.bf16.msra.mxu0 %v5268
        %5829 = vmatprep.subr.bf16.mxu0 %v5261
        %5830 = vmatpush1.bf16.msra.mxu0 %v5260
        %5831 = vmatprep.subr.bf16.mxu0 %v5253
        %5832 = vmatpush1.bf16.msra.mxu0 %v5252
        %5833 = vmatprep.subr.bf16.mxu0 %v5245
        %5834 = vmatpush1.bf16.msra.mxu0 %v5244
        %5835 = vmatprep.subr.bf16.mxu0 %v5237
        %5836 = vmatpush1.bf16.msra.mxu0 %v5236
        %5837 = vmatprep.subr.bf16.mxu0 %v5229
        %5838 = vmatpush1.bf16.msra.mxu0 %v5228
        %5839 = vmatprep.subr.bf16.mxu0 %v5349
        %5840 = vmatpush2.bf16.msra.mxu0 %v5348
        %5841 = vmatprep.subr.bf16.mxu0 %v5341
        %5842 = vmatpush2.bf16.msra.mxu0 %v5340
        %5843 = vmatprep.subr.bf16.mxu0 %v5333
        %5844 = vmatpush2.bf16.msra.mxu0 %v5332
        %5845 = vmatprep.subr.bf16.mxu0 %v5325
        %5846 = vmatpush2.bf16.msra.mxu0 %v5324
        %5847 = vmatprep.subr.bf16.mxu0 %v5317
        %5848 = vmatpush2.bf16.msra.mxu0 %v5316
        %5849 = vmatprep.subr.bf16.mxu0 %v5309
        %5850 = vmatpush2.bf16.msra.mxu0 %v5308
        %5851 = vmatprep.subr.bf16.mxu0 %v5301
        %5852 = vmatpush2.bf16.msra.mxu0 %v5300
        %5853 = vmatprep.subr.bf16.mxu0 %v5293
        %5854 = vmatpush2.bf16.msra.mxu0 %v5292
        %5855 = vmatprep.mubr.bf16.mxu0 %v4323
        %5856 = vmatmul.mubr.bf16.gmra.mxu0 %v4322
        %v5857 = vpop.f32.mrf.mxu0
        %v5858 = vadd.f32 %v5815, %v5857
        %v5859 = vpop.f32.mrf.mxu0
        %v5860 = vadd.f32 %v5817, %v5859
        %v5861 = vpop.f32.mrf.mxu0
        %v5862 = vadd.f32 %v5819, %v5861
        %v5863 = vpop.f32.mrf.mxu0
        %v5864 = vadd.f32 %v5821, %v5863
        %5865 = vdwg.mxu0
        %5866 = vmatprep.subr.bf16.mxu0 %v5159
        %5867 = vmatpush1.bf16.msra.mxu0 %v5158
        %5868 = vmatprep.subr.bf16.mxu0 %v5151
        %5869 = vmatpush1.bf16.msra.mxu0 %v5150
        %5870 = vmatprep.subr.bf16.mxu0 %v5143
        %5871 = vmatpush1.bf16.msra.mxu0 %v5142
        %5872 = vmatprep.subr.bf16.mxu0 %v5135
        %5873 = vmatpush1.bf16.msra.mxu0 %v5134
        %5874 = vmatprep.subr.bf16.mxu0 %v5127
        %5875 = vmatpush1.bf16.msra.mxu0 %v5126
        %5876 = vmatprep.subr.bf16.mxu0 %v5119
        %5877 = vmatpush1.bf16.msra.mxu0 %v5118
        %5878 = vmatprep.subr.bf16.mxu0 %v5111
        %5879 = vmatpush1.bf16.msra.mxu0 %v5110
        %5880 = vmatprep.subr.bf16.mxu0 %v5103
        %5881 = vmatpush1.bf16.msra.mxu0 %v5102
        %5882 = vmatprep.subr.bf16.mxu0 %v5223
        %5883 = vmatpush2.bf16.msra.mxu0 %v5222
        %5884 = vmatprep.subr.bf16.mxu0 %v5215
        %5885 = vmatpush2.bf16.msra.mxu0 %v5214
        %5886 = vmatprep.subr.bf16.mxu0 %v5207
        %5887 = vmatpush2.bf16.msra.mxu0 %v5206
        %5888 = vmatprep.subr.bf16.mxu0 %v5199
        %5889 = vmatpush2.bf16.msra.mxu0 %v5198
        %5890 = vmatprep.subr.bf16.mxu0 %v5191
        %5891 = vmatpush2.bf16.msra.mxu0 %v5190
        %5892 = vmatprep.subr.bf16.mxu0 %v5183
        %5893 = vmatpush2.bf16.msra.mxu0 %v5182
        %5894 = vmatprep.subr.bf16.mxu0 %v5175
        %5895 = vmatpush2.bf16.msra.mxu0 %v5174
        %5896 = vmatprep.subr.bf16.mxu0 %v5167
        %5897 = vmatpush2.bf16.msra.mxu0 %v5166
        %5898 = vmatprep.mubr.bf16.mxu0 %v4321
        %5899 = vmatmul.mubr.bf16.gmra.mxu0 %v4320
        %v5900 = vpop.f32.mrf.mxu0
        %v5901 = vadd.f32 0.0, %v5900
        %v5902 = vpop.f32.mrf.mxu0
        %v5903 = vadd.f32 0.0, %v5902
        %v5904 = vpop.f32.mrf.mxu0
        %v5905 = vadd.f32 0.0, %v5904
        %v5906 = vpop.f32.mrf.mxu0
        %v5907 = vadd.f32 0.0, %v5906
        %5908 = vdwg.mxu0
        %5909 = vmatprep.subr.bf16.mxu0 %v5287
        %5910 = vmatpush1.bf16.msra.mxu0 %v5286
        %5911 = vmatprep.subr.bf16.mxu0 %v5279
        %5912 = vmatpush1.bf16.msra.mxu0 %v5278
        %5913 = vmatprep.subr.bf16.mxu0 %v5271
        %5914 = vmatpush1.bf16.msra.mxu0 %v5270
        %5915 = vmatprep.subr.bf16.mxu0 %v5263
        %5916 = vmatpush1.bf16.msra.mxu0 %v5262
        %5917 = vmatprep.subr.bf16.mxu0 %v5255
        %5918 = vmatpush1.bf16.msra.mxu0 %v5254
        %5919 = vmatprep.subr.bf16.mxu0 %v5247
        %5920 = vmatpush1.bf16.msra.mxu0 %v5246
        %5921 = vmatprep.subr.bf16.mxu0 %v5239
        %5922 = vmatpush1.bf16.msra.mxu0 %v5238
        %5923 = vmatprep.subr.bf16.mxu0 %v5231
        %5924 = vmatpush1.bf16.msra.mxu0 %v5230
        %5925 = vmatprep.subr.bf16.mxu0 %v5351
        %5926 = vmatpush2.bf16.msra.mxu0 %v5350
        %5927 = vmatprep.subr.bf16.mxu0 %v5343
        %5928 = vmatpush2.bf16.msra.mxu0 %v5342
        %5929 = vmatprep.subr.bf16.mxu0 %v5335
        %5930 = vmatpush2.bf16.msra.mxu0 %v5334
        %5931 = vmatprep.subr.bf16.mxu0 %v5327
        %5932 = vmatpush2.bf16.msra.mxu0 %v5326
        %5933 = vmatprep.subr.bf16.mxu0 %v5319
        %5934 = vmatpush2.bf16.msra.mxu0 %v5318
        %5935 = vmatprep.subr.bf16.mxu0 %v5311
        %5936 = vmatpush2.bf16.msra.mxu0 %v5310
        %5937 = vmatprep.subr.bf16.mxu0 %v5303
        %5938 = vmatpush2.bf16.msra.mxu0 %v5302
        %5939 = vmatprep.subr.bf16.mxu0 %v5295
        %5940 = vmatpush2.bf16.msra.mxu0 %v5294
        %5941 = vmatprep.mubr.bf16.mxu0 %v4323
        %5942 = vmatmul.mubr.bf16.gmra.mxu0 %v4322
        %v5943 = vpop.f32.mrf.mxu0
        %v5944 = vadd.f32 %v5901, %v5943
        %v5945 = vpop.f32.mrf.mxu0
        %v5946 = vadd.f32 %v5903, %v5945
        %v5947 = vpop.f32.mrf.mxu0
        %v5948 = vadd.f32 %v5905, %v5947
        %v5949 = vpop.f32.mrf.mxu0
        %v5950 = vadd.f32 %v5907, %v5949
        %5951 = vdwg.mxu0
        %v5952 = vadd.f32 %v3792, %v5686
        %v5953 = vadd.f32 %v3794, %v5688
        %v5954 = vadd.f32 %v3878, %v5772
        %v5955 = vadd.f32 %v3880, %v5774
        %v5956 = vadd.f32 %v3964, %v5858
        %v5957 = vadd.f32 %v3966, %v5860
        %v5958 = vadd.f32 %v4050, %v5944
        %v5959 = vadd.f32 %v4052, %v5946
        %v5960 = vadd.f32 %v3796, %v5690
        %v5961 = vadd.f32 %v3798, %v5692
        %v5962 = vadd.f32 %v3882, %v5776
        %v5963 = vadd.f32 %v3884, %v5778
        %v5964 = vadd.f32 %v3968, %v5862
        %v5965 = vadd.f32 %v3970, %v5864
        %v5966 = vadd.f32 %v4054, %v5948
        %v5967 = vadd.f32 %v4056, %v5950
        %v5968 = vld [vmem:[#allocation2 + $0x1800] sm:$0xff]
        %v5969 = vld [vmem:[#allocation2 + $0x1808] sm:$0xff]
        %v5970 = vld [vmem:[#allocation2 + $0x1810] sm:$0xff]
        %v5971 = vld [vmem:[#allocation2 + $0x1818] sm:$0xff]
        %v5972 = vld [vmem:[#allocation2 + $0x1820] sm:$0xff]
        %v5973 = vld [vmem:[#allocation2 + $0x1828] sm:$0xff]
        %v5974 = vld [vmem:[#allocation2 + $0x1830] sm:$0xff]
        %v5975 = vld [vmem:[#allocation2 + $0x1838] sm:$0xff]
        %v5976 = vld [vmem:[#allocation2 + $0x1840] sm:$0xff]
        %v5977 = vld [vmem:[#allocation2 + $0x1848] sm:$0xff]
        %v5978 = vld [vmem:[#allocation2 + $0x1850] sm:$0xff]
        %v5979 = vld [vmem:[#allocation2 + $0x1858] sm:$0xff]
        %v5980 = vld [vmem:[#allocation2 + $0x1860] sm:$0xff]
        %v5981 = vld [vmem:[#allocation2 + $0x1868] sm:$0xff]
        %v5982 = vld [vmem:[#allocation2 + $0x1870] sm:$0xff]
        %v5983 = vld [vmem:[#allocation2 + $0x1878] sm:$0xff]
        %v5984 = vld [vmem:[#allocation2 + $0x1880] sm:$0xff]
        %v5985 = vld [vmem:[#allocation2 + $0x1888] sm:$0xff]
        %v5986 = vld [vmem:[#allocation2 + $0x1890] sm:$0xff]
        %v5987 = vld [vmem:[#allocation2 + $0x1898] sm:$0xff]
        %v5988 = vld [vmem:[#allocation2 + $0x18a0] sm:$0xff]
        %v5989 = vld [vmem:[#allocation2 + $0x18a8] sm:$0xff]
        %v5990 = vld [vmem:[#allocation2 + $0x18b0] sm:$0xff]
        %v5991 = vld [vmem:[#allocation2 + $0x18b8] sm:$0xff]
        %v5992 = vld [vmem:[#allocation2 + $0x18c0] sm:$0xff]
        %v5993 = vld [vmem:[#allocation2 + $0x18c8] sm:$0xff]
        %v5994 = vld [vmem:[#allocation2 + $0x18d0] sm:$0xff]
        %v5995 = vld [vmem:[#allocation2 + $0x18d8] sm:$0xff]
        %v5996 = vld [vmem:[#allocation2 + $0x18e0] sm:$0xff]
        %v5997 = vld [vmem:[#allocation2 + $0x18e8] sm:$0xff]
        %v5998 = vld [vmem:[#allocation2 + $0x18f0] sm:$0xff]
        %v5999 = vld [vmem:[#allocation2 + $0x18f8] sm:$0xff]
        %v6000 = vld [vmem:[#allocation2 + $0x1900] sm:$0xff]
        %v6001 = vld [vmem:[#allocation2 + $0x1908] sm:$0xff]
        %v6002 = vld [vmem:[#allocation2 + $0x1910] sm:$0xff]
        %v6003 = vld [vmem:[#allocation2 + $0x1918] sm:$0xff]
        %v6004 = vld [vmem:[#allocation2 + $0x1920] sm:$0xff]
        %v6005 = vld [vmem:[#allocation2 + $0x1928] sm:$0xff]
        %v6006 = vld [vmem:[#allocation2 + $0x1930] sm:$0xff]
        %v6007 = vld [vmem:[#allocation2 + $0x1938] sm:$0xff]
        %v6008 = vld [vmem:[#allocation2 + $0x1940] sm:$0xff]
        %v6009 = vld [vmem:[#allocation2 + $0x1948] sm:$0xff]
        %v6010 = vld [vmem:[#allocation2 + $0x1950] sm:$0xff]
        %v6011 = vld [vmem:[#allocation2 + $0x1958] sm:$0xff]
        %v6012 = vld [vmem:[#allocation2 + $0x1960] sm:$0xff]
        %v6013 = vld [vmem:[#allocation2 + $0x1968] sm:$0xff]
        %v6014 = vld [vmem:[#allocation2 + $0x1970] sm:$0xff]
        %v6015 = vld [vmem:[#allocation2 + $0x1978] sm:$0xff]
        %v6016 = vld [vmem:[#allocation2 + $0x1980] sm:$0xff]
        %v6017 = vld [vmem:[#allocation2 + $0x1988] sm:$0xff]
        %v6018 = vld [vmem:[#allocation2 + $0x1990] sm:$0xff]
        %v6019 = vld [vmem:[#allocation2 + $0x1998] sm:$0xff]
        %v6020 = vld [vmem:[#allocation2 + $0x19a0] sm:$0xff]
        %v6021 = vld [vmem:[#allocation2 + $0x19a8] sm:$0xff]
        %v6022 = vld [vmem:[#allocation2 + $0x19b0] sm:$0xff]
        %v6023 = vld [vmem:[#allocation2 + $0x19b8] sm:$0xff]
        %v6024 = vld [vmem:[#allocation2 + $0x19c0] sm:$0xff]
        %v6025 = vld [vmem:[#allocation2 + $0x19c8] sm:$0xff]
        %v6026 = vld [vmem:[#allocation2 + $0x19d0] sm:$0xff]
        %v6027 = vld [vmem:[#allocation2 + $0x19d8] sm:$0xff]
        %v6028 = vld [vmem:[#allocation2 + $0x19e0] sm:$0xff]
        %v6029 = vld [vmem:[#allocation2 + $0x19e8] sm:$0xff]
        %v6030 = vld [vmem:[#allocation2 + $0x19f0] sm:$0xff]
        %v6031 = vld [vmem:[#allocation2 + $0x19f8] sm:$0xff]
        %v6032 = vld [vmem:[#allocation2 + $0x1a00] sm:$0xff]
        %v6033 = vld [vmem:[#allocation2 + $0x1a08] sm:$0xff]
        %v6034 = vld [vmem:[#allocation2 + $0x1a10] sm:$0xff]
        %v6035 = vld [vmem:[#allocation2 + $0x1a18] sm:$0xff]
        %v6036 = vld [vmem:[#allocation2 + $0x1a20] sm:$0xff]
        %v6037 = vld [vmem:[#allocation2 + $0x1a28] sm:$0xff]
        %v6038 = vld [vmem:[#allocation2 + $0x1a30] sm:$0xff]
        %v6039 = vld [vmem:[#allocation2 + $0x1a38] sm:$0xff]
        %v6040 = vld [vmem:[#allocation2 + $0x1a40] sm:$0xff]
        %v6041 = vld [vmem:[#allocation2 + $0x1a48] sm:$0xff]
        %v6042 = vld [vmem:[#allocation2 + $0x1a50] sm:$0xff]
        %v6043 = vld [vmem:[#allocation2 + $0x1a58] sm:$0xff]
        %v6044 = vld [vmem:[#allocation2 + $0x1a60] sm:$0xff]
        %v6045 = vld [vmem:[#allocation2 + $0x1a68] sm:$0xff]
        %v6046 = vld [vmem:[#allocation2 + $0x1a70] sm:$0xff]
        %v6047 = vld [vmem:[#allocation2 + $0x1a78] sm:$0xff]
        %v6048 = vld [vmem:[#allocation2 + $0x1a80] sm:$0xff]
        %v6049 = vld [vmem:[#allocation2 + $0x1a88] sm:$0xff]
        %v6050 = vld [vmem:[#allocation2 + $0x1a90] sm:$0xff]
        %v6051 = vld [vmem:[#allocation2 + $0x1a98] sm:$0xff]
        %v6052 = vld [vmem:[#allocation2 + $0x1aa0] sm:$0xff]
        %v6053 = vld [vmem:[#allocation2 + $0x1aa8] sm:$0xff]
        %v6054 = vld [vmem:[#allocation2 + $0x1ab0] sm:$0xff]
        %v6055 = vld [vmem:[#allocation2 + $0x1ab8] sm:$0xff]
        %v6056 = vld [vmem:[#allocation2 + $0x1ac0] sm:$0xff]
        %v6057 = vld [vmem:[#allocation2 + $0x1ac8] sm:$0xff]
        %v6058 = vld [vmem:[#allocation2 + $0x1ad0] sm:$0xff]
        %v6059 = vld [vmem:[#allocation2 + $0x1ad8] sm:$0xff]
        %v6060 = vld [vmem:[#allocation2 + $0x1ae0] sm:$0xff]
        %v6061 = vld [vmem:[#allocation2 + $0x1ae8] sm:$0xff]
        %v6062 = vld [vmem:[#allocation2 + $0x1af0] sm:$0xff]
        %v6063 = vld [vmem:[#allocation2 + $0x1af8] sm:$0xff]
        %v6064 = vld [vmem:[#allocation2 + $0x1b00] sm:$0xff]
        %v6065 = vld [vmem:[#allocation2 + $0x1b08] sm:$0xff]
        %v6066 = vld [vmem:[#allocation2 + $0x1b10] sm:$0xff]
        %v6067 = vld [vmem:[#allocation2 + $0x1b18] sm:$0xff]
        %v6068 = vld [vmem:[#allocation2 + $0x1b20] sm:$0xff]
        %v6069 = vld [vmem:[#allocation2 + $0x1b28] sm:$0xff]
        %v6070 = vld [vmem:[#allocation2 + $0x1b30] sm:$0xff]
        %v6071 = vld [vmem:[#allocation2 + $0x1b38] sm:$0xff]
        %v6072 = vld [vmem:[#allocation2 + $0x1b40] sm:$0xff]
        %v6073 = vld [vmem:[#allocation2 + $0x1b48] sm:$0xff]
        %v6074 = vld [vmem:[#allocation2 + $0x1b50] sm:$0xff]
        %v6075 = vld [vmem:[#allocation2 + $0x1b58] sm:$0xff]
        %v6076 = vld [vmem:[#allocation2 + $0x1b60] sm:$0xff]
        %v6077 = vld [vmem:[#allocation2 + $0x1b68] sm:$0xff]
        %v6078 = vld [vmem:[#allocation2 + $0x1b70] sm:$0xff]
        %v6079 = vld [vmem:[#allocation2 + $0x1b78] sm:$0xff]
        %v6080 = vld [vmem:[#allocation2 + $0x1b80] sm:$0xff]
        %v6081 = vld [vmem:[#allocation2 + $0x1b88] sm:$0xff]
        %v6082 = vld [vmem:[#allocation2 + $0x1b90] sm:$0xff]
        %v6083 = vld [vmem:[#allocation2 + $0x1b98] sm:$0xff]
        %v6084 = vld [vmem:[#allocation2 + $0x1ba0] sm:$0xff]
        %v6085 = vld [vmem:[#allocation2 + $0x1ba8] sm:$0xff]
        %v6086 = vld [vmem:[#allocation2 + $0x1bb0] sm:$0xff]
        %v6087 = vld [vmem:[#allocation2 + $0x1bb8] sm:$0xff]
        %v6088 = vld [vmem:[#allocation2 + $0x1bc0] sm:$0xff]
        %v6089 = vld [vmem:[#allocation2 + $0x1bc8] sm:$0xff]
        %v6090 = vld [vmem:[#allocation2 + $0x1bd0] sm:$0xff]
        %v6091 = vld [vmem:[#allocation2 + $0x1bd8] sm:$0xff]
        %v6092 = vld [vmem:[#allocation2 + $0x1be0] sm:$0xff]
        %v6093 = vld [vmem:[#allocation2 + $0x1be8] sm:$0xff]
        %v6094 = vld [vmem:[#allocation2 + $0x1bf0] sm:$0xff]
        %v6095 = vld [vmem:[#allocation2 + $0x1bf8] sm:$0xff]
        %v6096 = vld [vmem:[#allocation2 + $0x1c00] sm:$0xff]
        %v6097 = vld [vmem:[#allocation2 + $0x1c08] sm:$0xff]
        %v6098 = vld [vmem:[#allocation2 + $0x1c10] sm:$0xff]
        %v6099 = vld [vmem:[#allocation2 + $0x1c18] sm:$0xff]
        %v6100 = vld [vmem:[#allocation2 + $0x1c20] sm:$0xff]
        %v6101 = vld [vmem:[#allocation2 + $0x1c28] sm:$0xff]
        %v6102 = vld [vmem:[#allocation2 + $0x1c30] sm:$0xff]
        %v6103 = vld [vmem:[#allocation2 + $0x1c38] sm:$0xff]
        %v6104 = vld [vmem:[#allocation2 + $0x1c40] sm:$0xff]
        %v6105 = vld [vmem:[#allocation2 + $0x1c48] sm:$0xff]
        %v6106 = vld [vmem:[#allocation2 + $0x1c50] sm:$0xff]
        %v6107 = vld [vmem:[#allocation2 + $0x1c58] sm:$0xff]
        %v6108 = vld [vmem:[#allocation2 + $0x1c60] sm:$0xff]
        %v6109 = vld [vmem:[#allocation2 + $0x1c68] sm:$0xff]
        %v6110 = vld [vmem:[#allocation2 + $0x1c70] sm:$0xff]
        %v6111 = vld [vmem:[#allocation2 + $0x1c78] sm:$0xff]
        %v6112 = vld [vmem:[#allocation2 + $0x1c80] sm:$0xff]
        %v6113 = vld [vmem:[#allocation2 + $0x1c88] sm:$0xff]
        %v6114 = vld [vmem:[#allocation2 + $0x1c90] sm:$0xff]
        %v6115 = vld [vmem:[#allocation2 + $0x1c98] sm:$0xff]
        %v6116 = vld [vmem:[#allocation2 + $0x1ca0] sm:$0xff]
        %v6117 = vld [vmem:[#allocation2 + $0x1ca8] sm:$0xff]
        %v6118 = vld [vmem:[#allocation2 + $0x1cb0] sm:$0xff]
        %v6119 = vld [vmem:[#allocation2 + $0x1cb8] sm:$0xff]
        %v6120 = vld [vmem:[#allocation2 + $0x1cc0] sm:$0xff]
        %v6121 = vld [vmem:[#allocation2 + $0x1cc8] sm:$0xff]
        %v6122 = vld [vmem:[#allocation2 + $0x1cd0] sm:$0xff]
        %v6123 = vld [vmem:[#allocation2 + $0x1cd8] sm:$0xff]
        %v6124 = vld [vmem:[#allocation2 + $0x1ce0] sm:$0xff]
        %v6125 = vld [vmem:[#allocation2 + $0x1ce8] sm:$0xff]
        %v6126 = vld [vmem:[#allocation2 + $0x1cf0] sm:$0xff]
        %v6127 = vld [vmem:[#allocation2 + $0x1cf8] sm:$0xff]
        %v6128 = vld [vmem:[#allocation2 + $0x1d00] sm:$0xff]
        %v6129 = vld [vmem:[#allocation2 + $0x1d08] sm:$0xff]
        %v6130 = vld [vmem:[#allocation2 + $0x1d10] sm:$0xff]
        %v6131 = vld [vmem:[#allocation2 + $0x1d18] sm:$0xff]
        %v6132 = vld [vmem:[#allocation2 + $0x1d20] sm:$0xff]
        %v6133 = vld [vmem:[#allocation2 + $0x1d28] sm:$0xff]
        %v6134 = vld [vmem:[#allocation2 + $0x1d30] sm:$0xff]
        %v6135 = vld [vmem:[#allocation2 + $0x1d38] sm:$0xff]
        %v6136 = vld [vmem:[#allocation2 + $0x1d40] sm:$0xff]
        %v6137 = vld [vmem:[#allocation2 + $0x1d48] sm:$0xff]
        %v6138 = vld [vmem:[#allocation2 + $0x1d50] sm:$0xff]
        %v6139 = vld [vmem:[#allocation2 + $0x1d58] sm:$0xff]
        %v6140 = vld [vmem:[#allocation2 + $0x1d60] sm:$0xff]
        %v6141 = vld [vmem:[#allocation2 + $0x1d68] sm:$0xff]
        %v6142 = vld [vmem:[#allocation2 + $0x1d70] sm:$0xff]
        %v6143 = vld [vmem:[#allocation2 + $0x1d78] sm:$0xff]
        %v6144 = vld [vmem:[#allocation2 + $0x1d80] sm:$0xff]
        %v6145 = vld [vmem:[#allocation2 + $0x1d88] sm:$0xff]
        %v6146 = vld [vmem:[#allocation2 + $0x1d90] sm:$0xff]
        %v6147 = vld [vmem:[#allocation2 + $0x1d98] sm:$0xff]
        %v6148 = vld [vmem:[#allocation2 + $0x1da0] sm:$0xff]
        %v6149 = vld [vmem:[#allocation2 + $0x1da8] sm:$0xff]
        %v6150 = vld [vmem:[#allocation2 + $0x1db0] sm:$0xff]
        %v6151 = vld [vmem:[#allocation2 + $0x1db8] sm:$0xff]
        %v6152 = vld [vmem:[#allocation2 + $0x1dc0] sm:$0xff]
        %v6153 = vld [vmem:[#allocation2 + $0x1dc8] sm:$0xff]
        %v6154 = vld [vmem:[#allocation2 + $0x1dd0] sm:$0xff]
        %v6155 = vld [vmem:[#allocation2 + $0x1dd8] sm:$0xff]
        %v6156 = vld [vmem:[#allocation2 + $0x1de0] sm:$0xff]
        %v6157 = vld [vmem:[#allocation2 + $0x1de8] sm:$0xff]
        %v6158 = vld [vmem:[#allocation2 + $0x1df0] sm:$0xff]
        %v6159 = vld [vmem:[#allocation2 + $0x1df8] sm:$0xff]
        %v6160 = vld [vmem:[#allocation2 + $0x1e00] sm:$0xff]
        %v6161 = vld [vmem:[#allocation2 + $0x1e08] sm:$0xff]
        %v6162 = vld [vmem:[#allocation2 + $0x1e10] sm:$0xff]
        %v6163 = vld [vmem:[#allocation2 + $0x1e18] sm:$0xff]
        %v6164 = vld [vmem:[#allocation2 + $0x1e20] sm:$0xff]
        %v6165 = vld [vmem:[#allocation2 + $0x1e28] sm:$0xff]
        %v6166 = vld [vmem:[#allocation2 + $0x1e30] sm:$0xff]
        %v6167 = vld [vmem:[#allocation2 + $0x1e38] sm:$0xff]
        %v6168 = vld [vmem:[#allocation2 + $0x1e40] sm:$0xff]
        %v6169 = vld [vmem:[#allocation2 + $0x1e48] sm:$0xff]
        %v6170 = vld [vmem:[#allocation2 + $0x1e50] sm:$0xff]
        %v6171 = vld [vmem:[#allocation2 + $0x1e58] sm:$0xff]
        %v6172 = vld [vmem:[#allocation2 + $0x1e60] sm:$0xff]
        %v6173 = vld [vmem:[#allocation2 + $0x1e68] sm:$0xff]
        %v6174 = vld [vmem:[#allocation2 + $0x1e70] sm:$0xff]
        %v6175 = vld [vmem:[#allocation2 + $0x1e78] sm:$0xff]
        %v6176 = vld [vmem:[#allocation2 + $0x1e80] sm:$0xff]
        %v6177 = vld [vmem:[#allocation2 + $0x1e88] sm:$0xff]
        %v6178 = vld [vmem:[#allocation2 + $0x1e90] sm:$0xff]
        %v6179 = vld [vmem:[#allocation2 + $0x1e98] sm:$0xff]
        %v6180 = vld [vmem:[#allocation2 + $0x1ea0] sm:$0xff]
        %v6181 = vld [vmem:[#allocation2 + $0x1ea8] sm:$0xff]
        %v6182 = vld [vmem:[#allocation2 + $0x1eb0] sm:$0xff]
        %v6183 = vld [vmem:[#allocation2 + $0x1eb8] sm:$0xff]
        %v6184 = vld [vmem:[#allocation2 + $0x1ec0] sm:$0xff]
        %v6185 = vld [vmem:[#allocation2 + $0x1ec8] sm:$0xff]
        %v6186 = vld [vmem:[#allocation2 + $0x1ed0] sm:$0xff]
        %v6187 = vld [vmem:[#allocation2 + $0x1ed8] sm:$0xff]
        %v6188 = vld [vmem:[#allocation2 + $0x1ee0] sm:$0xff]
        %v6189 = vld [vmem:[#allocation2 + $0x1ee8] sm:$0xff]
        %v6190 = vld [vmem:[#allocation2 + $0x1ef0] sm:$0xff]
        %v6191 = vld [vmem:[#allocation2 + $0x1ef8] sm:$0xff]
        %v6192 = vld [vmem:[#allocation2 + $0x1f00] sm:$0xff]
        %v6193 = vld [vmem:[#allocation2 + $0x1f08] sm:$0xff]
        %v6194 = vld [vmem:[#allocation2 + $0x1f10] sm:$0xff]
        %v6195 = vld [vmem:[#allocation2 + $0x1f18] sm:$0xff]
        %v6196 = vld [vmem:[#allocation2 + $0x1f20] sm:$0xff]
        %v6197 = vld [vmem:[#allocation2 + $0x1f28] sm:$0xff]
        %v6198 = vld [vmem:[#allocation2 + $0x1f30] sm:$0xff]
        %v6199 = vld [vmem:[#allocation2 + $0x1f38] sm:$0xff]
        %v6200 = vld [vmem:[#allocation2 + $0x1f40] sm:$0xff]
        %v6201 = vld [vmem:[#allocation2 + $0x1f48] sm:$0xff]
        %v6202 = vld [vmem:[#allocation2 + $0x1f50] sm:$0xff]
        %v6203 = vld [vmem:[#allocation2 + $0x1f58] sm:$0xff]
        %v6204 = vld [vmem:[#allocation2 + $0x1f60] sm:$0xff]
        %v6205 = vld [vmem:[#allocation2 + $0x1f68] sm:$0xff]
        %v6206 = vld [vmem:[#allocation2 + $0x1f70] sm:$0xff]
        %v6207 = vld [vmem:[#allocation2 + $0x1f78] sm:$0xff]
        %v6208 = vld [vmem:[#allocation2 + $0x1f80] sm:$0xff]
        %v6209 = vld [vmem:[#allocation2 + $0x1f88] sm:$0xff]
        %v6210 = vld [vmem:[#allocation2 + $0x1f90] sm:$0xff]
        %v6211 = vld [vmem:[#allocation2 + $0x1f98] sm:$0xff]
        %v6212 = vld [vmem:[#allocation2 + $0x1fa0] sm:$0xff]
        %v6213 = vld [vmem:[#allocation2 + $0x1fa8] sm:$0xff]
        %v6214 = vld [vmem:[#allocation2 + $0x1fb0] sm:$0xff]
        %v6215 = vld [vmem:[#allocation2 + $0x1fb8] sm:$0xff]
        %v6216 = vld [vmem:[#allocation2 + $0x1fc0] sm:$0xff]
        %v6217 = vld [vmem:[#allocation2 + $0x1fc8] sm:$0xff]
        %v6218 = vld [vmem:[#allocation2 + $0x1fd0] sm:$0xff]
        %v6219 = vld [vmem:[#allocation2 + $0x1fd8] sm:$0xff]
        %v6220 = vld [vmem:[#allocation2 + $0x1fe0] sm:$0xff]
        %v6221 = vld [vmem:[#allocation2 + $0x1fe8] sm:$0xff]
        %v6222 = vld [vmem:[#allocation2 + $0x1ff0] sm:$0xff]
        %v6223 = vld [vmem:[#allocation2 + $0x1ff8] sm:$0xff]
        %v6226 = vunpack.c.l.b16 %v256
        %v6227 = vunpack.c.h.b16 %v256
        %v6228 = vunpack.c.l.b16 %v257
        %v6229 = vunpack.c.h.b16 %v257
        %v6230 = vpack.c.b16 %v6226, %v778
        %v6231 = vpack.c.b16 %v6227, %v779
        %v6232 = vpack.c.b16 %v6228, %v780
        %v6233 = vpack.c.b16 %v6229, %v781
        %v6494 = vunpack.c.l.b16 %v5968
        %v6495 = vunpack.c.h.b16 %v5968
        %v6496 = vunpack.c.l.b16 %v5969
        %v6497 = vunpack.c.h.b16 %v5969
        %v6498 = vunpack.c.l.b16 %v5970
        %v6499 = vunpack.c.h.b16 %v5970
        %v6500 = vunpack.c.l.b16 %v5971
        %v6501 = vunpack.c.h.b16 %v5971
        %v6502 = vunpack.c.l.b16 %v5972
        %v6503 = vunpack.c.h.b16 %v5972
        %v6504 = vunpack.c.l.b16 %v5973
        %v6505 = vunpack.c.h.b16 %v5973
        %v6506 = vunpack.c.l.b16 %v5974
        %v6507 = vunpack.c.h.b16 %v5974
        %v6508 = vunpack.c.l.b16 %v5975
        %v6509 = vunpack.c.h.b16 %v5975
        %v6510 = vunpack.c.l.b16 %v5976
        %v6511 = vunpack.c.h.b16 %v5976
        %v6512 = vunpack.c.l.b16 %v5977
        %v6513 = vunpack.c.h.b16 %v5977
        %v6514 = vunpack.c.l.b16 %v5978
        %v6515 = vunpack.c.h.b16 %v5978
        %v6516 = vunpack.c.l.b16 %v5979
        %v6517 = vunpack.c.h.b16 %v5979
        %v6518 = vunpack.c.l.b16 %v5980
        %v6519 = vunpack.c.h.b16 %v5980
        %v6520 = vunpack.c.l.b16 %v5981
        %v6521 = vunpack.c.h.b16 %v5981
        %v6522 = vunpack.c.l.b16 %v5982
        %v6523 = vunpack.c.h.b16 %v5982
        %v6524 = vunpack.c.l.b16 %v5983
        %v6525 = vunpack.c.h.b16 %v5983
        %v6526 = vunpack.c.l.b16 %v5984
        %v6527 = vunpack.c.h.b16 %v5984
        %v6528 = vunpack.c.l.b16 %v5985
        %v6529 = vunpack.c.h.b16 %v5985
        %v6530 = vunpack.c.l.b16 %v5986
        %v6531 = vunpack.c.h.b16 %v5986
        %v6532 = vunpack.c.l.b16 %v5987
        %v6533 = vunpack.c.h.b16 %v5987
        %v6534 = vunpack.c.l.b16 %v5988
        %v6535 = vunpack.c.h.b16 %v5988
        %v6536 = vunpack.c.l.b16 %v5989
        %v6537 = vunpack.c.h.b16 %v5989
        %v6538 = vunpack.c.l.b16 %v5990
        %v6539 = vunpack.c.h.b16 %v5990
        %v6540 = vunpack.c.l.b16 %v5991
        %v6541 = vunpack.c.h.b16 %v5991
        %v6542 = vunpack.c.l.b16 %v5992
        %v6543 = vunpack.c.h.b16 %v5992
        %v6544 = vunpack.c.l.b16 %v5993
        %v6545 = vunpack.c.h.b16 %v5993
        %v6546 = vunpack.c.l.b16 %v5994
        %v6547 = vunpack.c.h.b16 %v5994
        %v6548 = vunpack.c.l.b16 %v5995
        %v6549 = vunpack.c.h.b16 %v5995
        %v6550 = vunpack.c.l.b16 %v5996
        %v6551 = vunpack.c.h.b16 %v5996
        %v6552 = vunpack.c.l.b16 %v5997
        %v6553 = vunpack.c.h.b16 %v5997
        %v6554 = vunpack.c.l.b16 %v5998
        %v6555 = vunpack.c.h.b16 %v5998
        %v6556 = vunpack.c.l.b16 %v5999
        %v6557 = vunpack.c.h.b16 %v5999
        %v6558 = vunpack.c.l.b16 %v6000
        %v6559 = vunpack.c.h.b16 %v6000
        %v6560 = vunpack.c.l.b16 %v6001
        %v6561 = vunpack.c.h.b16 %v6001
        %v6562 = vunpack.c.l.b16 %v6002
        %v6563 = vunpack.c.h.b16 %v6002
        %v6564 = vunpack.c.l.b16 %v6003
        %v6565 = vunpack.c.h.b16 %v6003
        %v6566 = vunpack.c.l.b16 %v6004
        %v6567 = vunpack.c.h.b16 %v6004
        %v6568 = vunpack.c.l.b16 %v6005
        %v6569 = vunpack.c.h.b16 %v6005
        %v6570 = vunpack.c.l.b16 %v6006
        %v6571 = vunpack.c.h.b16 %v6006
        %v6572 = vunpack.c.l.b16 %v6007
        %v6573 = vunpack.c.h.b16 %v6007
        %v6574 = vunpack.c.l.b16 %v6008
        %v6575 = vunpack.c.h.b16 %v6008
        %v6576 = vunpack.c.l.b16 %v6009
        %v6577 = vunpack.c.h.b16 %v6009
        %v6578 = vunpack.c.l.b16 %v6010
        %v6579 = vunpack.c.h.b16 %v6010
        %v6580 = vunpack.c.l.b16 %v6011
        %v6581 = vunpack.c.h.b16 %v6011
        %v6582 = vunpack.c.l.b16 %v6012
        %v6583 = vunpack.c.h.b16 %v6012
        %v6584 = vunpack.c.l.b16 %v6013
        %v6585 = vunpack.c.h.b16 %v6013
        %v6586 = vunpack.c.l.b16 %v6014
        %v6587 = vunpack.c.h.b16 %v6014
        %v6588 = vunpack.c.l.b16 %v6015
        %v6589 = vunpack.c.h.b16 %v6015
        %v6590 = vunpack.c.l.b16 %v6016
        %v6591 = vunpack.c.h.b16 %v6016
        %v6592 = vunpack.c.l.b16 %v6017
        %v6593 = vunpack.c.h.b16 %v6017
        %v6594 = vunpack.c.l.b16 %v6018
        %v6595 = vunpack.c.h.b16 %v6018
        %v6596 = vunpack.c.l.b16 %v6019
        %v6597 = vunpack.c.h.b16 %v6019
        %v6598 = vunpack.c.l.b16 %v6020
        %v6599 = vunpack.c.h.b16 %v6020
        %v6600 = vunpack.c.l.b16 %v6021
        %v6601 = vunpack.c.h.b16 %v6021
        %v6602 = vunpack.c.l.b16 %v6022
        %v6603 = vunpack.c.h.b16 %v6022
        %v6604 = vunpack.c.l.b16 %v6023
        %v6605 = vunpack.c.h.b16 %v6023
        %v6606 = vunpack.c.l.b16 %v6024
        %v6607 = vunpack.c.h.b16 %v6024
        %v6608 = vunpack.c.l.b16 %v6025
        %v6609 = vunpack.c.h.b16 %v6025
        %v6610 = vunpack.c.l.b16 %v6026
        %v6611 = vunpack.c.h.b16 %v6026
        %v6612 = vunpack.c.l.b16 %v6027
        %v6613 = vunpack.c.h.b16 %v6027
        %v6614 = vunpack.c.l.b16 %v6028
        %v6615 = vunpack.c.h.b16 %v6028
        %v6616 = vunpack.c.l.b16 %v6029
        %v6617 = vunpack.c.h.b16 %v6029
        %v6618 = vunpack.c.l.b16 %v6030
        %v6619 = vunpack.c.h.b16 %v6030
        %v6620 = vunpack.c.l.b16 %v6031
        %v6621 = vunpack.c.h.b16 %v6031
        %v6622 = vunpack.c.l.b16 %v6032
        %v6623 = vunpack.c.h.b16 %v6032
        %v6624 = vunpack.c.l.b16 %v6033
        %v6625 = vunpack.c.h.b16 %v6033
        %v6626 = vunpack.c.l.b16 %v6034
        %v6627 = vunpack.c.h.b16 %v6034
        %v6628 = vunpack.c.l.b16 %v6035
        %v6629 = vunpack.c.h.b16 %v6035
        %v6630 = vunpack.c.l.b16 %v6036
        %v6631 = vunpack.c.h.b16 %v6036
        %v6632 = vunpack.c.l.b16 %v6037
        %v6633 = vunpack.c.h.b16 %v6037
        %v6634 = vunpack.c.l.b16 %v6038
        %v6635 = vunpack.c.h.b16 %v6038
        %v6636 = vunpack.c.l.b16 %v6039
        %v6637 = vunpack.c.h.b16 %v6039
        %v6638 = vunpack.c.l.b16 %v6040
        %v6639 = vunpack.c.h.b16 %v6040
        %v6640 = vunpack.c.l.b16 %v6041
        %v6641 = vunpack.c.h.b16 %v6041
        %v6642 = vunpack.c.l.b16 %v6042
        %v6643 = vunpack.c.h.b16 %v6042
        %v6644 = vunpack.c.l.b16 %v6043
        %v6645 = vunpack.c.h.b16 %v6043
        %v6646 = vunpack.c.l.b16 %v6044
        %v6647 = vunpack.c.h.b16 %v6044
        %v6648 = vunpack.c.l.b16 %v6045
        %v6649 = vunpack.c.h.b16 %v6045
        %v6650 = vunpack.c.l.b16 %v6046
        %v6651 = vunpack.c.h.b16 %v6046
        %v6652 = vunpack.c.l.b16 %v6047
        %v6653 = vunpack.c.h.b16 %v6047
        %v6654 = vunpack.c.l.b16 %v6048
        %v6655 = vunpack.c.h.b16 %v6048
        %v6656 = vunpack.c.l.b16 %v6049
        %v6657 = vunpack.c.h.b16 %v6049
        %v6658 = vunpack.c.l.b16 %v6050
        %v6659 = vunpack.c.h.b16 %v6050
        %v6660 = vunpack.c.l.b16 %v6051
        %v6661 = vunpack.c.h.b16 %v6051
        %v6662 = vunpack.c.l.b16 %v6052
        %v6663 = vunpack.c.h.b16 %v6052
        %v6664 = vunpack.c.l.b16 %v6053
        %v6665 = vunpack.c.h.b16 %v6053
        %v6666 = vunpack.c.l.b16 %v6054
        %v6667 = vunpack.c.h.b16 %v6054
        %v6668 = vunpack.c.l.b16 %v6055
        %v6669 = vunpack.c.h.b16 %v6055
        %v6670 = vunpack.c.l.b16 %v6056
        %v6671 = vunpack.c.h.b16 %v6056
        %v6672 = vunpack.c.l.b16 %v6057
        %v6673 = vunpack.c.h.b16 %v6057
        %v6674 = vunpack.c.l.b16 %v6058
        %v6675 = vunpack.c.h.b16 %v6058
        %v6676 = vunpack.c.l.b16 %v6059
        %v6677 = vunpack.c.h.b16 %v6059
        %v6678 = vunpack.c.l.b16 %v6060
        %v6679 = vunpack.c.h.b16 %v6060
        %v6680 = vunpack.c.l.b16 %v6061
        %v6681 = vunpack.c.h.b16 %v6061
        %v6682 = vunpack.c.l.b16 %v6062
        %v6683 = vunpack.c.h.b16 %v6062
        %v6684 = vunpack.c.l.b16 %v6063
        %v6685 = vunpack.c.h.b16 %v6063
        %v6686 = vunpack.c.l.b16 %v6064
        %v6687 = vunpack.c.h.b16 %v6064
        %v6688 = vunpack.c.l.b16 %v6065
        %v6689 = vunpack.c.h.b16 %v6065
        %v6690 = vunpack.c.l.b16 %v6066
        %v6691 = vunpack.c.h.b16 %v6066
        %v6692 = vunpack.c.l.b16 %v6067
        %v6693 = vunpack.c.h.b16 %v6067
        %v6694 = vunpack.c.l.b16 %v6068
        %v6695 = vunpack.c.h.b16 %v6068
        %v6696 = vunpack.c.l.b16 %v6069
        %v6697 = vunpack.c.h.b16 %v6069
        %v6698 = vunpack.c.l.b16 %v6070
        %v6699 = vunpack.c.h.b16 %v6070
        %v6700 = vunpack.c.l.b16 %v6071
        %v6701 = vunpack.c.h.b16 %v6071
        %v6702 = vunpack.c.l.b16 %v6072
        %v6703 = vunpack.c.h.b16 %v6072
        %v6704 = vunpack.c.l.b16 %v6073
        %v6705 = vunpack.c.h.b16 %v6073
        %v6706 = vunpack.c.l.b16 %v6074
        %v6707 = vunpack.c.h.b16 %v6074
        %v6708 = vunpack.c.l.b16 %v6075
        %v6709 = vunpack.c.h.b16 %v6075
        %v6710 = vunpack.c.l.b16 %v6076
        %v6711 = vunpack.c.h.b16 %v6076
        %v6712 = vunpack.c.l.b16 %v6077
        %v6713 = vunpack.c.h.b16 %v6077
        %v6714 = vunpack.c.l.b16 %v6078
        %v6715 = vunpack.c.h.b16 %v6078
        %v6716 = vunpack.c.l.b16 %v6079
        %v6717 = vunpack.c.h.b16 %v6079
        %v6718 = vunpack.c.l.b16 %v6080
        %v6719 = vunpack.c.h.b16 %v6080
        %v6720 = vunpack.c.l.b16 %v6081
        %v6721 = vunpack.c.h.b16 %v6081
        %v6722 = vunpack.c.l.b16 %v6082
        %v6723 = vunpack.c.h.b16 %v6082
        %v6724 = vunpack.c.l.b16 %v6083
        %v6725 = vunpack.c.h.b16 %v6083
        %v6726 = vunpack.c.l.b16 %v6084
        %v6727 = vunpack.c.h.b16 %v6084
        %v6728 = vunpack.c.l.b16 %v6085
        %v6729 = vunpack.c.h.b16 %v6085
        %v6730 = vunpack.c.l.b16 %v6086
        %v6731 = vunpack.c.h.b16 %v6086
        %v6732 = vunpack.c.l.b16 %v6087
        %v6733 = vunpack.c.h.b16 %v6087
        %v6734 = vunpack.c.l.b16 %v6088
        %v6735 = vunpack.c.h.b16 %v6088
        %v6736 = vunpack.c.l.b16 %v6089
        %v6737 = vunpack.c.h.b16 %v6089
        %v6738 = vunpack.c.l.b16 %v6090
        %v6739 = vunpack.c.h.b16 %v6090
        %v6740 = vunpack.c.l.b16 %v6091
        %v6741 = vunpack.c.h.b16 %v6091
        %v6742 = vunpack.c.l.b16 %v6092
        %v6743 = vunpack.c.h.b16 %v6092
        %v6744 = vunpack.c.l.b16 %v6093
        %v6745 = vunpack.c.h.b16 %v6093
        %v6746 = vunpack.c.l.b16 %v6094
        %v6747 = vunpack.c.h.b16 %v6094
        %v6748 = vunpack.c.l.b16 %v6095
        %v6749 = vunpack.c.h.b16 %v6095
        %v6750 = vunpack.c.l.b16 %v6096
        %v6751 = vunpack.c.h.b16 %v6096
        %v6752 = vunpack.c.l.b16 %v6097
        %v6753 = vunpack.c.h.b16 %v6097
        %v6754 = vunpack.c.l.b16 %v6098
        %v6755 = vunpack.c.h.b16 %v6098
        %v6756 = vunpack.c.l.b16 %v6099
        %v6757 = vunpack.c.h.b16 %v6099
        %v6758 = vunpack.c.l.b16 %v6100
        %v6759 = vunpack.c.h.b16 %v6100
        %v6760 = vunpack.c.l.b16 %v6101
        %v6761 = vunpack.c.h.b16 %v6101
        %v6762 = vunpack.c.l.b16 %v6102
        %v6763 = vunpack.c.h.b16 %v6102
        %v6764 = vunpack.c.l.b16 %v6103
        %v6765 = vunpack.c.h.b16 %v6103
        %v6766 = vunpack.c.l.b16 %v6104
        %v6767 = vunpack.c.h.b16 %v6104
        %v6768 = vunpack.c.l.b16 %v6105
        %v6769 = vunpack.c.h.b16 %v6105
        %v6770 = vunpack.c.l.b16 %v6106
        %v6771 = vunpack.c.h.b16 %v6106
        %v6772 = vunpack.c.l.b16 %v6107
        %v6773 = vunpack.c.h.b16 %v6107
        %v6774 = vunpack.c.l.b16 %v6108
        %v6775 = vunpack.c.h.b16 %v6108
        %v6776 = vunpack.c.l.b16 %v6109
        %v6777 = vunpack.c.h.b16 %v6109
        %v6778 = vunpack.c.l.b16 %v6110
        %v6779 = vunpack.c.h.b16 %v6110
        %v6780 = vunpack.c.l.b16 %v6111
        %v6781 = vunpack.c.h.b16 %v6111
        %v6782 = vunpack.c.l.b16 %v6112
        %v6783 = vunpack.c.h.b16 %v6112
        %v6784 = vunpack.c.l.b16 %v6113
        %v6785 = vunpack.c.h.b16 %v6113
        %v6786 = vunpack.c.l.b16 %v6114
        %v6787 = vunpack.c.h.b16 %v6114
        %v6788 = vunpack.c.l.b16 %v6115
        %v6789 = vunpack.c.h.b16 %v6115
        %v6790 = vunpack.c.l.b16 %v6116
        %v6791 = vunpack.c.h.b16 %v6116
        %v6792 = vunpack.c.l.b16 %v6117
        %v6793 = vunpack.c.h.b16 %v6117
        %v6794 = vunpack.c.l.b16 %v6118
        %v6795 = vunpack.c.h.b16 %v6118
        %v6796 = vunpack.c.l.b16 %v6119
        %v6797 = vunpack.c.h.b16 %v6119
        %v6798 = vunpack.c.l.b16 %v6120
        %v6799 = vunpack.c.h.b16 %v6120
        %v6800 = vunpack.c.l.b16 %v6121
        %v6801 = vunpack.c.h.b16 %v6121
        %v6802 = vunpack.c.l.b16 %v6122
        %v6803 = vunpack.c.h.b16 %v6122
        %v6804 = vunpack.c.l.b16 %v6123
        %v6805 = vunpack.c.h.b16 %v6123
        %v6806 = vunpack.c.l.b16 %v6124
        %v6807 = vunpack.c.h.b16 %v6124
        %v6808 = vunpack.c.l.b16 %v6125
        %v6809 = vunpack.c.h.b16 %v6125
        %v6810 = vunpack.c.l.b16 %v6126
        %v6811 = vunpack.c.h.b16 %v6126
        %v6812 = vunpack.c.l.b16 %v6127
        %v6813 = vunpack.c.h.b16 %v6127
        %v6814 = vunpack.c.l.b16 %v6128
        %v6815 = vunpack.c.h.b16 %v6128
        %v6816 = vunpack.c.l.b16 %v6129
        %v6817 = vunpack.c.h.b16 %v6129
        %v6818 = vunpack.c.l.b16 %v6130
        %v6819 = vunpack.c.h.b16 %v6130
        %v6820 = vunpack.c.l.b16 %v6131
        %v6821 = vunpack.c.h.b16 %v6131
        %v6822 = vunpack.c.l.b16 %v6132
        %v6823 = vunpack.c.h.b16 %v6132
        %v6824 = vunpack.c.l.b16 %v6133
        %v6825 = vunpack.c.h.b16 %v6133
        %v6826 = vunpack.c.l.b16 %v6134
        %v6827 = vunpack.c.h.b16 %v6134
        %v6828 = vunpack.c.l.b16 %v6135
        %v6829 = vunpack.c.h.b16 %v6135
        %v6830 = vunpack.c.l.b16 %v6136
        %v6831 = vunpack.c.h.b16 %v6136
        %v6832 = vunpack.c.l.b16 %v6137
        %v6833 = vunpack.c.h.b16 %v6137
        %v6834 = vunpack.c.l.b16 %v6138
        %v6835 = vunpack.c.h.b16 %v6138
        %v6836 = vunpack.c.l.b16 %v6139
        %v6837 = vunpack.c.h.b16 %v6139
        %v6838 = vunpack.c.l.b16 %v6140
        %v6839 = vunpack.c.h.b16 %v6140
        %v6840 = vunpack.c.l.b16 %v6141
        %v6841 = vunpack.c.h.b16 %v6141
        %v6842 = vunpack.c.l.b16 %v6142
        %v6843 = vunpack.c.h.b16 %v6142
        %v6844 = vunpack.c.l.b16 %v6143
        %v6845 = vunpack.c.h.b16 %v6143
        %v6846 = vunpack.c.l.b16 %v6144
        %v6847 = vunpack.c.h.b16 %v6144
        %v6848 = vunpack.c.l.b16 %v6145
        %v6849 = vunpack.c.h.b16 %v6145
        %v6850 = vunpack.c.l.b16 %v6146
        %v6851 = vunpack.c.h.b16 %v6146
        %v6852 = vunpack.c.l.b16 %v6147
        %v6853 = vunpack.c.h.b16 %v6147
        %v6854 = vunpack.c.l.b16 %v6148
        %v6855 = vunpack.c.h.b16 %v6148
        %v6856 = vunpack.c.l.b16 %v6149
        %v6857 = vunpack.c.h.b16 %v6149
        %v6858 = vunpack.c.l.b16 %v6150
        %v6859 = vunpack.c.h.b16 %v6150
        %v6860 = vunpack.c.l.b16 %v6151
        %v6861 = vunpack.c.h.b16 %v6151
        %v6862 = vunpack.c.l.b16 %v6152
        %v6863 = vunpack.c.h.b16 %v6152
        %v6864 = vunpack.c.l.b16 %v6153
        %v6865 = vunpack.c.h.b16 %v6153
        %v6866 = vunpack.c.l.b16 %v6154
        %v6867 = vunpack.c.h.b16 %v6154
        %v6868 = vunpack.c.l.b16 %v6155
        %v6869 = vunpack.c.h.b16 %v6155
        %v6870 = vunpack.c.l.b16 %v6156
        %v6871 = vunpack.c.h.b16 %v6156
        %v6872 = vunpack.c.l.b16 %v6157
        %v6873 = vunpack.c.h.b16 %v6157
        %v6874 = vunpack.c.l.b16 %v6158
        %v6875 = vunpack.c.h.b16 %v6158
        %v6876 = vunpack.c.l.b16 %v6159
        %v6877 = vunpack.c.h.b16 %v6159
        %v6878 = vunpack.c.l.b16 %v6160
        %v6879 = vunpack.c.h.b16 %v6160
        %v6880 = vunpack.c.l.b16 %v6161
        %v6881 = vunpack.c.h.b16 %v6161
        %v6882 = vunpack.c.l.b16 %v6162
        %v6883 = vunpack.c.h.b16 %v6162
        %v6884 = vunpack.c.l.b16 %v6163
        %v6885 = vunpack.c.h.b16 %v6163
        %v6886 = vunpack.c.l.b16 %v6164
        %v6887 = vunpack.c.h.b16 %v6164
        %v6888 = vunpack.c.l.b16 %v6165
        %v6889 = vunpack.c.h.b16 %v6165
        %v6890 = vunpack.c.l.b16 %v6166
        %v6891 = vunpack.c.h.b16 %v6166
        %v6892 = vunpack.c.l.b16 %v6167
        %v6893 = vunpack.c.h.b16 %v6167
        %v6894 = vunpack.c.l.b16 %v6168
        %v6895 = vunpack.c.h.b16 %v6168
        %v6896 = vunpack.c.l.b16 %v6169
        %v6897 = vunpack.c.h.b16 %v6169
        %v6898 = vunpack.c.l.b16 %v6170
        %v6899 = vunpack.c.h.b16 %v6170
        %v6900 = vunpack.c.l.b16 %v6171
        %v6901 = vunpack.c.h.b16 %v6171
        %v6902 = vunpack.c.l.b16 %v6172
        %v6903 = vunpack.c.h.b16 %v6172
        %v6904 = vunpack.c.l.b16 %v6173
        %v6905 = vunpack.c.h.b16 %v6173
        %v6906 = vunpack.c.l.b16 %v6174
        %v6907 = vunpack.c.h.b16 %v6174
        %v6908 = vunpack.c.l.b16 %v6175
        %v6909 = vunpack.c.h.b16 %v6175
        %v6910 = vunpack.c.l.b16 %v6176
        %v6911 = vunpack.c.h.b16 %v6176
        %v6912 = vunpack.c.l.b16 %v6177
        %v6913 = vunpack.c.h.b16 %v6177
        %v6914 = vunpack.c.l.b16 %v6178
        %v6915 = vunpack.c.h.b16 %v6178
        %v6916 = vunpack.c.l.b16 %v6179
        %v6917 = vunpack.c.h.b16 %v6179
        %v6918 = vunpack.c.l.b16 %v6180
        %v6919 = vunpack.c.h.b16 %v6180
        %v6920 = vunpack.c.l.b16 %v6181
        %v6921 = vunpack.c.h.b16 %v6181
        %v6922 = vunpack.c.l.b16 %v6182
        %v6923 = vunpack.c.h.b16 %v6182
        %v6924 = vunpack.c.l.b16 %v6183
        %v6925 = vunpack.c.h.b16 %v6183
        %v6926 = vunpack.c.l.b16 %v6184
        %v6927 = vunpack.c.h.b16 %v6184
        %v6928 = vunpack.c.l.b16 %v6185
        %v6929 = vunpack.c.h.b16 %v6185
        %v6930 = vunpack.c.l.b16 %v6186
        %v6931 = vunpack.c.h.b16 %v6186
        %v6932 = vunpack.c.l.b16 %v6187
        %v6933 = vunpack.c.h.b16 %v6187
        %v6934 = vunpack.c.l.b16 %v6188
        %v6935 = vunpack.c.h.b16 %v6188
        %v6936 = vunpack.c.l.b16 %v6189
        %v6937 = vunpack.c.h.b16 %v6189
        %v6938 = vunpack.c.l.b16 %v6190
        %v6939 = vunpack.c.h.b16 %v6190
        %v6940 = vunpack.c.l.b16 %v6191
        %v6941 = vunpack.c.h.b16 %v6191
        %v6942 = vunpack.c.l.b16 %v6192
        %v6943 = vunpack.c.h.b16 %v6192
        %v6944 = vunpack.c.l.b16 %v6193
        %v6945 = vunpack.c.h.b16 %v6193
        %v6946 = vunpack.c.l.b16 %v6194
        %v6947 = vunpack.c.h.b16 %v6194
        %v6948 = vunpack.c.l.b16 %v6195
        %v6949 = vunpack.c.h.b16 %v6195
        %v6950 = vunpack.c.l.b16 %v6196
        %v6951 = vunpack.c.h.b16 %v6196
        %v6952 = vunpack.c.l.b16 %v6197
        %v6953 = vunpack.c.h.b16 %v6197
        %v6954 = vunpack.c.l.b16 %v6198
        %v6955 = vunpack.c.h.b16 %v6198
        %v6956 = vunpack.c.l.b16 %v6199
        %v6957 = vunpack.c.h.b16 %v6199
        %v6958 = vunpack.c.l.b16 %v6200
        %v6959 = vunpack.c.h.b16 %v6200
        %v6960 = vunpack.c.l.b16 %v6201
        %v6961 = vunpack.c.h.b16 %v6201
        %v6962 = vunpack.c.l.b16 %v6202
        %v6963 = vunpack.c.h.b16 %v6202
        %v6964 = vunpack.c.l.b16 %v6203
        %v6965 = vunpack.c.h.b16 %v6203
        %v6966 = vunpack.c.l.b16 %v6204
        %v6967 = vunpack.c.h.b16 %v6204
        %v6968 = vunpack.c.l.b16 %v6205
        %v6969 = vunpack.c.h.b16 %v6205
        %v6970 = vunpack.c.l.b16 %v6206
        %v6971 = vunpack.c.h.b16 %v6206
        %v6972 = vunpack.c.l.b16 %v6207
        %v6973 = vunpack.c.h.b16 %v6207
        %v6974 = vunpack.c.l.b16 %v6208
        %v6975 = vunpack.c.h.b16 %v6208
        %v6976 = vunpack.c.l.b16 %v6209
        %v6977 = vunpack.c.h.b16 %v6209
        %v6978 = vunpack.c.l.b16 %v6210
        %v6979 = vunpack.c.h.b16 %v6210
        %v6980 = vunpack.c.l.b16 %v6211
        %v6981 = vunpack.c.h.b16 %v6211
        %v6982 = vunpack.c.l.b16 %v6212
        %v6983 = vunpack.c.h.b16 %v6212
        %v6984 = vunpack.c.l.b16 %v6213
        %v6985 = vunpack.c.h.b16 %v6213
        %v6986 = vunpack.c.l.b16 %v6214
        %v6987 = vunpack.c.h.b16 %v6214
        %v6988 = vunpack.c.l.b16 %v6215
        %v6989 = vunpack.c.h.b16 %v6215
        %v6990 = vunpack.c.l.b16 %v6216
        %v6991 = vunpack.c.h.b16 %v6216
        %v6992 = vunpack.c.l.b16 %v6217
        %v6993 = vunpack.c.h.b16 %v6217
        %v6994 = vunpack.c.l.b16 %v6218
        %v6995 = vunpack.c.h.b16 %v6218
        %v6996 = vunpack.c.l.b16 %v6219
        %v6997 = vunpack.c.h.b16 %v6219
        %v6998 = vunpack.c.l.b16 %v6220
        %v6999 = vunpack.c.h.b16 %v6220
        %v7000 = vunpack.c.l.b16 %v6221
        %v7001 = vunpack.c.h.b16 %v6221
        %v7002 = vunpack.c.l.b16 %v6222
        %v7003 = vunpack.c.h.b16 %v6222
        %v7004 = vunpack.c.l.b16 %v6223
        %v7005 = vunpack.c.h.b16 %v6223
        %v7006 = vpack.c.b16 %v6502, %v6494
        %v7007 = vpack.c.b16 %v6503, %v6495
        %v7008 = vpack.c.b16 %v6504, %v6496
        %v7009 = vpack.c.b16 %v6505, %v6497
        %v7010 = vpack.c.b16 %v6506, %v6498
        %v7011 = vpack.c.b16 %v6507, %v6499
        %v7012 = vpack.c.b16 %v6508, %v6500
        %v7013 = vpack.c.b16 %v6509, %v6501
        %v7014 = vpack.c.b16 %v6518, %v6510
        %v7015 = vpack.c.b16 %v6519, %v6511
        %v7016 = vpack.c.b16 %v6520, %v6512
        %v7017 = vpack.c.b16 %v6521, %v6513
        %v7018 = vpack.c.b16 %v6522, %v6514
        %v7019 = vpack.c.b16 %v6523, %v6515
        %v7020 = vpack.c.b16 %v6524, %v6516
        %v7021 = vpack.c.b16 %v6525, %v6517
        %v7022 = vpack.c.b16 %v6534, %v6526
        %v7023 = vpack.c.b16 %v6535, %v6527
        %v7024 = vpack.c.b16 %v6536, %v6528
        %v7025 = vpack.c.b16 %v6537, %v6529
        %v7026 = vpack.c.b16 %v6538, %v6530
        %v7027 = vpack.c.b16 %v6539, %v6531
        %v7028 = vpack.c.b16 %v6540, %v6532
        %v7029 = vpack.c.b16 %v6541, %v6533
        %v7030 = vpack.c.b16 %v6550, %v6542
        %v7031 = vpack.c.b16 %v6551, %v6543
        %v7032 = vpack.c.b16 %v6552, %v6544
        %v7033 = vpack.c.b16 %v6553, %v6545
        %v7034 = vpack.c.b16 %v6554, %v6546
        %v7035 = vpack.c.b16 %v6555, %v6547
        %v7036 = vpack.c.b16 %v6556, %v6548
        %v7037 = vpack.c.b16 %v6557, %v6549
        %v7038 = vpack.c.b16 %v6566, %v6558
        %v7039 = vpack.c.b16 %v6567, %v6559
        %v7040 = vpack.c.b16 %v6568, %v6560
        %v7041 = vpack.c.b16 %v6569, %v6561
        %v7042 = vpack.c.b16 %v6570, %v6562
        %v7043 = vpack.c.b16 %v6571, %v6563
        %v7044 = vpack.c.b16 %v6572, %v6564
        %v7045 = vpack.c.b16 %v6573, %v6565
        %v7046 = vpack.c.b16 %v6582, %v6574
        %v7047 = vpack.c.b16 %v6583, %v6575
        %v7048 = vpack.c.b16 %v6584, %v6576
        %v7049 = vpack.c.b16 %v6585, %v6577
        %v7050 = vpack.c.b16 %v6586, %v6578
        %v7051 = vpack.c.b16 %v6587, %v6579
        %v7052 = vpack.c.b16 %v6588, %v6580
        %v7053 = vpack.c.b16 %v6589, %v6581
        %v7054 = vpack.c.b16 %v6598, %v6590
        %v7055 = vpack.c.b16 %v6599, %v6591
        %v7056 = vpack.c.b16 %v6600, %v6592
        %v7057 = vpack.c.b16 %v6601, %v6593
        %v7058 = vpack.c.b16 %v6602, %v6594
        %v7059 = vpack.c.b16 %v6603, %v6595
        %v7060 = vpack.c.b16 %v6604, %v6596
        %v7061 = vpack.c.b16 %v6605, %v6597
        %v7062 = vpack.c.b16 %v6614, %v6606
        %v7063 = vpack.c.b16 %v6615, %v6607
        %v7064 = vpack.c.b16 %v6616, %v6608
        %v7065 = vpack.c.b16 %v6617, %v6609
        %v7066 = vpack.c.b16 %v6618, %v6610
        %v7067 = vpack.c.b16 %v6619, %v6611
        %v7068 = vpack.c.b16 %v6620, %v6612
        %v7069 = vpack.c.b16 %v6621, %v6613
        %v7070 = vpack.c.b16 %v6630, %v6622
        %v7071 = vpack.c.b16 %v6631, %v6623
        %v7072 = vpack.c.b16 %v6632, %v6624
        %v7073 = vpack.c.b16 %v6633, %v6625
        %v7074 = vpack.c.b16 %v6634, %v6626
        %v7075 = vpack.c.b16 %v6635, %v6627
        %v7076 = vpack.c.b16 %v6636, %v6628
        %v7077 = vpack.c.b16 %v6637, %v6629
        %v7078 = vpack.c.b16 %v6646, %v6638
        %v7079 = vpack.c.b16 %v6647, %v6639
        %v7080 = vpack.c.b16 %v6648, %v6640
        %v7081 = vpack.c.b16 %v6649, %v6641
        %v7082 = vpack.c.b16 %v6650, %v6642
        %v7083 = vpack.c.b16 %v6651, %v6643
        %v7084 = vpack.c.b16 %v6652, %v6644
        %v7085 = vpack.c.b16 %v6653, %v6645
        %v7086 = vpack.c.b16 %v6662, %v6654
        %v7087 = vpack.c.b16 %v6663, %v6655
        %v7088 = vpack.c.b16 %v6664, %v6656
        %v7089 = vpack.c.b16 %v6665, %v6657
        %v7090 = vpack.c.b16 %v6666, %v6658
        %v7091 = vpack.c.b16 %v6667, %v6659
        %v7092 = vpack.c.b16 %v6668, %v6660
        %v7093 = vpack.c.b16 %v6669, %v6661
        %v7094 = vpack.c.b16 %v6678, %v6670
        %v7095 = vpack.c.b16 %v6679, %v6671
        %v7096 = vpack.c.b16 %v6680, %v6672
        %v7097 = vpack.c.b16 %v6681, %v6673
        %v7098 = vpack.c.b16 %v6682, %v6674
        %v7099 = vpack.c.b16 %v6683, %v6675
        %v7100 = vpack.c.b16 %v6684, %v6676
        %v7101 = vpack.c.b16 %v6685, %v6677
        %v7102 = vpack.c.b16 %v6694, %v6686
        %v7103 = vpack.c.b16 %v6695, %v6687
        %v7104 = vpack.c.b16 %v6696, %v6688
        %v7105 = vpack.c.b16 %v6697, %v6689
        %v7106 = vpack.c.b16 %v6698, %v6690
        %v7107 = vpack.c.b16 %v6699, %v6691
        %v7108 = vpack.c.b16 %v6700, %v6692
        %v7109 = vpack.c.b16 %v6701, %v6693
        %v7110 = vpack.c.b16 %v6710, %v6702
        %v7111 = vpack.c.b16 %v6711, %v6703
        %v7112 = vpack.c.b16 %v6712, %v6704
        %v7113 = vpack.c.b16 %v6713, %v6705
        %v7114 = vpack.c.b16 %v6714, %v6706
        %v7115 = vpack.c.b16 %v6715, %v6707
        %v7116 = vpack.c.b16 %v6716, %v6708
        %v7117 = vpack.c.b16 %v6717, %v6709
        %v7118 = vpack.c.b16 %v6726, %v6718
        %v7119 = vpack.c.b16 %v6727, %v6719
        %v7120 = vpack.c.b16 %v6728, %v6720
        %v7121 = vpack.c.b16 %v6729, %v6721
        %v7122 = vpack.c.b16 %v6730, %v6722
        %v7123 = vpack.c.b16 %v6731, %v6723
        %v7124 = vpack.c.b16 %v6732, %v6724
        %v7125 = vpack.c.b16 %v6733, %v6725
        %v7126 = vpack.c.b16 %v6742, %v6734
        %v7127 = vpack.c.b16 %v6743, %v6735
        %v7128 = vpack.c.b16 %v6744, %v6736
        %v7129 = vpack.c.b16 %v6745, %v6737
        %v7130 = vpack.c.b16 %v6746, %v6738
        %v7131 = vpack.c.b16 %v6747, %v6739
        %v7132 = vpack.c.b16 %v6748, %v6740
        %v7133 = vpack.c.b16 %v6749, %v6741
        %v7134 = vpack.c.b16 %v6758, %v6750
        %v7135 = vpack.c.b16 %v6759, %v6751
        %v7136 = vpack.c.b16 %v6760, %v6752
        %v7137 = vpack.c.b16 %v6761, %v6753
        %v7138 = vpack.c.b16 %v6762, %v6754
        %v7139 = vpack.c.b16 %v6763, %v6755
        %v7140 = vpack.c.b16 %v6764, %v6756
        %v7141 = vpack.c.b16 %v6765, %v6757
        %v7142 = vpack.c.b16 %v6774, %v6766
        %v7143 = vpack.c.b16 %v6775, %v6767
        %v7144 = vpack.c.b16 %v6776, %v6768
        %v7145 = vpack.c.b16 %v6777, %v6769
        %v7146 = vpack.c.b16 %v6778, %v6770
        %v7147 = vpack.c.b16 %v6779, %v6771
        %v7148 = vpack.c.b16 %v6780, %v6772
        %v7149 = vpack.c.b16 %v6781, %v6773
        %v7150 = vpack.c.b16 %v6790, %v6782
        %v7151 = vpack.c.b16 %v6791, %v6783
        %v7152 = vpack.c.b16 %v6792, %v6784
        %v7153 = vpack.c.b16 %v6793, %v6785
        %v7154 = vpack.c.b16 %v6794, %v6786
        %v7155 = vpack.c.b16 %v6795, %v6787
        %v7156 = vpack.c.b16 %v6796, %v6788
        %v7157 = vpack.c.b16 %v6797, %v6789
        %v7158 = vpack.c.b16 %v6806, %v6798
        %v7159 = vpack.c.b16 %v6807, %v6799
        %v7160 = vpack.c.b16 %v6808, %v6800
        %v7161 = vpack.c.b16 %v6809, %v6801
        %v7162 = vpack.c.b16 %v6810, %v6802
        %v7163 = vpack.c.b16 %v6811, %v6803
        %v7164 = vpack.c.b16 %v6812, %v6804
        %v7165 = vpack.c.b16 %v6813, %v6805
        %v7166 = vpack.c.b16 %v6822, %v6814
        %v7167 = vpack.c.b16 %v6823, %v6815
        %v7168 = vpack.c.b16 %v6824, %v6816
        %v7169 = vpack.c.b16 %v6825, %v6817
        %v7170 = vpack.c.b16 %v6826, %v6818
        %v7171 = vpack.c.b16 %v6827, %v6819
        %v7172 = vpack.c.b16 %v6828, %v6820
        %v7173 = vpack.c.b16 %v6829, %v6821
        %v7174 = vpack.c.b16 %v6838, %v6830
        %v7175 = vpack.c.b16 %v6839, %v6831
        %v7176 = vpack.c.b16 %v6840, %v6832
        %v7177 = vpack.c.b16 %v6841, %v6833
        %v7178 = vpack.c.b16 %v6842, %v6834
        %v7179 = vpack.c.b16 %v6843, %v6835
        %v7180 = vpack.c.b16 %v6844, %v6836
        %v7181 = vpack.c.b16 %v6845, %v6837
        %v7182 = vpack.c.b16 %v6854, %v6846
        %v7183 = vpack.c.b16 %v6855, %v6847
        %v7184 = vpack.c.b16 %v6856, %v6848
        %v7185 = vpack.c.b16 %v6857, %v6849
        %v7186 = vpack.c.b16 %v6858, %v6850
        %v7187 = vpack.c.b16 %v6859, %v6851
        %v7188 = vpack.c.b16 %v6860, %v6852
        %v7189 = vpack.c.b16 %v6861, %v6853
        %v7190 = vpack.c.b16 %v6870, %v6862
        %v7191 = vpack.c.b16 %v6871, %v6863
        %v7192 = vpack.c.b16 %v6872, %v6864
        %v7193 = vpack.c.b16 %v6873, %v6865
        %v7194 = vpack.c.b16 %v6874, %v6866
        %v7195 = vpack.c.b16 %v6875, %v6867
        %v7196 = vpack.c.b16 %v6876, %v6868
        %v7197 = vpack.c.b16 %v6877, %v6869
        %v7198 = vpack.c.b16 %v6886, %v6878
        %v7199 = vpack.c.b16 %v6887, %v6879
        %v7200 = vpack.c.b16 %v6888, %v6880
        %v7201 = vpack.c.b16 %v6889, %v6881
        %v7202 = vpack.c.b16 %v6890, %v6882
        %v7203 = vpack.c.b16 %v6891, %v6883
        %v7204 = vpack.c.b16 %v6892, %v6884
        %v7205 = vpack.c.b16 %v6893, %v6885
        %v7206 = vpack.c.b16 %v6902, %v6894
        %v7207 = vpack.c.b16 %v6903, %v6895
        %v7208 = vpack.c.b16 %v6904, %v6896
        %v7209 = vpack.c.b16 %v6905, %v6897
        %v7210 = vpack.c.b16 %v6906, %v6898
        %v7211 = vpack.c.b16 %v6907, %v6899
        %v7212 = vpack.c.b16 %v6908, %v6900
        %v7213 = vpack.c.b16 %v6909, %v6901
        %v7214 = vpack.c.b16 %v6918, %v6910
        %v7215 = vpack.c.b16 %v6919, %v6911
        %v7216 = vpack.c.b16 %v6920, %v6912
        %v7217 = vpack.c.b16 %v6921, %v6913
        %v7218 = vpack.c.b16 %v6922, %v6914
        %v7219 = vpack.c.b16 %v6923, %v6915
        %v7220 = vpack.c.b16 %v6924, %v6916
        %v7221 = vpack.c.b16 %v6925, %v6917
        %v7222 = vpack.c.b16 %v6934, %v6926
        %v7223 = vpack.c.b16 %v6935, %v6927
        %v7224 = vpack.c.b16 %v6936, %v6928
        %v7225 = vpack.c.b16 %v6937, %v6929
        %v7226 = vpack.c.b16 %v6938, %v6930
        %v7227 = vpack.c.b16 %v6939, %v6931
        %v7228 = vpack.c.b16 %v6940, %v6932
        %v7229 = vpack.c.b16 %v6941, %v6933
        %v7230 = vpack.c.b16 %v6950, %v6942
        %v7231 = vpack.c.b16 %v6951, %v6943
        %v7232 = vpack.c.b16 %v6952, %v6944
        %v7233 = vpack.c.b16 %v6953, %v6945
        %v7234 = vpack.c.b16 %v6954, %v6946
        %v7235 = vpack.c.b16 %v6955, %v6947
        %v7236 = vpack.c.b16 %v6956, %v6948
        %v7237 = vpack.c.b16 %v6957, %v6949
        %v7238 = vpack.c.b16 %v6966, %v6958
        %v7239 = vpack.c.b16 %v6967, %v6959
        %v7240 = vpack.c.b16 %v6968, %v6960
        %v7241 = vpack.c.b16 %v6969, %v6961
        %v7242 = vpack.c.b16 %v6970, %v6962
        %v7243 = vpack.c.b16 %v6971, %v6963
        %v7244 = vpack.c.b16 %v6972, %v6964
        %v7245 = vpack.c.b16 %v6973, %v6965
        %v7246 = vpack.c.b16 %v6982, %v6974
        %v7247 = vpack.c.b16 %v6983, %v6975
        %v7248 = vpack.c.b16 %v6984, %v6976
        %v7249 = vpack.c.b16 %v6985, %v6977
        %v7250 = vpack.c.b16 %v6986, %v6978
        %v7251 = vpack.c.b16 %v6987, %v6979
        %v7252 = vpack.c.b16 %v6988, %v6980
        %v7253 = vpack.c.b16 %v6989, %v6981
        %v7254 = vpack.c.b16 %v6998, %v6990
        %v7255 = vpack.c.b16 %v6999, %v6991
        %v7256 = vpack.c.b16 %v7000, %v6992
        %v7257 = vpack.c.b16 %v7001, %v6993
        %v7258 = vpack.c.b16 %v7002, %v6994
        %v7259 = vpack.c.b16 %v7003, %v6995
        %v7260 = vpack.c.b16 %v7004, %v6996
        %v7261 = vpack.c.b16 %v7005, %v6997
        %7518 = vmatprep.subr.bf16.mxu0 %v7063
        %7519 = vmatpush1.bf16.msra.mxu0 %v7062
        %7520 = vmatprep.subr.bf16.mxu0 %v7055
        %7521 = vmatpush1.bf16.msra.mxu0 %v7054
        %7522 = vmatprep.subr.bf16.mxu0 %v7047
        %7523 = vmatpush1.bf16.msra.mxu0 %v7046
        %7524 = vmatprep.subr.bf16.mxu0 %v7039
        %7525 = vmatpush1.bf16.msra.mxu0 %v7038
        %7526 = vmatprep.subr.bf16.mxu0 %v7031
        %7527 = vmatpush1.bf16.msra.mxu0 %v7030
        %7528 = vmatprep.subr.bf16.mxu0 %v7023
        %7529 = vmatpush1.bf16.msra.mxu0 %v7022
        %7530 = vmatprep.subr.bf16.mxu0 %v7015
        %7531 = vmatpush1.bf16.msra.mxu0 %v7014
        %7532 = vmatprep.subr.bf16.mxu0 %v7007
        %7533 = vmatpush1.bf16.msra.mxu0 %v7006
        %7534 = vmatprep.subr.bf16.mxu0 %v7127
        %7535 = vmatpush2.bf16.msra.mxu0 %v7126
        %7536 = vmatprep.subr.bf16.mxu0 %v7119
        %7537 = vmatpush2.bf16.msra.mxu0 %v7118
        %7538 = vmatprep.subr.bf16.mxu0 %v7111
        %7539 = vmatpush2.bf16.msra.mxu0 %v7110
        %7540 = vmatprep.subr.bf16.mxu0 %v7103
        %7541 = vmatpush2.bf16.msra.mxu0 %v7102
        %7542 = vmatprep.subr.bf16.mxu0 %v7095
        %7543 = vmatpush2.bf16.msra.mxu0 %v7094
        %7544 = vmatprep.subr.bf16.mxu0 %v7087
        %7545 = vmatpush2.bf16.msra.mxu0 %v7086
        %7546 = vmatprep.subr.bf16.mxu0 %v7079
        %7547 = vmatpush2.bf16.msra.mxu0 %v7078
        %7548 = vmatprep.subr.bf16.mxu0 %v7071
        %7549 = vmatpush2.bf16.msra.mxu0 %v7070
        %7550 = vmatprep.mubr.bf16.mxu0 %v6231
        %7551 = vmatmul.mubr.bf16.gmra.mxu0 %v6230
        %v7552 = vpop.f32.mrf.mxu0
        %v7553 = vadd.f32 0.0, %v7552
        %v7554 = vpop.f32.mrf.mxu0
        %v7555 = vadd.f32 0.0, %v7554
        %v7556 = vpop.f32.mrf.mxu0
        %v7557 = vadd.f32 0.0, %v7556
        %v7558 = vpop.f32.mrf.mxu0
        %v7559 = vadd.f32 0.0, %v7558
        %7560 = vdwg.mxu0
        %7561 = vmatprep.subr.bf16.mxu0 %v7191
        %7562 = vmatpush1.bf16.msra.mxu0 %v7190
        %7563 = vmatprep.subr.bf16.mxu0 %v7183
        %7564 = vmatpush1.bf16.msra.mxu0 %v7182
        %7565 = vmatprep.subr.bf16.mxu0 %v7175
        %7566 = vmatpush1.bf16.msra.mxu0 %v7174
        %7567 = vmatprep.subr.bf16.mxu0 %v7167
        %7568 = vmatpush1.bf16.msra.mxu0 %v7166
        %7569 = vmatprep.subr.bf16.mxu0 %v7159
        %7570 = vmatpush1.bf16.msra.mxu0 %v7158
        %7571 = vmatprep.subr.bf16.mxu0 %v7151
        %7572 = vmatpush1.bf16.msra.mxu0 %v7150
        %7573 = vmatprep.subr.bf16.mxu0 %v7143
        %7574 = vmatpush1.bf16.msra.mxu0 %v7142
        %7575 = vmatprep.subr.bf16.mxu0 %v7135
        %7576 = vmatpush1.bf16.msra.mxu0 %v7134
        %7577 = vmatprep.subr.bf16.mxu0 %v7255
        %7578 = vmatpush2.bf16.msra.mxu0 %v7254
        %7579 = vmatprep.subr.bf16.mxu0 %v7247
        %7580 = vmatpush2.bf16.msra.mxu0 %v7246
        %7581 = vmatprep.subr.bf16.mxu0 %v7239
        %7582 = vmatpush2.bf16.msra.mxu0 %v7238
        %7583 = vmatprep.subr.bf16.mxu0 %v7231
        %7584 = vmatpush2.bf16.msra.mxu0 %v7230
        %7585 = vmatprep.subr.bf16.mxu0 %v7223
        %7586 = vmatpush2.bf16.msra.mxu0 %v7222
        %7587 = vmatprep.subr.bf16.mxu0 %v7215
        %7588 = vmatpush2.bf16.msra.mxu0 %v7214
        %7589 = vmatprep.subr.bf16.mxu0 %v7207
        %7590 = vmatpush2.bf16.msra.mxu0 %v7206
        %7591 = vmatprep.subr.bf16.mxu0 %v7199
        %7592 = vmatpush2.bf16.msra.mxu0 %v7198
        %7593 = vmatprep.mubr.bf16.mxu0 %v6233
        %7594 = vmatmul.mubr.bf16.gmra.mxu0 %v6232
        %v7595 = vpop.f32.mrf.mxu0
        %v7596 = vadd.f32 %v7553, %v7595
        %v7597 = vpop.f32.mrf.mxu0
        %v7598 = vadd.f32 %v7555, %v7597
        %v7599 = vpop.f32.mrf.mxu0
        %v7600 = vadd.f32 %v7557, %v7599
        %v7601 = vpop.f32.mrf.mxu0
        %v7602 = vadd.f32 %v7559, %v7601
        %7603 = vdwg.mxu0
        %7604 = vmatprep.subr.bf16.mxu0 %v7065
        %7605 = vmatpush1.bf16.msra.mxu0 %v7064
        %7606 = vmatprep.subr.bf16.mxu0 %v7057
        %7607 = vmatpush1.bf16.msra.mxu0 %v7056
        %7608 = vmatprep.subr.bf16.mxu0 %v7049
        %7609 = vmatpush1.bf16.msra.mxu0 %v7048
        %7610 = vmatprep.subr.bf16.mxu0 %v7041
        %7611 = vmatpush1.bf16.msra.mxu0 %v7040
        %7612 = vmatprep.subr.bf16.mxu0 %v7033
        %7613 = vmatpush1.bf16.msra.mxu0 %v7032
        %7614 = vmatprep.subr.bf16.mxu0 %v7025
        %7615 = vmatpush1.bf16.msra.mxu0 %v7024
        %7616 = vmatprep.subr.bf16.mxu0 %v7017
        %7617 = vmatpush1.bf16.msra.mxu0 %v7016
        %7618 = vmatprep.subr.bf16.mxu0 %v7009
        %7619 = vmatpush1.bf16.msra.mxu0 %v7008
        %7620 = vmatprep.subr.bf16.mxu0 %v7129
        %7621 = vmatpush2.bf16.msra.mxu0 %v7128
        %7622 = vmatprep.subr.bf16.mxu0 %v7121
        %7623 = vmatpush2.bf16.msra.mxu0 %v7120
        %7624 = vmatprep.subr.bf16.mxu0 %v7113
        %7625 = vmatpush2.bf16.msra.mxu0 %v7112
        %7626 = vmatprep.subr.bf16.mxu0 %v7105
        %7627 = vmatpush2.bf16.msra.mxu0 %v7104
        %7628 = vmatprep.subr.bf16.mxu0 %v7097
        %7629 = vmatpush2.bf16.msra.mxu0 %v7096
        %7630 = vmatprep.subr.bf16.mxu0 %v7089
        %7631 = vmatpush2.bf16.msra.mxu0 %v7088
        %7632 = vmatprep.subr.bf16.mxu0 %v7081
        %7633 = vmatpush2.bf16.msra.mxu0 %v7080
        %7634 = vmatprep.subr.bf16.mxu0 %v7073
        %7635 = vmatpush2.bf16.msra.mxu0 %v7072
        %7636 = vmatprep.mubr.bf16.mxu0 %v6231
        %7637 = vmatmul.mubr.bf16.gmra.mxu0 %v6230
        %v7638 = vpop.f32.mrf.mxu0
        %v7639 = vadd.f32 0.0, %v7638
        %v7640 = vpop.f32.mrf.mxu0
        %v7641 = vadd.f32 0.0, %v7640
        %v7642 = vpop.f32.mrf.mxu0
        %v7643 = vadd.f32 0.0, %v7642
        %v7644 = vpop.f32.mrf.mxu0
        %v7645 = vadd.f32 0.0, %v7644
        %7646 = vdwg.mxu0
        %7647 = vmatprep.subr.bf16.mxu0 %v7193
        %7648 = vmatpush1.bf16.msra.mxu0 %v7192
        %7649 = vmatprep.subr.bf16.mxu0 %v7185
        %7650 = vmatpush1.bf16.msra.mxu0 %v7184
        %7651 = vmatprep.subr.bf16.mxu0 %v7177
        %7652 = vmatpush1.bf16.msra.mxu0 %v7176
        %7653 = vmatprep.subr.bf16.mxu0 %v7169
        %7654 = vmatpush1.bf16.msra.mxu0 %v7168
        %7655 = vmatprep.subr.bf16.mxu0 %v7161
        %7656 = vmatpush1.bf16.msra.mxu0 %v7160
        %7657 = vmatprep.subr.bf16.mxu0 %v7153
        %7658 = vmatpush1.bf16.msra.mxu0 %v7152
        %7659 = vmatprep.subr.bf16.mxu0 %v7145
        %7660 = vmatpush1.bf16.msra.mxu0 %v7144
        %7661 = vmatprep.subr.bf16.mxu0 %v7137
        %7662 = vmatpush1.bf16.msra.mxu0 %v7136
        %7663 = vmatprep.subr.bf16.mxu0 %v7257
        %7664 = vmatpush2.bf16.msra.mxu0 %v7256
        %7665 = vmatprep.subr.bf16.mxu0 %v7249
        %7666 = vmatpush2.bf16.msra.mxu0 %v7248
        %7667 = vmatprep.subr.bf16.mxu0 %v7241
        %7668 = vmatpush2.bf16.msra.mxu0 %v7240
        %7669 = vmatprep.subr.bf16.mxu0 %v7233
        %7670 = vmatpush2.bf16.msra.mxu0 %v7232
        %7671 = vmatprep.subr.bf16.mxu0 %v7225
        %7672 = vmatpush2.bf16.msra.mxu0 %v7224
        %7673 = vmatprep.subr.bf16.mxu0 %v7217
        %7674 = vmatpush2.bf16.msra.mxu0 %v7216
        %7675 = vmatprep.subr.bf16.mxu0 %v7209
        %7676 = vmatpush2.bf16.msra.mxu0 %v7208
        %7677 = vmatprep.subr.bf16.mxu0 %v7201
        %7678 = vmatpush2.bf16.msra.mxu0 %v7200
        %7679 = vmatprep.mubr.bf16.mxu0 %v6233
        %7680 = vmatmul.mubr.bf16.gmra.mxu0 %v6232
        %v7681 = vpop.f32.mrf.mxu0
        %v7682 = vadd.f32 %v7639, %v7681
        %v7683 = vpop.f32.mrf.mxu0
        %v7684 = vadd.f32 %v7641, %v7683
        %v7685 = vpop.f32.mrf.mxu0
        %v7686 = vadd.f32 %v7643, %v7685
        %v7687 = vpop.f32.mrf.mxu0
        %v7688 = vadd.f32 %v7645, %v7687
        %7689 = vdwg.mxu0
        %7690 = vmatprep.subr.bf16.mxu0 %v7067
        %7691 = vmatpush1.bf16.msra.mxu0 %v7066
        %7692 = vmatprep.subr.bf16.mxu0 %v7059
        %7693 = vmatpush1.bf16.msra.mxu0 %v7058
        %7694 = vmatprep.subr.bf16.mxu0 %v7051
        %7695 = vmatpush1.bf16.msra.mxu0 %v7050
        %7696 = vmatprep.subr.bf16.mxu0 %v7043
        %7697 = vmatpush1.bf16.msra.mxu0 %v7042
        %7698 = vmatprep.subr.bf16.mxu0 %v7035
        %7699 = vmatpush1.bf16.msra.mxu0 %v7034
        %7700 = vmatprep.subr.bf16.mxu0 %v7027
        %7701 = vmatpush1.bf16.msra.mxu0 %v7026
        %7702 = vmatprep.subr.bf16.mxu0 %v7019
        %7703 = vmatpush1.bf16.msra.mxu0 %v7018
        %7704 = vmatprep.subr.bf16.mxu0 %v7011
        %7705 = vmatpush1.bf16.msra.mxu0 %v7010
        %7706 = vmatprep.subr.bf16.mxu0 %v7131
        %7707 = vmatpush2.bf16.msra.mxu0 %v7130
        %7708 = vmatprep.subr.bf16.mxu0 %v7123
        %7709 = vmatpush2.bf16.msra.mxu0 %v7122
        %7710 = vmatprep.subr.bf16.mxu0 %v7115
        %7711 = vmatpush2.bf16.msra.mxu0 %v7114
        %7712 = vmatprep.subr.bf16.mxu0 %v7107
        %7713 = vmatpush2.bf16.msra.mxu0 %v7106
        %7714 = vmatprep.subr.bf16.mxu0 %v7099
        %7715 = vmatpush2.bf16.msra.mxu0 %v7098
        %7716 = vmatprep.subr.bf16.mxu0 %v7091
        %7717 = vmatpush2.bf16.msra.mxu0 %v7090
        %7718 = vmatprep.subr.bf16.mxu0 %v7083
        %7719 = vmatpush2.bf16.msra.mxu0 %v7082
        %7720 = vmatprep.subr.bf16.mxu0 %v7075
        %7721 = vmatpush2.bf16.msra.mxu0 %v7074
        %7722 = vmatprep.mubr.bf16.mxu0 %v6231
        %7723 = vmatmul.mubr.bf16.gmra.mxu0 %v6230
        %v7724 = vpop.f32.mrf.mxu0
        %v7725 = vadd.f32 0.0, %v7724
        %v7726 = vpop.f32.mrf.mxu0
        %v7727 = vadd.f32 0.0, %v7726
        %v7728 = vpop.f32.mrf.mxu0
        %v7729 = vadd.f32 0.0, %v7728
        %v7730 = vpop.f32.mrf.mxu0
        %v7731 = vadd.f32 0.0, %v7730
        %7732 = vdwg.mxu0
        %7733 = vmatprep.subr.bf16.mxu0 %v7195
        %7734 = vmatpush1.bf16.msra.mxu0 %v7194
        %7735 = vmatprep.subr.bf16.mxu0 %v7187
        %7736 = vmatpush1.bf16.msra.mxu0 %v7186
        %7737 = vmatprep.subr.bf16.mxu0 %v7179
        %7738 = vmatpush1.bf16.msra.mxu0 %v7178
        %7739 = vmatprep.subr.bf16.mxu0 %v7171
        %7740 = vmatpush1.bf16.msra.mxu0 %v7170
        %7741 = vmatprep.subr.bf16.mxu0 %v7163
        %7742 = vmatpush1.bf16.msra.mxu0 %v7162
        %7743 = vmatprep.subr.bf16.mxu0 %v7155
        %7744 = vmatpush1.bf16.msra.mxu0 %v7154
        %7745 = vmatprep.subr.bf16.mxu0 %v7147
        %7746 = vmatpush1.bf16.msra.mxu0 %v7146
        %7747 = vmatprep.subr.bf16.mxu0 %v7139
        %7748 = vmatpush1.bf16.msra.mxu0 %v7138
        %7749 = vmatprep.subr.bf16.mxu0 %v7259
        %7750 = vmatpush2.bf16.msra.mxu0 %v7258
        %7751 = vmatprep.subr.bf16.mxu0 %v7251
        %7752 = vmatpush2.bf16.msra.mxu0 %v7250
        %7753 = vmatprep.subr.bf16.mxu0 %v7243
        %7754 = vmatpush2.bf16.msra.mxu0 %v7242
        %7755 = vmatprep.subr.bf16.mxu0 %v7235
        %7756 = vmatpush2.bf16.msra.mxu0 %v7234
        %7757 = vmatprep.subr.bf16.mxu0 %v7227
        %7758 = vmatpush2.bf16.msra.mxu0 %v7226
        %7759 = vmatprep.subr.bf16.mxu0 %v7219
        %7760 = vmatpush2.bf16.msra.mxu0 %v7218
        %7761 = vmatprep.subr.bf16.mxu0 %v7211
        %7762 = vmatpush2.bf16.msra.mxu0 %v7210
        %7763 = vmatprep.subr.bf16.mxu0 %v7203
        %7764 = vmatpush2.bf16.msra.mxu0 %v7202
        %7765 = vmatprep.mubr.bf16.mxu0 %v6233
        %7766 = vmatmul.mubr.bf16.gmra.mxu0 %v6232
        %v7767 = vpop.f32.mrf.mxu0
        %v7768 = vadd.f32 %v7725, %v7767
        %v7769 = vpop.f32.mrf.mxu0
        %v7770 = vadd.f32 %v7727, %v7769
        %v7771 = vpop.f32.mrf.mxu0
        %v7772 = vadd.f32 %v7729, %v7771
        %v7773 = vpop.f32.mrf.mxu0
        %v7774 = vadd.f32 %v7731, %v7773
        %7775 = vdwg.mxu0
        %7776 = vmatprep.subr.bf16.mxu0 %v7069
        %7777 = vmatpush1.bf16.msra.mxu0 %v7068
        %7778 = vmatprep.subr.bf16.mxu0 %v7061
        %7779 = vmatpush1.bf16.msra.mxu0 %v7060
        %7780 = vmatprep.subr.bf16.mxu0 %v7053
        %7781 = vmatpush1.bf16.msra.mxu0 %v7052
        %7782 = vmatprep.subr.bf16.mxu0 %v7045
        %7783 = vmatpush1.bf16.msra.mxu0 %v7044
        %7784 = vmatprep.subr.bf16.mxu0 %v7037
        %7785 = vmatpush1.bf16.msra.mxu0 %v7036
        %7786 = vmatprep.subr.bf16.mxu0 %v7029
        %7787 = vmatpush1.bf16.msra.mxu0 %v7028
        %7788 = vmatprep.subr.bf16.mxu0 %v7021
        %7789 = vmatpush1.bf16.msra.mxu0 %v7020
        %7790 = vmatprep.subr.bf16.mxu0 %v7013
        %7791 = vmatpush1.bf16.msra.mxu0 %v7012
        %7792 = vmatprep.subr.bf16.mxu0 %v7133
        %7793 = vmatpush2.bf16.msra.mxu0 %v7132
        %7794 = vmatprep.subr.bf16.mxu0 %v7125
        %7795 = vmatpush2.bf16.msra.mxu0 %v7124
        %7796 = vmatprep.subr.bf16.mxu0 %v7117
        %7797 = vmatpush2.bf16.msra.mxu0 %v7116
        %7798 = vmatprep.subr.bf16.mxu0 %v7109
        %7799 = vmatpush2.bf16.msra.mxu0 %v7108
        %7800 = vmatprep.subr.bf16.mxu0 %v7101
        %7801 = vmatpush2.bf16.msra.mxu0 %v7100
        %7802 = vmatprep.subr.bf16.mxu0 %v7093
        %7803 = vmatpush2.bf16.msra.mxu0 %v7092
        %7804 = vmatprep.subr.bf16.mxu0 %v7085
        %7805 = vmatpush2.bf16.msra.mxu0 %v7084
        %7806 = vmatprep.subr.bf16.mxu0 %v7077
        %7807 = vmatpush2.bf16.msra.mxu0 %v7076
        %7808 = vmatprep.mubr.bf16.mxu0 %v6231
        %7809 = vmatmul.mubr.bf16.gmra.mxu0 %v6230
        %v7810 = vpop.f32.mrf.mxu0
        %v7811 = vadd.f32 0.0, %v7810
        %v7812 = vpop.f32.mrf.mxu0
        %v7813 = vadd.f32 0.0, %v7812
        %v7814 = vpop.f32.mrf.mxu0
        %v7815 = vadd.f32 0.0, %v7814
        %v7816 = vpop.f32.mrf.mxu0
        %v7817 = vadd.f32 0.0, %v7816
        %7818 = vdwg.mxu0
        %7819 = vmatprep.subr.bf16.mxu0 %v7197
        %7820 = vmatpush1.bf16.msra.mxu0 %v7196
        %7821 = vmatprep.subr.bf16.mxu0 %v7189
        %7822 = vmatpush1.bf16.msra.mxu0 %v7188
        %7823 = vmatprep.subr.bf16.mxu0 %v7181
        %7824 = vmatpush1.bf16.msra.mxu0 %v7180
        %7825 = vmatprep.subr.bf16.mxu0 %v7173
        %7826 = vmatpush1.bf16.msra.mxu0 %v7172
        %7827 = vmatprep.subr.bf16.mxu0 %v7165
        %7828 = vmatpush1.bf16.msra.mxu0 %v7164
        %7829 = vmatprep.subr.bf16.mxu0 %v7157
        %7830 = vmatpush1.bf16.msra.mxu0 %v7156
        %7831 = vmatprep.subr.bf16.mxu0 %v7149
        %7832 = vmatpush1.bf16.msra.mxu0 %v7148
        %7833 = vmatprep.subr.bf16.mxu0 %v7141
        %7834 = vmatpush1.bf16.msra.mxu0 %v7140
        %7835 = vmatprep.subr.bf16.mxu0 %v7261
        %7836 = vmatpush2.bf16.msra.mxu0 %v7260
        %7837 = vmatprep.subr.bf16.mxu0 %v7253
        %7838 = vmatpush2.bf16.msra.mxu0 %v7252
        %7839 = vmatprep.subr.bf16.mxu0 %v7245
        %7840 = vmatpush2.bf16.msra.mxu0 %v7244
        %7841 = vmatprep.subr.bf16.mxu0 %v7237
        %7842 = vmatpush2.bf16.msra.mxu0 %v7236
        %7843 = vmatprep.subr.bf16.mxu0 %v7229
        %7844 = vmatpush2.bf16.msra.mxu0 %v7228
        %7845 = vmatprep.subr.bf16.mxu0 %v7221
        %7846 = vmatpush2.bf16.msra.mxu0 %v7220
        %7847 = vmatprep.subr.bf16.mxu0 %v7213
        %7848 = vmatpush2.bf16.msra.mxu0 %v7212
        %7849 = vmatprep.subr.bf16.mxu0 %v7205
        %7850 = vmatpush2.bf16.msra.mxu0 %v7204
        %7851 = vmatprep.mubr.bf16.mxu0 %v6233
        %7852 = vmatmul.mubr.bf16.gmra.mxu0 %v6232
        %v7853 = vpop.f32.mrf.mxu0
        %v7854 = vadd.f32 %v7811, %v7853
        %v7855 = vpop.f32.mrf.mxu0
        %v7856 = vadd.f32 %v7813, %v7855
        %v7857 = vpop.f32.mrf.mxu0
        %v7858 = vadd.f32 %v7815, %v7857
        %v7859 = vpop.f32.mrf.mxu0
        %v7860 = vadd.f32 %v7817, %v7859
        %7861 = vdwg.mxu0
        %v7862 = vadd.f32 %v5952, %v7596
        %v7863 = vadd.f32 %v5953, %v7598
        %v7864 = vadd.f32 %v5954, %v7682
        %v7865 = vadd.f32 %v5955, %v7684
        %v7866 = vadd.f32 %v5956, %v7768
        %v7867 = vadd.f32 %v5957, %v7770
        %v7868 = vadd.f32 %v5958, %v7854
        %v7869 = vadd.f32 %v5959, %v7856
        %v7870 = vadd.f32 %v5960, %v7600
        %v7871 = vadd.f32 %v5961, %v7602
        %v7872 = vadd.f32 %v5962, %v7686
        %v7873 = vadd.f32 %v5963, %v7688
        %v7874 = vadd.f32 %v5964, %v7772
        %v7875 = vadd.f32 %v5965, %v7774
        %v7876 = vadd.f32 %v5966, %v7858
        %v7877 = vadd.f32 %v5967, %v7860
        %v7878 = vmax.f32 %v7862, %v7864
        %v7879 = vmax.f32 %v7863, %v7865
        %v7880 = vmax.f32 %v7870, %v7872
        %v7881 = vmax.f32 %v7871, %v7873
        %v7882 = vmax.f32 %v7866, %v7868
        %v7883 = vmax.f32 %v7867, %v7869
        %v7884 = vmax.f32 %v7874, %v7876
        %v7885 = vmax.f32 %v7875, %v7877
        %v7886 = vmax.f32 %v7878, %v7882
        %v7887 = vmax.f32 %v7879, %v7883
        %v7888 = vmax.f32 %v7880, %v7884
        %v7889 = vmax.f32 %v7881, %v7885
        %v7890 = vld [vmem:[#allocation4] sm:$0x3]
        %v7892 = vlaneseq
        %v7893 = vshrl.u32 %v7892, 7
        %v7894 = vsub.s32 0, %v7893
        %v7895 = vrot.slane %v7890, %v7894
        %v7896 = vlaneseq
        %v7897 = vshrl.u32 %v7896, 7
        %v7898 = vsub.s32 1, %v7897
        %v7899 = vrot.slane %v7890, %v7898
        %v7902 = vadd.f32 %v7886, %v7895
        %v7903 = vadd.f32 %v7887, %v7899
        %v7904 = vadd.f32 %v7888, %v7895
        %v7905 = vadd.f32 %v7889, %v7899
        %v7906 = vmax.f32 %v7902, 0.0
        %v7907 = vmax.f32 %v7903, 0.0
        %v7908 = vmax.f32 %v7904, 0.0
        %v7909 = vmax.f32 %v7905, 0.0
        %v7910 = vpack.c.bf16 %v7906, %v7906
        %v7911 = vpack.c.bf16 %v7907, %v7907
        %v7912 = vpack.c.bf16 %v7908, %v7908
        %v7913 = vpack.c.bf16 %v7909, %v7909
        %v7918 = vunpack.c.l.b16 %v7910
        %v7919 = vunpack.c.l.b16 %v7911
        %v7920 = vunpack.c.l.b16 %v7912
        %v7921 = vunpack.c.l.b16 %v7913
        %v7922 = vpack.c.b16 %v7919, %v7918
        %v7923 = vpack.c.b16 %v7921, %v7920
        %7926 = vst [vmem:[%s245] sm:$0xff] %v7922
        %7927 = vst [vmem:[%s245 + $0x8] sm:$0xff] %v7923
        %p7928 = scmp.lt.s32.totalorder %s17, 1
        %s7929 = scalar_select %p7928, %s17, 1
        %s7930 = smul.addr %s7929, 4
        %s7931 = smul.addr %s7930, 4
        %s7932 = scalar_lea.vmem %s4, %s7931
        // Predicated region
        $region45: #{_lambda_.8} parent=35 // pred_check
          %p7933 = pneg %p129
        $region46: #{_lambda_.8} parent=35 // pred_check_branch
          %7935 = sbr.rel (%p7933) target = $region48
        $region47: #{_lambda_.8} parent=35 // pred_region
          _
        $region48: #{_lambda_.8} parent=35 // pred_fallthru
          _
      $region36: #{_lambda_.8} parent=5 // pred_fallthru
        _
      %p7936 = scmp.le.s32.totalorder 2, %s12
      // Predicated region
      $region49: #{_lambda_.8} parent=5 // pred_check
        %p7937 = pneg %p7936
      $region50: #{_lambda_.8} parent=5 // pred_check_branch
        %7939 = sbr.rel (%p7937) target = $region52
      $region51: #{_lambda_.8} parent=5 // pred_region
        %s7940 = ssub.s32 %s12, 2
        // Predicated region
        $region53: #{_lambda_.8} parent=51 // pred_check
          %p7941 = pneg %p135
        $region54: #{_lambda_.8} parent=51 // pred_check_branch
          %7943 = sbr.rel (%p7941) target = $region56
        $region55: #{_lambda_.8} parent=51 // pred_region
          %p7944 = scmp.lt.s32.totalorder %s18, 1
          %s7945 = scalar_select %p7944, %s18, 1
          %s7946 = smul.addr %s7945, 4
          %s7947 = smul.addr %s7946, 4
          %s7948 = scalar_lea.vmem %s4, %s7947
        $region56: #{_lambda_.8} parent=51 // pred_fallthru
          _
      $region52: #{_lambda_.8} parent=5 // pred_fallthru
        _
    $region6: #{_lambda_.8} parent=1 // loop_footer
      %s16 = sadd.s32 1, %s12
    $region7: #{_lambda_.8} parent=1 // loop_footer_branch
      %11 = sbr.rel target = $region3
    $region8: #{_lambda_.8} parent=1 // loop_exit
      _
    %7949 = vsyncpa [#allocation3], 1
    %s7950 = scalar_lea.sflag [#allocation3], 1
    %7951 = vsyncpa %s7950, 1
    %7952 = vsyncpa [#allocation5], 1

</llo_original>
